<compile_context>
chip_gen: v7x
topology: tpu7x:2x2x1
jax: 0.10.0
libtpu: 0.0.40
codegen_flags: <defaults>
</compile_context>

<pallas_src>
import math

import jax
import jax.numpy as jnp
from jax import lax
from jax.experimental import pallas as pl
from jax.experimental.pallas import tpu as pltpu


# ----------------------------------------------------------------------------
# helpers: pad PyTorch-layout weights into lane-aligned gate blocks
# ----------------------------------------------------------------------------
def _round_up(x, m):
    return (x + m - 1) // m * m


# PyTorch gate order is (i, f, g, o); repack to (i, f, o, g) so the kernel can
# run one contiguous sigmoid over the first 3 gate blocks and one tanh on the
# last block.  Each gate block starts on a 128-lane boundary.
_GATE_PERM = (0, 1, 3, 2)


def _pack_gate_cols(w_t, hidden, hidden_pad):
    """(K, 4H) -> (K, 4*Hp), gate g's columns at [g*Hp, g*Hp + H), order i,f,o,g."""
    k = w_t.shape[0]
    w4 = w_t.reshape(k, 4, hidden)[:, _GATE_PERM, :]
    w4 = jnp.pad(w4, ((0, 0), (0, 0), (0, hidden_pad - hidden)))
    return w4.reshape(k, 4 * hidden_pad)


def _pad_rows(w, rows_pad):
    """Zero-pad the leading (contraction) dimension up to rows_pad."""
    return jnp.pad(w, ((0, rows_pad - w.shape[0]), (0, 0)))


# ----------------------------------------------------------------------------
# fused kernel: all LSTM layers + Linear + ReLU, fully VMEM resident
# ----------------------------------------------------------------------------
def _make_fused_kernel(num_layers, seq_len, batch_pad, hidden_pad):
    T, Bp, Hp = seq_len, batch_pad, hidden_pad
    unroll = True if T <= 16 else 8   # don't fully unroll long recurrences

    def kernel(*refs):
        # refs = [x2d, (wih, whh, b) * L, w_lin, b_lin, out, seq_scr, xp_scr, h, c]
        x_ref = refs[0]
        layer_refs = refs[1:1 + 3 * num_layers]
        wlin_ref = refs[1 + 3 * num_layers]
        blin_ref = refs[2 + 3 * num_layers]
        out_ref = refs[3 + 3 * num_layers]
        seq_scr, xp_scr, h_scr, c_scr = refs[4 + 3 * num_layers:]

        for layer in range(num_layers):
            wih_ref = layer_refs[3 * layer + 0]
            whh_ref = layer_refs[3 * layer + 1]
            b_ref = layer_refs[3 * layer + 2]
            is_last = layer == num_layers - 1
            in_ref = x_ref if layer == 0 else seq_scr

            # (1) Input projection for ALL timesteps as one batched matmul:
            #     (T*Bp, Din) @ (Din, 4Hp), f32 accumulate, bias added once,
            #     stored bf16.  Keeps the recurrent critical path to one dot.
            xp = jnp.dot(in_ref[...], wih_ref[...],
                         preferred_element_type=jnp.float32) + b_ref[...]
            xp_scr[...] = xp.astype(xp_scr.dtype)

            # (2) Sequential recurrence; h/c resident in f32 VMEM scratch.
            h_scr[...] = jnp.zeros_like(h_scr)
            c_scr[...] = jnp.zeros_like(c_scr)

            def rec_body(t, carry, whh_ref=whh_ref, is_last=is_last):
                row = pl.multiple_of(t * Bp, Bp)
                gates = (
                    xp_scr[pl.ds(row, Bp), :].astype(jnp.float32)
                    + jnp.dot(h_scr[...].astype(whh_ref.dtype), whh_ref[...],
                              preferred_element_type=jnp.float32)
                )                                               # (Bp, 4Hp) f32
                # gate layout (i, f, o, g): one wide sigmoid + one tanh (EUP).
                ifo = jax.nn.sigmoid(gates[:, :3 * Hp])
                g_g = jnp.tanh(gates[:, 3 * Hp:])
                i_g = ifo[:, 0 * Hp:1 * Hp]
                f_g = ifo[:, 1 * Hp:2 * Hp]
                o_g = ifo[:, 2 * Hp:3 * Hp]
                c_new = f_g * c_scr[...] + i_g * g_g
                h_new = o_g * jnp.tanh(c_new)
                c_scr[...] = c_new
                h_scr[...] = h_new
                if not is_last:
                    # Feed the next layer from VMEM (never touches HBM).
                    seq_scr[pl.ds(row, Bp), :] = h_new.astype(seq_scr.dtype)
                return carry

            lax.fori_loop(0, T, rec_body, 0, unroll=unroll)

        # (3) Fused Linear + ReLU on the last layer's final hidden state.
        y = jnp.dot(h_scr[...].astype(wlin_ref.dtype), wlin_ref[...],
                    preferred_element_type=jnp.float32) + blin_ref[...]
        out_ref[...] = jnp.maximum(y, 0.0).astype(out_ref.dtype)

    return kernel


# ----------------------------------------------------------------------------
# wrapper
# ----------------------------------------------------------------------------
@jax.jit
def lstm_without_projection_forward(x, params):
    """x: (B, T, input_dim) batch_first (as the PyTorch module). -> (B, proj_dim)."""
    B, T, Din = x.shape
    lstm_params = params["lstm"]
    num_layers = len(lstm_params)
    H = lstm_params[0]["w_hh"].shape[1]
    P = params["linear"]["w"].shape[0]

    Hp = _round_up(H, 128)
    Dp = _round_up(Din, 128)
    Pp = _round_up(P, 128)
    # Pad batch to 16 rows so per-timestep slices of the flattened (T*Bp, .)
    # bf16 buffers are sublane-tile aligned (and the VPU/EUP tiles are filled).
    Bp = _round_up(max(B, 1), 16)

    cdt = jnp.bfloat16   # MXU compute / storage dtype (f32 accumulation kept)

    # time-major, zero-padded, flattened to a single 2-D slab for the batched
    # projection matmul.  Padded lanes/rows are provably zero-preserving.
    x_tbd = jnp.transpose(x, (1, 0, 2)).astype(jnp.float32)       # (T, B, Din)
    x_pad = jnp.pad(x_tbd, ((0, 0), (0, Bp - B), (0, Dp - Din)))
    x_2d = x_pad.astype(cdt).reshape(T * Bp, Dp)                  # (T*Bp, Dp)

    kernel_inputs = [x_2d]
    for layer, lp in enumerate(lstm_params):
        rows = Dp if layer == 0 else Hp
        wih_t = jnp.transpose(lp["w_ih"]).astype(jnp.float32)     # (Din_l, 4H)
        whh_t = jnp.transpose(lp["w_hh"]).astype(jnp.float32)     # (H, 4H)
        wih_p = _pad_rows(_pack_gate_cols(wih_t, H, Hp), rows).astype(cdt)
        whh_p = _pad_rows(_pack_gate_cols(whh_t, H, Hp), Hp).astype(cdt)
        bias = (lp["b_ih"] + lp["b_hh"]).astype(jnp.float32).reshape(1, 4 * H)
        bias_p = _pack_gate_cols(bias, H, Hp)                     # f32 (1, 4Hp)
        kernel_inputs += [wih_p, whh_p, bias_p]

    wlin_t = jnp.transpose(params["linear"]["w"]).astype(jnp.float32)   # (H, P)
    wlin_p = jnp.pad(wlin_t, ((0, Hp - H), (0, Pp - P))).astype(cdt)
    blin_p = jnp.pad(params["linear"]["b"].astype(jnp.float32),
                     (0, Pp - P)).reshape(1, Pp)
    kernel_inputs += [wlin_p, blin_p]

    scratch_shapes = [
        pltpu.VMEM((T * Bp, Hp), cdt),          # inter-layer hidden sequence
        pltpu.VMEM((T * Bp, 4 * Hp), cdt),      # precomputed input projections
        pltpu.VMEM((Bp, Hp), jnp.float32),      # h state
        pltpu.VMEM((Bp, Hp), jnp.float32),      # c state
    ]

    # Explicit scoped-VMEM budget from the actual resident footprint.
    def nbytes(shape, dtype):
        return math.prod(shape) * jnp.dtype(dtype).itemsize

    footprint = sum(nbytes(a.shape, a.dtype) for a in kernel_inputs)
    footprint += nbytes((Bp, Pp), jnp.float32)                    # output
    footprint += (nbytes((T * Bp, Hp), cdt) + nbytes((T * Bp, 4 * Hp), cdt)
                  + 2 * nbytes((Bp, Hp), jnp.float32))            # scratch
    vmem_limit = int(min(max(2 * footprint + (2 << 20), 32 << 20), 64 << 20))

    kernel = _make_fused_kernel(num_layers, T, Bp, Hp)
    vmem_spec = pl.BlockSpec(memory_space=pltpu.MemorySpace.VMEM)
    out_pad = pl.pallas_call(
        kernel,
        out_shape=jax.ShapeDtypeStruct((Bp, Pp), jnp.float32),
        in_specs=[vmem_spec] * len(kernel_inputs),   # single block, no double-buffer
        out_specs=vmem_spec,
        scratch_shapes=scratch_shapes,
        compiler_params=pltpu.CompilerParams(vmem_limit_bytes=vmem_limit),
    )(*kernel_inputs)
    return out_pad[:B, :P]


# ----------------------------------------------------------------------------
# pure-JAX reference (f32) for correctness checking
# ----------------------------------------------------------------------------
def reference_forward(x, params):
    B = x.shape[0]
    H = params["lstm"][0]["w_hh"].shape[1]
    h_seq = jnp.transpose(x, (1, 0, 2)).astype(jnp.float32)   # (T, B, D)
    h_last = None
    for lp in params["lstm"]:
        wih_t, whh_t = lp["w_ih"].T, lp["w_hh"].T
        b = lp["b_ih"] + lp["b_hh"]

        def step(carry, x_t, wih_t=wih_t, whh_t=whh_t, b=b):
            h, c = carry
            gates = x_t @ wih_t + h @ whh_t + b
            i, f, g, o = jnp.split(gates, 4, axis=-1)
            i, f, o = jax.nn.sigmoid(i), jax.nn.sigmoid(f), jax.nn.sigmoid(o)
            g = jnp.tanh(g)
            c = f * c + i * g
            h = o * jnp.tanh(c)
            return (h, c), h

        init = (jnp.zeros((B, H), jnp.float32), jnp.zeros((B, H), jnp.float32))
        (h_last, _), h_seq = lax.scan(step, init, h_seq)
    y = h_last @ params["linear"]["w"].T + params["linear"]["b"]
    return jnp.maximum(y, 0.0)


# ----------------------------------------------------------------------------
# parameter init (PyTorch uniform(-1/sqrt(H), 1/sqrt(H)) style)
# ----------------------------------------------------------------------------
def init_params(key, input_dim, lstm_dim, proj_dim, num_lstm_layers):
    params = {"lstm": [], "linear": {}}
    bound = 1.0 / math.sqrt(lstm_dim)
    for layer in range(num_lstm_layers):
        d_in = input_dim if layer == 0 else lstm_dim
        key, k1, k2, k3, k4 = jax.random.split(key, 5)
        params["lstm"].append({
            "w_ih": jax.random.uniform(k1, (4 * lstm_dim, d_in), jnp.float32, -bound, bound),
            "w_hh": jax.random.uniform(k2, (4 * lstm_dim, lstm_dim), jnp.float32, -bound, bound),
            "b_ih": jax.random.uniform(k3, (4 * lstm_dim,), jnp.float32, -bound, bound),
            "b_hh": jax.random.uniform(k4, (4 * lstm_dim,), jnp.float32, -bound, bound),
        })
    key, k1, k2 = jax.random.split(key, 3)
    params["linear"]["w"] = jax.random.uniform(
        k1, (proj_dim, lstm_dim), jnp.float32, -bound, bound)
    params["linear"]["b"] = jax.random.uniform(
        k2, (proj_dim,), jnp.float32, -bound, bound)
    return params


if __name__ == "__main__":
    B, T = 2, 8
    INPUT_DIM, LSTM_DIM, PROJ_DIM, NUM_LAYERS = 16, 32, 24, 2

    key = jax.random.PRNGKey(0)
    key, xk = jax.random.split(key)
    x = jax.random.normal(xk, (B, T, INPUT_DIM), jnp.float32)
    params = init_params(key, INPUT_DIM, LSTM_DIM, PROJ_DIM, NUM_LAYERS)

    out = jax.block_until_ready(lstm_without_projection_forward(x, params))

    assert out.shape == (B, PROJ_DIM), out.shape
    assert out.dtype == jnp.float32
    assert bool(jnp.all(out >= 0.0))          # ReLU output

    ref = reference_forward(x, params)        # bf16 weights => loose tolerance
    assert bool(jnp.allclose(out, ref, atol=5e-2, rtol=5e-2)), (
        float(jnp.max(jnp.abs(out - ref))))

    print("KERNEL_OK")
</pallas_src>

<mosaic_0001>
module attributes {stable_mosaic.version = 11 : i64} {
  func.func @kernel(%arg0: memref<128x128xbf16, #tpu.memory_space<vmem>>, %arg1: memref<128x512xbf16, #tpu.memory_space<vmem>>, %arg2: memref<128x512xbf16, #tpu.memory_space<vmem>>, %arg3: memref<1x512xf32, #tpu.memory_space<vmem>>, %arg4: memref<128x512xbf16, #tpu.memory_space<vmem>>, %arg5: memref<128x512xbf16, #tpu.memory_space<vmem>>, %arg6: memref<1x512xf32, #tpu.memory_space<vmem>>, %arg7: memref<128x128xbf16, #tpu.memory_space<vmem>>, %arg8: memref<1x128xf32, #tpu.memory_space<vmem>>, %arg9: memref<16x128xf32, #tpu.memory_space<vmem>>, %arg10: memref<128x128xbf16, #tpu.memory_space<vmem>>, %arg11: memref<128x512xbf16, #tpu.memory_space<vmem>>, %arg12: memref<16x128xf32, #tpu.memory_space<vmem>>, %arg13: memref<16x128xf32, #tpu.memory_space<vmem>>) attributes {dimension_semantics = [], scalar_prefetch = 0 : i64, scratch_operands = 4 : i64, tpu.core_type = #tpu.core_type<tc>} {
    %c0 = arith.constant 0 : index
    %c0_0 = arith.constant 0 : index
    %0 = vector.load %arg0[%c0, %c0_0] : memref<128x128xbf16, #tpu.memory_space<vmem>>, vector<128x128xbf16>
    %c0_1 = arith.constant 0 : index
    %c0_2 = arith.constant 0 : index
    %1 = vector.load %arg1[%c0_1, %c0_2] : memref<128x512xbf16, #tpu.memory_space<vmem>>, vector<128x512xbf16>
    %cst = arith.constant dense<0.000000e+00> : vector<128x512xf32>
    %2 = tpu.matmul %0, %1, %cst {dimension_numbers = #tpu.dot_dimension_numbers<[1], [0], [0], [1], [0, 0, 1, 1], [], []>} : vector<128x128xbf16>, vector<128x512xbf16>, vector<128x512xf32> -> vector<128x512xf32>
    %c0_3 = arith.constant 0 : index
    %c0_4 = arith.constant 0 : index
    %3 = vector.load %arg3[%c0_3, %c0_4] : memref<1x512xf32, #tpu.memory_space<vmem>>, vector<1x512xf32>
    %4 = vector.broadcast %3 : vector<1x512xf32> to vector<128x512xf32>
    %5 = arith.addf %2, %4 : vector<128x512xf32>
    %6 = arith.truncf %5 : vector<128x512xf32> to vector<128x512xbf16>
    %c0_5 = arith.constant 0 : index
    %c0_6 = arith.constant 0 : index
    %7 = vector.load %arg11[%c0_5, %c0_6] : memref<128x512xbf16, #tpu.memory_space<vmem>>, vector<128x512xbf16>
    tpu.vector_store %arg11[%c0_5, %c0_6], %6 {strides = array<i32>} : memref<128x512xbf16, #tpu.memory_space<vmem>>, vector<128x512xbf16>,
    %cst_7 = arith.constant 0.000000e+00 : f32
    %8 = vector.broadcast %cst_7 : f32 to vector<16x128xf32>
    %c0_8 = arith.constant 0 : index
    %c0_9 = arith.constant 0 : index
    %9 = vector.load %arg12[%c0_8, %c0_9] : memref<16x128xf32, #tpu.memory_space<vmem>>, vector<16x128xf32>
    tpu.vector_store %arg12[%c0_8, %c0_9], %8 {strides = array<i32>} : memref<16x128xf32, #tpu.memory_space<vmem>>, vector<16x128xf32>,
    %cst_10 = arith.constant 0.000000e+00 : f32
    %10 = vector.broadcast %cst_10 : f32 to vector<16x128xf32>
    %c0_11 = arith.constant 0 : index
    %c0_12 = arith.constant 0 : index
    %11 = vector.load %arg13[%c0_11, %c0_12] : memref<16x128xf32, #tpu.memory_space<vmem>>, vector<16x128xf32>
    tpu.vector_store %arg13[%c0_11, %c0_12], %10 {strides = array<i32>} : memref<16x128xf32, #tpu.memory_space<vmem>>, vector<16x128xf32>,
    %c0_i32 = arith.constant 0 : i32
    %c16_i32 = arith.constant 16 : i32
    %12 = arith.muli %c0_i32, %c16_i32 : i32
    %13 = tpu.assume_multiple %12, 16 : i32
    %14 = arith.index_cast %13 : i32 to index
    %c0_13 = arith.constant 0 : index
    %15 = vector.load %arg11[%14, %c0_13] : memref<128x512xbf16, #tpu.memory_space<vmem>>, vector<16x512xbf16>
    %16 = arith.extf %15 : vector<16x512xbf16> to vector<16x512xf32>
    %c0_14 = arith.constant 0 : index
    %c0_15 = arith.constant 0 : index
    %17 = vector.load %arg12[%c0_14, %c0_15] : memref<16x128xf32, #tpu.memory_space<vmem>>, vector<16x128xf32>
    %18 = arith.truncf %17 : vector<16x128xf32> to vector<16x128xbf16>
    %c0_16 = arith.constant 0 : index
    %c0_17 = arith.constant 0 : index
    %19 = vector.load %arg2[%c0_16, %c0_17] : memref<128x512xbf16, #tpu.memory_space<vmem>>, vector<128x512xbf16>
    %cst_18 = arith.constant dense<0.000000e+00> : vector<16x512xf32>
    %20 = tpu.matmul %18, %19, %cst_18 {dimension_numbers = #tpu.dot_dimension_numbers<[1], [0], [0], [1], [0, 0, 1, 1], [], []>} : vector<16x128xbf16>, vector<128x512xbf16>, vector<16x512xf32> -> vector<16x512xf32>
    %21 = arith.addf %16, %20 : vector<16x512xf32>
    %22 = vector.extract_strided_slice %21 {offsets = [0, 0], sizes = [16, 384], strides = [1, 1]} : vector<16x512xf32> to vector<16x384xf32>
    %23 = arith.negf %22 : vector<16x384xf32>
    %24 = math.exp %23 : vector<16x384xf32>
    %cst_19 = arith.constant 1.000000e+00 : f32
    %25 = vector.broadcast %cst_19 : f32 to vector<16x384xf32>
    %26 = arith.addf %25, %24 : vector<16x384xf32>
    %27 = arith.divf %25, %26 : vector<16x384xf32>
    %28 = vector.extract_strided_slice %21 {offsets = [0, 384], sizes = [16, 128], strides = [1, 1]} : vector<16x512xf32> to vector<16x128xf32>
    %29 = math.tanh %28 : vector<16x128xf32>
    %30 = vector.extract_strided_slice %27 {offsets = [0, 0], sizes = [16, 128], strides = [1, 1]} : vector<16x384xf32> to vector<16x128xf32>
    %31 = vector.extract_strided_slice %27 {offsets = [0, 128], sizes = [16, 128], strides = [1, 1]} : vector<16x384xf32> to vector<16x128xf32>
    %32 = vector.extract_strided_slice %27 {offsets = [0, 256], sizes = [16, 128], strides = [1, 1]} : vector<16x384xf32> to vector<16x128xf32>
    %c0_20 = arith.constant 0 : index
    %c0_21 = arith.constant 0 : index
    %33 = vector.load %arg13[%c0_20, %c0_21] : memref<16x128xf32, #tpu.memory_space<vmem>>, vector<16x128xf32>
    %34 = arith.mulf %31, %33 : vector<16x128xf32>
    %35 = arith.mulf %30, %29 : vector<16x128xf32>
    %36 = arith.addf %34, %35 : vector<16x128xf32>
    %37 = math.tanh %36 : vector<16x128xf32>
    %38 = arith.mulf %32, %37 : vector<16x128xf32>
    %c0_22 = arith.constant 0 : index
    %c0_23 = arith.constant 0 : index
    %39 = vector.load %arg13[%c0_22, %c0_23] : memref<16x128xf32, #tpu.memory_space<vmem>>, vector<16x128xf32>
    tpu.vector_store %arg13[%c0_22, %c0_23], %36 {strides = array<i32>} : memref<16x128xf32, #tpu.memory_space<vmem>>, vector<16x128xf32>,
    %c0_24 = arith.constant 0 : index
    %c0_25 = arith.constant 0 : index
    %40 = vector.load %arg12[%c0_24, %c0_25] : memref<16x128xf32, #tpu.memory_space<vmem>>, vector<16x128xf32>
    tpu.vector_store %arg12[%c0_24, %c0_25], %38 {strides = array<i32>} : memref<16x128xf32, #tpu.memory_space<vmem>>, vector<16x128xf32>,
    %41 = arith.truncf %38 : vector<16x128xf32> to vector<16x128xbf16>
    %42 = arith.index_cast %13 : i32 to index
    %c0_26 = arith.constant 0 : index
    %43 = vector.load %arg10[%42, %c0_26] : memref<128x128xbf16, #tpu.memory_space<vmem>>, vector<16x128xbf16>
    tpu.vector_store %arg10[%42, %c0_26], %41 {strides = array<i32>} : memref<128x128xbf16, #tpu.memory_space<vmem>>, vector<16x128xbf16>,
    %c1_i32 = arith.constant 1 : i32
    %c16_i32_27 = arith.constant 16 : i32
    %44 = arith.muli %c1_i32, %c16_i32_27 : i32
    %45 = tpu.assume_multiple %44, 16 : i32
    %46 = arith.index_cast %45 : i32 to index
    %c0_28 = arith.constant 0 : index
    %47 = vector.load %arg11[%46, %c0_28] : memref<128x512xbf16, #tpu.memory_space<vmem>>, vector<16x512xbf16>
    %48 = arith.extf %47 : vector<16x512xbf16> to vector<16x512xf32>
    %c0_29 = arith.constant 0 : index
    %c0_30 = arith.constant 0 : index
    %49 = vector.load %arg12[%c0_29, %c0_30] : memref<16x128xf32, #tpu.memory_space<vmem>>, vector<16x128xf32>
    %50 = arith.truncf %49 : vector<16x128xf32> to vector<16x128xbf16>
    %c0_31 = arith.constant 0 : index
    %c0_32 = arith.constant 0 : index
    %51 = vector.load %arg2[%c0_31, %c0_32] : memref<128x512xbf16, #tpu.memory_space<vmem>>, vector<128x512xbf16>
    %cst_33 = arith.constant dense<0.000000e+00> : vector<16x512xf32>
    %52 = tpu.matmul %50, %51, %cst_33 {dimension_numbers = #tpu.dot_dimension_numbers<[1], [0], [0], [1], [0, 0, 1, 1], [], []>} : vector<16x128xbf16>, vector<128x512xbf16>, vector<16x512xf32> -> vector<16x512xf32>
    %53 = arith.addf %48, %52 : vector<16x512xf32>
    %54 = vector.extract_strided_slice %53 {offsets = [0, 0], sizes = [16, 384], strides = [1, 1]} : vector<16x512xf32> to vector<16x384xf32>
    %55 = arith.negf %54 : vector<16x384xf32>
    %56 = math.exp %55 : vector<16x384xf32>
    %cst_34 = arith.constant 1.000000e+00 : f32
    %57 = vector.broadcast %cst_34 : f32 to vector<16x384xf32>
    %58 = arith.addf %57, %56 : vector<16x384xf32>
    %59 = arith.divf %57, %58 : vector<16x384xf32>
    %60 = vector.extract_strided_slice %53 {offsets = [0, 384], sizes = [16, 128], strides = [1, 1]} : vector<16x512xf32> to vector<16x128xf32>
    %61 = math.tanh %60 : vector<16x128xf32>
    %62 = vector.extract_strided_slice %59 {offsets = [0, 0], sizes = [16, 128], strides = [1, 1]} : vector<16x384xf32> to vector<16x128xf32>
    %63 = vector.extract_strided_slice %59 {offsets = [0, 128], sizes = [16, 128], strides = [1, 1]} : vector<16x384xf32> to vector<16x128xf32>
    %64 = vector.extract_strided_slice %59 {offsets = [0, 256], sizes = [16, 128], strides = [1, 1]} : vector<16x384xf32> to vector<16x128xf32>
    %c0_35 = arith.constant 0 : index
    %c0_36 = arith.constant 0 : index
    %65 = vector.load %arg13[%c0_35, %c0_36] : memref<16x128xf32, #tpu.memory_space<vmem>>, vector<16x128xf32>
    %66 = arith.mulf %63, %65 : vector<16x128xf32>
    %67 = arith.mulf %62, %61 : vector<16x128xf32>
    %68 = arith.addf %66, %67 : vector<16x128xf32>
    %69 = math.tanh %68 : vector<16x128xf32>
    %70 = arith.mulf %64, %69 : vector<16x128xf32>
    %c0_37 = arith.constant 0 : index
    %c0_38 = arith.constant 0 : index
    %71 = vector.load %arg13[%c0_37, %c0_38] : memref<16x128xf32, #tpu.memory_space<vmem>>, vector<16x128xf32>
    tpu.vector_store %arg13[%c0_37, %c0_38], %68 {strides = array<i32>} : memref<16x128xf32, #tpu.memory_space<vmem>>, vector<16x128xf32>,
    %c0_39 = arith.constant 0 : index
    %c0_40 = arith.constant 0 : index
    %72 = vector.load %arg12[%c0_39, %c0_40] : memref<16x128xf32, #tpu.memory_space<vmem>>, vector<16x128xf32>
    tpu.vector_store %arg12[%c0_39, %c0_40], %70 {strides = array<i32>} : memref<16x128xf32, #tpu.memory_space<vmem>>, vector<16x128xf32>,
    %73 = arith.truncf %70 : vector<16x128xf32> to vector<16x128xbf16>
    %74 = arith.index_cast %45 : i32 to index
    %c0_41 = arith.constant 0 : index
    %75 = vector.load %arg10[%74, %c0_41] : memref<128x128xbf16, #tpu.memory_space<vmem>>, vector<16x128xbf16>
    tpu.vector_store %arg10[%74, %c0_41], %73 {strides = array<i32>} : memref<128x128xbf16, #tpu.memory_space<vmem>>, vector<16x128xbf16>,
    %c2_i32 = arith.constant 2 : i32
    %c16_i32_42 = arith.constant 16 : i32
    %76 = arith.muli %c2_i32, %c16_i32_42 : i32
    %77 = tpu.assume_multiple %76, 16 : i32
    %78 = arith.index_cast %77 : i32 to index
    %c0_43 = arith.constant 0 : index
    %79 = vector.load %arg11[%78, %c0_43] : memref<128x512xbf16, #tpu.memory_space<vmem>>, vector<16x512xbf16>
    %80 = arith.extf %79 : vector<16x512xbf16> to vector<16x512xf32>
    %c0_44 = arith.constant 0 : index
    %c0_45 = arith.constant 0 : index
    %81 = vector.load %arg12[%c0_44, %c0_45] : memref<16x128xf32, #tpu.memory_space<vmem>>, vector<16x128xf32>
    %82 = arith.truncf %81 : vector<16x128xf32> to vector<16x128xbf16>
    %c0_46 = arith.constant 0 : index
    %c0_47 = arith.constant 0 : index
    %83 = vector.load %arg2[%c0_46, %c0_47] : memref<128x512xbf16, #tpu.memory_space<vmem>>, vector<128x512xbf16>
    %cst_48 = arith.constant dense<0.000000e+00> : vector<16x512xf32>
    %84 = tpu.matmul %82, %83, %cst_48 {dimension_numbers = #tpu.dot_dimension_numbers<[1], [0], [0], [1], [0, 0, 1, 1], [], []>} : vector<16x128xbf16>, vector<128x512xbf16>, vector<16x512xf32> -> vector<16x512xf32>
    %85 = arith.addf %80, %84 : vector<16x512xf32>
    %86 = vector.extract_strided_slice %85 {offsets = [0, 0], sizes = [16, 384], strides = [1, 1]} : vector<16x512xf32> to vector<16x384xf32>
    %87 = arith.negf %86 : vector<16x384xf32>
    %88 = math.exp %87 : vector<16x384xf32>
    %cst_49 = arith.constant 1.000000e+00 : f32
    %89 = vector.broadcast %cst_49 : f32 to vector<16x384xf32>
    %90 = arith.addf %89, %88 : vector<16x384xf32>
    %91 = arith.divf %89, %90 : vector<16x384xf32>
    %92 = vector.extract_strided_slice %85 {offsets = [0, 384], sizes = [16, 128], strides = [1, 1]} : vector<16x512xf32> to vector<16x128xf32>
    %93 = math.tanh %92 : vector<16x128xf32>
    %94 = vector.extract_strided_slice %91 {offsets = [0, 0], sizes = [16, 128], strides = [1, 1]} : vector<16x384xf32> to vector<16x128xf32>
    %95 = vector.extract_strided_slice %91 {offsets = [0, 128], sizes = [16, 128], strides = [1, 1]} : vector<16x384xf32> to vector<16x128xf32>
    %96 = vector.extract_strided_slice %91 {offsets = [0, 256], sizes = [16, 128], strides = [1, 1]} : vector<16x384xf32> to vector<16x128xf32>
    %c0_50 = arith.constant 0 : index
    %c0_51 = arith.constant 0 : index
    %97 = vector.load %arg13[%c0_50, %c0_51] : memref<16x128xf32, #tpu.memory_space<vmem>>, vector<16x128xf32>
    %98 = arith.mulf %95, %97 : vector<16x128xf32>
    %99 = arith.mulf %94, %93 : vector<16x128xf32>
    %100 = arith.addf %98, %99 : vector<16x128xf32>
    %101 = math.tanh %100 : vector<16x128xf32>
    %102 = arith.mulf %96, %101 : vector<16x128xf32>
    %c0_52 = arith.constant 0 : index
    %c0_53 = arith.constant 0 : index
    %103 = vector.load %arg13[%c0_52, %c0_53] : memref<16x128xf32, #tpu.memory_space<vmem>>, vector<16x128xf32>
    tpu.vector_store %arg13[%c0_52, %c0_53], %100 {strides = array<i32>} : memref<16x128xf32, #tpu.memory_space<vmem>>, vector<16x128xf32>,
    %c0_54 = arith.constant 0 : index
    %c0_55 = arith.constant 0 : index
    %104 = vector.load %arg12[%c0_54, %c0_55] : memref<16x128xf32, #tpu.memory_space<vmem>>, vector<16x128xf32>
    tpu.vector_store %arg12[%c0_54, %c0_55], %102 {strides = array<i32>} : memref<16x128xf32, #tpu.memory_space<vmem>>, vector<16x128xf32>,
    %105 = arith.truncf %102 : vector<16x128xf32> to vector<16x128xbf16>
    %106 = arith.index_cast %77 : i32 to index
    %c0_56 = arith.constant 0 : index
    %107 = vector.load %arg10[%106, %c0_56] : memref<128x128xbf16, #tpu.memory_space<vmem>>, vector<16x128xbf16>
    tpu.vector_store %arg10[%106, %c0_56], %105 {strides = array<i32>} : memref<128x128xbf16, #tpu.memory_space<vmem>>, vector<16x128xbf16>,
    %c3_i32 = arith.constant 3 : i32
    %c16_i32_57 = arith.constant 16 : i32
    %108 = arith.muli %c3_i32, %c16_i32_57 : i32
    %109 = tpu.assume_multiple %108, 16 : i32
    %110 = arith.index_cast %109 : i32 to index
    %c0_58 = arith.constant 0 : index
    %111 = vector.load %arg11[%110, %c0_58] : memref<128x512xbf16, #tpu.memory_space<vmem>>, vector<16x512xbf16>
    %112 = arith.extf %111 : vector<16x512xbf16> to vector<16x512xf32>
    %c0_59 = arith.constant 0 : index
    %c0_60 = arith.constant 0 : index
    %113 = vector.load %arg12[%c0_59, %c0_60] : memref<16x128xf32, #tpu.memory_space<vmem>>, vector<16x128xf32>
    %114 = arith.truncf %113 : vector<16x128xf32> to vector<16x128xbf16>
    %c0_61 = arith.constant 0 : index
    %c0_62 = arith.constant 0 : index
    %115 = vector.load %arg2[%c0_61, %c0_62] : memref<128x512xbf16, #tpu.memory_space<vmem>>, vector<128x512xbf16>
    %cst_63 = arith.constant dense<0.000000e+00> : vector<16x512xf32>
    %116 = tpu.matmul %114, %115, %cst_63 {dimension_numbers = #tpu.dot_dimension_numbers<[1], [0], [0], [1], [0, 0, 1, 1], [], []>} : vector<16x128xbf16>, vector<128x512xbf16>, vector<16x512xf32> -> vector<16x512xf32>
    %117 = arith.addf %112, %116 : vector<16x512xf32>
    %118 = vector.extract_strided_slice %117 {offsets = [0, 0], sizes = [16, 384], strides = [1, 1]} : vector<16x512xf32> to vector<16x384xf32>
    %119 = arith.negf %118 : vector<16x384xf32>
    %120 = math.exp %119 : vector<16x384xf32>
    %cst_64 = arith.constant 1.000000e+00 : f32
    %121 = vector.broadcast %cst_64 : f32 to vector<16x384xf32>
    %122 = arith.addf %121, %120 : vector<16x384xf32>
    %123 = arith.divf %121, %122 : vector<16x384xf32>
    %124 = vector.extract_strided_slice %117 {offsets = [0, 384], sizes = [16, 128], strides = [1, 1]} : vector<16x512xf32> to vector<16x128xf32>
    %125 = math.tanh %124 : vector<16x128xf32>
    %126 = vector.extract_strided_slice %123 {offsets = [0, 0], sizes = [16, 128], strides = [1, 1]} : vector<16x384xf32> to vector<16x128xf32>
    %127 = vector.extract_strided_slice %123 {offsets = [0, 128], sizes = [16, 128], strides = [1, 1]} : vector<16x384xf32> to vector<16x128xf32>
    %128 = vector.extract_strided_slice %123 {offsets = [0, 256], sizes = [16, 128], strides = [1, 1]} : vector<16x384xf32> to vector<16x128xf32>
    %c0_65 = arith.constant 0 : index
    %c0_66 = arith.constant 0 : index
    %129 = vector.load %arg13[%c0_65, %c0_66] : memref<16x128xf32, #tpu.memory_space<vmem>>, vector<16x128xf32>
    %130 = arith.mulf %127, %129 : vector<16x128xf32>
    %131 = arith.mulf %126, %125 : vector<16x128xf32>
    %132 = arith.addf %130, %131 : vector<16x128xf32>
    %133 = math.tanh %132 : vector<16x128xf32>
    %134 = arith.mulf %128, %133 : vector<16x128xf32>
    %c0_67 = arith.constant 0 : index
    %c0_68 = arith.constant 0 : index
    %135 = vector.load %arg13[%c0_67, %c0_68] : memref<16x128xf32, #tpu.memory_space<vmem>>, vector<16x128xf32>
    tpu.vector_store %arg13[%c0_67, %c0_68], %132 {strides = array<i32>} : memref<16x128xf32, #tpu.memory_space<vmem>>, vector<16x128xf32>,
    %c0_69 = arith.constant 0 : index
    %c0_70 = arith.constant 0 : index
    %136 = vector.load %arg12[%c0_69, %c0_70] : memref<16x128xf32, #tpu.memory_space<vmem>>, vector<16x128xf32>
    tpu.vector_store %arg12[%c0_69, %c0_70], %134 {strides = array<i32>} : memref<16x128xf32, #tpu.memory_space<vmem>>, vector<16x128xf32>,
    %137 = arith.truncf %134 : vector<16x128xf32> to vector<16x128xbf16>
    %138 = arith.index_cast %109 : i32 to index
    %c0_71 = arith.constant 0 : index
    %139 = vector.load %arg10[%138, %c0_71] : memref<128x128xbf16, #tpu.memory_space<vmem>>, vector<16x128xbf16>
    tpu.vector_store %arg10[%138, %c0_71], %137 {strides = array<i32>} : memref<128x128xbf16, #tpu.memory_space<vmem>>, vector<16x128xbf16>,
    %c4_i32 = arith.constant 4 : i32
    %c16_i32_72 = arith.constant 16 : i32
    %140 = arith.muli %c4_i32, %c16_i32_72 : i32
    %141 = tpu.assume_multiple %140, 16 : i32
    %142 = arith.index_cast %141 : i32 to index
    %c0_73 = arith.constant 0 : index
    %143 = vector.load %arg11[%142, %c0_73] : memref<128x512xbf16, #tpu.memory_space<vmem>>, vector<16x512xbf16>
    %144 = arith.extf %143 : vector<16x512xbf16> to vector<16x512xf32>
    %c0_74 = arith.constant 0 : index
    %c0_75 = arith.constant 0 : index
    %145 = vector.load %arg12[%c0_74, %c0_75] : memref<16x128xf32, #tpu.memory_space<vmem>>, vector<16x128xf32>
    %146 = arith.truncf %145 : vector<16x128xf32> to vector<16x128xbf16>
    %c0_76 = arith.constant 0 : index
    %c0_77 = arith.constant 0 : index
    %147 = vector.load %arg2[%c0_76, %c0_77] : memref<128x512xbf16, #tpu.memory_space<vmem>>, vector<128x512xbf16>
    %cst_78 = arith.constant dense<0.000000e+00> : vector<16x512xf32>
    %148 = tpu.matmul %146, %147, %cst_78 {dimension_numbers = #tpu.dot_dimension_numbers<[1], [0], [0], [1], [0, 0, 1, 1], [], []>} : vector<16x128xbf16>, vector<128x512xbf16>, vector<16x512xf32> -> vector<16x512xf32>
    %149 = arith.addf %144, %148 : vector<16x512xf32>
    %150 = vector.extract_strided_slice %149 {offsets = [0, 0], sizes = [16, 384], strides = [1, 1]} : vector<16x512xf32> to vector<16x384xf32>
    %151 = arith.negf %150 : vector<16x384xf32>
    %152 = math.exp %151 : vector<16x384xf32>
    %cst_79 = arith.constant 1.000000e+00 : f32
    %153 = vector.broadcast %cst_79 : f32 to vector<16x384xf32>
    %154 = arith.addf %153, %152 : vector<16x384xf32>
    %155 = arith.divf %153, %154 : vector<16x384xf32>
    %156 = vector.extract_strided_slice %149 {offsets = [0, 384], sizes = [16, 128], strides = [1, 1]} : vector<16x512xf32> to vector<16x128xf32>
    %157 = math.tanh %156 : vector<16x128xf32>
    %158 = vector.extract_strided_slice %155 {offsets = [0, 0], sizes = [16, 128], strides = [1, 1]} : vector<16x384xf32> to vector<16x128xf32>
    %159 = vector.extract_strided_slice %155 {offsets = [0, 128], sizes = [16, 128], strides = [1, 1]} : vector<16x384xf32> to vector<16x128xf32>
    %160 = vector.extract_strided_slice %155 {offsets = [0, 256], sizes = [16, 128], strides = [1, 1]} : vector<16x384xf32> to vector<16x128xf32>
    %c0_80 = arith.constant 0 : index
    %c0_81 = arith.constant 0 : index
    %161 = vector.load %arg13[%c0_80, %c0_81] : memref<16x128xf32, #tpu.memory_space<vmem>>, vector<16x128xf32>
    %162 = arith.mulf %159, %161 : vector<16x128xf32>
    %163 = arith.mulf %158, %157 : vector<16x128xf32>
    %164 = arith.addf %162, %163 : vector<16x128xf32>
    %165 = math.tanh %164 : vector<16x128xf32>
    %166 = arith.mulf %160, %165 : vector<16x128xf32>
    %c0_82 = arith.constant 0 : index
    %c0_83 = arith.constant 0 : index
    %167 = vector.load %arg13[%c0_82, %c0_83] : memref<16x128xf32, #tpu.memory_space<vmem>>, vector<16x128xf32>
    tpu.vector_store %arg13[%c0_82, %c0_83], %164 {strides = array<i32>} : memref<16x128xf32, #tpu.memory_space<vmem>>, vector<16x128xf32>,
    %c0_84 = arith.constant 0 : index
    %c0_85 = arith.constant 0 : index
    %168 = vector.load %arg12[%c0_84, %c0_85] : memref<16x128xf32, #tpu.memory_space<vmem>>, vector<16x128xf32>
    tpu.vector_store %arg12[%c0_84, %c0_85], %166 {strides = array<i32>} : memref<16x128xf32, #tpu.memory_space<vmem>>, vector<16x128xf32>,
    %169 = arith.truncf %166 : vector<16x128xf32> to vector<16x128xbf16>
    %170 = arith.index_cast %141 : i32 to index
    %c0_86 = arith.constant 0 : index
    %171 = vector.load %arg10[%170, %c0_86] : memref<128x128xbf16, #tpu.memory_space<vmem>>, vector<16x128xbf16>
    tpu.vector_store %arg10[%170, %c0_86], %169 {strides = array<i32>} : memref<128x128xbf16, #tpu.memory_space<vmem>>, vector<16x128xbf16>,
    %c5_i32 = arith.constant 5 : i32
    %c16_i32_87 = arith.constant 16 : i32
    %172 = arith.muli %c5_i32, %c16_i32_87 : i32
    %173 = tpu.assume_multiple %172, 16 : i32
    %174 = arith.index_cast %173 : i32 to index
    %c0_88 = arith.constant 0 : index
    %175 = vector.load %arg11[%174, %c0_88] : memref<128x512xbf16, #tpu.memory_space<vmem>>, vector<16x512xbf16>
    %176 = arith.extf %175 : vector<16x512xbf16> to vector<16x512xf32>
    %c0_89 = arith.constant 0 : index
    %c0_90 = arith.constant 0 : index
    %177 = vector.load %arg12[%c0_89, %c0_90] : memref<16x128xf32, #tpu.memory_space<vmem>>, vector<16x128xf32>
    %178 = arith.truncf %177 : vector<16x128xf32> to vector<16x128xbf16>
    %c0_91 = arith.constant 0 : index
    %c0_92 = arith.constant 0 : index
    %179 = vector.load %arg2[%c0_91, %c0_92] : memref<128x512xbf16, #tpu.memory_space<vmem>>, vector<128x512xbf16>
    %cst_93 = arith.constant dense<0.000000e+00> : vector<16x512xf32>
    %180 = tpu.matmul %178, %179, %cst_93 {dimension_numbers = #tpu.dot_dimension_numbers<[1], [0], [0], [1], [0, 0, 1, 1], [], []>} : vector<16x128xbf16>, vector<128x512xbf16>, vector<16x512xf32> -> vector<16x512xf32>
    %181 = arith.addf %176, %180 : vector<16x512xf32>
    %182 = vector.extract_strided_slice %181 {offsets = [0, 0], sizes = [16, 384], strides = [1, 1]} : vector<16x512xf32> to vector<16x384xf32>
    %183 = arith.negf %182 : vector<16x384xf32>
    %184 = math.exp %183 : vector<16x384xf32>
    %cst_94 = arith.constant 1.000000e+00 : f32
    %185 = vector.broadcast %cst_94 : f32 to vector<16x384xf32>
    %186 = arith.addf %185, %184 : vector<16x384xf32>
    %187 = arith.divf %185, %186 : vector<16x384xf32>
    %188 = vector.extract_strided_slice %181 {offsets = [0, 384], sizes = [16, 128], strides = [1, 1]} : vector<16x512xf32> to vector<16x128xf32>
    %189 = math.tanh %188 : vector<16x128xf32>
    %190 = vector.extract_strided_slice %187 {offsets = [0, 0], sizes = [16, 128], strides = [1, 1]} : vector<16x384xf32> to vector<16x128xf32>
    %191 = vector.extract_strided_slice %187 {offsets = [0, 128], sizes = [16, 128], strides = [1, 1]} : vector<16x384xf32> to vector<16x128xf32>
    %192 = vector.extract_strided_slice %187 {offsets = [0, 256], sizes = [16, 128], strides = [1, 1]} : vector<16x384xf32> to vector<16x128xf32>
    %c0_95 = arith.constant 0 : index
    %c0_96 = arith.constant 0 : index
    %193 = vector.load %arg13[%c0_95, %c0_96] : memref<16x128xf32, #tpu.memory_space<vmem>>, vector<16x128xf32>
    %194 = arith.mulf %191, %193 : vector<16x128xf32>
    %195 = arith.mulf %190, %189 : vector<16x128xf32>
    %196 = arith.addf %194, %195 : vector<16x128xf32>
    %197 = math.tanh %196 : vector<16x128xf32>
    %198 = arith.mulf %192, %197 : vector<16x128xf32>
    %c0_97 = arith.constant 0 : index
    %c0_98 = arith.constant 0 : index
    %199 = vector.load %arg13[%c0_97, %c0_98] : memref<16x128xf32, #tpu.memory_space<vmem>>, vector<16x128xf32>
    tpu.vector_store %arg13[%c0_97, %c0_98], %196 {strides = array<i32>} : memref<16x128xf32, #tpu.memory_space<vmem>>, vector<16x128xf32>,
    %c0_99 = arith.constant 0 : index
    %c0_100 = arith.constant 0 : index
    %200 = vector.load %arg12[%c0_99, %c0_100] : memref<16x128xf32, #tpu.memory_space<vmem>>, vector<16x128xf32>
    tpu.vector_store %arg12[%c0_99, %c0_100], %198 {strides = array<i32>} : memref<16x128xf32, #tpu.memory_space<vmem>>, vector<16x128xf32>,
    %201 = arith.truncf %198 : vector<16x128xf32> to vector<16x128xbf16>
    %202 = arith.index_cast %173 : i32 to index
    %c0_101 = arith.constant 0 : index
    %203 = vector.load %arg10[%202, %c0_101] : memref<128x128xbf16, #tpu.memory_space<vmem>>, vector<16x128xbf16>
    tpu.vector_store %arg10[%202, %c0_101], %201 {strides = array<i32>} : memref<128x128xbf16, #tpu.memory_space<vmem>>, vector<16x128xbf16>,
    %c6_i32 = arith.constant 6 : i32
    %c16_i32_102 = arith.constant 16 : i32
    %204 = arith.muli %c6_i32, %c16_i32_102 : i32
    %205 = tpu.assume_multiple %204, 16 : i32
    %206 = arith.index_cast %205 : i32 to index
    %c0_103 = arith.constant 0 : index
    %207 = vector.load %arg11[%206, %c0_103] : memref<128x512xbf16, #tpu.memory_space<vmem>>, vector<16x512xbf16>
    %208 = arith.extf %207 : vector<16x512xbf16> to vector<16x512xf32>
    %c0_104 = arith.constant 0 : index
    %c0_105 = arith.constant 0 : index
    %209 = vector.load %arg12[%c0_104, %c0_105] : memref<16x128xf32, #tpu.memory_space<vmem>>, vector<16x128xf32>
    %210 = arith.truncf %209 : vector<16x128xf32> to vector<16x128xbf16>
    %c0_106 = arith.constant 0 : index
    %c0_107 = arith.constant 0 : index
    %211 = vector.load %arg2[%c0_106, %c0_107] : memref<128x512xbf16, #tpu.memory_space<vmem>>, vector<128x512xbf16>
    %cst_108 = arith.constant dense<0.000000e+00> : vector<16x512xf32>
    %212 = tpu.matmul %210, %211, %cst_108 {dimension_numbers = #tpu.dot_dimension_numbers<[1], [0], [0], [1], [0, 0, 1, 1], [], []>} : vector<16x128xbf16>, vector<128x512xbf16>, vector<16x512xf32> -> vector<16x512xf32>
    %213 = arith.addf %208, %212 : vector<16x512xf32>
    %214 = vector.extract_strided_slice %213 {offsets = [0, 0], sizes = [16, 384], strides = [1, 1]} : vector<16x512xf32> to vector<16x384xf32>
    %215 = arith.negf %214 : vector<16x384xf32>
    %216 = math.exp %215 : vector<16x384xf32>
    %cst_109 = arith.constant 1.000000e+00 : f32
    %217 = vector.broadcast %cst_109 : f32 to vector<16x384xf32>
    %218 = arith.addf %217, %216 : vector<16x384xf32>
    %219 = arith.divf %217, %218 : vector<16x384xf32>
    %220 = vector.extract_strided_slice %213 {offsets = [0, 384], sizes = [16, 128], strides = [1, 1]} : vector<16x512xf32> to vector<16x128xf32>
    %221 = math.tanh %220 : vector<16x128xf32>
    %222 = vector.extract_strided_slice %219 {offsets = [0, 0], sizes = [16, 128], strides = [1, 1]} : vector<16x384xf32> to vector<16x128xf32>
    %223 = vector.extract_strided_slice %219 {offsets = [0, 128], sizes = [16, 128], strides = [1, 1]} : vector<16x384xf32> to vector<16x128xf32>
    %224 = vector.extract_strided_slice %219 {offsets = [0, 256], sizes = [16, 128], strides = [1, 1]} : vector<16x384xf32> to vector<16x128xf32>
    %c0_110 = arith.constant 0 : index
    %c0_111 = arith.constant 0 : index
    %225 = vector.load %arg13[%c0_110, %c0_111] : memref<16x128xf32, #tpu.memory_space<vmem>>, vector<16x128xf32>
    %226 = arith.mulf %223, %225 : vector<16x128xf32>
    %227 = arith.mulf %222, %221 : vector<16x128xf32>
    %228 = arith.addf %226, %227 : vector<16x128xf32>
    %229 = math.tanh %228 : vector<16x128xf32>
    %230 = arith.mulf %224, %229 : vector<16x128xf32>
    %c0_112 = arith.constant 0 : index
    %c0_113 = arith.constant 0 : index
    %231 = vector.load %arg13[%c0_112, %c0_113] : memref<16x128xf32, #tpu.memory_space<vmem>>, vector<16x128xf32>
    tpu.vector_store %arg13[%c0_112, %c0_113], %228 {strides = array<i32>} : memref<16x128xf32, #tpu.memory_space<vmem>>, vector<16x128xf32>,
    %c0_114 = arith.constant 0 : index
    %c0_115 = arith.constant 0 : index
    %232 = vector.load %arg12[%c0_114, %c0_115] : memref<16x128xf32, #tpu.memory_space<vmem>>, vector<16x128xf32>
    tpu.vector_store %arg12[%c0_114, %c0_115], %230 {strides = array<i32>} : memref<16x128xf32, #tpu.memory_space<vmem>>, vector<16x128xf32>,
    %233 = arith.truncf %230 : vector<16x128xf32> to vector<16x128xbf16>
    %234 = arith.index_cast %205 : i32 to index
    %c0_116 = arith.constant 0 : index
    %235 = vector.load %arg10[%234, %c0_116] : memref<128x128xbf16, #tpu.memory_space<vmem>>, vector<16x128xbf16>
    tpu.vector_store %arg10[%234, %c0_116], %233 {strides = array<i32>} : memref<128x128xbf16, #tpu.memory_space<vmem>>, vector<16x128xbf16>,
    %c7_i32 = arith.constant 7 : i32
    %c16_i32_117 = arith.constant 16 : i32
    %236 = arith.muli %c7_i32, %c16_i32_117 : i32
    %237 = tpu.assume_multiple %236, 16 : i32
    %238 = arith.index_cast %237 : i32 to index
    %c0_118 = arith.constant 0 : index
    %239 = vector.load %arg11[%238, %c0_118] : memref<128x512xbf16, #tpu.memory_space<vmem>>, vector<16x512xbf16>
    %240 = arith.extf %239 : vector<16x512xbf16> to vector<16x512xf32>
    %c0_119 = arith.constant 0 : index
    %c0_120 = arith.constant 0 : index
    %241 = vector.load %arg12[%c0_119, %c0_120] : memref<16x128xf32, #tpu.memory_space<vmem>>, vector<16x128xf32>
    %242 = arith.truncf %241 : vector<16x128xf32> to vector<16x128xbf16>
    %c0_121 = arith.constant 0 : index
    %c0_122 = arith.constant 0 : index
    %243 = vector.load %arg2[%c0_121, %c0_122] : memref<128x512xbf16, #tpu.memory_space<vmem>>, vector<128x512xbf16>
    %cst_123 = arith.constant dense<0.000000e+00> : vector<16x512xf32>
    %244 = tpu.matmul %242, %243, %cst_123 {dimension_numbers = #tpu.dot_dimension_numbers<[1], [0], [0], [1], [0, 0, 1, 1], [], []>} : vector<16x128xbf16>, vector<128x512xbf16>, vector<16x512xf32> -> vector<16x512xf32>
    %245 = arith.addf %240, %244 : vector<16x512xf32>
    %246 = vector.extract_strided_slice %245 {offsets = [0, 0], sizes = [16, 384], strides = [1, 1]} : vector<16x512xf32> to vector<16x384xf32>
    %247 = arith.negf %246 : vector<16x384xf32>
    %248 = math.exp %247 : vector<16x384xf32>
    %cst_124 = arith.constant 1.000000e+00 : f32
    %249 = vector.broadcast %cst_124 : f32 to vector<16x384xf32>
    %250 = arith.addf %249, %248 : vector<16x384xf32>
    %251 = arith.divf %249, %250 : vector<16x384xf32>
    %252 = vector.extract_strided_slice %245 {offsets = [0, 384], sizes = [16, 128], strides = [1, 1]} : vector<16x512xf32> to vector<16x128xf32>
    %253 = math.tanh %252 : vector<16x128xf32>
    %254 = vector.extract_strided_slice %251 {offsets = [0, 0], sizes = [16, 128], strides = [1, 1]} : vector<16x384xf32> to vector<16x128xf32>
    %255 = vector.extract_strided_slice %251 {offsets = [0, 128], sizes = [16, 128], strides = [1, 1]} : vector<16x384xf32> to vector<16x128xf32>
    %256 = vector.extract_strided_slice %251 {offsets = [0, 256], sizes = [16, 128], strides = [1, 1]} : vector<16x384xf32> to vector<16x128xf32>
    %c0_125 = arith.constant 0 : index
    %c0_126 = arith.constant 0 : index
    %257 = vector.load %arg13[%c0_125, %c0_126] : memref<16x128xf32, #tpu.memory_space<vmem>>, vector<16x128xf32>
    %258 = arith.mulf %255, %257 : vector<16x128xf32>
    %259 = arith.mulf %254, %253 : vector<16x128xf32>
    %260 = arith.addf %258, %259 : vector<16x128xf32>
    %261 = math.tanh %260 : vector<16x128xf32>
    %262 = arith.mulf %256, %261 : vector<16x128xf32>
    %c0_127 = arith.constant 0 : index
    %c0_128 = arith.constant 0 : index
    %263 = vector.load %arg13[%c0_127, %c0_128] : memref<16x128xf32, #tpu.memory_space<vmem>>, vector<16x128xf32>
    tpu.vector_store %arg13[%c0_127, %c0_128], %260 {strides = array<i32>} : memref<16x128xf32, #tpu.memory_space<vmem>>, vector<16x128xf32>,
    %c0_129 = arith.constant 0 : index
    %c0_130 = arith.constant 0 : index
    %264 = vector.load %arg12[%c0_129, %c0_130] : memref<16x128xf32, #tpu.memory_space<vmem>>, vector<16x128xf32>
    tpu.vector_store %arg12[%c0_129, %c0_130], %262 {strides = array<i32>} : memref<16x128xf32, #tpu.memory_space<vmem>>, vector<16x128xf32>,
    %265 = arith.truncf %262 : vector<16x128xf32> to vector<16x128xbf16>
    %266 = arith.index_cast %237 : i32 to index
    %c0_131 = arith.constant 0 : index
    %267 = vector.load %arg10[%266, %c0_131] : memref<128x128xbf16, #tpu.memory_space<vmem>>, vector<16x128xbf16>
    tpu.vector_store %arg10[%266, %c0_131], %265 {strides = array<i32>} : memref<128x128xbf16, #tpu.memory_space<vmem>>, vector<16x128xbf16>,
    %c8_i32 = arith.constant 8 : i32
    %c0_132 = arith.constant 0 : index
    %c0_133 = arith.constant 0 : index
    %268 = vector.load %arg10[%c0_132, %c0_133] : memref<128x128xbf16, #tpu.memory_space<vmem>>, vector<128x128xbf16>
    %c0_134 = arith.constant 0 : index
    %c0_135 = arith.constant 0 : index
    %269 = vector.load %arg4[%c0_134, %c0_135] : memref<128x512xbf16, #tpu.memory_space<vmem>>, vector<128x512xbf16>
    %cst_136 = arith.constant dense<0.000000e+00> : vector<128x512xf32>
    %270 = tpu.matmul %268, %269, %cst_136 {dimension_numbers = #tpu.dot_dimension_numbers<[1], [0], [0], [1], [0, 0, 1, 1], [], []>} : vector<128x128xbf16>, vector<128x512xbf16>, vector<128x512xf32> -> vector<128x512xf32>
    %c0_137 = arith.constant 0 : index
    %c0_138 = arith.constant 0 : index
    %271 = vector.load %arg6[%c0_137, %c0_138] : memref<1x512xf32, #tpu.memory_space<vmem>>, vector<1x512xf32>
    %272 = vector.broadcast %271 : vector<1x512xf32> to vector<128x512xf32>
    %273 = arith.addf %270, %272 : vector<128x512xf32>
    %274 = arith.truncf %273 : vector<128x512xf32> to vector<128x512xbf16>
    %c0_139 = arith.constant 0 : index
    %c0_140 = arith.constant 0 : index
    %275 = vector.load %arg11[%c0_139, %c0_140] : memref<128x512xbf16, #tpu.memory_space<vmem>>, vector<128x512xbf16>
    tpu.vector_store %arg11[%c0_139, %c0_140], %274 {strides = array<i32>} : memref<128x512xbf16, #tpu.memory_space<vmem>>, vector<128x512xbf16>,
    %cst_141 = arith.constant 0.000000e+00 : f32
    %276 = vector.broadcast %cst_141 : f32 to vector<16x128xf32>
    %c0_142 = arith.constant 0 : index
    %c0_143 = arith.constant 0 : index
    %277 = vector.load %arg12[%c0_142, %c0_143] : memref<16x128xf32, #tpu.memory_space<vmem>>, vector<16x128xf32>
    tpu.vector_store %arg12[%c0_142, %c0_143], %276 {strides = array<i32>} : memref<16x128xf32, #tpu.memory_space<vmem>>, vector<16x128xf32>,
    %cst_144 = arith.constant 0.000000e+00 : f32
    %278 = vector.broadcast %cst_144 : f32 to vector<16x128xf32>
    %c0_145 = arith.constant 0 : index
    %c0_146 = arith.constant 0 : index
    %279 = vector.load %arg13[%c0_145, %c0_146] : memref<16x128xf32, #tpu.memory_space<vmem>>, vector<16x128xf32>
    tpu.vector_store %arg13[%c0_145, %c0_146], %278 {strides = array<i32>} : memref<16x128xf32, #tpu.memory_space<vmem>>, vector<16x128xf32>,
    %c0_i32_147 = arith.constant 0 : i32
    %c16_i32_148 = arith.constant 16 : i32
    %280 = arith.muli %c0_i32_147, %c16_i32_148 : i32
    %281 = tpu.assume_multiple %280, 16 : i32
    %282 = arith.index_cast %281 : i32 to index
    %c0_149 = arith.constant 0 : index
    %283 = vector.load %arg11[%282, %c0_149] : memref<128x512xbf16, #tpu.memory_space<vmem>>, vector<16x512xbf16>
    %284 = arith.extf %283 : vector<16x512xbf16> to vector<16x512xf32>
    %c0_150 = arith.constant 0 : index
    %c0_151 = arith.constant 0 : index
    %285 = vector.load %arg12[%c0_150, %c0_151] : memref<16x128xf32, #tpu.memory_space<vmem>>, vector<16x128xf32>
    %286 = arith.truncf %285 : vector<16x128xf32> to vector<16x128xbf16>
    %c0_152 = arith.constant 0 : index
    %c0_153 = arith.constant 0 : index
    %287 = vector.load %arg5[%c0_152, %c0_153] : memref<128x512xbf16, #tpu.memory_space<vmem>>, vector<128x512xbf16>
    %cst_154 = arith.constant dense<0.000000e+00> : vector<16x512xf32>
    %288 = tpu.matmul %286, %287, %cst_154 {dimension_numbers = #tpu.dot_dimension_numbers<[1], [0], [0], [1], [0, 0, 1, 1], [], []>} : vector<16x128xbf16>, vector<128x512xbf16>, vector<16x512xf32> -> vector<16x512xf32>
    %289 = arith.addf %284, %288 : vector<16x512xf32>
    %290 = vector.extract_strided_slice %289 {offsets = [0, 0], sizes = [16, 384], strides = [1, 1]} : vector<16x512xf32> to vector<16x384xf32>
    %291 = arith.negf %290 : vector<16x384xf32>
    %292 = math.exp %291 : vector<16x384xf32>
    %cst_155 = arith.constant 1.000000e+00 : f32
    %293 = vector.broadcast %cst_155 : f32 to vector<16x384xf32>
    %294 = arith.addf %293, %292 : vector<16x384xf32>
    %295 = arith.divf %293, %294 : vector<16x384xf32>
    %296 = vector.extract_strided_slice %289 {offsets = [0, 384], sizes = [16, 128], strides = [1, 1]} : vector<16x512xf32> to vector<16x128xf32>
    %297 = math.tanh %296 : vector<16x128xf32>
    %298 = vector.extract_strided_slice %295 {offsets = [0, 0], sizes = [16, 128], strides = [1, 1]} : vector<16x384xf32> to vector<16x128xf32>
    %299 = vector.extract_strided_slice %295 {offsets = [0, 128], sizes = [16, 128], strides = [1, 1]} : vector<16x384xf32> to vector<16x128xf32>
    %300 = vector.extract_strided_slice %295 {offsets = [0, 256], sizes = [16, 128], strides = [1, 1]} : vector<16x384xf32> to vector<16x128xf32>
    %c0_156 = arith.constant 0 : index
    %c0_157 = arith.constant 0 : index
    %301 = vector.load %arg13[%c0_156, %c0_157] : memref<16x128xf32, #tpu.memory_space<vmem>>, vector<16x128xf32>
    %302 = arith.mulf %299, %301 : vector<16x128xf32>
    %303 = arith.mulf %298, %297 : vector<16x128xf32>
    %304 = arith.addf %302, %303 : vector<16x128xf32>
    %305 = math.tanh %304 : vector<16x128xf32>
    %306 = arith.mulf %300, %305 : vector<16x128xf32>
    %c0_158 = arith.constant 0 : index
    %c0_159 = arith.constant 0 : index
    %307 = vector.load %arg13[%c0_158, %c0_159] : memref<16x128xf32, #tpu.memory_space<vmem>>, vector<16x128xf32>
    tpu.vector_store %arg13[%c0_158, %c0_159], %304 {strides = array<i32>} : memref<16x128xf32, #tpu.memory_space<vmem>>, vector<16x128xf32>,
    %c0_160 = arith.constant 0 : index
    %c0_161 = arith.constant 0 : index
    %308 = vector.load %arg12[%c0_160, %c0_161] : memref<16x128xf32, #tpu.memory_space<vmem>>, vector<16x128xf32>
    tpu.vector_store %arg12[%c0_160, %c0_161], %306 {strides = array<i32>} : memref<16x128xf32, #tpu.memory_space<vmem>>, vector<16x128xf32>,
    %c1_i32_162 = arith.constant 1 : i32
    %c16_i32_163 = arith.constant 16 : i32
    %309 = arith.muli %c1_i32_162, %c16_i32_163 : i32
    %310 = tpu.assume_multiple %309, 16 : i32
    %311 = arith.index_cast %310 : i32 to index
    %c0_164 = arith.constant 0 : index
    %312 = vector.load %arg11[%311, %c0_164] : memref<128x512xbf16, #tpu.memory_space<vmem>>, vector<16x512xbf16>
    %313 = arith.extf %312 : vector<16x512xbf16> to vector<16x512xf32>
    %c0_165 = arith.constant 0 : index
    %c0_166 = arith.constant 0 : index
    %314 = vector.load %arg12[%c0_165, %c0_166] : memref<16x128xf32, #tpu.memory_space<vmem>>, vector<16x128xf32>
    %315 = arith.truncf %314 : vector<16x128xf32> to vector<16x128xbf16>
    %c0_167 = arith.constant 0 : index
    %c0_168 = arith.constant 0 : index
    %316 = vector.load %arg5[%c0_167, %c0_168] : memref<128x512xbf16, #tpu.memory_space<vmem>>, vector<128x512xbf16>
    %cst_169 = arith.constant dense<0.000000e+00> : vector<16x512xf32>
    %317 = tpu.matmul %315, %316, %cst_169 {dimension_numbers = #tpu.dot_dimension_numbers<[1], [0], [0], [1], [0, 0, 1, 1], [], []>} : vector<16x128xbf16>, vector<128x512xbf16>, vector<16x512xf32> -> vector<16x512xf32>
    %318 = arith.addf %313, %317 : vector<16x512xf32>
    %319 = vector.extract_strided_slice %318 {offsets = [0, 0], sizes = [16, 384], strides = [1, 1]} : vector<16x512xf32> to vector<16x384xf32>
    %320 = arith.negf %319 : vector<16x384xf32>
    %321 = math.exp %320 : vector<16x384xf32>
    %cst_170 = arith.constant 1.000000e+00 : f32
    %322 = vector.broadcast %cst_170 : f32 to vector<16x384xf32>
    %323 = arith.addf %322, %321 : vector<16x384xf32>
    %324 = arith.divf %322, %323 : vector<16x384xf32>
    %325 = vector.extract_strided_slice %318 {offsets = [0, 384], sizes = [16, 128], strides = [1, 1]} : vector<16x512xf32> to vector<16x128xf32>
    %326 = math.tanh %325 : vector<16x128xf32>
    %327 = vector.extract_strided_slice %324 {offsets = [0, 0], sizes = [16, 128], strides = [1, 1]} : vector<16x384xf32> to vector<16x128xf32>
    %328 = vector.extract_strided_slice %324 {offsets = [0, 128], sizes = [16, 128], strides = [1, 1]} : vector<16x384xf32> to vector<16x128xf32>
    %329 = vector.extract_strided_slice %324 {offsets = [0, 256], sizes = [16, 128], strides = [1, 1]} : vector<16x384xf32> to vector<16x128xf32>
    %c0_171 = arith.constant 0 : index
    %c0_172 = arith.constant 0 : index
    %330 = vector.load %arg13[%c0_171, %c0_172] : memref<16x128xf32, #tpu.memory_space<vmem>>, vector<16x128xf32>
    %331 = arith.mulf %328, %330 : vector<16x128xf32>
    %332 = arith.mulf %327, %326 : vector<16x128xf32>
    %333 = arith.addf %331, %332 : vector<16x128xf32>
    %334 = math.tanh %333 : vector<16x128xf32>
    %335 = arith.mulf %329, %334 : vector<16x128xf32>
    %c0_173 = arith.constant 0 : index
    %c0_174 = arith.constant 0 : index
    %336 = vector.load %arg13[%c0_173, %c0_174] : memref<16x128xf32, #tpu.memory_space<vmem>>, vector<16x128xf32>
    tpu.vector_store %arg13[%c0_173, %c0_174], %333 {strides = array<i32>} : memref<16x128xf32, #tpu.memory_space<vmem>>, vector<16x128xf32>,
    %c0_175 = arith.constant 0 : index
    %c0_176 = arith.constant 0 : index
    %337 = vector.load %arg12[%c0_175, %c0_176] : memref<16x128xf32, #tpu.memory_space<vmem>>, vector<16x128xf32>
    tpu.vector_store %arg12[%c0_175, %c0_176], %335 {strides = array<i32>} : memref<16x128xf32, #tpu.memory_space<vmem>>, vector<16x128xf32>,
    %c2_i32_177 = arith.constant 2 : i32
    %c16_i32_178 = arith.constant 16 : i32
    %338 = arith.muli %c2_i32_177, %c16_i32_178 : i32
    %339 = tpu.assume_multiple %338, 16 : i32
    %340 = arith.index_cast %339 : i32 to index
    %c0_179 = arith.constant 0 : index
    %341 = vector.load %arg11[%340, %c0_179] : memref<128x512xbf16, #tpu.memory_space<vmem>>, vector<16x512xbf16>
    %342 = arith.extf %341 : vector<16x512xbf16> to vector<16x512xf32>
    %c0_180 = arith.constant 0 : index
    %c0_181 = arith.constant 0 : index
    %343 = vector.load %arg12[%c0_180, %c0_181] : memref<16x128xf32, #tpu.memory_space<vmem>>, vector<16x128xf32>
    %344 = arith.truncf %343 : vector<16x128xf32> to vector<16x128xbf16>
    %c0_182 = arith.constant 0 : index
    %c0_183 = arith.constant 0 : index
    %345 = vector.load %arg5[%c0_182, %c0_183] : memref<128x512xbf16, #tpu.memory_space<vmem>>, vector<128x512xbf16>
    %cst_184 = arith.constant dense<0.000000e+00> : vector<16x512xf32>
    %346 = tpu.matmul %344, %345, %cst_184 {dimension_numbers = #tpu.dot_dimension_numbers<[1], [0], [0], [1], [0, 0, 1, 1], [], []>} : vector<16x128xbf16>, vector<128x512xbf16>, vector<16x512xf32> -> vector<16x512xf32>
    %347 = arith.addf %342, %346 : vector<16x512xf32>
    %348 = vector.extract_strided_slice %347 {offsets = [0, 0], sizes = [16, 384], strides = [1, 1]} : vector<16x512xf32> to vector<16x384xf32>
    %349 = arith.negf %348 : vector<16x384xf32>
    %350 = math.exp %349 : vector<16x384xf32>
    %cst_185 = arith.constant 1.000000e+00 : f32
    %351 = vector.broadcast %cst_185 : f32 to vector<16x384xf32>
    %352 = arith.addf %351, %350 : vector<16x384xf32>
    %353 = arith.divf %351, %352 : vector<16x384xf32>
    %354 = vector.extract_strided_slice %347 {offsets = [0, 384], sizes = [16, 128], strides = [1, 1]} : vector<16x512xf32> to vector<16x128xf32>
    %355 = math.tanh %354 : vector<16x128xf32>
    %356 = vector.extract_strided_slice %353 {offsets = [0, 0], sizes = [16, 128], strides = [1, 1]} : vector<16x384xf32> to vector<16x128xf32>
    %357 = vector.extract_strided_slice %353 {offsets = [0, 128], sizes = [16, 128], strides = [1, 1]} : vector<16x384xf32> to vector<16x128xf32>
    %358 = vector.extract_strided_slice %353 {offsets = [0, 256], sizes = [16, 128], strides = [1, 1]} : vector<16x384xf32> to vector<16x128xf32>
    %c0_186 = arith.constant 0 : index
    %c0_187 = arith.constant 0 : index
    %359 = vector.load %arg13[%c0_186, %c0_187] : memref<16x128xf32, #tpu.memory_space<vmem>>, vector<16x128xf32>
    %360 = arith.mulf %357, %359 : vector<16x128xf32>
    %361 = arith.mulf %356, %355 : vector<16x128xf32>
    %362 = arith.addf %360, %361 : vector<16x128xf32>
    %363 = math.tanh %362 : vector<16x128xf32>
    %364 = arith.mulf %358, %363 : vector<16x128xf32>
    %c0_188 = arith.constant 0 : index
    %c0_189 = arith.constant 0 : index
    %365 = vector.load %arg13[%c0_188, %c0_189] : memref<16x128xf32, #tpu.memory_space<vmem>>, vector<16x128xf32>
    tpu.vector_store %arg13[%c0_188, %c0_189], %362 {strides = array<i32>} : memref<16x128xf32, #tpu.memory_space<vmem>>, vector<16x128xf32>,
    %c0_190 = arith.constant 0 : index
    %c0_191 = arith.constant 0 : index
    %366 = vector.load %arg12[%c0_190, %c0_191] : memref<16x128xf32, #tpu.memory_space<vmem>>, vector<16x128xf32>
    tpu.vector_store %arg12[%c0_190, %c0_191], %364 {strides = array<i32>} : memref<16x128xf32, #tpu.memory_space<vmem>>, vector<16x128xf32>,
    %c3_i32_192 = arith.constant 3 : i32
    %c16_i32_193 = arith.constant 16 : i32
    %367 = arith.muli %c3_i32_192, %c16_i32_193 : i32
    %368 = tpu.assume_multiple %367, 16 : i32
    %369 = arith.index_cast %368 : i32 to index
    %c0_194 = arith.constant 0 : index
    %370 = vector.load %arg11[%369, %c0_194] : memref<128x512xbf16, #tpu.memory_space<vmem>>, vector<16x512xbf16>
    %371 = arith.extf %370 : vector<16x512xbf16> to vector<16x512xf32>
    %c0_195 = arith.constant 0 : index
    %c0_196 = arith.constant 0 : index
    %372 = vector.load %arg12[%c0_195, %c0_196] : memref<16x128xf32, #tpu.memory_space<vmem>>, vector<16x128xf32>
    %373 = arith.truncf %372 : vector<16x128xf32> to vector<16x128xbf16>
    %c0_197 = arith.constant 0 : index
    %c0_198 = arith.constant 0 : index
    %374 = vector.load %arg5[%c0_197, %c0_198] : memref<128x512xbf16, #tpu.memory_space<vmem>>, vector<128x512xbf16>
    %cst_199 = arith.constant dense<0.000000e+00> : vector<16x512xf32>
    %375 = tpu.matmul %373, %374, %cst_199 {dimension_numbers = #tpu.dot_dimension_numbers<[1], [0], [0], [1], [0, 0, 1, 1], [], []>} : vector<16x128xbf16>, vector<128x512xbf16>, vector<16x512xf32> -> vector<16x512xf32>
    %376 = arith.addf %371, %375 : vector<16x512xf32>
    %377 = vector.extract_strided_slice %376 {offsets = [0, 0], sizes = [16, 384], strides = [1, 1]} : vector<16x512xf32> to vector<16x384xf32>
    %378 = arith.negf %377 : vector<16x384xf32>
    %379 = math.exp %378 : vector<16x384xf32>
    %cst_200 = arith.constant 1.000000e+00 : f32
    %380 = vector.broadcast %cst_200 : f32 to vector<16x384xf32>
    %381 = arith.addf %380, %379 : vector<16x384xf32>
    %382 = arith.divf %380, %381 : vector<16x384xf32>
    %383 = vector.extract_strided_slice %376 {offsets = [0, 384], sizes = [16, 128], strides = [1, 1]} : vector<16x512xf32> to vector<16x128xf32>
    %384 = math.tanh %383 : vector<16x128xf32>
    %385 = vector.extract_strided_slice %382 {offsets = [0, 0], sizes = [16, 128], strides = [1, 1]} : vector<16x384xf32> to vector<16x128xf32>
    %386 = vector.extract_strided_slice %382 {offsets = [0, 128], sizes = [16, 128], strides = [1, 1]} : vector<16x384xf32> to vector<16x128xf32>
    %387 = vector.extract_strided_slice %382 {offsets = [0, 256], sizes = [16, 128], strides = [1, 1]} : vector<16x384xf32> to vector<16x128xf32>
    %c0_201 = arith.constant 0 : index
    %c0_202 = arith.constant 0 : index
    %388 = vector.load %arg13[%c0_201, %c0_202] : memref<16x128xf32, #tpu.memory_space<vmem>>, vector<16x128xf32>
    %389 = arith.mulf %386, %388 : vector<16x128xf32>
    %390 = arith.mulf %385, %384 : vector<16x128xf32>
    %391 = arith.addf %389, %390 : vector<16x128xf32>
    %392 = math.tanh %391 : vector<16x128xf32>
    %393 = arith.mulf %387, %392 : vector<16x128xf32>
    %c0_203 = arith.constant 0 : index
    %c0_204 = arith.constant 0 : index
    %394 = vector.load %arg13[%c0_203, %c0_204] : memref<16x128xf32, #tpu.memory_space<vmem>>, vector<16x128xf32>
    tpu.vector_store %arg13[%c0_203, %c0_204], %391 {strides = array<i32>} : memref<16x128xf32, #tpu.memory_space<vmem>>, vector<16x128xf32>,
    %c0_205 = arith.constant 0 : index
    %c0_206 = arith.constant 0 : index
    %395 = vector.load %arg12[%c0_205, %c0_206] : memref<16x128xf32, #tpu.memory_space<vmem>>, vector<16x128xf32>
    tpu.vector_store %arg12[%c0_205, %c0_206], %393 {strides = array<i32>} : memref<16x128xf32, #tpu.memory_space<vmem>>, vector<16x128xf32>,
    %c4_i32_207 = arith.constant 4 : i32
    %c16_i32_208 = arith.constant 16 : i32
    %396 = arith.muli %c4_i32_207, %c16_i32_208 : i32
    %397 = tpu.assume_multiple %396, 16 : i32
    %398 = arith.index_cast %397 : i32 to index
    %c0_209 = arith.constant 0 : index
    %399 = vector.load %arg11[%398, %c0_209] : memref<128x512xbf16, #tpu.memory_space<vmem>>, vector<16x512xbf16>
    %400 = arith.extf %399 : vector<16x512xbf16> to vector<16x512xf32>
    %c0_210 = arith.constant 0 : index
    %c0_211 = arith.constant 0 : index
    %401 = vector.load %arg12[%c0_210, %c0_211] : memref<16x128xf32, #tpu.memory_space<vmem>>, vector<16x128xf32>
    %402 = arith.truncf %401 : vector<16x128xf32> to vector<16x128xbf16>
    %c0_212 = arith.constant 0 : index
    %c0_213 = arith.constant 0 : index
    %403 = vector.load %arg5[%c0_212, %c0_213] : memref<128x512xbf16, #tpu.memory_space<vmem>>, vector<128x512xbf16>
    %cst_214 = arith.constant dense<0.000000e+00> : vector<16x512xf32>
    %404 = tpu.matmul %402, %403, %cst_214 {dimension_numbers = #tpu.dot_dimension_numbers<[1], [0], [0], [1], [0, 0, 1, 1], [], []>} : vector<16x128xbf16>, vector<128x512xbf16>, vector<16x512xf32> -> vector<16x512xf32>
    %405 = arith.addf %400, %404 : vector<16x512xf32>
    %406 = vector.extract_strided_slice %405 {offsets = [0, 0], sizes = [16, 384], strides = [1, 1]} : vector<16x512xf32> to vector<16x384xf32>
    %407 = arith.negf %406 : vector<16x384xf32>
    %408 = math.exp %407 : vector<16x384xf32>
    %cst_215 = arith.constant 1.000000e+00 : f32
    %409 = vector.broadcast %cst_215 : f32 to vector<16x384xf32>
    %410 = arith.addf %409, %408 : vector<16x384xf32>
    %411 = arith.divf %409, %410 : vector<16x384xf32>
    %412 = vector.extract_strided_slice %405 {offsets = [0, 384], sizes = [16, 128], strides = [1, 1]} : vector<16x512xf32> to vector<16x128xf32>
    %413 = math.tanh %412 : vector<16x128xf32>
    %414 = vector.extract_strided_slice %411 {offsets = [0, 0], sizes = [16, 128], strides = [1, 1]} : vector<16x384xf32> to vector<16x128xf32>
    %415 = vector.extract_strided_slice %411 {offsets = [0, 128], sizes = [16, 128], strides = [1, 1]} : vector<16x384xf32> to vector<16x128xf32>
    %416 = vector.extract_strided_slice %411 {offsets = [0, 256], sizes = [16, 128], strides = [1, 1]} : vector<16x384xf32> to vector<16x128xf32>
    %c0_216 = arith.constant 0 : index
    %c0_217 = arith.constant 0 : index
    %417 = vector.load %arg13[%c0_216, %c0_217] : memref<16x128xf32, #tpu.memory_space<vmem>>, vector<16x128xf32>
    %418 = arith.mulf %415, %417 : vector<16x128xf32>
    %419 = arith.mulf %414, %413 : vector<16x128xf32>
    %420 = arith.addf %418, %419 : vector<16x128xf32>
    %421 = math.tanh %420 : vector<16x128xf32>
    %422 = arith.mulf %416, %421 : vector<16x128xf32>
    %c0_218 = arith.constant 0 : index
    %c0_219 = arith.constant 0 : index
    %423 = vector.load %arg13[%c0_218, %c0_219] : memref<16x128xf32, #tpu.memory_space<vmem>>, vector<16x128xf32>
    tpu.vector_store %arg13[%c0_218, %c0_219], %420 {strides = array<i32>} : memref<16x128xf32, #tpu.memory_space<vmem>>, vector<16x128xf32>,
    %c0_220 = arith.constant 0 : index
    %c0_221 = arith.constant 0 : index
    %424 = vector.load %arg12[%c0_220, %c0_221] : memref<16x128xf32, #tpu.memory_space<vmem>>, vector<16x128xf32>
    tpu.vector_store %arg12[%c0_220, %c0_221], %422 {strides = array<i32>} : memref<16x128xf32, #tpu.memory_space<vmem>>, vector<16x128xf32>,
    %c5_i32_222 = arith.constant 5 : i32
    %c16_i32_223 = arith.constant 16 : i32
    %425 = arith.muli %c5_i32_222, %c16_i32_223 : i32
    %426 = tpu.assume_multiple %425, 16 : i32
    %427 = arith.index_cast %426 : i32 to index
    %c0_224 = arith.constant 0 : index
    %428 = vector.load %arg11[%427, %c0_224] : memref<128x512xbf16, #tpu.memory_space<vmem>>, vector<16x512xbf16>
    %429 = arith.extf %428 : vector<16x512xbf16> to vector<16x512xf32>
    %c0_225 = arith.constant 0 : index
    %c0_226 = arith.constant 0 : index
    %430 = vector.load %arg12[%c0_225, %c0_226] : memref<16x128xf32, #tpu.memory_space<vmem>>, vector<16x128xf32>
    %431 = arith.truncf %430 : vector<16x128xf32> to vector<16x128xbf16>
    %c0_227 = arith.constant 0 : index
    %c0_228 = arith.constant 0 : index
    %432 = vector.load %arg5[%c0_227, %c0_228] : memref<128x512xbf16, #tpu.memory_space<vmem>>, vector<128x512xbf16>
    %cst_229 = arith.constant dense<0.000000e+00> : vector<16x512xf32>
    %433 = tpu.matmul %431, %432, %cst_229 {dimension_numbers = #tpu.dot_dimension_numbers<[1], [0], [0], [1], [0, 0, 1, 1], [], []>} : vector<16x128xbf16>, vector<128x512xbf16>, vector<16x512xf32> -> vector<16x512xf32>
    %434 = arith.addf %429, %433 : vector<16x512xf32>
    %435 = vector.extract_strided_slice %434 {offsets = [0, 0], sizes = [16, 384], strides = [1, 1]} : vector<16x512xf32> to vector<16x384xf32>
    %436 = arith.negf %435 : vector<16x384xf32>
    %437 = math.exp %436 : vector<16x384xf32>
    %cst_230 = arith.constant 1.000000e+00 : f32
    %438 = vector.broadcast %cst_230 : f32 to vector<16x384xf32>
    %439 = arith.addf %438, %437 : vector<16x384xf32>
    %440 = arith.divf %438, %439 : vector<16x384xf32>
    %441 = vector.extract_strided_slice %434 {offsets = [0, 384], sizes = [16, 128], strides = [1, 1]} : vector<16x512xf32> to vector<16x128xf32>
    %442 = math.tanh %441 : vector<16x128xf32>
    %443 = vector.extract_strided_slice %440 {offsets = [0, 0], sizes = [16, 128], strides = [1, 1]} : vector<16x384xf32> to vector<16x128xf32>
    %444 = vector.extract_strided_slice %440 {offsets = [0, 128], sizes = [16, 128], strides = [1, 1]} : vector<16x384xf32> to vector<16x128xf32>
    %445 = vector.extract_strided_slice %440 {offsets = [0, 256], sizes = [16, 128], strides = [1, 1]} : vector<16x384xf32> to vector<16x128xf32>
    %c0_231 = arith.constant 0 : index
    %c0_232 = arith.constant 0 : index
    %446 = vector.load %arg13[%c0_231, %c0_232] : memref<16x128xf32, #tpu.memory_space<vmem>>, vector<16x128xf32>
    %447 = arith.mulf %444, %446 : vector<16x128xf32>
    %448 = arith.mulf %443, %442 : vector<16x128xf32>
    %449 = arith.addf %447, %448 : vector<16x128xf32>
    %450 = math.tanh %449 : vector<16x128xf32>
    %451 = arith.mulf %445, %450 : vector<16x128xf32>
    %c0_233 = arith.constant 0 : index
    %c0_234 = arith.constant 0 : index
    %452 = vector.load %arg13[%c0_233, %c0_234] : memref<16x128xf32, #tpu.memory_space<vmem>>, vector<16x128xf32>
    tpu.vector_store %arg13[%c0_233, %c0_234], %449 {strides = array<i32>} : memref<16x128xf32, #tpu.memory_space<vmem>>, vector<16x128xf32>,
    %c0_235 = arith.constant 0 : index
    %c0_236 = arith.constant 0 : index
    %453 = vector.load %arg12[%c0_235, %c0_236] : memref<16x128xf32, #tpu.memory_space<vmem>>, vector<16x128xf32>
    tpu.vector_store %arg12[%c0_235, %c0_236], %451 {strides = array<i32>} : memref<16x128xf32, #tpu.memory_space<vmem>>, vector<16x128xf32>,
    %c6_i32_237 = arith.constant 6 : i32
    %c16_i32_238 = arith.constant 16 : i32
    %454 = arith.muli %c6_i32_237, %c16_i32_238 : i32
    %455 = tpu.assume_multiple %454, 16 : i32
    %456 = arith.index_cast %455 : i32 to index
    %c0_239 = arith.constant 0 : index
    %457 = vector.load %arg11[%456, %c0_239] : memref<128x512xbf16, #tpu.memory_space<vmem>>, vector<16x512xbf16>
    %458 = arith.extf %457 : vector<16x512xbf16> to vector<16x512xf32>
    %c0_240 = arith.constant 0 : index
    %c0_241 = arith.constant 0 : index
    %459 = vector.load %arg12[%c0_240, %c0_241] : memref<16x128xf32, #tpu.memory_space<vmem>>, vector<16x128xf32>
    %460 = arith.truncf %459 : vector<16x128xf32> to vector<16x128xbf16>
    %c0_242 = arith.constant 0 : index
    %c0_243 = arith.constant 0 : index
    %461 = vector.load %arg5[%c0_242, %c0_243] : memref<128x512xbf16, #tpu.memory_space<vmem>>, vector<128x512xbf16>
    %cst_244 = arith.constant dense<0.000000e+00> : vector<16x512xf32>
    %462 = tpu.matmul %460, %461, %cst_244 {dimension_numbers = #tpu.dot_dimension_numbers<[1], [0], [0], [1], [0, 0, 1, 1], [], []>} : vector<16x128xbf16>, vector<128x512xbf16>, vector<16x512xf32> -> vector<16x512xf32>
    %463 = arith.addf %458, %462 : vector<16x512xf32>
    %464 = vector.extract_strided_slice %463 {offsets = [0, 0], sizes = [16, 384], strides = [1, 1]} : vector<16x512xf32> to vector<16x384xf32>
    %465 = arith.negf %464 : vector<16x384xf32>
    %466 = math.exp %465 : vector<16x384xf32>
    %cst_245 = arith.constant 1.000000e+00 : f32
    %467 = vector.broadcast %cst_245 : f32 to vector<16x384xf32>
    %468 = arith.addf %467, %466 : vector<16x384xf32>
    %469 = arith.divf %467, %468 : vector<16x384xf32>
    %470 = vector.extract_strided_slice %463 {offsets = [0, 384], sizes = [16, 128], strides = [1, 1]} : vector<16x512xf32> to vector<16x128xf32>
    %471 = math.tanh %470 : vector<16x128xf32>
    %472 = vector.extract_strided_slice %469 {offsets = [0, 0], sizes = [16, 128], strides = [1, 1]} : vector<16x384xf32> to vector<16x128xf32>
    %473 = vector.extract_strided_slice %469 {offsets = [0, 128], sizes = [16, 128], strides = [1, 1]} : vector<16x384xf32> to vector<16x128xf32>
    %474 = vector.extract_strided_slice %469 {offsets = [0, 256], sizes = [16, 128], strides = [1, 1]} : vector<16x384xf32> to vector<16x128xf32>
    %c0_246 = arith.constant 0 : index
    %c0_247 = arith.constant 0 : index
    %475 = vector.load %arg13[%c0_246, %c0_247] : memref<16x128xf32, #tpu.memory_space<vmem>>, vector<16x128xf32>
    %476 = arith.mulf %473, %475 : vector<16x128xf32>
    %477 = arith.mulf %472, %471 : vector<16x128xf32>
    %478 = arith.addf %476, %477 : vector<16x128xf32>
    %479 = math.tanh %478 : vector<16x128xf32>
    %480 = arith.mulf %474, %479 : vector<16x128xf32>
    %c0_248 = arith.constant 0 : index
    %c0_249 = arith.constant 0 : index
    %481 = vector.load %arg13[%c0_248, %c0_249] : memref<16x128xf32, #tpu.memory_space<vmem>>, vector<16x128xf32>
    tpu.vector_store %arg13[%c0_248, %c0_249], %478 {strides = array<i32>} : memref<16x128xf32, #tpu.memory_space<vmem>>, vector<16x128xf32>,
    %c0_250 = arith.constant 0 : index
    %c0_251 = arith.constant 0 : index
    %482 = vector.load %arg12[%c0_250, %c0_251] : memref<16x128xf32, #tpu.memory_space<vmem>>, vector<16x128xf32>
    tpu.vector_store %arg12[%c0_250, %c0_251], %480 {strides = array<i32>} : memref<16x128xf32, #tpu.memory_space<vmem>>, vector<16x128xf32>,
    %c7_i32_252 = arith.constant 7 : i32
    %c16_i32_253 = arith.constant 16 : i32
    %483 = arith.muli %c7_i32_252, %c16_i32_253 : i32
    %484 = tpu.assume_multiple %483, 16 : i32
    %485 = arith.index_cast %484 : i32 to index
    %c0_254 = arith.constant 0 : index
    %486 = vector.load %arg11[%485, %c0_254] : memref<128x512xbf16, #tpu.memory_space<vmem>>, vector<16x512xbf16>
    %487 = arith.extf %486 : vector<16x512xbf16> to vector<16x512xf32>
    %c0_255 = arith.constant 0 : index
    %c0_256 = arith.constant 0 : index
    %488 = vector.load %arg12[%c0_255, %c0_256] : memref<16x128xf32, #tpu.memory_space<vmem>>, vector<16x128xf32>
    %489 = arith.truncf %488 : vector<16x128xf32> to vector<16x128xbf16>
    %c0_257 = arith.constant 0 : index
    %c0_258 = arith.constant 0 : index
    %490 = vector.load %arg5[%c0_257, %c0_258] : memref<128x512xbf16, #tpu.memory_space<vmem>>, vector<128x512xbf16>
    %cst_259 = arith.constant dense<0.000000e+00> : vector<16x512xf32>
    %491 = tpu.matmul %489, %490, %cst_259 {dimension_numbers = #tpu.dot_dimension_numbers<[1], [0], [0], [1], [0, 0, 1, 1], [], []>} : vector<16x128xbf16>, vector<128x512xbf16>, vector<16x512xf32> -> vector<16x512xf32>
    %492 = arith.addf %487, %491 : vector<16x512xf32>
    %493 = vector.extract_strided_slice %492 {offsets = [0, 0], sizes = [16, 384], strides = [1, 1]} : vector<16x512xf32> to vector<16x384xf32>
    %494 = arith.negf %493 : vector<16x384xf32>
    %495 = math.exp %494 : vector<16x384xf32>
    %cst_260 = arith.constant 1.000000e+00 : f32
    %496 = vector.broadcast %cst_260 : f32 to vector<16x384xf32>
    %497 = arith.addf %496, %495 : vector<16x384xf32>
    %498 = arith.divf %496, %497 : vector<16x384xf32>
    %499 = vector.extract_strided_slice %492 {offsets = [0, 384], sizes = [16, 128], strides = [1, 1]} : vector<16x512xf32> to vector<16x128xf32>
    %500 = math.tanh %499 : vector<16x128xf32>
    %501 = vector.extract_strided_slice %498 {offsets = [0, 0], sizes = [16, 128], strides = [1, 1]} : vector<16x384xf32> to vector<16x128xf32>
    %502 = vector.extract_strided_slice %498 {offsets = [0, 128], sizes = [16, 128], strides = [1, 1]} : vector<16x384xf32> to vector<16x128xf32>
    %503 = vector.extract_strided_slice %498 {offsets = [0, 256], sizes = [16, 128], strides = [1, 1]} : vector<16x384xf32> to vector<16x128xf32>
    %c0_261 = arith.constant 0 : index
    %c0_262 = arith.constant 0 : index
    %504 = vector.load %arg13[%c0_261, %c0_262] : memref<16x128xf32, #tpu.memory_space<vmem>>, vector<16x128xf32>
    %505 = arith.mulf %502, %504 : vector<16x128xf32>
    %506 = arith.mulf %501, %500 : vector<16x128xf32>
    %507 = arith.addf %505, %506 : vector<16x128xf32>
    %508 = math.tanh %507 : vector<16x128xf32>
    %509 = arith.mulf %503, %508 : vector<16x128xf32>
    %c0_263 = arith.constant 0 : index
    %c0_264 = arith.constant 0 : index
    %510 = vector.load %arg13[%c0_263, %c0_264] : memref<16x128xf32, #tpu.memory_space<vmem>>, vector<16x128xf32>
    tpu.vector_store %arg13[%c0_263, %c0_264], %507 {strides = array<i32>} : memref<16x128xf32, #tpu.memory_space<vmem>>, vector<16x128xf32>,
    %c0_265 = arith.constant 0 : index
    %c0_266 = arith.constant 0 : index
    %511 = vector.load %arg12[%c0_265, %c0_266] : memref<16x128xf32, #tpu.memory_space<vmem>>, vector<16x128xf32>
    tpu.vector_store %arg12[%c0_265, %c0_266], %509 {strides = array<i32>} : memref<16x128xf32, #tpu.memory_space<vmem>>, vector<16x128xf32>,
    %c8_i32_267 = arith.constant 8 : i32
    %c0_268 = arith.constant 0 : index
    %c0_269 = arith.constant 0 : index
    %512 = vector.load %arg12[%c0_268, %c0_269] : memref<16x128xf32, #tpu.memory_space<vmem>>, vector<16x128xf32>
    %513 = arith.truncf %512 : vector<16x128xf32> to vector<16x128xbf16>
    %c0_270 = arith.constant 0 : index
    %c0_271 = arith.constant 0 : index
    %514 = vector.load %arg7[%c0_270, %c0_271] : memref<128x128xbf16, #tpu.memory_space<vmem>>, vector<128x128xbf16>
    %cst_272 = arith.constant dense<0.000000e+00> : vector<16x128xf32>
    %515 = tpu.matmul %513, %514, %cst_272 {dimension_numbers = #tpu.dot_dimension_numbers<[1], [0], [0], [1], [0, 0, 1, 1], [], []>} : vector<16x128xbf16>, vector<128x128xbf16>, vector<16x128xf32> -> vector<16x128xf32>
    %c0_273 = arith.constant 0 : index
    %c0_274 = arith.constant 0 : index
    %516 = vector.load %arg8[%c0_273, %c0_274] : memref<1x128xf32, #tpu.memory_space<vmem>>, vector<1x128xf32>
    %517 = vector.broadcast %516 : vector<1x128xf32> to vector<16x128xf32>
    %518 = arith.addf %515, %517 : vector<16x128xf32>
    %cst_275 = arith.constant 0.000000e+00 : f32
    %519 = vector.broadcast %cst_275 : f32 to vector<16x128xf32>
    %520 = arith.maximumf %518, %519 : vector<16x128xf32>
    %c0_276 = arith.constant 0 : index
    %c0_277 = arith.constant 0 : index
    %521 = vector.load %arg9[%c0_276, %c0_277] : memref<16x128xf32, #tpu.memory_space<vmem>>, vector<16x128xf32>
    tpu.vector_store %arg9[%c0_276, %c0_277], %520 {strides = array<i32>} : memref<16x128xf32, #tpu.memory_space<vmem>>, vector<16x128xf32>,
    return
  }
}

</mosaic_0001>

<llo_original>
// kernel: lstm_without_projection_forward.1
$region0: #{lstm_without_projection_forward.1}
  #allocation0 [shape = 'u32[]', space=smem, size = 0x4, offset = 0x4, fixed_abs, tag = 'smem constant byte address 0x4 - core index']
  #allocation1 [shape = 'u32[144,128]{1,0:T(1,128)}', space=vmem, size = 0x12000, scoped, tag = 'internal scratch']
  #allocation2 [shape = 'bf16[128,128]{1,0:T(16,128)(2,1)}', space=vmem, size = 0x8000, scoped, tag = 'scratch operand']
  #allocation3 [shape = 'bf16[128,512]{1,0:T(16,128)(2,1)}', space=vmem, size = 0x20000, scoped, tag = 'scratch operand']
  #allocation4 [shape = 'f32[16,128]{1,0:T(8,128)}', space=vmem, size = 0x2000, scoped, tag = 'scratch operand']
  #allocation5 [shape = 'f32[16,128]{1,0:T(8,128)}', space=vmem, size = 0x2000, scoped, tag = 'scratch operand']
  %s0 = inlined_call_operand.vmem [shape: bf16[128,128], index: 0, kind: input, shape index: {}]
  %s1 = inlined_call_operand.vmem [shape: bf16[128,512], index: 1, kind: input, shape index: {}]
  %s2 = inlined_call_operand.vmem [shape: bf16[128,512], index: 2, kind: input, shape index: {}]
  %s3 = inlined_call_operand.vmem [shape: f32[1,512], index: 3, kind: input, shape index: {}]
  %s4 = inlined_call_operand.vmem [shape: bf16[128,512], index: 4, kind: input, shape index: {}]
  %s5 = inlined_call_operand.vmem [shape: bf16[128,512], index: 5, kind: input, shape index: {}]
  %s6 = inlined_call_operand.vmem [shape: f32[1,512], index: 6, kind: input, shape index: {}]
  %s7 = inlined_call_operand.vmem [shape: bf16[128,128], index: 7, kind: input, shape index: {}]
  %s8 = inlined_call_operand.vmem [shape: f32[1,128], index: 8, kind: input, shape index: {}]
  %s9 = inlined_call_operand.vmem [shape: f32[16,128], index: 9, kind: output, shape index: {}]
  %s10 = sld [smem:[#allocation0]]
  $region46: #{lstm_without_projection_forward.1} parent=0
    _
  %s12 = ssub.s32 1, %s10
  %s13 = scalar_select 0, %s12, %s10
  // Predicated region
  $region2: #{lstm_without_projection_forward.1} parent=0 // pred_check
    _
  $region3: #{lstm_without_projection_forward.1} parent=0 // pred_check_branch
    %15 = sbr.rel (0) target = $region5
  $region4: #{lstm_without_projection_forward.1} parent=0 // pred_region
    _
  $region5: #{lstm_without_projection_forward.1} parent=0 // pred_fallthru
    _
  // Predicated region
  $region6: #{lstm_without_projection_forward.1} parent=0 // pred_check
    _
  $region7: #{lstm_without_projection_forward.1} parent=0 // pred_check_branch
    %17 = sbr.rel (0) target = $region9
  $region8: #{lstm_without_projection_forward.1} parent=0 // pred_region
    _
  $region9: #{lstm_without_projection_forward.1} parent=0 // pred_fallthru
    _
  // Predicated region
  $region10: #{lstm_without_projection_forward.1} parent=0 // pred_check
    _
  $region11: #{lstm_without_projection_forward.1} parent=0 // pred_check_branch
    %19 = sbr.rel (0) target = $region13
  $region12: #{lstm_without_projection_forward.1} parent=0 // pred_region
    _
  $region13: #{lstm_without_projection_forward.1} parent=0 // pred_fallthru
    _
  // Predicated region
  $region14: #{lstm_without_projection_forward.1} parent=0 // pred_check
    _
  $region15: #{lstm_without_projection_forward.1} parent=0 // pred_check_branch
    %21 = sbr.rel (0) target = $region17
  $region16: #{lstm_without_projection_forward.1} parent=0 // pred_region
    _
  $region17: #{lstm_without_projection_forward.1} parent=0 // pred_fallthru
    _
  // Predicated region
  $region18: #{lstm_without_projection_forward.1} parent=0 // pred_check
    _
  $region19: #{lstm_without_projection_forward.1} parent=0 // pred_check_branch
    %23 = sbr.rel (0) target = $region21
  $region20: #{lstm_without_projection_forward.1} parent=0 // pred_region
    _
  $region21: #{lstm_without_projection_forward.1} parent=0 // pred_fallthru
    _
  // Predicated region
  $region22: #{lstm_without_projection_forward.1} parent=0 // pred_check
    _
  $region23: #{lstm_without_projection_forward.1} parent=0 // pred_check_branch
    %25 = sbr.rel (0) target = $region25
  $region24: #{lstm_without_projection_forward.1} parent=0 // pred_region
    _
  $region25: #{lstm_without_projection_forward.1} parent=0 // pred_fallthru
    _
  // Predicated region
  $region26: #{lstm_without_projection_forward.1} parent=0 // pred_check
    _
  $region27: #{lstm_without_projection_forward.1} parent=0 // pred_check_branch
    %27 = sbr.rel (0) target = $region29
  $region28: #{lstm_without_projection_forward.1} parent=0 // pred_region
    _
  $region29: #{lstm_without_projection_forward.1} parent=0 // pred_fallthru
    _
  // Predicated region
  $region30: #{lstm_without_projection_forward.1} parent=0 // pred_check
    _
  $region31: #{lstm_without_projection_forward.1} parent=0 // pred_check_branch
    %29 = sbr.rel (0) target = $region33
  $region32: #{lstm_without_projection_forward.1} parent=0 // pred_region
    _
  $region33: #{lstm_without_projection_forward.1} parent=0 // pred_fallthru
    _
  // Predicated region
  $region34: #{lstm_without_projection_forward.1} parent=0 // pred_check
    _
  $region35: #{lstm_without_projection_forward.1} parent=0 // pred_check_branch
    %31 = sbr.rel (0) target = $region37
  $region36: #{lstm_without_projection_forward.1} parent=0 // pred_region
    _
  $region37: #{lstm_without_projection_forward.1} parent=0 // pred_fallthru
    _
  %v33 = vld [vmem:[%s0] sm:$0xf]
  %v34 = vld [vmem:[%s0 + $0x4] sm:$0xf]
  %v35 = vld [vmem:[%s0 + $0x8] sm:$0xf]
  %v36 = vld [vmem:[%s0 + $0xc] sm:$0xf]
  %v37 = vld [vmem:[%s0 + $0x10] sm:$0xf]
  %v38 = vld [vmem:[%s0 + $0x14] sm:$0xf]
  %v39 = vld [vmem:[%s0 + $0x18] sm:$0xf]
  %v40 = vld [vmem:[%s0 + $0x1c] sm:$0xf]
  %v41 = vld [vmem:[%s0 + $0x20] sm:$0xf]
  %v42 = vld [vmem:[%s0 + $0x24] sm:$0xf]
  %v43 = vld [vmem:[%s0 + $0x28] sm:$0xf]
  %v44 = vld [vmem:[%s0 + $0x2c] sm:$0xf]
  %v45 = vld [vmem:[%s0 + $0x30] sm:$0xf]
  %v46 = vld [vmem:[%s0 + $0x34] sm:$0xf]
  %v47 = vld [vmem:[%s0 + $0x38] sm:$0xf]
  %v48 = vld [vmem:[%s0 + $0x3c] sm:$0xf]
  %v49 = vld [vmem:[%s1] sm:$0xff]
  %v50 = vld [vmem:[%s1 + $0x8] sm:$0xff]
  %v51 = vld [vmem:[%s1 + $0x10] sm:$0xff]
  %v52 = vld [vmem:[%s1 + $0x18] sm:$0xff]
  %v53 = vld [vmem:[%s1 + $0x20] sm:$0xff]
  %v54 = vld [vmem:[%s1 + $0x28] sm:$0xff]
  %v55 = vld [vmem:[%s1 + $0x30] sm:$0xff]
  %v56 = vld [vmem:[%s1 + $0x38] sm:$0xff]
  %v57 = vld [vmem:[%s1 + $0x40] sm:$0xff]
  %v58 = vld [vmem:[%s1 + $0x48] sm:$0xff]
  %v59 = vld [vmem:[%s1 + $0x50] sm:$0xff]
  %v60 = vld [vmem:[%s1 + $0x58] sm:$0xff]
  %v61 = vld [vmem:[%s1 + $0x60] sm:$0xff]
  %v62 = vld [vmem:[%s1 + $0x68] sm:$0xff]
  %v63 = vld [vmem:[%s1 + $0x70] sm:$0xff]
  %v64 = vld [vmem:[%s1 + $0x78] sm:$0xff]
  %v65 = vld [vmem:[%s1 + $0x80] sm:$0xff]
  %v66 = vld [vmem:[%s1 + $0x88] sm:$0xff]
  %v67 = vld [vmem:[%s1 + $0x90] sm:$0xff]
  %v68 = vld [vmem:[%s1 + $0x98] sm:$0xff]
  %v69 = vld [vmem:[%s1 + $0xa0] sm:$0xff]
  %v70 = vld [vmem:[%s1 + $0xa8] sm:$0xff]
  %v71 = vld [vmem:[%s1 + $0xb0] sm:$0xff]
  %v72 = vld [vmem:[%s1 + $0xb8] sm:$0xff]
  %v73 = vld [vmem:[%s1 + $0xc0] sm:$0xff]
  %v74 = vld [vmem:[%s1 + $0xc8] sm:$0xff]
  %v75 = vld [vmem:[%s1 + $0xd0] sm:$0xff]
  %v76 = vld [vmem:[%s1 + $0xd8] sm:$0xff]
  %v77 = vld [vmem:[%s1 + $0xe0] sm:$0xff]
  %v78 = vld [vmem:[%s1 + $0xe8] sm:$0xff]
  %v79 = vld [vmem:[%s1 + $0xf0] sm:$0xff]
  %v80 = vld [vmem:[%s1 + $0xf8] sm:$0xff]
  %v81 = vld [vmem:[%s3] sm:$0xf]
  %v83 = vlaneseq
  %v84 = vshrl.u32 %v83, 7
  %v85 = vsub.s32 0, %v84
  %v86 = vrot.slane %v81, %v85
  %v87 = vlaneseq
  %v88 = vshrl.u32 %v87, 7
  %v89 = vsub.s32 1, %v88
  %v90 = vrot.slane %v81, %v89
  %v91 = vlaneseq
  %v92 = vshrl.u32 %v91, 7
  %v93 = vsub.s32 2, %v92
  %v94 = vrot.slane %v81, %v93
  %v95 = vlaneseq
  %v96 = vshrl.u32 %v95, 7
  %v97 = vsub.s32 3, %v96
  %v98 = vrot.slane %v81, %v97
  %v119 = vunpack.c.l.b16 %v33
  %v120 = vunpack.c.l.b16 %v34
  %v121 = vunpack.c.l.b16 %v35
  %v122 = vunpack.c.l.b16 %v36
  %v123 = vunpack.c.l.b16 %v37
  %v124 = vunpack.c.l.b16 %v38
  %v125 = vunpack.c.l.b16 %v39
  %v126 = vunpack.c.l.b16 %v40
  %v127 = vunpack.c.l.b16 %v41
  %v128 = vunpack.c.l.b16 %v42
  %v129 = vunpack.c.l.b16 %v43
  %v130 = vunpack.c.l.b16 %v44
  %v131 = vunpack.c.l.b16 %v45
  %v132 = vunpack.c.l.b16 %v46
  %v133 = vunpack.c.l.b16 %v47
  %v134 = vunpack.c.l.b16 %v48
  %v135 = vpack.c.b16 %v120, %v119
  %v136 = vpack.c.b16 %v122, %v121
  %v137 = vpack.c.b16 %v124, %v123
  %v138 = vpack.c.b16 %v126, %v125
  %v139 = vpack.c.b16 %v128, %v127
  %v140 = vpack.c.b16 %v130, %v129
  %v141 = vpack.c.b16 %v132, %v131
  %v142 = vpack.c.b16 %v134, %v133
  %v183 = vunpack.c.l.b16 %v49
  %v184 = vunpack.c.h.b16 %v49
  %v185 = vunpack.c.l.b16 %v50
  %v186 = vunpack.c.h.b16 %v50
  %v187 = vunpack.c.l.b16 %v51
  %v188 = vunpack.c.h.b16 %v51
  %v189 = vunpack.c.l.b16 %v52
  %v190 = vunpack.c.h.b16 %v52
  %v191 = vunpack.c.l.b16 %v53
  %v192 = vunpack.c.h.b16 %v53
  %v193 = vunpack.c.l.b16 %v54
  %v194 = vunpack.c.h.b16 %v54
  %v195 = vunpack.c.l.b16 %v55
  %v196 = vunpack.c.h.b16 %v55
  %v197 = vunpack.c.l.b16 %v56
  %v198 = vunpack.c.h.b16 %v56
  %v199 = vunpack.c.l.b16 %v57
  %v200 = vunpack.c.h.b16 %v57
  %v201 = vunpack.c.l.b16 %v58
  %v202 = vunpack.c.h.b16 %v58
  %v203 = vunpack.c.l.b16 %v59
  %v204 = vunpack.c.h.b16 %v59
  %v205 = vunpack.c.l.b16 %v60
  %v206 = vunpack.c.h.b16 %v60
  %v207 = vunpack.c.l.b16 %v61
  %v208 = vunpack.c.h.b16 %v61
  %v209 = vunpack.c.l.b16 %v62
  %v210 = vunpack.c.h.b16 %v62
  %v211 = vunpack.c.l.b16 %v63
  %v212 = vunpack.c.h.b16 %v63
  %v213 = vunpack.c.l.b16 %v64
  %v214 = vunpack.c.h.b16 %v64
  %v215 = vunpack.c.l.b16 %v65
  %v216 = vunpack.c.h.b16 %v65
  %v217 = vunpack.c.l.b16 %v66
  %v218 = vunpack.c.h.b16 %v66
  %v219 = vunpack.c.l.b16 %v67
  %v220 = vunpack.c.h.b16 %v67
  %v221 = vunpack.c.l.b16 %v68
  %v222 = vunpack.c.h.b16 %v68
  %v223 = vunpack.c.l.b16 %v69
  %v224 = vunpack.c.h.b16 %v69
  %v225 = vunpack.c.l.b16 %v70
  %v226 = vunpack.c.h.b16 %v70
  %v227 = vunpack.c.l.b16 %v71
  %v228 = vunpack.c.h.b16 %v71
  %v229 = vunpack.c.l.b16 %v72
  %v230 = vunpack.c.h.b16 %v72
  %v231 = vunpack.c.l.b16 %v73
  %v232 = vunpack.c.h.b16 %v73
  %v233 = vunpack.c.l.b16 %v74
  %v234 = vunpack.c.h.b16 %v74
  %v235 = vunpack.c.l.b16 %v75
  %v236 = vunpack.c.h.b16 %v75
  %v237 = vunpack.c.l.b16 %v76
  %v238 = vunpack.c.h.b16 %v76
  %v239 = vunpack.c.l.b16 %v77
  %v240 = vunpack.c.h.b16 %v77
  %v241 = vunpack.c.l.b16 %v78
  %v242 = vunpack.c.h.b16 %v78
  %v243 = vunpack.c.l.b16 %v79
  %v244 = vunpack.c.h.b16 %v79
  %v245 = vunpack.c.l.b16 %v80
  %v246 = vunpack.c.h.b16 %v80
  %v247 = vpack.c.b16 %v187, %v183
  %v248 = vpack.c.b16 %v188, %v184
  %v249 = vpack.c.b16 %v189, %v185
  %v250 = vpack.c.b16 %v190, %v186
  %v251 = vpack.c.b16 %v195, %v191
  %v252 = vpack.c.b16 %v196, %v192
  %v253 = vpack.c.b16 %v197, %v193
  %v254 = vpack.c.b16 %v198, %v194
  %v255 = vpack.c.b16 %v203, %v199
  %v256 = vpack.c.b16 %v204, %v200
  %v257 = vpack.c.b16 %v205, %v201
  %v258 = vpack.c.b16 %v206, %v202
  %v259 = vpack.c.b16 %v211, %v207
  %v260 = vpack.c.b16 %v212, %v208
  %v261 = vpack.c.b16 %v213, %v209
  %v262 = vpack.c.b16 %v214, %v210
  %v263 = vpack.c.b16 %v219, %v215
  %v264 = vpack.c.b16 %v220, %v216
  %v265 = vpack.c.b16 %v221, %v217
  %v266 = vpack.c.b16 %v222, %v218
  %v267 = vpack.c.b16 %v227, %v223
  %v268 = vpack.c.b16 %v228, %v224
  %v269 = vpack.c.b16 %v229, %v225
  %v270 = vpack.c.b16 %v230, %v226
  %v271 = vpack.c.b16 %v235, %v231
  %v272 = vpack.c.b16 %v236, %v232
  %v273 = vpack.c.b16 %v237, %v233
  %v274 = vpack.c.b16 %v238, %v234
  %v275 = vpack.c.b16 %v243, %v239
  %v276 = vpack.c.b16 %v244, %v240
  %v277 = vpack.c.b16 %v245, %v241
  %v278 = vpack.c.b16 %v246, %v242
  %311 = vmatprep.subr.bf16.mxu0 %v248
  %312 = vmatpush1.bf16.msra.mxu0 %v247
  %313 = vmatprep.subr.bf16.mxu0 %v252
  %314 = vmatpush1.bf16.msra.mxu0 %v251
  %315 = vmatprep.subr.bf16.mxu0 %v256
  %316 = vmatpush1.bf16.msra.mxu0 %v255
  %317 = vmatprep.subr.bf16.mxu0 %v260
  %318 = vmatpush1.bf16.msra.mxu0 %v259
  %319 = vmatprep.subr.bf16.mxu0 %v264
  %320 = vmatpush1.bf16.msra.mxu0 %v263
  %321 = vmatprep.subr.bf16.mxu0 %v268
  %322 = vmatpush1.bf16.msra.mxu0 %v267
  %323 = vmatprep.subr.bf16.mxu0 %v272
  %324 = vmatpush1.bf16.msra.mxu0 %v271
  %325 = vmatprep.subr.bf16.mxu0 %v276
  %326 = vmatpush1.bf16.msra.mxu0 %v275
  %327 = vmatprep.subr.bf16.mxu0 0
  %328 = vmatpush1.bf16.msra.mxu0 0
  %329 = vmatprep.subr.bf16.mxu0 0
  %330 = vmatpush1.bf16.msra.mxu0 0
  %331 = vmatprep.subr.bf16.mxu0 0
  %332 = vmatpush1.bf16.msra.mxu0 0
  %333 = vmatprep.subr.bf16.mxu0 0
  %334 = vmatpush1.bf16.msra.mxu0 0
  %335 = vmatprep.subr.bf16.mxu0 0
  %336 = vmatpush1.bf16.msra.mxu0 0
  %337 = vmatprep.subr.bf16.mxu0 0
  %338 = vmatpush1.bf16.msra.mxu0 0
  %339 = vmatprep.subr.bf16.mxu0 0
  %340 = vmatpush1.bf16.msra.mxu0 0
  %341 = vmatprep.subr.bf16.mxu0 0
  %342 = vmatpush1.bf16.msra.mxu0 0
  %343 = vmatprep.mubr.bf16.mxu0 0
  %344 = vmatmul.mubr.bf16.gmra.mrb[0].mxu0 %v135
  %v345 = vpop.f32.mrb[0].mxu0
  %v346 = vadd.f32 %v86, %v345
  %v347 = vpop.f32.mrb[0].mxu0
  %v348 = vadd.f32 %v90, %v347
  %v349 = vpop.f32.mrb[0].mxu0
  %v350 = vadd.f32 %v86, %v349
  %v351 = vpop.f32.mrb[0].mxu0
  %v352 = vadd.f32 %v90, %v351
  %353 = vmatprep.mubr.bf16.mxu0 0
  %354 = vmatmul.mubr.bf16.gmra.mrb[0].mxu0 %v136
  %v355 = vpop.f32.mrb[0].mxu0
  %v356 = vadd.f32 %v86, %v355
  %v357 = vpop.f32.mrb[0].mxu0
  %v358 = vadd.f32 %v90, %v357
  %v359 = vpop.f32.mrb[0].mxu0
  %v360 = vadd.f32 %v86, %v359
  %v361 = vpop.f32.mrb[0].mxu0
  %v362 = vadd.f32 %v90, %v361
  %363 = vmatprep.mubr.bf16.mxu0 0
  %364 = vmatmul.mubr.bf16.gmra.mrb[0].mxu0 %v137
  %v365 = vpop.f32.mrb[0].mxu0
  %v366 = vadd.f32 %v86, %v365
  %v367 = vpop.f32.mrb[0].mxu0
  %v368 = vadd.f32 %v90, %v367
  %v369 = vpop.f32.mrb[0].mxu0
  %v370 = vadd.f32 %v86, %v369
  %v371 = vpop.f32.mrb[0].mxu0
  %v372 = vadd.f32 %v90, %v371
  %373 = vmatprep.mubr.bf16.mxu0 0
  %374 = vmatmul.mubr.bf16.gmra.mrb[0].mxu0 %v138
  %v375 = vpop.f32.mrb[0].mxu0
  %v376 = vadd.f32 %v86, %v375
  %v377 = vpop.f32.mrb[0].mxu0
  %v378 = vadd.f32 %v90, %v377
  %v379 = vpop.f32.mrb[0].mxu0
  %v380 = vadd.f32 %v86, %v379
  %v381 = vpop.f32.mrb[0].mxu0
  %v382 = vadd.f32 %v90, %v381
  %383 = vmatprep.mubr.bf16.mxu0 0
  %384 = vmatmul.mubr.bf16.gmra.mrb[0].mxu0 %v139
  %v385 = vpop.f32.mrb[0].mxu0
  %v386 = vadd.f32 %v86, %v385
  %v387 = vpop.f32.mrb[0].mxu0
  %v388 = vadd.f32 %v90, %v387
  %v389 = vpop.f32.mrb[0].mxu0
  %v390 = vadd.f32 %v86, %v389
  %v391 = vpop.f32.mrb[0].mxu0
  %v392 = vadd.f32 %v90, %v391
  %393 = vmatprep.mubr.bf16.mxu0 0
  %394 = vmatmul.mubr.bf16.gmra.mrb[0].mxu0 %v140
  %v395 = vpop.f32.mrb[0].mxu0
  %v396 = vadd.f32 %v86, %v395
  %v397 = vpop.f32.mrb[0].mxu0
  %v398 = vadd.f32 %v90, %v397
  %v399 = vpop.f32.mrb[0].mxu0
  %v400 = vadd.f32 %v86, %v399
  %v401 = vpop.f32.mrb[0].mxu0
  %v402 = vadd.f32 %v90, %v401
  %403 = vmatprep.mubr.bf16.mxu0 0
  %404 = vmatmul.mubr.bf16.gmra.mrb[0].mxu0 %v141
  %v405 = vpop.f32.mrb[0].mxu0
  %v406 = vadd.f32 %v86, %v405
  %v407 = vpop.f32.mrb[0].mxu0
  %v408 = vadd.f32 %v90, %v407
  %v409 = vpop.f32.mrb[0].mxu0
  %v410 = vadd.f32 %v86, %v409
  %v411 = vpop.f32.mrb[0].mxu0
  %v412 = vadd.f32 %v90, %v411
  %413 = vmatprep.mubr.bf16.mxu0 0
  %414 = vmatmul.mubr.bf16.gmra.mrb[0].mxu0 %v142
  %v415 = vpop.f32.mrb[0].mxu0
  %v416 = vadd.f32 %v86, %v415
  %v417 = vpop.f32.mrb[0].mxu0
  %v418 = vadd.f32 %v90, %v417
  %v419 = vpop.f32.mrb[0].mxu0
  %v420 = vadd.f32 %v86, %v419
  %v421 = vpop.f32.mrb[0].mxu0
  %v422 = vadd.f32 %v90, %v421
  %423 = vdwg.mxu0
  %424 = vmatprep.subr.bf16.mxu0 %v250
  %425 = vmatpush1.bf16.msra.mxu0 %v249
  %426 = vmatprep.subr.bf16.mxu0 %v254
  %427 = vmatpush1.bf16.msra.mxu0 %v253
  %428 = vmatprep.subr.bf16.mxu0 %v258
  %429 = vmatpush1.bf16.msra.mxu0 %v257
  %430 = vmatprep.subr.bf16.mxu0 %v262
  %431 = vmatpush1.bf16.msra.mxu0 %v261
  %432 = vmatprep.subr.bf16.mxu0 %v266
  %433 = vmatpush1.bf16.msra.mxu0 %v265
  %434 = vmatprep.subr.bf16.mxu0 %v270
  %435 = vmatpush1.bf16.msra.mxu0 %v269
  %436 = vmatprep.subr.bf16.mxu0 %v274
  %437 = vmatpush1.bf16.msra.mxu0 %v273
  %438 = vmatprep.subr.bf16.mxu0 %v278
  %439 = vmatpush1.bf16.msra.mxu0 %v277
  %440 = vmatprep.subr.bf16.mxu0 0
  %441 = vmatpush1.bf16.msra.mxu0 0
  %442 = vmatprep.subr.bf16.mxu0 0
  %443 = vmatpush1.bf16.msra.mxu0 0
  %444 = vmatprep.subr.bf16.mxu0 0
  %445 = vmatpush1.bf16.msra.mxu0 0
  %446 = vmatprep.subr.bf16.mxu0 0
  %447 = vmatpush1.bf16.msra.mxu0 0
  %448 = vmatprep.subr.bf16.mxu0 0
  %449 = vmatpush1.bf16.msra.mxu0 0
  %450 = vmatprep.subr.bf16.mxu0 0
  %451 = vmatpush1.bf16.msra.mxu0 0
  %452 = vmatprep.subr.bf16.mxu0 0
  %453 = vmatpush1.bf16.msra.mxu0 0
  %454 = vmatprep.subr.bf16.mxu0 0
  %455 = vmatpush1.bf16.msra.mxu0 0
  %456 = vmatprep.mubr.bf16.mxu0 0
  %457 = vmatmul.mubr.bf16.gmra.mrb[0].mxu0 %v135
  %v458 = vpop.f32.mrb[0].mxu0
  %v459 = vadd.f32 %v94, %v458
  %v460 = vpop.f32.mrb[0].mxu0
  %v461 = vadd.f32 %v98, %v460
  %v462 = vpop.f32.mrb[0].mxu0
  %v463 = vadd.f32 %v94, %v462
  %v464 = vpop.f32.mrb[0].mxu0
  %v465 = vadd.f32 %v98, %v464
  %466 = vmatprep.mubr.bf16.mxu0 0
  %467 = vmatmul.mubr.bf16.gmra.mrb[0].mxu0 %v136
  %v468 = vpop.f32.mrb[0].mxu0
  %v469 = vadd.f32 %v94, %v468
  %v470 = vpop.f32.mrb[0].mxu0
  %v471 = vadd.f32 %v98, %v470
  %v472 = vpop.f32.mrb[0].mxu0
  %v473 = vadd.f32 %v94, %v472
  %v474 = vpop.f32.mrb[0].mxu0
  %v475 = vadd.f32 %v98, %v474
  %476 = vmatprep.mubr.bf16.mxu0 0
  %477 = vmatmul.mubr.bf16.gmra.mrb[0].mxu0 %v137
  %v478 = vpop.f32.mrb[0].mxu0
  %v479 = vadd.f32 %v94, %v478
  %v480 = vpop.f32.mrb[0].mxu0
  %v481 = vadd.f32 %v98, %v480
  %v482 = vpop.f32.mrb[0].mxu0
  %v483 = vadd.f32 %v94, %v482
  %v484 = vpop.f32.mrb[0].mxu0
  %v485 = vadd.f32 %v98, %v484
  %486 = vmatprep.mubr.bf16.mxu0 0
  %487 = vmatmul.mubr.bf16.gmra.mrb[0].mxu0 %v138
  %v488 = vpop.f32.mrb[0].mxu0
  %v489 = vadd.f32 %v94, %v488
  %v490 = vpop.f32.mrb[0].mxu0
  %v491 = vadd.f32 %v98, %v490
  %v492 = vpop.f32.mrb[0].mxu0
  %v493 = vadd.f32 %v94, %v492
  %v494 = vpop.f32.mrb[0].mxu0
  %v495 = vadd.f32 %v98, %v494
  %496 = vmatprep.mubr.bf16.mxu0 0
  %497 = vmatmul.mubr.bf16.gmra.mrb[0].mxu0 %v139
  %v498 = vpop.f32.mrb[0].mxu0
  %v499 = vadd.f32 %v94, %v498
  %v500 = vpop.f32.mrb[0].mxu0
  %v501 = vadd.f32 %v98, %v500
  %v502 = vpop.f32.mrb[0].mxu0
  %v503 = vadd.f32 %v94, %v502
  %v504 = vpop.f32.mrb[0].mxu0
  %v505 = vadd.f32 %v98, %v504
  %506 = vmatprep.mubr.bf16.mxu0 0
  %507 = vmatmul.mubr.bf16.gmra.mrb[0].mxu0 %v140
  %v508 = vpop.f32.mrb[0].mxu0
  %v509 = vadd.f32 %v94, %v508
  %v510 = vpop.f32.mrb[0].mxu0
  %v511 = vadd.f32 %v98, %v510
  %v512 = vpop.f32.mrb[0].mxu0
  %v513 = vadd.f32 %v94, %v512
  %v514 = vpop.f32.mrb[0].mxu0
  %v515 = vadd.f32 %v98, %v514
  %516 = vmatprep.mubr.bf16.mxu0 0
  %517 = vmatmul.mubr.bf16.gmra.mrb[0].mxu0 %v141
  %v518 = vpop.f32.mrb[0].mxu0
  %v519 = vadd.f32 %v94, %v518
  %v520 = vpop.f32.mrb[0].mxu0
  %v521 = vadd.f32 %v98, %v520
  %v522 = vpop.f32.mrb[0].mxu0
  %v523 = vadd.f32 %v94, %v522
  %v524 = vpop.f32.mrb[0].mxu0
  %v525 = vadd.f32 %v98, %v524
  %526 = vmatprep.mubr.bf16.mxu0 0
  %527 = vmatmul.mubr.bf16.gmra.mrb[0].mxu0 %v142
  %v528 = vpop.f32.mrb[0].mxu0
  %v529 = vadd.f32 %v94, %v528
  %v530 = vpop.f32.mrb[0].mxu0
  %v531 = vadd.f32 %v98, %v530
  %v532 = vpop.f32.mrb[0].mxu0
  %v533 = vadd.f32 %v94, %v532
  %v534 = vpop.f32.mrb[0].mxu0
  %v535 = vadd.f32 %v98, %v534
  %536 = vdwg.mxu0
  %v537 = vpack.c.bf16 %v350, %v346
  %v538 = vpack.c.bf16 %v352, %v348
  %v539 = vpack.c.bf16 %v463, %v459
  %v540 = vpack.c.bf16 %v465, %v461
  %v541 = vpack.c.bf16 %v360, %v356
  %v542 = vpack.c.bf16 %v362, %v358
  %v543 = vpack.c.bf16 %v473, %v469
  %v544 = vpack.c.bf16 %v475, %v471
  %v545 = vpack.c.bf16 %v370, %v366
  %v546 = vpack.c.bf16 %v372, %v368
  %v547 = vpack.c.bf16 %v483, %v479
  %v548 = vpack.c.bf16 %v485, %v481
  %v549 = vpack.c.bf16 %v380, %v376
  %v550 = vpack.c.bf16 %v382, %v378
  %v551 = vpack.c.bf16 %v493, %v489
  %v552 = vpack.c.bf16 %v495, %v491
  %v553 = vpack.c.bf16 %v390, %v386
  %v554 = vpack.c.bf16 %v392, %v388
  %v555 = vpack.c.bf16 %v503, %v499
  %v556 = vpack.c.bf16 %v505, %v501
  %v557 = vpack.c.bf16 %v400, %v396
  %v558 = vpack.c.bf16 %v402, %v398
  %v559 = vpack.c.bf16 %v513, %v509
  %v560 = vpack.c.bf16 %v515, %v511
  %v561 = vpack.c.bf16 %v410, %v406
  %v562 = vpack.c.bf16 %v412, %v408
  %v563 = vpack.c.bf16 %v523, %v519
  %v564 = vpack.c.bf16 %v525, %v521
  %v565 = vpack.c.bf16 %v420, %v416
  %v566 = vpack.c.bf16 %v422, %v418
  %v567 = vpack.c.bf16 %v533, %v529
  %v568 = vpack.c.bf16 %v535, %v531
  %569 = vst [vmem:[#allocation3] sm:$0xff] %v537
  %570 = vst [vmem:[#allocation3 + $0x8] sm:$0xff] %v538
  %571 = vst [vmem:[#allocation3 + $0x10] sm:$0xff] %v539
  %572 = vst [vmem:[#allocation3 + $0x18] sm:$0xff] %v540
  %573 = vst [vmem:[#allocation3 + $0x20] sm:$0xff] %v541
  %574 = vst [vmem:[#allocation3 + $0x28] sm:$0xff] %v542
  %575 = vst [vmem:[#allocation3 + $0x30] sm:$0xff] %v543
  %576 = vst [vmem:[#allocation3 + $0x38] sm:$0xff] %v544
  %577 = vst [vmem:[#allocation3 + $0x40] sm:$0xff] %v545
  %578 = vst [vmem:[#allocation3 + $0x48] sm:$0xff] %v546
  %579 = vst [vmem:[#allocation3 + $0x50] sm:$0xff] %v547
  %580 = vst [vmem:[#allocation3 + $0x58] sm:$0xff] %v548
  %581 = vst [vmem:[#allocation3 + $0x60] sm:$0xff] %v549
  %582 = vst [vmem:[#allocation3 + $0x68] sm:$0xff] %v550
  %583 = vst [vmem:[#allocation3 + $0x70] sm:$0xff] %v551
  %584 = vst [vmem:[#allocation3 + $0x78] sm:$0xff] %v552
  %585 = vst [vmem:[#allocation3 + $0x80] sm:$0xff] %v553
  %586 = vst [vmem:[#allocation3 + $0x88] sm:$0xff] %v554
  %587 = vst [vmem:[#allocation3 + $0x90] sm:$0xff] %v555
  %588 = vst [vmem:[#allocation3 + $0x98] sm:$0xff] %v556
  %589 = vst [vmem:[#allocation3 + $0xa0] sm:$0xff] %v557
  %590 = vst [vmem:[#allocation3 + $0xa8] sm:$0xff] %v558
  %591 = vst [vmem:[#allocation3 + $0xb0] sm:$0xff] %v559
  %592 = vst [vmem:[#allocation3 + $0xb8] sm:$0xff] %v560
  %593 = vst [vmem:[#allocation3 + $0xc0] sm:$0xff] %v561
  %594 = vst [vmem:[#allocation3 + $0xc8] sm:$0xff] %v562
  %595 = vst [vmem:[#allocation3 + $0xd0] sm:$0xff] %v563
  %596 = vst [vmem:[#allocation3 + $0xd8] sm:$0xff] %v564
  %597 = vst [vmem:[#allocation3 + $0xe0] sm:$0xff] %v565
  %598 = vst [vmem:[#allocation3 + $0xe8] sm:$0xff] %v566
  %599 = vst [vmem:[#allocation3 + $0xf0] sm:$0xff] %v567
  %600 = vst [vmem:[#allocation3 + $0xf8] sm:$0xff] %v568
  %601 = vst [vmem:[#allocation4] sm:$0xff] 0.0
  %602 = vst [vmem:[#allocation4 + $0x8] sm:$0xff] 0.0
  %603 = vst [vmem:[#allocation5] sm:$0xff] 0.0
  %604 = vst [vmem:[#allocation5 + $0x8] sm:$0xff] 0.0
  %s605 = smul.u32 0, 4
  %s606 = smul.addr %s605, 8
  %s607 = scalar_lea.vmem [#allocation3], %s606
  %v608 = vld [vmem:[%s607] sm:$0xff]
  %v609 = vld [vmem:[%s607 + $0x8] sm:$0xff]
  %v610 = vld [vmem:[%s607 + $0x10] sm:$0xff]
  %v611 = vld [vmem:[%s607 + $0x18] sm:$0xff]
  %v612 = vunpack.c.l.bf16 %v608
  %v613 = vunpack.c.l.bf16 %v609
  %v614 = vunpack.c.l.bf16 %v610
  %v615 = vunpack.c.l.bf16 %v611
  %v616 = vunpack.c.h.bf16 %v608
  %v617 = vunpack.c.h.bf16 %v609
  %v618 = vunpack.c.h.bf16 %v610
  %v619 = vunpack.c.h.bf16 %v611
  %v620 = vld [vmem:[#allocation4] sm:$0xff]
  %v621 = vld [vmem:[#allocation4 + $0x8] sm:$0xff]
  %v622 = vpack.c.bf16 %v621, %v620
  %v623 = vld [vmem:[%s2] sm:$0xff]
  %v624 = vld [vmem:[%s2 + $0x8] sm:$0xff]
  %v625 = vld [vmem:[%s2 + $0x10] sm:$0xff]
  %v626 = vld [vmem:[%s2 + $0x18] sm:$0xff]
  %v627 = vld [vmem:[%s2 + $0x20] sm:$0xff]
  %v628 = vld [vmem:[%s2 + $0x28] sm:$0xff]
  %v629 = vld [vmem:[%s2 + $0x30] sm:$0xff]
  %v630 = vld [vmem:[%s2 + $0x38] sm:$0xff]
  %v631 = vld [vmem:[%s2 + $0x40] sm:$0xff]
  %v632 = vld [vmem:[%s2 + $0x48] sm:$0xff]
  %v633 = vld [vmem:[%s2 + $0x50] sm:$0xff]
  %v634 = vld [vmem:[%s2 + $0x58] sm:$0xff]
  %v635 = vld [vmem:[%s2 + $0x60] sm:$0xff]
  %v636 = vld [vmem:[%s2 + $0x68] sm:$0xff]
  %v637 = vld [vmem:[%s2 + $0x70] sm:$0xff]
  %v638 = vld [vmem:[%s2 + $0x78] sm:$0xff]
  %v639 = vld [vmem:[%s2 + $0x80] sm:$0xff]
  %v640 = vld [vmem:[%s2 + $0x88] sm:$0xff]
  %v641 = vld [vmem:[%s2 + $0x90] sm:$0xff]
  %v642 = vld [vmem:[%s2 + $0x98] sm:$0xff]
  %v643 = vld [vmem:[%s2 + $0xa0] sm:$0xff]
  %v644 = vld [vmem:[%s2 + $0xa8] sm:$0xff]
  %v645 = vld [vmem:[%s2 + $0xb0] sm:$0xff]
  %v646 = vld [vmem:[%s2 + $0xb8] sm:$0xff]
  %v647 = vld [vmem:[%s2 + $0xc0] sm:$0xff]
  %v648 = vld [vmem:[%s2 + $0xc8] sm:$0xff]
  %v649 = vld [vmem:[%s2 + $0xd0] sm:$0xff]
  %v650 = vld [vmem:[%s2 + $0xd8] sm:$0xff]
  %v651 = vld [vmem:[%s2 + $0xe0] sm:$0xff]
  %v652 = vld [vmem:[%s2 + $0xe8] sm:$0xff]
  %v653 = vld [vmem:[%s2 + $0xf0] sm:$0xff]
  %v654 = vld [vmem:[%s2 + $0xf8] sm:$0xff]
  %v687 = vunpack.c.l.b16 %v623
  %v688 = vunpack.c.h.b16 %v623
  %v689 = vunpack.c.l.b16 %v624
  %v690 = vunpack.c.h.b16 %v624
  %v691 = vunpack.c.l.b16 %v625
  %v692 = vunpack.c.h.b16 %v625
  %v693 = vunpack.c.l.b16 %v626
  %v694 = vunpack.c.h.b16 %v626
  %v695 = vunpack.c.l.b16 %v627
  %v696 = vunpack.c.h.b16 %v627
  %v697 = vunpack.c.l.b16 %v628
  %v698 = vunpack.c.h.b16 %v628
  %v699 = vunpack.c.l.b16 %v629
  %v700 = vunpack.c.h.b16 %v629
  %v701 = vunpack.c.l.b16 %v630
  %v702 = vunpack.c.h.b16 %v630
  %v703 = vunpack.c.l.b16 %v631
  %v704 = vunpack.c.h.b16 %v631
  %v705 = vunpack.c.l.b16 %v632
  %v706 = vunpack.c.h.b16 %v632
  %v707 = vunpack.c.l.b16 %v633
  %v708 = vunpack.c.h.b16 %v633
  %v709 = vunpack.c.l.b16 %v634
  %v710 = vunpack.c.h.b16 %v634
  %v711 = vunpack.c.l.b16 %v635
  %v712 = vunpack.c.h.b16 %v635
  %v713 = vunpack.c.l.b16 %v636
  %v714 = vunpack.c.h.b16 %v636
  %v715 = vunpack.c.l.b16 %v637
  %v716 = vunpack.c.h.b16 %v637
  %v717 = vunpack.c.l.b16 %v638
  %v718 = vunpack.c.h.b16 %v638
  %v719 = vunpack.c.l.b16 %v639
  %v720 = vunpack.c.h.b16 %v639
  %v721 = vunpack.c.l.b16 %v640
  %v722 = vunpack.c.h.b16 %v640
  %v723 = vunpack.c.l.b16 %v641
  %v724 = vunpack.c.h.b16 %v641
  %v725 = vunpack.c.l.b16 %v642
  %v726 = vunpack.c.h.b16 %v642
  %v727 = vunpack.c.l.b16 %v643
  %v728 = vunpack.c.h.b16 %v643
  %v729 = vunpack.c.l.b16 %v644
  %v730 = vunpack.c.h.b16 %v644
  %v731 = vunpack.c.l.b16 %v645
  %v732 = vunpack.c.h.b16 %v645
  %v733 = vunpack.c.l.b16 %v646
  %v734 = vunpack.c.h.b16 %v646
  %v735 = vunpack.c.l.b16 %v647
  %v736 = vunpack.c.h.b16 %v647
  %v737 = vunpack.c.l.b16 %v648
  %v738 = vunpack.c.h.b16 %v648
  %v739 = vunpack.c.l.b16 %v649
  %v740 = vunpack.c.h.b16 %v649
  %v741 = vunpack.c.l.b16 %v650
  %v742 = vunpack.c.h.b16 %v650
  %v743 = vunpack.c.l.b16 %v651
  %v744 = vunpack.c.h.b16 %v651
  %v745 = vunpack.c.l.b16 %v652
  %v746 = vunpack.c.h.b16 %v652
  %v747 = vunpack.c.l.b16 %v653
  %v748 = vunpack.c.h.b16 %v653
  %v749 = vunpack.c.l.b16 %v654
  %v750 = vunpack.c.h.b16 %v654
  %v751 = vpack.c.b16 %v691, %v687
  %v752 = vpack.c.b16 %v692, %v688
  %v753 = vpack.c.b16 %v693, %v689
  %v754 = vpack.c.b16 %v694, %v690
  %v755 = vpack.c.b16 %v699, %v695
  %v756 = vpack.c.b16 %v700, %v696
  %v757 = vpack.c.b16 %v701, %v697
  %v758 = vpack.c.b16 %v702, %v698
  %v759 = vpack.c.b16 %v707, %v703
  %v760 = vpack.c.b16 %v708, %v704
  %v761 = vpack.c.b16 %v709, %v705
  %v762 = vpack.c.b16 %v710, %v706
  %v763 = vpack.c.b16 %v715, %v711
  %v764 = vpack.c.b16 %v716, %v712
  %v765 = vpack.c.b16 %v717, %v713
  %v766 = vpack.c.b16 %v718, %v714
  %v767 = vpack.c.b16 %v723, %v719
  %v768 = vpack.c.b16 %v724, %v720
  %v769 = vpack.c.b16 %v725, %v721
  %v770 = vpack.c.b16 %v726, %v722
  %v771 = vpack.c.b16 %v731, %v727
  %v772 = vpack.c.b16 %v732, %v728
  %v773 = vpack.c.b16 %v733, %v729
  %v774 = vpack.c.b16 %v734, %v730
  %v775 = vpack.c.b16 %v739, %v735
  %v776 = vpack.c.b16 %v740, %v736
  %v777 = vpack.c.b16 %v741, %v737
  %v778 = vpack.c.b16 %v742, %v738
  %v779 = vpack.c.b16 %v747, %v743
  %v780 = vpack.c.b16 %v748, %v744
  %v781 = vpack.c.b16 %v749, %v745
  %v782 = vpack.c.b16 %v750, %v746
  %815 = vmatprep.subr.bf16.mxu0 %v752
  %816 = vmatpush1.bf16.msra.mxu0 %v751
  %817 = vmatprep.subr.bf16.mxu0 %v756
  %818 = vmatpush1.bf16.msra.mxu0 %v755
  %819 = vmatprep.subr.bf16.mxu0 %v760
  %820 = vmatpush1.bf16.msra.mxu0 %v759
  %821 = vmatprep.subr.bf16.mxu0 %v764
  %822 = vmatpush1.bf16.msra.mxu0 %v763
  %823 = vmatprep.subr.bf16.mxu0 %v768
  %824 = vmatpush1.bf16.msra.mxu0 %v767
  %825 = vmatprep.subr.bf16.mxu0 %v772
  %826 = vmatpush1.bf16.msra.mxu0 %v771
  %827 = vmatprep.subr.bf16.mxu0 %v776
  %828 = vmatpush1.bf16.msra.mxu0 %v775
  %829 = vmatprep.subr.bf16.mxu0 %v780
  %830 = vmatpush1.bf16.msra.mxu0 %v779
  %831 = vmatprep.subr.bf16.mxu0 0
  %832 = vmatpush1.bf16.msra.mxu0 0
  %833 = vmatprep.subr.bf16.mxu0 0
  %834 = vmatpush1.bf16.msra.mxu0 0
  %835 = vmatprep.subr.bf16.mxu0 0
  %836 = vmatpush1.bf16.msra.mxu0 0
  %837 = vmatprep.subr.bf16.mxu0 0
  %838 = vmatpush1.bf16.msra.mxu0 0
  %839 = vmatprep.subr.bf16.mxu0 0
  %840 = vmatpush1.bf16.msra.mxu0 0
  %841 = vmatprep.subr.bf16.mxu0 0
  %842 = vmatpush1.bf16.msra.mxu0 0
  %843 = vmatprep.subr.bf16.mxu0 0
  %844 = vmatpush1.bf16.msra.mxu0 0
  %845 = vmatprep.subr.bf16.mxu0 0
  %846 = vmatpush1.bf16.msra.mxu0 0
  %847 = vmatprep.mubr.bf16.mxu0 0
  %848 = vmatmul.mubr.bf16.gmra.mrb[0].mxu0 %v622
  %v849 = vpop.f32.mrb[0].mxu0
  %v850 = vadd.f32 0.0, %v849
  %v851 = vpop.f32.mrb[0].mxu0
  %v852 = vadd.f32 0.0, %v851
  %v853 = vpop.f32.mrb[0].mxu0
  %v854 = vadd.f32 0.0, %v853
  %v855 = vpop.f32.mrb[0].mxu0
  %v856 = vadd.f32 0.0, %v855
  %857 = vdwg.mxu0
  %858 = vmatprep.subr.bf16.mxu0 %v754
  %859 = vmatpush1.bf16.msra.mxu0 %v753
  %860 = vmatprep.subr.bf16.mxu0 %v758
  %861 = vmatpush1.bf16.msra.mxu0 %v757
  %862 = vmatprep.subr.bf16.mxu0 %v762
  %863 = vmatpush1.bf16.msra.mxu0 %v761
  %864 = vmatprep.subr.bf16.mxu0 %v766
  %865 = vmatpush1.bf16.msra.mxu0 %v765
  %866 = vmatprep.subr.bf16.mxu0 %v770
  %867 = vmatpush1.bf16.msra.mxu0 %v769
  %868 = vmatprep.subr.bf16.mxu0 %v774
  %869 = vmatpush1.bf16.msra.mxu0 %v773
  %870 = vmatprep.subr.bf16.mxu0 %v778
  %871 = vmatpush1.bf16.msra.mxu0 %v777
  %872 = vmatprep.subr.bf16.mxu0 %v782
  %873 = vmatpush1.bf16.msra.mxu0 %v781
  %874 = vmatprep.subr.bf16.mxu0 0
  %875 = vmatpush1.bf16.msra.mxu0 0
  %876 = vmatprep.subr.bf16.mxu0 0
  %877 = vmatpush1.bf16.msra.mxu0 0
  %878 = vmatprep.subr.bf16.mxu0 0
  %879 = vmatpush1.bf16.msra.mxu0 0
  %880 = vmatprep.subr.bf16.mxu0 0
  %881 = vmatpush1.bf16.msra.mxu0 0
  %882 = vmatprep.subr.bf16.mxu0 0
  %883 = vmatpush1.bf16.msra.mxu0 0
  %884 = vmatprep.subr.bf16.mxu0 0
  %885 = vmatpush1.bf16.msra.mxu0 0
  %886 = vmatprep.subr.bf16.mxu0 0
  %887 = vmatpush1.bf16.msra.mxu0 0
  %888 = vmatprep.subr.bf16.mxu0 0
  %889 = vmatpush1.bf16.msra.mxu0 0
  %890 = vmatprep.mubr.bf16.mxu0 0
  %891 = vmatmul.mubr.bf16.gmra.mrb[0].mxu0 %v622
  %v892 = vpop.f32.mrb[0].mxu0
  %v893 = vadd.f32 0.0, %v892
  %v894 = vpop.f32.mrb[0].mxu0
  %v895 = vadd.f32 0.0, %v894
  %v896 = vpop.f32.mrb[0].mxu0
  %v897 = vadd.f32 0.0, %v896
  %v898 = vpop.f32.mrb[0].mxu0
  %v899 = vadd.f32 0.0, %v898
  %900 = vdwg.mxu0
  %v901 = vadd.f32 %v612, %v850
  %v902 = vadd.f32 %v613, %v852
  %v903 = vadd.f32 %v614, %v893
  %v904 = vadd.f32 %v615, %v895
  %v905 = vadd.f32 %v616, %v854
  %v906 = vadd.f32 %v617, %v856
  %v907 = vadd.f32 %v618, %v897
  %v908 = vadd.f32 %v619, %v899
  %v909 = vxor.u32 %v901, 2147483648
  %v910 = vxor.u32 %v902, 2147483648
  %v911 = vxor.u32 %v903, 2147483648
  %v912 = vxor.u32 %v905, 2147483648
  %v913 = vxor.u32 %v906, 2147483648
  %v914 = vxor.u32 %v907, 2147483648
  %v915 = vmul.f32 %v909, 1.442695
  %v916 = vpow.pop %v915
  %v917 = vmul.f32 %v910, 1.442695
  %v918 = vpow.pop %v917
  %v919 = vmul.f32 %v911, 1.442695
  %v920 = vpow.pop %v919
  %v921 = vmul.f32 %v912, 1.442695
  %v922 = vpow.pop %v921
  %v923 = vmul.f32 %v913, 1.442695
  %v924 = vpow.pop %v923
  %v925 = vmul.f32 %v914, 1.442695
  %v926 = vpow.pop %v925
  %v927 = vadd.f32 %v916, 1.0
  %v928 = vadd.f32 %v918, 1.0
  %v929 = vadd.f32 %v920, 1.0
  %v930 = vadd.f32 %v922, 1.0
  %v931 = vadd.f32 %v924, 1.0
  %v932 = vadd.f32 %v926, 1.0
  %v933 = vrcp.pop %v927
  %v934 = vmul.f32 1.0, %v933
  %v935 = vrcp.pop %v928
  %v936 = vmul.f32 1.0, %v935
  %v937 = vrcp.pop %v929
  %v938 = vmul.f32 1.0, %v937
  %v939 = vrcp.pop %v930
  %v940 = vmul.f32 1.0, %v939
  %v941 = vrcp.pop %v931
  %v942 = vmul.f32 1.0, %v941
  %v943 = vrcp.pop %v932
  %v944 = vmul.f32 1.0, %v943
  %v945 = vtanh.pop %v904
  %v946 = vtanh.pop %v908
  %v947 = vld [vmem:[#allocation5] sm:$0xff]
  %v948 = vld [vmem:[#allocation5 + $0x8] sm:$0xff]
  %v949 = vmul.f32 %v936, %v947
  %v950 = vmul.f32 %v942, %v948
  %v951 = vmul.f32 %v934, %v945
  %v952 = vmul.f32 %v940, %v946
  %v953 = vadd.f32 %v949, %v951
  %v954 = vadd.f32 %v950, %v952
  %v955 = vtanh.pop %v953
  %v956 = vtanh.pop %v954
  %v957 = vmul.f32 %v938, %v955
  %v958 = vmul.f32 %v944, %v956
  %959 = vst [vmem:[#allocation5] sm:$0xff] %v953
  %960 = vst [vmem:[#allocation5 + $0x8] sm:$0xff] %v954
  %961 = vst [vmem:[#allocation4] sm:$0xff] %v957
  %962 = vst [vmem:[#allocation4 + $0x8] sm:$0xff] %v958
  %v963 = vpack.c.bf16 %v958, %v957
  %964 = vst [vmem:[#allocation2] sm:$0xff] %v963
  %s965 = smul.u32 1, 4
  %s966 = smul.addr %s965, 8
  %s967 = scalar_lea.vmem [#allocation3], %s966
  %v968 = vld [vmem:[%s967] sm:$0xff]
  %v969 = vld [vmem:[%s967 + $0x8] sm:$0xff]
  %v970 = vld [vmem:[%s967 + $0x10] sm:$0xff]
  %v971 = vld [vmem:[%s967 + $0x18] sm:$0xff]
  %v972 = vunpack.c.l.bf16 %v968
  %v973 = vunpack.c.l.bf16 %v969
  %v974 = vunpack.c.l.bf16 %v970
  %v975 = vunpack.c.l.bf16 %v971
  %v976 = vunpack.c.h.bf16 %v968
  %v977 = vunpack.c.h.bf16 %v969
  %v978 = vunpack.c.h.bf16 %v970
  %v979 = vunpack.c.h.bf16 %v971
  %v980 = vld [vmem:[#allocation4] sm:$0xff]
  %v981 = vld [vmem:[#allocation4 + $0x8] sm:$0xff]
  %v982 = vpack.c.bf16 %v981, %v980
  %v983 = vld [vmem:[%s2] sm:$0xff]
  %v984 = vld [vmem:[%s2 + $0x8] sm:$0xff]
  %v985 = vld [vmem:[%s2 + $0x10] sm:$0xff]
  %v986 = vld [vmem:[%s2 + $0x18] sm:$0xff]
  %v987 = vld [vmem:[%s2 + $0x20] sm:$0xff]
  %v988 = vld [vmem:[%s2 + $0x28] sm:$0xff]
  %v989 = vld [vmem:[%s2 + $0x30] sm:$0xff]
  %v990 = vld [vmem:[%s2 + $0x38] sm:$0xff]
  %v991 = vld [vmem:[%s2 + $0x40] sm:$0xff]
  %v992 = vld [vmem:[%s2 + $0x48] sm:$0xff]
  %v993 = vld [vmem:[%s2 + $0x50] sm:$0xff]
  %v994 = vld [vmem:[%s2 + $0x58] sm:$0xff]
  %v995 = vld [vmem:[%s2 + $0x60] sm:$0xff]
  %v996 = vld [vmem:[%s2 + $0x68] sm:$0xff]
  %v997 = vld [vmem:[%s2 + $0x70] sm:$0xff]
  %v998 = vld [vmem:[%s2 + $0x78] sm:$0xff]
  %v999 = vld [vmem:[%s2 + $0x80] sm:$0xff]
  %v1000 = vld [vmem:[%s2 + $0x88] sm:$0xff]
  %v1001 = vld [vmem:[%s2 + $0x90] sm:$0xff]
  %v1002 = vld [vmem:[%s2 + $0x98] sm:$0xff]
  %v1003 = vld [vmem:[%s2 + $0xa0] sm:$0xff]
  %v1004 = vld [vmem:[%s2 + $0xa8] sm:$0xff]
  %v1005 = vld [vmem:[%s2 + $0xb0] sm:$0xff]
  %v1006 = vld [vmem:[%s2 + $0xb8] sm:$0xff]
  %v1007 = vld [vmem:[%s2 + $0xc0] sm:$0xff]
  %v1008 = vld [vmem:[%s2 + $0xc8] sm:$0xff]
  %v1009 = vld [vmem:[%s2 + $0xd0] sm:$0xff]
  %v1010 = vld [vmem:[%s2 + $0xd8] sm:$0xff]
  %v1011 = vld [vmem:[%s2 + $0xe0] sm:$0xff]
  %v1012 = vld [vmem:[%s2 + $0xe8] sm:$0xff]
  %v1013 = vld [vmem:[%s2 + $0xf0] sm:$0xff]
  %v1014 = vld [vmem:[%s2 + $0xf8] sm:$0xff]
  %v1047 = vunpack.c.l.b16 %v983
  %v1048 = vunpack.c.h.b16 %v983
  %v1049 = vunpack.c.l.b16 %v984
  %v1050 = vunpack.c.h.b16 %v984
  %v1051 = vunpack.c.l.b16 %v985
  %v1052 = vunpack.c.h.b16 %v985
  %v1053 = vunpack.c.l.b16 %v986
  %v1054 = vunpack.c.h.b16 %v986
  %v1055 = vunpack.c.l.b16 %v987
  %v1056 = vunpack.c.h.b16 %v987
  %v1057 = vunpack.c.l.b16 %v988
  %v1058 = vunpack.c.h.b16 %v988
  %v1059 = vunpack.c.l.b16 %v989
  %v1060 = vunpack.c.h.b16 %v989
  %v1061 = vunpack.c.l.b16 %v990
  %v1062 = vunpack.c.h.b16 %v990
  %v1063 = vunpack.c.l.b16 %v991
  %v1064 = vunpack.c.h.b16 %v991
  %v1065 = vunpack.c.l.b16 %v992
  %v1066 = vunpack.c.h.b16 %v992
  %v1067 = vunpack.c.l.b16 %v993
  %v1068 = vunpack.c.h.b16 %v993
  %v1069 = vunpack.c.l.b16 %v994
  %v1070 = vunpack.c.h.b16 %v994
  %v1071 = vunpack.c.l.b16 %v995
  %v1072 = vunpack.c.h.b16 %v995
  %v1073 = vunpack.c.l.b16 %v996
  %v1074 = vunpack.c.h.b16 %v996
  %v1075 = vunpack.c.l.b16 %v997
  %v1076 = vunpack.c.h.b16 %v997
  %v1077 = vunpack.c.l.b16 %v998
  %v1078 = vunpack.c.h.b16 %v998
  %v1079 = vunpack.c.l.b16 %v999
  %v1080 = vunpack.c.h.b16 %v999
  %v1081 = vunpack.c.l.b16 %v1000
  %v1082 = vunpack.c.h.b16 %v1000
  %v1083 = vunpack.c.l.b16 %v1001
  %v1084 = vunpack.c.h.b16 %v1001
  %v1085 = vunpack.c.l.b16 %v1002
  %v1086 = vunpack.c.h.b16 %v1002
  %v1087 = vunpack.c.l.b16 %v1003
  %v1088 = vunpack.c.h.b16 %v1003
  %v1089 = vunpack.c.l.b16 %v1004
  %v1090 = vunpack.c.h.b16 %v1004
  %v1091 = vunpack.c.l.b16 %v1005
  %v1092 = vunpack.c.h.b16 %v1005
  %v1093 = vunpack.c.l.b16 %v1006
  %v1094 = vunpack.c.h.b16 %v1006
  %v1095 = vunpack.c.l.b16 %v1007
  %v1096 = vunpack.c.h.b16 %v1007
  %v1097 = vunpack.c.l.b16 %v1008
  %v1098 = vunpack.c.h.b16 %v1008
  %v1099 = vunpack.c.l.b16 %v1009
  %v1100 = vunpack.c.h.b16 %v1009
  %v1101 = vunpack.c.l.b16 %v1010
  %v1102 = vunpack.c.h.b16 %v1010
  %v1103 = vunpack.c.l.b16 %v1011
  %v1104 = vunpack.c.h.b16 %v1011
  %v1105 = vunpack.c.l.b16 %v1012
  %v1106 = vunpack.c.h.b16 %v1012
  %v1107 = vunpack.c.l.b16 %v1013
  %v1108 = vunpack.c.h.b16 %v1013
  %v1109 = vunpack.c.l.b16 %v1014
  %v1110 = vunpack.c.h.b16 %v1014
  %v1111 = vpack.c.b16 %v1051, %v1047
  %v1112 = vpack.c.b16 %v1052, %v1048
  %v1113 = vpack.c.b16 %v1053, %v1049
  %v1114 = vpack.c.b16 %v1054, %v1050
  %v1115 = vpack.c.b16 %v1059, %v1055
  %v1116 = vpack.c.b16 %v1060, %v1056
  %v1117 = vpack.c.b16 %v1061, %v1057
  %v1118 = vpack.c.b16 %v1062, %v1058
  %v1119 = vpack.c.b16 %v1067, %v1063
  %v1120 = vpack.c.b16 %v1068, %v1064
  %v1121 = vpack.c.b16 %v1069, %v1065
  %v1122 = vpack.c.b16 %v1070, %v1066
  %v1123 = vpack.c.b16 %v1075, %v1071
  %v1124 = vpack.c.b16 %v1076, %v1072
  %v1125 = vpack.c.b16 %v1077, %v1073
  %v1126 = vpack.c.b16 %v1078, %v1074
  %v1127 = vpack.c.b16 %v1083, %v1079
  %v1128 = vpack.c.b16 %v1084, %v1080
  %v1129 = vpack.c.b16 %v1085, %v1081
  %v1130 = vpack.c.b16 %v1086, %v1082
  %v1131 = vpack.c.b16 %v1091, %v1087
  %v1132 = vpack.c.b16 %v1092, %v1088
  %v1133 = vpack.c.b16 %v1093, %v1089
  %v1134 = vpack.c.b16 %v1094, %v1090
  %v1135 = vpack.c.b16 %v1099, %v1095
  %v1136 = vpack.c.b16 %v1100, %v1096
  %v1137 = vpack.c.b16 %v1101, %v1097
  %v1138 = vpack.c.b16 %v1102, %v1098
  %v1139 = vpack.c.b16 %v1107, %v1103
  %v1140 = vpack.c.b16 %v1108, %v1104
  %v1141 = vpack.c.b16 %v1109, %v1105
  %v1142 = vpack.c.b16 %v1110, %v1106
  %1175 = vmatprep.subr.bf16.mxu0 %v1112
  %1176 = vmatpush1.bf16.msra.mxu0 %v1111
  %1177 = vmatprep.subr.bf16.mxu0 %v1116
  %1178 = vmatpush1.bf16.msra.mxu0 %v1115
  %1179 = vmatprep.subr.bf16.mxu0 %v1120
  %1180 = vmatpush1.bf16.msra.mxu0 %v1119
  %1181 = vmatprep.subr.bf16.mxu0 %v1124
  %1182 = vmatpush1.bf16.msra.mxu0 %v1123
  %1183 = vmatprep.subr.bf16.mxu0 %v1128
  %1184 = vmatpush1.bf16.msra.mxu0 %v1127
  %1185 = vmatprep.subr.bf16.mxu0 %v1132
  %1186 = vmatpush1.bf16.msra.mxu0 %v1131
  %1187 = vmatprep.subr.bf16.mxu0 %v1136
  %1188 = vmatpush1.bf16.msra.mxu0 %v1135
  %1189 = vmatprep.subr.bf16.mxu0 %v1140
  %1190 = vmatpush1.bf16.msra.mxu0 %v1139
  %1191 = vmatprep.subr.bf16.mxu0 0
  %1192 = vmatpush1.bf16.msra.mxu0 0
  %1193 = vmatprep.subr.bf16.mxu0 0
  %1194 = vmatpush1.bf16.msra.mxu0 0
  %1195 = vmatprep.subr.bf16.mxu0 0
  %1196 = vmatpush1.bf16.msra.mxu0 0
  %1197 = vmatprep.subr.bf16.mxu0 0
  %1198 = vmatpush1.bf16.msra.mxu0 0
  %1199 = vmatprep.subr.bf16.mxu0 0
  %1200 = vmatpush1.bf16.msra.mxu0 0
  %1201 = vmatprep.subr.bf16.mxu0 0
  %1202 = vmatpush1.bf16.msra.mxu0 0
  %1203 = vmatprep.subr.bf16.mxu0 0
  %1204 = vmatpush1.bf16.msra.mxu0 0
  %1205 = vmatprep.subr.bf16.mxu0 0
  %1206 = vmatpush1.bf16.msra.mxu0 0
  %1207 = vmatprep.mubr.bf16.mxu0 0
  %1208 = vmatmul.mubr.bf16.gmra.mrb[0].mxu0 %v982
  %v1209 = vpop.f32.mrb[0].mxu0
  %v1210 = vadd.f32 0.0, %v1209
  %v1211 = vpop.f32.mrb[0].mxu0
  %v1212 = vadd.f32 0.0, %v1211
  %v1213 = vpop.f32.mrb[0].mxu0
  %v1214 = vadd.f32 0.0, %v1213
  %v1215 = vpop.f32.mrb[0].mxu0
  %v1216 = vadd.f32 0.0, %v1215
  %1217 = vdwg.mxu0
  %1218 = vmatprep.subr.bf16.mxu0 %v1114
  %1219 = vmatpush1.bf16.msra.mxu0 %v1113
  %1220 = vmatprep.subr.bf16.mxu0 %v1118
  %1221 = vmatpush1.bf16.msra.mxu0 %v1117
  %1222 = vmatprep.subr.bf16.mxu0 %v1122
  %1223 = vmatpush1.bf16.msra.mxu0 %v1121
  %1224 = vmatprep.subr.bf16.mxu0 %v1126
  %1225 = vmatpush1.bf16.msra.mxu0 %v1125
  %1226 = vmatprep.subr.bf16.mxu0 %v1130
  %1227 = vmatpush1.bf16.msra.mxu0 %v1129
  %1228 = vmatprep.subr.bf16.mxu0 %v1134
  %1229 = vmatpush1.bf16.msra.mxu0 %v1133
  %1230 = vmatprep.subr.bf16.mxu0 %v1138
  %1231 = vmatpush1.bf16.msra.mxu0 %v1137
  %1232 = vmatprep.subr.bf16.mxu0 %v1142
  %1233 = vmatpush1.bf16.msra.mxu0 %v1141
  %1234 = vmatprep.subr.bf16.mxu0 0
  %1235 = vmatpush1.bf16.msra.mxu0 0
  %1236 = vmatprep.subr.bf16.mxu0 0
  %1237 = vmatpush1.bf16.msra.mxu0 0
  %1238 = vmatprep.subr.bf16.mxu0 0
  %1239 = vmatpush1.bf16.msra.mxu0 0
  %1240 = vmatprep.subr.bf16.mxu0 0
  %1241 = vmatpush1.bf16.msra.mxu0 0
  %1242 = vmatprep.subr.bf16.mxu0 0
  %1243 = vmatpush1.bf16.msra.mxu0 0
  %1244 = vmatprep.subr.bf16.mxu0 0
  %1245 = vmatpush1.bf16.msra.mxu0 0
  %1246 = vmatprep.subr.bf16.mxu0 0
  %1247 = vmatpush1.bf16.msra.mxu0 0
  %1248 = vmatprep.subr.bf16.mxu0 0
  %1249 = vmatpush1.bf16.msra.mxu0 0
  %1250 = vmatprep.mubr.bf16.mxu0 0
  %1251 = vmatmul.mubr.bf16.gmra.mrb[0].mxu0 %v982
  %v1252 = vpop.f32.mrb[0].mxu0
  %v1253 = vadd.f32 0.0, %v1252
  %v1254 = vpop.f32.mrb[0].mxu0
  %v1255 = vadd.f32 0.0, %v1254
  %v1256 = vpop.f32.mrb[0].mxu0
  %v1257 = vadd.f32 0.0, %v1256
  %v1258 = vpop.f32.mrb[0].mxu0
  %v1259 = vadd.f32 0.0, %v1258
  %1260 = vdwg.mxu0
  %v1261 = vadd.f32 %v972, %v1210
  %v1262 = vadd.f32 %v973, %v1212
  %v1263 = vadd.f32 %v974, %v1253
  %v1264 = vadd.f32 %v975, %v1255
  %v1265 = vadd.f32 %v976, %v1214
  %v1266 = vadd.f32 %v977, %v1216
  %v1267 = vadd.f32 %v978, %v1257
  %v1268 = vadd.f32 %v979, %v1259
  %v1269 = vxor.u32 %v1261, 2147483648
  %v1270 = vxor.u32 %v1262, 2147483648
  %v1271 = vxor.u32 %v1263, 2147483648
  %v1272 = vxor.u32 %v1265, 2147483648
  %v1273 = vxor.u32 %v1266, 2147483648
  %v1274 = vxor.u32 %v1267, 2147483648
  %v1275 = vmul.f32 %v1269, 1.442695
  %v1276 = vpow.pop %v1275
  %v1277 = vmul.f32 %v1270, 1.442695
  %v1278 = vpow.pop %v1277
  %v1279 = vmul.f32 %v1271, 1.442695
  %v1280 = vpow.pop %v1279
  %v1281 = vmul.f32 %v1272, 1.442695
  %v1282 = vpow.pop %v1281
  %v1283 = vmul.f32 %v1273, 1.442695
  %v1284 = vpow.pop %v1283
  %v1285 = vmul.f32 %v1274, 1.442695
  %v1286 = vpow.pop %v1285
  %v1287 = vadd.f32 %v1276, 1.0
  %v1288 = vadd.f32 %v1278, 1.0
  %v1289 = vadd.f32 %v1280, 1.0
  %v1290 = vadd.f32 %v1282, 1.0
  %v1291 = vadd.f32 %v1284, 1.0
  %v1292 = vadd.f32 %v1286, 1.0
  %v1293 = vrcp.pop %v1287
  %v1294 = vmul.f32 1.0, %v1293
  %v1295 = vrcp.pop %v1288
  %v1296 = vmul.f32 1.0, %v1295
  %v1297 = vrcp.pop %v1289
  %v1298 = vmul.f32 1.0, %v1297
  %v1299 = vrcp.pop %v1290
  %v1300 = vmul.f32 1.0, %v1299
  %v1301 = vrcp.pop %v1291
  %v1302 = vmul.f32 1.0, %v1301
  %v1303 = vrcp.pop %v1292
  %v1304 = vmul.f32 1.0, %v1303
  %v1305 = vtanh.pop %v1264
  %v1306 = vtanh.pop %v1268
  %v1307 = vld [vmem:[#allocation5] sm:$0xff]
  %v1308 = vld [vmem:[#allocation5 + $0x8] sm:$0xff]
  %v1309 = vmul.f32 %v1296, %v1307
  %v1310 = vmul.f32 %v1302, %v1308
  %v1311 = vmul.f32 %v1294, %v1305
  %v1312 = vmul.f32 %v1300, %v1306
  %v1313 = vadd.f32 %v1309, %v1311
  %v1314 = vadd.f32 %v1310, %v1312
  %v1315 = vtanh.pop %v1313
  %v1316 = vtanh.pop %v1314
  %v1317 = vmul.f32 %v1298, %v1315
  %v1318 = vmul.f32 %v1304, %v1316
  %1319 = vst [vmem:[#allocation5] sm:$0xff] %v1313
  %1320 = vst [vmem:[#allocation5 + $0x8] sm:$0xff] %v1314
  %1321 = vst [vmem:[#allocation4] sm:$0xff] %v1317
  %1322 = vst [vmem:[#allocation4 + $0x8] sm:$0xff] %v1318
  %v1323 = vpack.c.bf16 %v1318, %v1317
  %s1324 = scalar_lea.vmem [#allocation2], 8
  %1325 = vst [vmem:[%s1324] sm:$0xff] %v1323
  %s1326 = smul.u32 2, 4
  %s1327 = smul.addr %s1326, 8
  %s1328 = scalar_lea.vmem [#allocation3], %s1327
  %v1329 = vld [vmem:[%s1328] sm:$0xff]
  %v1330 = vld [vmem:[%s1328 + $0x8] sm:$0xff]
  %v1331 = vld [vmem:[%s1328 + $0x10] sm:$0xff]
  %v1332 = vld [vmem:[%s1328 + $0x18] sm:$0xff]
  %v1333 = vunpack.c.l.bf16 %v1329
  %v1334 = vunpack.c.l.bf16 %v1330
  %v1335 = vunpack.c.l.bf16 %v1331
  %v1336 = vunpack.c.l.bf16 %v1332
  %v1337 = vunpack.c.h.bf16 %v1329
  %v1338 = vunpack.c.h.bf16 %v1330
  %v1339 = vunpack.c.h.bf16 %v1331
  %v1340 = vunpack.c.h.bf16 %v1332
  %v1341 = vld [vmem:[#allocation4] sm:$0xff]
  %v1342 = vld [vmem:[#allocation4 + $0x8] sm:$0xff]
  %v1343 = vpack.c.bf16 %v1342, %v1341
  %v1344 = vld [vmem:[%s2] sm:$0xff]
  %v1345 = vld [vmem:[%s2 + $0x8] sm:$0xff]
  %v1346 = vld [vmem:[%s2 + $0x10] sm:$0xff]
  %v1347 = vld [vmem:[%s2 + $0x18] sm:$0xff]
  %v1348 = vld [vmem:[%s2 + $0x20] sm:$0xff]
  %v1349 = vld [vmem:[%s2 + $0x28] sm:$0xff]
  %v1350 = vld [vmem:[%s2 + $0x30] sm:$0xff]
  %v1351 = vld [vmem:[%s2 + $0x38] sm:$0xff]
  %v1352 = vld [vmem:[%s2 + $0x40] sm:$0xff]
  %v1353 = vld [vmem:[%s2 + $0x48] sm:$0xff]
  %v1354 = vld [vmem:[%s2 + $0x50] sm:$0xff]
  %v1355 = vld [vmem:[%s2 + $0x58] sm:$0xff]
  %v1356 = vld [vmem:[%s2 + $0x60] sm:$0xff]
  %v1357 = vld [vmem:[%s2 + $0x68] sm:$0xff]
  %v1358 = vld [vmem:[%s2 + $0x70] sm:$0xff]
  %v1359 = vld [vmem:[%s2 + $0x78] sm:$0xff]
  %v1360 = vld [vmem:[%s2 + $0x80] sm:$0xff]
  %v1361 = vld [vmem:[%s2 + $0x88] sm:$0xff]
  %v1362 = vld [vmem:[%s2 + $0x90] sm:$0xff]
  %v1363 = vld [vmem:[%s2 + $0x98] sm:$0xff]
  %v1364 = vld [vmem:[%s2 + $0xa0] sm:$0xff]
  %v1365 = vld [vmem:[%s2 + $0xa8] sm:$0xff]
  %v1366 = vld [vmem:[%s2 + $0xb0] sm:$0xff]
  %v1367 = vld [vmem:[%s2 + $0xb8] sm:$0xff]
  %v1368 = vld [vmem:[%s2 + $0xc0] sm:$0xff]
  %v1369 = vld [vmem:[%s2 + $0xc8] sm:$0xff]
  %v1370 = vld [vmem:[%s2 + $0xd0] sm:$0xff]
  %v1371 = vld [vmem:[%s2 + $0xd8] sm:$0xff]
  %v1372 = vld [vmem:[%s2 + $0xe0] sm:$0xff]
  %v1373 = vld [vmem:[%s2 + $0xe8] sm:$0xff]
  %v1374 = vld [vmem:[%s2 + $0xf0] sm:$0xff]
  %v1375 = vld [vmem:[%s2 + $0xf8] sm:$0xff]
  %v1408 = vunpack.c.l.b16 %v1344
  %v1409 = vunpack.c.h.b16 %v1344
  %v1410 = vunpack.c.l.b16 %v1345
  %v1411 = vunpack.c.h.b16 %v1345
  %v1412 = vunpack.c.l.b16 %v1346
  %v1413 = vunpack.c.h.b16 %v1346
  %v1414 = vunpack.c.l.b16 %v1347
  %v1415 = vunpack.c.h.b16 %v1347
  %v1416 = vunpack.c.l.b16 %v1348
  %v1417 = vunpack.c.h.b16 %v1348
  %v1418 = vunpack.c.l.b16 %v1349
  %v1419 = vunpack.c.h.b16 %v1349
  %v1420 = vunpack.c.l.b16 %v1350
  %v1421 = vunpack.c.h.b16 %v1350
  %v1422 = vunpack.c.l.b16 %v1351
  %v1423 = vunpack.c.h.b16 %v1351
  %v1424 = vunpack.c.l.b16 %v1352
  %v1425 = vunpack.c.h.b16 %v1352
  %v1426 = vunpack.c.l.b16 %v1353
  %v1427 = vunpack.c.h.b16 %v1353
  %v1428 = vunpack.c.l.b16 %v1354
  %v1429 = vunpack.c.h.b16 %v1354
  %v1430 = vunpack.c.l.b16 %v1355
  %v1431 = vunpack.c.h.b16 %v1355
  %v1432 = vunpack.c.l.b16 %v1356
  %v1433 = vunpack.c.h.b16 %v1356
  %v1434 = vunpack.c.l.b16 %v1357
  %v1435 = vunpack.c.h.b16 %v1357
  %v1436 = vunpack.c.l.b16 %v1358
  %v1437 = vunpack.c.h.b16 %v1358
  %v1438 = vunpack.c.l.b16 %v1359
  %v1439 = vunpack.c.h.b16 %v1359
  %v1440 = vunpack.c.l.b16 %v1360
  %v1441 = vunpack.c.h.b16 %v1360
  %v1442 = vunpack.c.l.b16 %v1361
  %v1443 = vunpack.c.h.b16 %v1361
  %v1444 = vunpack.c.l.b16 %v1362
  %v1445 = vunpack.c.h.b16 %v1362
  %v1446 = vunpack.c.l.b16 %v1363
  %v1447 = vunpack.c.h.b16 %v1363
  %v1448 = vunpack.c.l.b16 %v1364
  %v1449 = vunpack.c.h.b16 %v1364
  %v1450 = vunpack.c.l.b16 %v1365
  %v1451 = vunpack.c.h.b16 %v1365
  %v1452 = vunpack.c.l.b16 %v1366
  %v1453 = vunpack.c.h.b16 %v1366
  %v1454 = vunpack.c.l.b16 %v1367
  %v1455 = vunpack.c.h.b16 %v1367
  %v1456 = vunpack.c.l.b16 %v1368
  %v1457 = vunpack.c.h.b16 %v1368
  %v1458 = vunpack.c.l.b16 %v1369
  %v1459 = vunpack.c.h.b16 %v1369
  %v1460 = vunpack.c.l.b16 %v1370
  %v1461 = vunpack.c.h.b16 %v1370
  %v1462 = vunpack.c.l.b16 %v1371
  %v1463 = vunpack.c.h.b16 %v1371
  %v1464 = vunpack.c.l.b16 %v1372
  %v1465 = vunpack.c.h.b16 %v1372
  %v1466 = vunpack.c.l.b16 %v1373
  %v1467 = vunpack.c.h.b16 %v1373
  %v1468 = vunpack.c.l.b16 %v1374
  %v1469 = vunpack.c.h.b16 %v1374
  %v1470 = vunpack.c.l.b16 %v1375
  %v1471 = vunpack.c.h.b16 %v1375
  %v1472 = vpack.c.b16 %v1412, %v1408
  %v1473 = vpack.c.b16 %v1413, %v1409
  %v1474 = vpack.c.b16 %v1414, %v1410
  %v1475 = vpack.c.b16 %v1415, %v1411
  %v1476 = vpack.c.b16 %v1420, %v1416
  %v1477 = vpack.c.b16 %v1421, %v1417
  %v1478 = vpack.c.b16 %v1422, %v1418
  %v1479 = vpack.c.b16 %v1423, %v1419
  %v1480 = vpack.c.b16 %v1428, %v1424
  %v1481 = vpack.c.b16 %v1429, %v1425
  %v1482 = vpack.c.b16 %v1430, %v1426
  %v1483 = vpack.c.b16 %v1431, %v1427
  %v1484 = vpack.c.b16 %v1436, %v1432
  %v1485 = vpack.c.b16 %v1437, %v1433
  %v1486 = vpack.c.b16 %v1438, %v1434
  %v1487 = vpack.c.b16 %v1439, %v1435
  %v1488 = vpack.c.b16 %v1444, %v1440
  %v1489 = vpack.c.b16 %v1445, %v1441
  %v1490 = vpack.c.b16 %v1446, %v1442
  %v1491 = vpack.c.b16 %v1447, %v1443
  %v1492 = vpack.c.b16 %v1452, %v1448
  %v1493 = vpack.c.b16 %v1453, %v1449
  %v1494 = vpack.c.b16 %v1454, %v1450
  %v1495 = vpack.c.b16 %v1455, %v1451
  %v1496 = vpack.c.b16 %v1460, %v1456
  %v1497 = vpack.c.b16 %v1461, %v1457
  %v1498 = vpack.c.b16 %v1462, %v1458
  %v1499 = vpack.c.b16 %v1463, %v1459
  %v1500 = vpack.c.b16 %v1468, %v1464
  %v1501 = vpack.c.b16 %v1469, %v1465
  %v1502 = vpack.c.b16 %v1470, %v1466
  %v1503 = vpack.c.b16 %v1471, %v1467
  %1536 = vmatprep.subr.bf16.mxu0 %v1473
  %1537 = vmatpush1.bf16.msra.mxu0 %v1472
  %1538 = vmatprep.subr.bf16.mxu0 %v1477
  %1539 = vmatpush1.bf16.msra.mxu0 %v1476
  %1540 = vmatprep.subr.bf16.mxu0 %v1481
  %1541 = vmatpush1.bf16.msra.mxu0 %v1480
  %1542 = vmatprep.subr.bf16.mxu0 %v1485
  %1543 = vmatpush1.bf16.msra.mxu0 %v1484
  %1544 = vmatprep.subr.bf16.mxu0 %v1489
  %1545 = vmatpush1.bf16.msra.mxu0 %v1488
  %1546 = vmatprep.subr.bf16.mxu0 %v1493
  %1547 = vmatpush1.bf16.msra.mxu0 %v1492
  %1548 = vmatprep.subr.bf16.mxu0 %v1497
  %1549 = vmatpush1.bf16.msra.mxu0 %v1496
  %1550 = vmatprep.subr.bf16.mxu0 %v1501
  %1551 = vmatpush1.bf16.msra.mxu0 %v1500
  %1552 = vmatprep.subr.bf16.mxu0 0
  %1553 = vmatpush1.bf16.msra.mxu0 0
  %1554 = vmatprep.subr.bf16.mxu0 0
  %1555 = vmatpush1.bf16.msra.mxu0 0
  %1556 = vmatprep.subr.bf16.mxu0 0
  %1557 = vmatpush1.bf16.msra.mxu0 0
  %1558 = vmatprep.subr.bf16.mxu0 0
  %1559 = vmatpush1.bf16.msra.mxu0 0
  %1560 = vmatprep.subr.bf16.mxu0 0
  %1561 = vmatpush1.bf16.msra.mxu0 0
  %1562 = vmatprep.subr.bf16.mxu0 0
  %1563 = vmatpush1.bf16.msra.mxu0 0
  %1564 = vmatprep.subr.bf16.mxu0 0
  %1565 = vmatpush1.bf16.msra.mxu0 0
  %1566 = vmatprep.subr.bf16.mxu0 0
  %1567 = vmatpush1.bf16.msra.mxu0 0
  %1568 = vmatprep.mubr.bf16.mxu0 0
  %1569 = vmatmul.mubr.bf16.gmra.mrb[0].mxu0 %v1343
  %v1570 = vpop.f32.mrb[0].mxu0
  %v1571 = vadd.f32 0.0, %v1570
  %v1572 = vpop.f32.mrb[0].mxu0
  %v1573 = vadd.f32 0.0, %v1572
  %v1574 = vpop.f32.mrb[0].mxu0
  %v1575 = vadd.f32 0.0, %v1574
  %v1576 = vpop.f32.mrb[0].mxu0
  %v1577 = vadd.f32 0.0, %v1576
  %1578 = vdwg.mxu0
  %1579 = vmatprep.subr.bf16.mxu0 %v1475
  %1580 = vmatpush1.bf16.msra.mxu0 %v1474
  %1581 = vmatprep.subr.bf16.mxu0 %v1479
  %1582 = vmatpush1.bf16.msra.mxu0 %v1478
  %1583 = vmatprep.subr.bf16.mxu0 %v1483
  %1584 = vmatpush1.bf16.msra.mxu0 %v1482
  %1585 = vmatprep.subr.bf16.mxu0 %v1487
  %1586 = vmatpush1.bf16.msra.mxu0 %v1486
  %1587 = vmatprep.subr.bf16.mxu0 %v1491
  %1588 = vmatpush1.bf16.msra.mxu0 %v1490
  %1589 = vmatprep.subr.bf16.mxu0 %v1495
  %1590 = vmatpush1.bf16.msra.mxu0 %v1494
  %1591 = vmatprep.subr.bf16.mxu0 %v1499
  %1592 = vmatpush1.bf16.msra.mxu0 %v1498
  %1593 = vmatprep.subr.bf16.mxu0 %v1503
  %1594 = vmatpush1.bf16.msra.mxu0 %v1502
  %1595 = vmatprep.subr.bf16.mxu0 0
  %1596 = vmatpush1.bf16.msra.mxu0 0
  %1597 = vmatprep.subr.bf16.mxu0 0
  %1598 = vmatpush1.bf16.msra.mxu0 0
  %1599 = vmatprep.subr.bf16.mxu0 0
  %1600 = vmatpush1.bf16.msra.mxu0 0
  %1601 = vmatprep.subr.bf16.mxu0 0
  %1602 = vmatpush1.bf16.msra.mxu0 0
  %1603 = vmatprep.subr.bf16.mxu0 0
  %1604 = vmatpush1.bf16.msra.mxu0 0
  %1605 = vmatprep.subr.bf16.mxu0 0
  %1606 = vmatpush1.bf16.msra.mxu0 0
  %1607 = vmatprep.subr.bf16.mxu0 0
  %1608 = vmatpush1.bf16.msra.mxu0 0
  %1609 = vmatprep.subr.bf16.mxu0 0
  %1610 = vmatpush1.bf16.msra.mxu0 0
  %1611 = vmatprep.mubr.bf16.mxu0 0
  %1612 = vmatmul.mubr.bf16.gmra.mrb[0].mxu0 %v1343
  %v1613 = vpop.f32.mrb[0].mxu0
  %v1614 = vadd.f32 0.0, %v1613
  %v1615 = vpop.f32.mrb[0].mxu0
  %v1616 = vadd.f32 0.0, %v1615
  %v1617 = vpop.f32.mrb[0].mxu0
  %v1618 = vadd.f32 0.0, %v1617
  %v1619 = vpop.f32.mrb[0].mxu0
  %v1620 = vadd.f32 0.0, %v1619
  %1621 = vdwg.mxu0
  %v1622 = vadd.f32 %v1333, %v1571
  %v1623 = vadd.f32 %v1334, %v1573
  %v1624 = vadd.f32 %v1335, %v1614
  %v1625 = vadd.f32 %v1336, %v1616
  %v1626 = vadd.f32 %v1337, %v1575
  %v1627 = vadd.f32 %v1338, %v1577
  %v1628 = vadd.f32 %v1339, %v1618
  %v1629 = vadd.f32 %v1340, %v1620
  %v1630 = vxor.u32 %v1622, 2147483648
  %v1631 = vxor.u32 %v1623, 2147483648
  %v1632 = vxor.u32 %v1624, 2147483648
  %v1633 = vxor.u32 %v1626, 2147483648
  %v1634 = vxor.u32 %v1627, 2147483648
  %v1635 = vxor.u32 %v1628, 2147483648
  %v1636 = vmul.f32 %v1630, 1.442695
  %v1637 = vpow.pop %v1636
  %v1638 = vmul.f32 %v1631, 1.442695
  %v1639 = vpow.pop %v1638
  %v1640 = vmul.f32 %v1632, 1.442695
  %v1641 = vpow.pop %v1640
  %v1642 = vmul.f32 %v1633, 1.442695
  %v1643 = vpow.pop %v1642
  %v1644 = vmul.f32 %v1634, 1.442695
  %v1645 = vpow.pop %v1644
  %v1646 = vmul.f32 %v1635, 1.442695
  %v1647 = vpow.pop %v1646
  %v1648 = vadd.f32 %v1637, 1.0
  %v1649 = vadd.f32 %v1639, 1.0
  %v1650 = vadd.f32 %v1641, 1.0
  %v1651 = vadd.f32 %v1643, 1.0
  %v1652 = vadd.f32 %v1645, 1.0
  %v1653 = vadd.f32 %v1647, 1.0
  %v1654 = vrcp.pop %v1648
  %v1655 = vmul.f32 1.0, %v1654
  %v1656 = vrcp.pop %v1649
  %v1657 = vmul.f32 1.0, %v1656
  %v1658 = vrcp.pop %v1650
  %v1659 = vmul.f32 1.0, %v1658
  %v1660 = vrcp.pop %v1651
  %v1661 = vmul.f32 1.0, %v1660
  %v1662 = vrcp.pop %v1652
  %v1663 = vmul.f32 1.0, %v1662
  %v1664 = vrcp.pop %v1653
  %v1665 = vmul.f32 1.0, %v1664
  %v1666 = vtanh.pop %v1625
  %v1667 = vtanh.pop %v1629
  %v1668 = vld [vmem:[#allocation5] sm:$0xff]
  %v1669 = vld [vmem:[#allocation5 + $0x8] sm:$0xff]
  %v1670 = vmul.f32 %v1657, %v1668
  %v1671 = vmul.f32 %v1663, %v1669
  %v1672 = vmul.f32 %v1655, %v1666
  %v1673 = vmul.f32 %v1661, %v1667
  %v1674 = vadd.f32 %v1670, %v1672
  %v1675 = vadd.f32 %v1671, %v1673
  %v1676 = vtanh.pop %v1674
  %v1677 = vtanh.pop %v1675
  %v1678 = vmul.f32 %v1659, %v1676
  %v1679 = vmul.f32 %v1665, %v1677
  %1680 = vst [vmem:[#allocation5] sm:$0xff] %v1674
  %1681 = vst [vmem:[#allocation5 + $0x8] sm:$0xff] %v1675
  %1682 = vst [vmem:[#allocation4] sm:$0xff] %v1678
  %1683 = vst [vmem:[#allocation4 + $0x8] sm:$0xff] %v1679
  %v1684 = vpack.c.bf16 %v1679, %v1678
  %s1685 = scalar_lea.vmem [#allocation2], 16
  %1686 = vst [vmem:[%s1685] sm:$0xff] %v1684
  %s1687 = smul.u32 3, 4
  %s1688 = smul.addr %s1687, 8
  %s1689 = scalar_lea.vmem [#allocation3], %s1688
  %v1690 = vld [vmem:[%s1689] sm:$0xff]
  %v1691 = vld [vmem:[%s1689 + $0x8] sm:$0xff]
  %v1692 = vld [vmem:[%s1689 + $0x10] sm:$0xff]
  %v1693 = vld [vmem:[%s1689 + $0x18] sm:$0xff]
  %v1694 = vunpack.c.l.bf16 %v1690
  %v1695 = vunpack.c.l.bf16 %v1691
  %v1696 = vunpack.c.l.bf16 %v1692
  %v1697 = vunpack.c.l.bf16 %v1693
  %v1698 = vunpack.c.h.bf16 %v1690
  %v1699 = vunpack.c.h.bf16 %v1691
  %v1700 = vunpack.c.h.bf16 %v1692
  %v1701 = vunpack.c.h.bf16 %v1693
  %v1702 = vld [vmem:[#allocation4] sm:$0xff]
  %v1703 = vld [vmem:[#allocation4 + $0x8] sm:$0xff]
  %v1704 = vpack.c.bf16 %v1703, %v1702
  %v1705 = vld [vmem:[%s2] sm:$0xff]
  %v1706 = vld [vmem:[%s2 + $0x8] sm:$0xff]
  %v1707 = vld [vmem:[%s2 + $0x10] sm:$0xff]
  %v1708 = vld [vmem:[%s2 + $0x18] sm:$0xff]
  %v1709 = vld [vmem:[%s2 + $0x20] sm:$0xff]
  %v1710 = vld [vmem:[%s2 + $0x28] sm:$0xff]
  %v1711 = vld [vmem:[%s2 + $0x30] sm:$0xff]
  %v1712 = vld [vmem:[%s2 + $0x38] sm:$0xff]
  %v1713 = vld [vmem:[%s2 + $0x40] sm:$0xff]
  %v1714 = vld [vmem:[%s2 + $0x48] sm:$0xff]
  %v1715 = vld [vmem:[%s2 + $0x50] sm:$0xff]
  %v1716 = vld [vmem:[%s2 + $0x58] sm:$0xff]
  %v1717 = vld [vmem:[%s2 + $0x60] sm:$0xff]
  %v1718 = vld [vmem:[%s2 + $0x68] sm:$0xff]
  %v1719 = vld [vmem:[%s2 + $0x70] sm:$0xff]
  %v1720 = vld [vmem:[%s2 + $0x78] sm:$0xff]
  %v1721 = vld [vmem:[%s2 + $0x80] sm:$0xff]
  %v1722 = vld [vmem:[%s2 + $0x88] sm:$0xff]
  %v1723 = vld [vmem:[%s2 + $0x90] sm:$0xff]
  %v1724 = vld [vmem:[%s2 + $0x98] sm:$0xff]
  %v1725 = vld [vmem:[%s2 + $0xa0] sm:$0xff]
  %v1726 = vld [vmem:[%s2 + $0xa8] sm:$0xff]
  %v1727 = vld [vmem:[%s2 + $0xb0] sm:$0xff]
  %v1728 = vld [vmem:[%s2 + $0xb8] sm:$0xff]
  %v1729 = vld [vmem:[%s2 + $0xc0] sm:$0xff]
  %v1730 = vld [vmem:[%s2 + $0xc8] sm:$0xff]
  %v1731 = vld [vmem:[%s2 + $0xd0] sm:$0xff]
  %v1732 = vld [vmem:[%s2 + $0xd8] sm:$0xff]
  %v1733 = vld [vmem:[%s2 + $0xe0] sm:$0xff]
  %v1734 = vld [vmem:[%s2 + $0xe8] sm:$0xff]
  %v1735 = vld [vmem:[%s2 + $0xf0] sm:$0xff]
  %v1736 = vld [vmem:[%s2 + $0xf8] sm:$0xff]
  %v1769 = vunpack.c.l.b16 %v1705
  %v1770 = vunpack.c.h.b16 %v1705
  %v1771 = vunpack.c.l.b16 %v1706
  %v1772 = vunpack.c.h.b16 %v1706
  %v1773 = vunpack.c.l.b16 %v1707
  %v1774 = vunpack.c.h.b16 %v1707
  %v1775 = vunpack.c.l.b16 %v1708
  %v1776 = vunpack.c.h.b16 %v1708
  %v1777 = vunpack.c.l.b16 %v1709
  %v1778 = vunpack.c.h.b16 %v1709
  %v1779 = vunpack.c.l.b16 %v1710
  %v1780 = vunpack.c.h.b16 %v1710
  %v1781 = vunpack.c.l.b16 %v1711
  %v1782 = vunpack.c.h.b16 %v1711
  %v1783 = vunpack.c.l.b16 %v1712
  %v1784 = vunpack.c.h.b16 %v1712
  %v1785 = vunpack.c.l.b16 %v1713
  %v1786 = vunpack.c.h.b16 %v1713
  %v1787 = vunpack.c.l.b16 %v1714
  %v1788 = vunpack.c.h.b16 %v1714
  %v1789 = vunpack.c.l.b16 %v1715
  %v1790 = vunpack.c.h.b16 %v1715
  %v1791 = vunpack.c.l.b16 %v1716
  %v1792 = vunpack.c.h.b16 %v1716
  %v1793 = vunpack.c.l.b16 %v1717
  %v1794 = vunpack.c.h.b16 %v1717
  %v1795 = vunpack.c.l.b16 %v1718
  %v1796 = vunpack.c.h.b16 %v1718
  %v1797 = vunpack.c.l.b16 %v1719
  %v1798 = vunpack.c.h.b16 %v1719
  %v1799 = vunpack.c.l.b16 %v1720
  %v1800 = vunpack.c.h.b16 %v1720
  %v1801 = vunpack.c.l.b16 %v1721
  %v1802 = vunpack.c.h.b16 %v1721
  %v1803 = vunpack.c.l.b16 %v1722
  %v1804 = vunpack.c.h.b16 %v1722
  %v1805 = vunpack.c.l.b16 %v1723
  %v1806 = vunpack.c.h.b16 %v1723
  %v1807 = vunpack.c.l.b16 %v1724
  %v1808 = vunpack.c.h.b16 %v1724
  %v1809 = vunpack.c.l.b16 %v1725
  %v1810 = vunpack.c.h.b16 %v1725
  %v1811 = vunpack.c.l.b16 %v1726
  %v1812 = vunpack.c.h.b16 %v1726
  %v1813 = vunpack.c.l.b16 %v1727
  %v1814 = vunpack.c.h.b16 %v1727
  %v1815 = vunpack.c.l.b16 %v1728
  %v1816 = vunpack.c.h.b16 %v1728
  %v1817 = vunpack.c.l.b16 %v1729
  %v1818 = vunpack.c.h.b16 %v1729
  %v1819 = vunpack.c.l.b16 %v1730
  %v1820 = vunpack.c.h.b16 %v1730
  %v1821 = vunpack.c.l.b16 %v1731
  %v1822 = vunpack.c.h.b16 %v1731
  %v1823 = vunpack.c.l.b16 %v1732
  %v1824 = vunpack.c.h.b16 %v1732
  %v1825 = vunpack.c.l.b16 %v1733
  %v1826 = vunpack.c.h.b16 %v1733
  %v1827 = vunpack.c.l.b16 %v1734
  %v1828 = vunpack.c.h.b16 %v1734
  %v1829 = vunpack.c.l.b16 %v1735
  %v1830 = vunpack.c.h.b16 %v1735
  %v1831 = vunpack.c.l.b16 %v1736
  %v1832 = vunpack.c.h.b16 %v1736
  %v1833 = vpack.c.b16 %v1773, %v1769
  %v1834 = vpack.c.b16 %v1774, %v1770
  %v1835 = vpack.c.b16 %v1775, %v1771
  %v1836 = vpack.c.b16 %v1776, %v1772
  %v1837 = vpack.c.b16 %v1781, %v1777
  %v1838 = vpack.c.b16 %v1782, %v1778
  %v1839 = vpack.c.b16 %v1783, %v1779
  %v1840 = vpack.c.b16 %v1784, %v1780
  %v1841 = vpack.c.b16 %v1789, %v1785
  %v1842 = vpack.c.b16 %v1790, %v1786
  %v1843 = vpack.c.b16 %v1791, %v1787
  %v1844 = vpack.c.b16 %v1792, %v1788
  %v1845 = vpack.c.b16 %v1797, %v1793
  %v1846 = vpack.c.b16 %v1798, %v1794
  %v1847 = vpack.c.b16 %v1799, %v1795
  %v1848 = vpack.c.b16 %v1800, %v1796
  %v1849 = vpack.c.b16 %v1805, %v1801
  %v1850 = vpack.c.b16 %v1806, %v1802
  %v1851 = vpack.c.b16 %v1807, %v1803
  %v1852 = vpack.c.b16 %v1808, %v1804
  %v1853 = vpack.c.b16 %v1813, %v1809
  %v1854 = vpack.c.b16 %v1814, %v1810
  %v1855 = vpack.c.b16 %v1815, %v1811
  %v1856 = vpack.c.b16 %v1816, %v1812
  %v1857 = vpack.c.b16 %v1821, %v1817
  %v1858 = vpack.c.b16 %v1822, %v1818
  %v1859 = vpack.c.b16 %v1823, %v1819
  %v1860 = vpack.c.b16 %v1824, %v1820
  %v1861 = vpack.c.b16 %v1829, %v1825
  %v1862 = vpack.c.b16 %v1830, %v1826
  %v1863 = vpack.c.b16 %v1831, %v1827
  %v1864 = vpack.c.b16 %v1832, %v1828
  %1897 = vmatprep.subr.bf16.mxu0 %v1834
  %1898 = vmatpush1.bf16.msra.mxu0 %v1833
  %1899 = vmatprep.subr.bf16.mxu0 %v1838
  %1900 = vmatpush1.bf16.msra.mxu0 %v1837
  %1901 = vmatprep.subr.bf16.mxu0 %v1842
  %1902 = vmatpush1.bf16.msra.mxu0 %v1841
  %1903 = vmatprep.subr.bf16.mxu0 %v1846
  %1904 = vmatpush1.bf16.msra.mxu0 %v1845
  %1905 = vmatprep.subr.bf16.mxu0 %v1850
  %1906 = vmatpush1.bf16.msra.mxu0 %v1849
  %1907 = vmatprep.subr.bf16.mxu0 %v1854
  %1908 = vmatpush1.bf16.msra.mxu0 %v1853
  %1909 = vmatprep.subr.bf16.mxu0 %v1858
  %1910 = vmatpush1.bf16.msra.mxu0 %v1857
  %1911 = vmatprep.subr.bf16.mxu0 %v1862
  %1912 = vmatpush1.bf16.msra.mxu0 %v1861
  %1913 = vmatprep.subr.bf16.mxu0 0
  %1914 = vmatpush1.bf16.msra.mxu0 0
  %1915 = vmatprep.subr.bf16.mxu0 0
  %1916 = vmatpush1.bf16.msra.mxu0 0
  %1917 = vmatprep.subr.bf16.mxu0 0
  %1918 = vmatpush1.bf16.msra.mxu0 0
  %1919 = vmatprep.subr.bf16.mxu0 0
  %1920 = vmatpush1.bf16.msra.mxu0 0
  %1921 = vmatprep.subr.bf16.mxu0 0
  %1922 = vmatpush1.bf16.msra.mxu0 0
  %1923 = vmatprep.subr.bf16.mxu0 0
  %1924 = vmatpush1.bf16.msra.mxu0 0
  %1925 = vmatprep.subr.bf16.mxu0 0
  %1926 = vmatpush1.bf16.msra.mxu0 0
  %1927 = vmatprep.subr.bf16.mxu0 0
  %1928 = vmatpush1.bf16.msra.mxu0 0
  %1929 = vmatprep.mubr.bf16.mxu0 0
  %1930 = vmatmul.mubr.bf16.gmra.mrb[0].mxu0 %v1704
  %v1931 = vpop.f32.mrb[0].mxu0
  %v1932 = vadd.f32 0.0, %v1931
  %v1933 = vpop.f32.mrb[0].mxu0
  %v1934 = vadd.f32 0.0, %v1933
  %v1935 = vpop.f32.mrb[0].mxu0
  %v1936 = vadd.f32 0.0, %v1935
  %v1937 = vpop.f32.mrb[0].mxu0
  %v1938 = vadd.f32 0.0, %v1937
  %1939 = vdwg.mxu0
  %1940 = vmatprep.subr.bf16.mxu0 %v1836
  %1941 = vmatpush1.bf16.msra.mxu0 %v1835
  %1942 = vmatprep.subr.bf16.mxu0 %v1840
  %1943 = vmatpush1.bf16.msra.mxu0 %v1839
  %1944 = vmatprep.subr.bf16.mxu0 %v1844
  %1945 = vmatpush1.bf16.msra.mxu0 %v1843
  %1946 = vmatprep.subr.bf16.mxu0 %v1848
  %1947 = vmatpush1.bf16.msra.mxu0 %v1847
  %1948 = vmatprep.subr.bf16.mxu0 %v1852
  %1949 = vmatpush1.bf16.msra.mxu0 %v1851
  %1950 = vmatprep.subr.bf16.mxu0 %v1856
  %1951 = vmatpush1.bf16.msra.mxu0 %v1855
  %1952 = vmatprep.subr.bf16.mxu0 %v1860
  %1953 = vmatpush1.bf16.msra.mxu0 %v1859
  %1954 = vmatprep.subr.bf16.mxu0 %v1864
  %1955 = vmatpush1.bf16.msra.mxu0 %v1863
  %1956 = vmatprep.subr.bf16.mxu0 0
  %1957 = vmatpush1.bf16.msra.mxu0 0
  %1958 = vmatprep.subr.bf16.mxu0 0
  %1959 = vmatpush1.bf16.msra.mxu0 0
  %1960 = vmatprep.subr.bf16.mxu0 0
  %1961 = vmatpush1.bf16.msra.mxu0 0
  %1962 = vmatprep.subr.bf16.mxu0 0
  %1963 = vmatpush1.bf16.msra.mxu0 0
  %1964 = vmatprep.subr.bf16.mxu0 0
  %1965 = vmatpush1.bf16.msra.mxu0 0
  %1966 = vmatprep.subr.bf16.mxu0 0
  %1967 = vmatpush1.bf16.msra.mxu0 0
  %1968 = vmatprep.subr.bf16.mxu0 0
  %1969 = vmatpush1.bf16.msra.mxu0 0
  %1970 = vmatprep.subr.bf16.mxu0 0
  %1971 = vmatpush1.bf16.msra.mxu0 0
  %1972 = vmatprep.mubr.bf16.mxu0 0
  %1973 = vmatmul.mubr.bf16.gmra.mrb[0].mxu0 %v1704
  %v1974 = vpop.f32.mrb[0].mxu0
  %v1975 = vadd.f32 0.0, %v1974
  %v1976 = vpop.f32.mrb[0].mxu0
  %v1977 = vadd.f32 0.0, %v1976
  %v1978 = vpop.f32.mrb[0].mxu0
  %v1979 = vadd.f32 0.0, %v1978
  %v1980 = vpop.f32.mrb[0].mxu0
  %v1981 = vadd.f32 0.0, %v1980
  %1982 = vdwg.mxu0
  %v1983 = vadd.f32 %v1694, %v1932
  %v1984 = vadd.f32 %v1695, %v1934
  %v1985 = vadd.f32 %v1696, %v1975
  %v1986 = vadd.f32 %v1697, %v1977
  %v1987 = vadd.f32 %v1698, %v1936
  %v1988 = vadd.f32 %v1699, %v1938
  %v1989 = vadd.f32 %v1700, %v1979
  %v1990 = vadd.f32 %v1701, %v1981
  %v1991 = vxor.u32 %v1983, 2147483648
  %v1992 = vxor.u32 %v1984, 2147483648
  %v1993 = vxor.u32 %v1985, 2147483648
  %v1994 = vxor.u32 %v1987, 2147483648
  %v1995 = vxor.u32 %v1988, 2147483648
  %v1996 = vxor.u32 %v1989, 2147483648
  %v1997 = vmul.f32 %v1991, 1.442695
  %v1998 = vpow.pop %v1997
  %v1999 = vmul.f32 %v1992, 1.442695
  %v2000 = vpow.pop %v1999
  %v2001 = vmul.f32 %v1993, 1.442695
  %v2002 = vpow.pop %v2001
  %v2003 = vmul.f32 %v1994, 1.442695
  %v2004 = vpow.pop %v2003
  %v2005 = vmul.f32 %v1995, 1.442695
  %v2006 = vpow.pop %v2005
  %v2007 = vmul.f32 %v1996, 1.442695
  %v2008 = vpow.pop %v2007
  %v2009 = vadd.f32 %v1998, 1.0
  %v2010 = vadd.f32 %v2000, 1.0
  %v2011 = vadd.f32 %v2002, 1.0
  %v2012 = vadd.f32 %v2004, 1.0
  %v2013 = vadd.f32 %v2006, 1.0
  %v2014 = vadd.f32 %v2008, 1.0
  %v2015 = vrcp.pop %v2009
  %v2016 = vmul.f32 1.0, %v2015
  %v2017 = vrcp.pop %v2010
  %v2018 = vmul.f32 1.0, %v2017
  %v2019 = vrcp.pop %v2011
  %v2020 = vmul.f32 1.0, %v2019
  %v2021 = vrcp.pop %v2012
  %v2022 = vmul.f32 1.0, %v2021
  %v2023 = vrcp.pop %v2013
  %v2024 = vmul.f32 1.0, %v2023
  %v2025 = vrcp.pop %v2014
  %v2026 = vmul.f32 1.0, %v2025
  %v2027 = vtanh.pop %v1986
  %v2028 = vtanh.pop %v1990
  %v2029 = vld [vmem:[#allocation5] sm:$0xff]
  %v2030 = vld [vmem:[#allocation5 + $0x8] sm:$0xff]
  %v2031 = vmul.f32 %v2018, %v2029
  %v2032 = vmul.f32 %v2024, %v2030
  %v2033 = vmul.f32 %v2016, %v2027
  %v2034 = vmul.f32 %v2022, %v2028
  %v2035 = vadd.f32 %v2031, %v2033
  %v2036 = vadd.f32 %v2032, %v2034
  %v2037 = vtanh.pop %v2035
  %v2038 = vtanh.pop %v2036
  %v2039 = vmul.f32 %v2020, %v2037
  %v2040 = vmul.f32 %v2026, %v2038
  %2041 = vst [vmem:[#allocation5] sm:$0xff] %v2035
  %2042 = vst [vmem:[#allocation5 + $0x8] sm:$0xff] %v2036
  %2043 = vst [vmem:[#allocation4] sm:$0xff] %v2039
  %2044 = vst [vmem:[#allocation4 + $0x8] sm:$0xff] %v2040
  %v2045 = vpack.c.bf16 %v2040, %v2039
  %s2046 = scalar_lea.vmem [#allocation2], 24
  %2047 = vst [vmem:[%s2046] sm:$0xff] %v2045
  %s2048 = smul.u32 4, 4
  %s2049 = smul.addr %s2048, 8
  %s2050 = scalar_lea.vmem [#allocation3], %s2049
  %v2051 = vld [vmem:[%s2050] sm:$0xff]
  %v2052 = vld [vmem:[%s2050 + $0x8] sm:$0xff]
  %v2053 = vld [vmem:[%s2050 + $0x10] sm:$0xff]
  %v2054 = vld [vmem:[%s2050 + $0x18] sm:$0xff]
  %v2055 = vunpack.c.l.bf16 %v2051
  %v2056 = vunpack.c.l.bf16 %v2052
  %v2057 = vunpack.c.l.bf16 %v2053
  %v2058 = vunpack.c.l.bf16 %v2054
  %v2059 = vunpack.c.h.bf16 %v2051
  %v2060 = vunpack.c.h.bf16 %v2052
  %v2061 = vunpack.c.h.bf16 %v2053
  %v2062 = vunpack.c.h.bf16 %v2054
  %v2063 = vld [vmem:[#allocation4] sm:$0xff]
  %v2064 = vld [vmem:[#allocation4 + $0x8] sm:$0xff]
  %v2065 = vpack.c.bf16 %v2064, %v2063
  %v2066 = vld [vmem:[%s2] sm:$0xff]
  %v2067 = vld [vmem:[%s2 + $0x8] sm:$0xff]
  %v2068 = vld [vmem:[%s2 + $0x10] sm:$0xff]
  %v2069 = vld [vmem:[%s2 + $0x18] sm:$0xff]
  %v2070 = vld [vmem:[%s2 + $0x20] sm:$0xff]
  %v2071 = vld [vmem:[%s2 + $0x28] sm:$0xff]
  %v2072 = vld [vmem:[%s2 + $0x30] sm:$0xff]
  %v2073 = vld [vmem:[%s2 + $0x38] sm:$0xff]
  %v2074 = vld [vmem:[%s2 + $0x40] sm:$0xff]
  %v2075 = vld [vmem:[%s2 + $0x48] sm:$0xff]
  %v2076 = vld [vmem:[%s2 + $0x50] sm:$0xff]
  %v2077 = vld [vmem:[%s2 + $0x58] sm:$0xff]
  %v2078 = vld [vmem:[%s2 + $0x60] sm:$0xff]
  %v2079 = vld [vmem:[%s2 + $0x68] sm:$0xff]
  %v2080 = vld [vmem:[%s2 + $0x70] sm:$0xff]
  %v2081 = vld [vmem:[%s2 + $0x78] sm:$0xff]
  %v2082 = vld [vmem:[%s2 + $0x80] sm:$0xff]
  %v2083 = vld [vmem:[%s2 + $0x88] sm:$0xff]
  %v2084 = vld [vmem:[%s2 + $0x90] sm:$0xff]
  %v2085 = vld [vmem:[%s2 + $0x98] sm:$0xff]
  %v2086 = vld [vmem:[%s2 + $0xa0] sm:$0xff]
  %v2087 = vld [vmem:[%s2 + $0xa8] sm:$0xff]
  %v2088 = vld [vmem:[%s2 + $0xb0] sm:$0xff]
  %v2089 = vld [vmem:[%s2 + $0xb8] sm:$0xff]
  %v2090 = vld [vmem:[%s2 + $0xc0] sm:$0xff]
  %v2091 = vld [vmem:[%s2 + $0xc8] sm:$0xff]
  %v2092 = vld [vmem:[%s2 + $0xd0] sm:$0xff]
  %v2093 = vld [vmem:[%s2 + $0xd8] sm:$0xff]
  %v2094 = vld [vmem:[%s2 + $0xe0] sm:$0xff]
  %v2095 = vld [vmem:[%s2 + $0xe8] sm:$0xff]
  %v2096 = vld [vmem:[%s2 + $0xf0] sm:$0xff]
  %v2097 = vld [vmem:[%s2 + $0xf8] sm:$0xff]
  %v2130 = vunpack.c.l.b16 %v2066
  %v2131 = vunpack.c.h.b16 %v2066
  %v2132 = vunpack.c.l.b16 %v2067
  %v2133 = vunpack.c.h.b16 %v2067
  %v2134 = vunpack.c.l.b16 %v2068
  %v2135 = vunpack.c.h.b16 %v2068
  %v2136 = vunpack.c.l.b16 %v2069
  %v2137 = vunpack.c.h.b16 %v2069
  %v2138 = vunpack.c.l.b16 %v2070
  %v2139 = vunpack.c.h.b16 %v2070
  %v2140 = vunpack.c.l.b16 %v2071
  %v2141 = vunpack.c.h.b16 %v2071
  %v2142 = vunpack.c.l.b16 %v2072
  %v2143 = vunpack.c.h.b16 %v2072
  %v2144 = vunpack.c.l.b16 %v2073
  %v2145 = vunpack.c.h.b16 %v2073
  %v2146 = vunpack.c.l.b16 %v2074
  %v2147 = vunpack.c.h.b16 %v2074
  %v2148 = vunpack.c.l.b16 %v2075
  %v2149 = vunpack.c.h.b16 %v2075
  %v2150 = vunpack.c.l.b16 %v2076
  %v2151 = vunpack.c.h.b16 %v2076
  %v2152 = vunpack.c.l.b16 %v2077
  %v2153 = vunpack.c.h.b16 %v2077
  %v2154 = vunpack.c.l.b16 %v2078
  %v2155 = vunpack.c.h.b16 %v2078
  %v2156 = vunpack.c.l.b16 %v2079
  %v2157 = vunpack.c.h.b16 %v2079
  %v2158 = vunpack.c.l.b16 %v2080
  %v2159 = vunpack.c.h.b16 %v2080
  %v2160 = vunpack.c.l.b16 %v2081
  %v2161 = vunpack.c.h.b16 %v2081
  %v2162 = vunpack.c.l.b16 %v2082
  %v2163 = vunpack.c.h.b16 %v2082
  %v2164 = vunpack.c.l.b16 %v2083
  %v2165 = vunpack.c.h.b16 %v2083
  %v2166 = vunpack.c.l.b16 %v2084
  %v2167 = vunpack.c.h.b16 %v2084
  %v2168 = vunpack.c.l.b16 %v2085
  %v2169 = vunpack.c.h.b16 %v2085
  %v2170 = vunpack.c.l.b16 %v2086
  %v2171 = vunpack.c.h.b16 %v2086
  %v2172 = vunpack.c.l.b16 %v2087
  %v2173 = vunpack.c.h.b16 %v2087
  %v2174 = vunpack.c.l.b16 %v2088
  %v2175 = vunpack.c.h.b16 %v2088
  %v2176 = vunpack.c.l.b16 %v2089
  %v2177 = vunpack.c.h.b16 %v2089
  %v2178 = vunpack.c.l.b16 %v2090
  %v2179 = vunpack.c.h.b16 %v2090
  %v2180 = vunpack.c.l.b16 %v2091
  %v2181 = vunpack.c.h.b16 %v2091
  %v2182 = vunpack.c.l.b16 %v2092
  %v2183 = vunpack.c.h.b16 %v2092
  %v2184 = vunpack.c.l.b16 %v2093
  %v2185 = vunpack.c.h.b16 %v2093
  %v2186 = vunpack.c.l.b16 %v2094
  %v2187 = vunpack.c.h.b16 %v2094
  %v2188 = vunpack.c.l.b16 %v2095
  %v2189 = vunpack.c.h.b16 %v2095
  %v2190 = vunpack.c.l.b16 %v2096
  %v2191 = vunpack.c.h.b16 %v2096
  %v2192 = vunpack.c.l.b16 %v2097
  %v2193 = vunpack.c.h.b16 %v2097
  %v2194 = vpack.c.b16 %v2134, %v2130
  %v2195 = vpack.c.b16 %v2135, %v2131
  %v2196 = vpack.c.b16 %v2136, %v2132
  %v2197 = vpack.c.b16 %v2137, %v2133
  %v2198 = vpack.c.b16 %v2142, %v2138
  %v2199 = vpack.c.b16 %v2143, %v2139
  %v2200 = vpack.c.b16 %v2144, %v2140
  %v2201 = vpack.c.b16 %v2145, %v2141
  %v2202 = vpack.c.b16 %v2150, %v2146
  %v2203 = vpack.c.b16 %v2151, %v2147
  %v2204 = vpack.c.b16 %v2152, %v2148
  %v2205 = vpack.c.b16 %v2153, %v2149
  %v2206 = vpack.c.b16 %v2158, %v2154
  %v2207 = vpack.c.b16 %v2159, %v2155
  %v2208 = vpack.c.b16 %v2160, %v2156
  %v2209 = vpack.c.b16 %v2161, %v2157
  %v2210 = vpack.c.b16 %v2166, %v2162
  %v2211 = vpack.c.b16 %v2167, %v2163
  %v2212 = vpack.c.b16 %v2168, %v2164
  %v2213 = vpack.c.b16 %v2169, %v2165
  %v2214 = vpack.c.b16 %v2174, %v2170
  %v2215 = vpack.c.b16 %v2175, %v2171
  %v2216 = vpack.c.b16 %v2176, %v2172
  %v2217 = vpack.c.b16 %v2177, %v2173
  %v2218 = vpack.c.b16 %v2182, %v2178
  %v2219 = vpack.c.b16 %v2183, %v2179
  %v2220 = vpack.c.b16 %v2184, %v2180
  %v2221 = vpack.c.b16 %v2185, %v2181
  %v2222 = vpack.c.b16 %v2190, %v2186
  %v2223 = vpack.c.b16 %v2191, %v2187
  %v2224 = vpack.c.b16 %v2192, %v2188
  %v2225 = vpack.c.b16 %v2193, %v2189
  %2258 = vmatprep.subr.bf16.mxu0 %v2195
  %2259 = vmatpush1.bf16.msra.mxu0 %v2194
  %2260 = vmatprep.subr.bf16.mxu0 %v2199
  %2261 = vmatpush1.bf16.msra.mxu0 %v2198
  %2262 = vmatprep.subr.bf16.mxu0 %v2203
  %2263 = vmatpush1.bf16.msra.mxu0 %v2202
  %2264 = vmatprep.subr.bf16.mxu0 %v2207
  %2265 = vmatpush1.bf16.msra.mxu0 %v2206
  %2266 = vmatprep.subr.bf16.mxu0 %v2211
  %2267 = vmatpush1.bf16.msra.mxu0 %v2210
  %2268 = vmatprep.subr.bf16.mxu0 %v2215
  %2269 = vmatpush1.bf16.msra.mxu0 %v2214
  %2270 = vmatprep.subr.bf16.mxu0 %v2219
  %2271 = vmatpush1.bf16.msra.mxu0 %v2218
  %2272 = vmatprep.subr.bf16.mxu0 %v2223
  %2273 = vmatpush1.bf16.msra.mxu0 %v2222
  %2274 = vmatprep.subr.bf16.mxu0 0
  %2275 = vmatpush1.bf16.msra.mxu0 0
  %2276 = vmatprep.subr.bf16.mxu0 0
  %2277 = vmatpush1.bf16.msra.mxu0 0
  %2278 = vmatprep.subr.bf16.mxu0 0
  %2279 = vmatpush1.bf16.msra.mxu0 0
  %2280 = vmatprep.subr.bf16.mxu0 0
  %2281 = vmatpush1.bf16.msra.mxu0 0
  %2282 = vmatprep.subr.bf16.mxu0 0
  %2283 = vmatpush1.bf16.msra.mxu0 0
  %2284 = vmatprep.subr.bf16.mxu0 0
  %2285 = vmatpush1.bf16.msra.mxu0 0
  %2286 = vmatprep.subr.bf16.mxu0 0
  %2287 = vmatpush1.bf16.msra.mxu0 0
  %2288 = vmatprep.subr.bf16.mxu0 0
  %2289 = vmatpush1.bf16.msra.mxu0 0
  %2290 = vmatprep.mubr.bf16.mxu0 0
  %2291 = vmatmul.mubr.bf16.gmra.mrb[0].mxu0 %v2065
  %v2292 = vpop.f32.mrb[0].mxu0
  %v2293 = vadd.f32 0.0, %v2292
  %v2294 = vpop.f32.mrb[0].mxu0
  %v2295 = vadd.f32 0.0, %v2294
  %v2296 = vpop.f32.mrb[0].mxu0
  %v2297 = vadd.f32 0.0, %v2296
  %v2298 = vpop.f32.mrb[0].mxu0
  %v2299 = vadd.f32 0.0, %v2298
  %2300 = vdwg.mxu0
  %2301 = vmatprep.subr.bf16.mxu0 %v2197
  %2302 = vmatpush1.bf16.msra.mxu0 %v2196
  %2303 = vmatprep.subr.bf16.mxu0 %v2201
  %2304 = vmatpush1.bf16.msra.mxu0 %v2200
  %2305 = vmatprep.subr.bf16.mxu0 %v2205
  %2306 = vmatpush1.bf16.msra.mxu0 %v2204
  %2307 = vmatprep.subr.bf16.mxu0 %v2209
  %2308 = vmatpush1.bf16.msra.mxu0 %v2208
  %2309 = vmatprep.subr.bf16.mxu0 %v2213
  %2310 = vmatpush1.bf16.msra.mxu0 %v2212
  %2311 = vmatprep.subr.bf16.mxu0 %v2217
  %2312 = vmatpush1.bf16.msra.mxu0 %v2216
  %2313 = vmatprep.subr.bf16.mxu0 %v2221
  %2314 = vmatpush1.bf16.msra.mxu0 %v2220
  %2315 = vmatprep.subr.bf16.mxu0 %v2225
  %2316 = vmatpush1.bf16.msra.mxu0 %v2224
  %2317 = vmatprep.subr.bf16.mxu0 0
  %2318 = vmatpush1.bf16.msra.mxu0 0
  %2319 = vmatprep.subr.bf16.mxu0 0
  %2320 = vmatpush1.bf16.msra.mxu0 0
  %2321 = vmatprep.subr.bf16.mxu0 0
  %2322 = vmatpush1.bf16.msra.mxu0 0
  %2323 = vmatprep.subr.bf16.mxu0 0
  %2324 = vmatpush1.bf16.msra.mxu0 0
  %2325 = vmatprep.subr.bf16.mxu0 0
  %2326 = vmatpush1.bf16.msra.mxu0 0
  %2327 = vmatprep.subr.bf16.mxu0 0
  %2328 = vmatpush1.bf16.msra.mxu0 0
  %2329 = vmatprep.subr.bf16.mxu0 0
  %2330 = vmatpush1.bf16.msra.mxu0 0
  %2331 = vmatprep.subr.bf16.mxu0 0
  %2332 = vmatpush1.bf16.msra.mxu0 0
  %2333 = vmatprep.mubr.bf16.mxu0 0
  %2334 = vmatmul.mubr.bf16.gmra.mrb[0].mxu0 %v2065
  %v2335 = vpop.f32.mrb[0].mxu0
  %v2336 = vadd.f32 0.0, %v2335
  %v2337 = vpop.f32.mrb[0].mxu0
  %v2338 = vadd.f32 0.0, %v2337
  %v2339 = vpop.f32.mrb[0].mxu0
  %v2340 = vadd.f32 0.0, %v2339
  %v2341 = vpop.f32.mrb[0].mxu0
  %v2342 = vadd.f32 0.0, %v2341
  %2343 = vdwg.mxu0
  %v2344 = vadd.f32 %v2055, %v2293
  %v2345 = vadd.f32 %v2056, %v2295
  %v2346 = vadd.f32 %v2057, %v2336
  %v2347 = vadd.f32 %v2058, %v2338
  %v2348 = vadd.f32 %v2059, %v2297
  %v2349 = vadd.f32 %v2060, %v2299
  %v2350 = vadd.f32 %v2061, %v2340
  %v2351 = vadd.f32 %v2062, %v2342
  %v2352 = vxor.u32 %v2344, 2147483648
  %v2353 = vxor.u32 %v2345, 2147483648
  %v2354 = vxor.u32 %v2346, 2147483648
  %v2355 = vxor.u32 %v2348, 2147483648
  %v2356 = vxor.u32 %v2349, 2147483648
  %v2357 = vxor.u32 %v2350, 2147483648
  %v2358 = vmul.f32 %v2352, 1.442695
  %v2359 = vpow.pop %v2358
  %v2360 = vmul.f32 %v2353, 1.442695
  %v2361 = vpow.pop %v2360
  %v2362 = vmul.f32 %v2354, 1.442695
  %v2363 = vpow.pop %v2362
  %v2364 = vmul.f32 %v2355, 1.442695
  %v2365 = vpow.pop %v2364
  %v2366 = vmul.f32 %v2356, 1.442695
  %v2367 = vpow.pop %v2366
  %v2368 = vmul.f32 %v2357, 1.442695
  %v2369 = vpow.pop %v2368
  %v2370 = vadd.f32 %v2359, 1.0
  %v2371 = vadd.f32 %v2361, 1.0
  %v2372 = vadd.f32 %v2363, 1.0
  %v2373 = vadd.f32 %v2365, 1.0
  %v2374 = vadd.f32 %v2367, 1.0
  %v2375 = vadd.f32 %v2369, 1.0
  %v2376 = vrcp.pop %v2370
  %v2377 = vmul.f32 1.0, %v2376
  %v2378 = vrcp.pop %v2371
  %v2379 = vmul.f32 1.0, %v2378
  %v2380 = vrcp.pop %v2372
  %v2381 = vmul.f32 1.0, %v2380
  %v2382 = vrcp.pop %v2373
  %v2383 = vmul.f32 1.0, %v2382
  %v2384 = vrcp.pop %v2374
  %v2385 = vmul.f32 1.0, %v2384
  %v2386 = vrcp.pop %v2375
  %v2387 = vmul.f32 1.0, %v2386
  %v2388 = vtanh.pop %v2347
  %v2389 = vtanh.pop %v2351
  %v2390 = vld [vmem:[#allocation5] sm:$0xff]
  %v2391 = vld [vmem:[#allocation5 + $0x8] sm:$0xff]
  %v2392 = vmul.f32 %v2379, %v2390
  %v2393 = vmul.f32 %v2385, %v2391
  %v2394 = vmul.f32 %v2377, %v2388
  %v2395 = vmul.f32 %v2383, %v2389
  %v2396 = vadd.f32 %v2392, %v2394
  %v2397 = vadd.f32 %v2393, %v2395
  %v2398 = vtanh.pop %v2396
  %v2399 = vtanh.pop %v2397
  %v2400 = vmul.f32 %v2381, %v2398
  %v2401 = vmul.f32 %v2387, %v2399
  %2402 = vst [vmem:[#allocation5] sm:$0xff] %v2396
  %2403 = vst [vmem:[#allocation5 + $0x8] sm:$0xff] %v2397
  %2404 = vst [vmem:[#allocation4] sm:$0xff] %v2400
  %2405 = vst [vmem:[#allocation4 + $0x8] sm:$0xff] %v2401
  %v2406 = vpack.c.bf16 %v2401, %v2400
  %s2407 = scalar_lea.vmem [#allocation2], 32
  %2408 = vst [vmem:[%s2407] sm:$0xff] %v2406
  %s2409 = smul.u32 5, 4
  %s2410 = smul.addr %s2409, 8
  %s2411 = scalar_lea.vmem [#allocation3], %s2410
  %v2412 = vld [vmem:[%s2411] sm:$0xff]
  %v2413 = vld [vmem:[%s2411 + $0x8] sm:$0xff]
  %v2414 = vld [vmem:[%s2411 + $0x10] sm:$0xff]
  %v2415 = vld [vmem:[%s2411 + $0x18] sm:$0xff]
  %v2416 = vunpack.c.l.bf16 %v2412
  %v2417 = vunpack.c.l.bf16 %v2413
  %v2418 = vunpack.c.l.bf16 %v2414
  %v2419 = vunpack.c.l.bf16 %v2415
  %v2420 = vunpack.c.h.bf16 %v2412
  %v2421 = vunpack.c.h.bf16 %v2413
  %v2422 = vunpack.c.h.bf16 %v2414
  %v2423 = vunpack.c.h.bf16 %v2415
  %v2424 = vld [vmem:[#allocation4] sm:$0xff]
  %v2425 = vld [vmem:[#allocation4 + $0x8] sm:$0xff]
  %v2426 = vpack.c.bf16 %v2425, %v2424
  %v2427 = vld [vmem:[%s2] sm:$0xff]
  %v2428 = vld [vmem:[%s2 + $0x8] sm:$0xff]
  %v2429 = vld [vmem:[%s2 + $0x10] sm:$0xff]
  %v2430 = vld [vmem:[%s2 + $0x18] sm:$0xff]
  %v2431 = vld [vmem:[%s2 + $0x20] sm:$0xff]
  %v2432 = vld [vmem:[%s2 + $0x28] sm:$0xff]
  %v2433 = vld [vmem:[%s2 + $0x30] sm:$0xff]
  %v2434 = vld [vmem:[%s2 + $0x38] sm:$0xff]
  %v2435 = vld [vmem:[%s2 + $0x40] sm:$0xff]
  %v2436 = vld [vmem:[%s2 + $0x48] sm:$0xff]
  %v2437 = vld [vmem:[%s2 + $0x50] sm:$0xff]
  %v2438 = vld [vmem:[%s2 + $0x58] sm:$0xff]
  %v2439 = vld [vmem:[%s2 + $0x60] sm:$0xff]
  %v2440 = vld [vmem:[%s2 + $0x68] sm:$0xff]
  %v2441 = vld [vmem:[%s2 + $0x70] sm:$0xff]
  %v2442 = vld [vmem:[%s2 + $0x78] sm:$0xff]
  %v2443 = vld [vmem:[%s2 + $0x80] sm:$0xff]
  %v2444 = vld [vmem:[%s2 + $0x88] sm:$0xff]
  %v2445 = vld [vmem:[%s2 + $0x90] sm:$0xff]
  %v2446 = vld [vmem:[%s2 + $0x98] sm:$0xff]
  %v2447 = vld [vmem:[%s2 + $0xa0] sm:$0xff]
  %v2448 = vld [vmem:[%s2 + $0xa8] sm:$0xff]
  %v2449 = vld [vmem:[%s2 + $0xb0] sm:$0xff]
  %v2450 = vld [vmem:[%s2 + $0xb8] sm:$0xff]
  %v2451 = vld [vmem:[%s2 + $0xc0] sm:$0xff]
  %v2452 = vld [vmem:[%s2 + $0xc8] sm:$0xff]
  %v2453 = vld [vmem:[%s2 + $0xd0] sm:$0xff]
  %v2454 = vld [vmem:[%s2 + $0xd8] sm:$0xff]
  %v2455 = vld [vmem:[%s2 + $0xe0] sm:$0xff]
  %v2456 = vld [vmem:[%s2 + $0xe8] sm:$0xff]
  %v2457 = vld [vmem:[%s2 + $0xf0] sm:$0xff]
  %v2458 = vld [vmem:[%s2 + $0xf8] sm:$0xff]
  %v2491 = vunpack.c.l.b16 %v2427
  %v2492 = vunpack.c.h.b16 %v2427
  %v2493 = vunpack.c.l.b16 %v2428
  %v2494 = vunpack.c.h.b16 %v2428
  %v2495 = vunpack.c.l.b16 %v2429
  %v2496 = vunpack.c.h.b16 %v2429
  %v2497 = vunpack.c.l.b16 %v2430
  %v2498 = vunpack.c.h.b16 %v2430
  %v2499 = vunpack.c.l.b16 %v2431
  %v2500 = vunpack.c.h.b16 %v2431
  %v2501 = vunpack.c.l.b16 %v2432
  %v2502 = vunpack.c.h.b16 %v2432
  %v2503 = vunpack.c.l.b16 %v2433
  %v2504 = vunpack.c.h.b16 %v2433
  %v2505 = vunpack.c.l.b16 %v2434
  %v2506 = vunpack.c.h.b16 %v2434
  %v2507 = vunpack.c.l.b16 %v2435
  %v2508 = vunpack.c.h.b16 %v2435
  %v2509 = vunpack.c.l.b16 %v2436
  %v2510 = vunpack.c.h.b16 %v2436
  %v2511 = vunpack.c.l.b16 %v2437
  %v2512 = vunpack.c.h.b16 %v2437
  %v2513 = vunpack.c.l.b16 %v2438
  %v2514 = vunpack.c.h.b16 %v2438
  %v2515 = vunpack.c.l.b16 %v2439
  %v2516 = vunpack.c.h.b16 %v2439
  %v2517 = vunpack.c.l.b16 %v2440
  %v2518 = vunpack.c.h.b16 %v2440
  %v2519 = vunpack.c.l.b16 %v2441
  %v2520 = vunpack.c.h.b16 %v2441
  %v2521 = vunpack.c.l.b16 %v2442
  %v2522 = vunpack.c.h.b16 %v2442
  %v2523 = vunpack.c.l.b16 %v2443
  %v2524 = vunpack.c.h.b16 %v2443
  %v2525 = vunpack.c.l.b16 %v2444
  %v2526 = vunpack.c.h.b16 %v2444
  %v2527 = vunpack.c.l.b16 %v2445
  %v2528 = vunpack.c.h.b16 %v2445
  %v2529 = vunpack.c.l.b16 %v2446
  %v2530 = vunpack.c.h.b16 %v2446
  %v2531 = vunpack.c.l.b16 %v2447
  %v2532 = vunpack.c.h.b16 %v2447
  %v2533 = vunpack.c.l.b16 %v2448
  %v2534 = vunpack.c.h.b16 %v2448
  %v2535 = vunpack.c.l.b16 %v2449
  %v2536 = vunpack.c.h.b16 %v2449
  %v2537 = vunpack.c.l.b16 %v2450
  %v2538 = vunpack.c.h.b16 %v2450
  %v2539 = vunpack.c.l.b16 %v2451
  %v2540 = vunpack.c.h.b16 %v2451
  %v2541 = vunpack.c.l.b16 %v2452
  %v2542 = vunpack.c.h.b16 %v2452
  %v2543 = vunpack.c.l.b16 %v2453
  %v2544 = vunpack.c.h.b16 %v2453
  %v2545 = vunpack.c.l.b16 %v2454
  %v2546 = vunpack.c.h.b16 %v2454
  %v2547 = vunpack.c.l.b16 %v2455
  %v2548 = vunpack.c.h.b16 %v2455
  %v2549 = vunpack.c.l.b16 %v2456
  %v2550 = vunpack.c.h.b16 %v2456
  %v2551 = vunpack.c.l.b16 %v2457
  %v2552 = vunpack.c.h.b16 %v2457
  %v2553 = vunpack.c.l.b16 %v2458
  %v2554 = vunpack.c.h.b16 %v2458
  %v2555 = vpack.c.b16 %v2495, %v2491
  %v2556 = vpack.c.b16 %v2496, %v2492
  %v2557 = vpack.c.b16 %v2497, %v2493
  %v2558 = vpack.c.b16 %v2498, %v2494
  %v2559 = vpack.c.b16 %v2503, %v2499
  %v2560 = vpack.c.b16 %v2504, %v2500
  %v2561 = vpack.c.b16 %v2505, %v2501
  %v2562 = vpack.c.b16 %v2506, %v2502
  %v2563 = vpack.c.b16 %v2511, %v2507
  %v2564 = vpack.c.b16 %v2512, %v2508
  %v2565 = vpack.c.b16 %v2513, %v2509
  %v2566 = vpack.c.b16 %v2514, %v2510
  %v2567 = vpack.c.b16 %v2519, %v2515
  %v2568 = vpack.c.b16 %v2520, %v2516
  %v2569 = vpack.c.b16 %v2521, %v2517
  %v2570 = vpack.c.b16 %v2522, %v2518
  %v2571 = vpack.c.b16 %v2527, %v2523
  %v2572 = vpack.c.b16 %v2528, %v2524
  %v2573 = vpack.c.b16 %v2529, %v2525
  %v2574 = vpack.c.b16 %v2530, %v2526
  %v2575 = vpack.c.b16 %v2535, %v2531
  %v2576 = vpack.c.b16 %v2536, %v2532
  %v2577 = vpack.c.b16 %v2537, %v2533
  %v2578 = vpack.c.b16 %v2538, %v2534
  %v2579 = vpack.c.b16 %v2543, %v2539
  %v2580 = vpack.c.b16 %v2544, %v2540
  %v2581 = vpack.c.b16 %v2545, %v2541
  %v2582 = vpack.c.b16 %v2546, %v2542
  %v2583 = vpack.c.b16 %v2551, %v2547
  %v2584 = vpack.c.b16 %v2552, %v2548
  %v2585 = vpack.c.b16 %v2553, %v2549
  %v2586 = vpack.c.b16 %v2554, %v2550
  %2619 = vmatprep.subr.bf16.mxu0 %v2556
  %2620 = vmatpush1.bf16.msra.mxu0 %v2555
  %2621 = vmatprep.subr.bf16.mxu0 %v2560
  %2622 = vmatpush1.bf16.msra.mxu0 %v2559
  %2623 = vmatprep.subr.bf16.mxu0 %v2564
  %2624 = vmatpush1.bf16.msra.mxu0 %v2563
  %2625 = vmatprep.subr.bf16.mxu0 %v2568
  %2626 = vmatpush1.bf16.msra.mxu0 %v2567
  %2627 = vmatprep.subr.bf16.mxu0 %v2572
  %2628 = vmatpush1.bf16.msra.mxu0 %v2571
  %2629 = vmatprep.subr.bf16.mxu0 %v2576
  %2630 = vmatpush1.bf16.msra.mxu0 %v2575
  %2631 = vmatprep.subr.bf16.mxu0 %v2580
  %2632 = vmatpush1.bf16.msra.mxu0 %v2579
  %2633 = vmatprep.subr.bf16.mxu0 %v2584
  %2634 = vmatpush1.bf16.msra.mxu0 %v2583
  %2635 = vmatprep.subr.bf16.mxu0 0
  %2636 = vmatpush1.bf16.msra.mxu0 0
  %2637 = vmatprep.subr.bf16.mxu0 0
  %2638 = vmatpush1.bf16.msra.mxu0 0
  %2639 = vmatprep.subr.bf16.mxu0 0
  %2640 = vmatpush1.bf16.msra.mxu0 0
  %2641 = vmatprep.subr.bf16.mxu0 0
  %2642 = vmatpush1.bf16.msra.mxu0 0
  %2643 = vmatprep.subr.bf16.mxu0 0
  %2644 = vmatpush1.bf16.msra.mxu0 0
  %2645 = vmatprep.subr.bf16.mxu0 0
  %2646 = vmatpush1.bf16.msra.mxu0 0
  %2647 = vmatprep.subr.bf16.mxu0 0
  %2648 = vmatpush1.bf16.msra.mxu0 0
  %2649 = vmatprep.subr.bf16.mxu0 0
  %2650 = vmatpush1.bf16.msra.mxu0 0
  %2651 = vmatprep.mubr.bf16.mxu0 0
  %2652 = vmatmul.mubr.bf16.gmra.mrb[0].mxu0 %v2426
  %v2653 = vpop.f32.mrb[0].mxu0
  %v2654 = vadd.f32 0.0, %v2653
  %v2655 = vpop.f32.mrb[0].mxu0
  %v2656 = vadd.f32 0.0, %v2655
  %v2657 = vpop.f32.mrb[0].mxu0
  %v2658 = vadd.f32 0.0, %v2657
  %v2659 = vpop.f32.mrb[0].mxu0
  %v2660 = vadd.f32 0.0, %v2659
  %2661 = vdwg.mxu0
  %2662 = vmatprep.subr.bf16.mxu0 %v2558
  %2663 = vmatpush1.bf16.msra.mxu0 %v2557
  %2664 = vmatprep.subr.bf16.mxu0 %v2562
  %2665 = vmatpush1.bf16.msra.mxu0 %v2561
  %2666 = vmatprep.subr.bf16.mxu0 %v2566
  %2667 = vmatpush1.bf16.msra.mxu0 %v2565
  %2668 = vmatprep.subr.bf16.mxu0 %v2570
  %2669 = vmatpush1.bf16.msra.mxu0 %v2569
  %2670 = vmatprep.subr.bf16.mxu0 %v2574
  %2671 = vmatpush1.bf16.msra.mxu0 %v2573
  %2672 = vmatprep.subr.bf16.mxu0 %v2578
  %2673 = vmatpush1.bf16.msra.mxu0 %v2577
  %2674 = vmatprep.subr.bf16.mxu0 %v2582
  %2675 = vmatpush1.bf16.msra.mxu0 %v2581
  %2676 = vmatprep.subr.bf16.mxu0 %v2586
  %2677 = vmatpush1.bf16.msra.mxu0 %v2585
  %2678 = vmatprep.subr.bf16.mxu0 0
  %2679 = vmatpush1.bf16.msra.mxu0 0
  %2680 = vmatprep.subr.bf16.mxu0 0
  %2681 = vmatpush1.bf16.msra.mxu0 0
  %2682 = vmatprep.subr.bf16.mxu0 0
  %2683 = vmatpush1.bf16.msra.mxu0 0
  %2684 = vmatprep.subr.bf16.mxu0 0
  %2685 = vmatpush1.bf16.msra.mxu0 0
  %2686 = vmatprep.subr.bf16.mxu0 0
  %2687 = vmatpush1.bf16.msra.mxu0 0
  %2688 = vmatprep.subr.bf16.mxu0 0
  %2689 = vmatpush1.bf16.msra.mxu0 0
  %2690 = vmatprep.subr.bf16.mxu0 0
  %2691 = vmatpush1.bf16.msra.mxu0 0
  %2692 = vmatprep.subr.bf16.mxu0 0
  %2693 = vmatpush1.bf16.msra.mxu0 0
  %2694 = vmatprep.mubr.bf16.mxu0 0
  %2695 = vmatmul.mubr.bf16.gmra.mrb[0].mxu0 %v2426
  %v2696 = vpop.f32.mrb[0].mxu0
  %v2697 = vadd.f32 0.0, %v2696
  %v2698 = vpop.f32.mrb[0].mxu0
  %v2699 = vadd.f32 0.0, %v2698
  %v2700 = vpop.f32.mrb[0].mxu0
  %v2701 = vadd.f32 0.0, %v2700
  %v2702 = vpop.f32.mrb[0].mxu0
  %v2703 = vadd.f32 0.0, %v2702
  %2704 = vdwg.mxu0
  %v2705 = vadd.f32 %v2416, %v2654
  %v2706 = vadd.f32 %v2417, %v2656
  %v2707 = vadd.f32 %v2418, %v2697
  %v2708 = vadd.f32 %v2419, %v2699
  %v2709 = vadd.f32 %v2420, %v2658
  %v2710 = vadd.f32 %v2421, %v2660
  %v2711 = vadd.f32 %v2422, %v2701
  %v2712 = vadd.f32 %v2423, %v2703
  %v2713 = vxor.u32 %v2705, 2147483648
  %v2714 = vxor.u32 %v2706, 2147483648
  %v2715 = vxor.u32 %v2707, 2147483648
  %v2716 = vxor.u32 %v2709, 2147483648
  %v2717 = vxor.u32 %v2710, 2147483648
  %v2718 = vxor.u32 %v2711, 2147483648
  %v2719 = vmul.f32 %v2713, 1.442695
  %v2720 = vpow.pop %v2719
  %v2721 = vmul.f32 %v2714, 1.442695
  %v2722 = vpow.pop %v2721
  %v2723 = vmul.f32 %v2715, 1.442695
  %v2724 = vpow.pop %v2723
  %v2725 = vmul.f32 %v2716, 1.442695
  %v2726 = vpow.pop %v2725
  %v2727 = vmul.f32 %v2717, 1.442695
  %v2728 = vpow.pop %v2727
  %v2729 = vmul.f32 %v2718, 1.442695
  %v2730 = vpow.pop %v2729
  %v2731 = vadd.f32 %v2720, 1.0
  %v2732 = vadd.f32 %v2722, 1.0
  %v2733 = vadd.f32 %v2724, 1.0
  %v2734 = vadd.f32 %v2726, 1.0
  %v2735 = vadd.f32 %v2728, 1.0
  %v2736 = vadd.f32 %v2730, 1.0
  %v2737 = vrcp.pop %v2731
  %v2738 = vmul.f32 1.0, %v2737
  %v2739 = vrcp.pop %v2732
  %v2740 = vmul.f32 1.0, %v2739
  %v2741 = vrcp.pop %v2733
  %v2742 = vmul.f32 1.0, %v2741
  %v2743 = vrcp.pop %v2734
  %v2744 = vmul.f32 1.0, %v2743
  %v2745 = vrcp.pop %v2735
  %v2746 = vmul.f32 1.0, %v2745
  %v2747 = vrcp.pop %v2736
  %v2748 = vmul.f32 1.0, %v2747
  %v2749 = vtanh.pop %v2708
  %v2750 = vtanh.pop %v2712
  %v2751 = vld [vmem:[#allocation5] sm:$0xff]
  %v2752 = vld [vmem:[#allocation5 + $0x8] sm:$0xff]
  %v2753 = vmul.f32 %v2740, %v2751
  %v2754 = vmul.f32 %v2746, %v2752
  %v2755 = vmul.f32 %v2738, %v2749
  %v2756 = vmul.f32 %v2744, %v2750
  %v2757 = vadd.f32 %v2753, %v2755
  %v2758 = vadd.f32 %v2754, %v2756
  %v2759 = vtanh.pop %v2757
  %v2760 = vtanh.pop %v2758
  %v2761 = vmul.f32 %v2742, %v2759
  %v2762 = vmul.f32 %v2748, %v2760
  %2763 = vst [vmem:[#allocation5] sm:$0xff] %v2757
  %2764 = vst [vmem:[#allocation5 + $0x8] sm:$0xff] %v2758
  %2765 = vst [vmem:[#allocation4] sm:$0xff] %v2761
  %2766 = vst [vmem:[#allocation4 + $0x8] sm:$0xff] %v2762
  %v2767 = vpack.c.bf16 %v2762, %v2761
  %s2768 = scalar_lea.vmem [#allocation2], 40
  %2769 = vst [vmem:[%s2768] sm:$0xff] %v2767
  %s2770 = smul.u32 6, 4
  %s2771 = smul.addr %s2770, 8
  %s2772 = scalar_lea.vmem [#allocation3], %s2771
  %v2773 = vld [vmem:[%s2772] sm:$0xff]
  %v2774 = vld [vmem:[%s2772 + $0x8] sm:$0xff]
  %v2775 = vld [vmem:[%s2772 + $0x10] sm:$0xff]
  %v2776 = vld [vmem:[%s2772 + $0x18] sm:$0xff]
  %v2777 = vunpack.c.l.bf16 %v2773
  %v2778 = vunpack.c.l.bf16 %v2774
  %v2779 = vunpack.c.l.bf16 %v2775
  %v2780 = vunpack.c.l.bf16 %v2776
  %v2781 = vunpack.c.h.bf16 %v2773
  %v2782 = vunpack.c.h.bf16 %v2774
  %v2783 = vunpack.c.h.bf16 %v2775
  %v2784 = vunpack.c.h.bf16 %v2776
  %v2785 = vld [vmem:[#allocation4] sm:$0xff]
  %v2786 = vld [vmem:[#allocation4 + $0x8] sm:$0xff]
  %v2787 = vpack.c.bf16 %v2786, %v2785
  %v2788 = vld [vmem:[%s2] sm:$0xff]
  %v2789 = vld [vmem:[%s2 + $0x8] sm:$0xff]
  %v2790 = vld [vmem:[%s2 + $0x10] sm:$0xff]
  %v2791 = vld [vmem:[%s2 + $0x18] sm:$0xff]
  %v2792 = vld [vmem:[%s2 + $0x20] sm:$0xff]
  %v2793 = vld [vmem:[%s2 + $0x28] sm:$0xff]
  %v2794 = vld [vmem:[%s2 + $0x30] sm:$0xff]
  %v2795 = vld [vmem:[%s2 + $0x38] sm:$0xff]
  %v2796 = vld [vmem:[%s2 + $0x40] sm:$0xff]
  %v2797 = vld [vmem:[%s2 + $0x48] sm:$0xff]
  %v2798 = vld [vmem:[%s2 + $0x50] sm:$0xff]
  %v2799 = vld [vmem:[%s2 + $0x58] sm:$0xff]
  %v2800 = vld [vmem:[%s2 + $0x60] sm:$0xff]
  %v2801 = vld [vmem:[%s2 + $0x68] sm:$0xff]
  %v2802 = vld [vmem:[%s2 + $0x70] sm:$0xff]
  %v2803 = vld [vmem:[%s2 + $0x78] sm:$0xff]
  %v2804 = vld [vmem:[%s2 + $0x80] sm:$0xff]
  %v2805 = vld [vmem:[%s2 + $0x88] sm:$0xff]
  %v2806 = vld [vmem:[%s2 + $0x90] sm:$0xff]
  %v2807 = vld [vmem:[%s2 + $0x98] sm:$0xff]
  %v2808 = vld [vmem:[%s2 + $0xa0] sm:$0xff]
  %v2809 = vld [vmem:[%s2 + $0xa8] sm:$0xff]
  %v2810 = vld [vmem:[%s2 + $0xb0] sm:$0xff]
  %v2811 = vld [vmem:[%s2 + $0xb8] sm:$0xff]
  %v2812 = vld [vmem:[%s2 + $0xc0] sm:$0xff]
  %v2813 = vld [vmem:[%s2 + $0xc8] sm:$0xff]
  %v2814 = vld [vmem:[%s2 + $0xd0] sm:$0xff]
  %v2815 = vld [vmem:[%s2 + $0xd8] sm:$0xff]
  %v2816 = vld [vmem:[%s2 + $0xe0] sm:$0xff]
  %v2817 = vld [vmem:[%s2 + $0xe8] sm:$0xff]
  %v2818 = vld [vmem:[%s2 + $0xf0] sm:$0xff]
  %v2819 = vld [vmem:[%s2 + $0xf8] sm:$0xff]
  %v2852 = vunpack.c.l.b16 %v2788
  %v2853 = vunpack.c.h.b16 %v2788
  %v2854 = vunpack.c.l.b16 %v2789
  %v2855 = vunpack.c.h.b16 %v2789
  %v2856 = vunpack.c.l.b16 %v2790
  %v2857 = vunpack.c.h.b16 %v2790
  %v2858 = vunpack.c.l.b16 %v2791
  %v2859 = vunpack.c.h.b16 %v2791
  %v2860 = vunpack.c.l.b16 %v2792
  %v2861 = vunpack.c.h.b16 %v2792
  %v2862 = vunpack.c.l.b16 %v2793
  %v2863 = vunpack.c.h.b16 %v2793
  %v2864 = vunpack.c.l.b16 %v2794
  %v2865 = vunpack.c.h.b16 %v2794
  %v2866 = vunpack.c.l.b16 %v2795
  %v2867 = vunpack.c.h.b16 %v2795
  %v2868 = vunpack.c.l.b16 %v2796
  %v2869 = vunpack.c.h.b16 %v2796
  %v2870 = vunpack.c.l.b16 %v2797
  %v2871 = vunpack.c.h.b16 %v2797
  %v2872 = vunpack.c.l.b16 %v2798
  %v2873 = vunpack.c.h.b16 %v2798
  %v2874 = vunpack.c.l.b16 %v2799
  %v2875 = vunpack.c.h.b16 %v2799
  %v2876 = vunpack.c.l.b16 %v2800
  %v2877 = vunpack.c.h.b16 %v2800
  %v2878 = vunpack.c.l.b16 %v2801
  %v2879 = vunpack.c.h.b16 %v2801
  %v2880 = vunpack.c.l.b16 %v2802
  %v2881 = vunpack.c.h.b16 %v2802
  %v2882 = vunpack.c.l.b16 %v2803
  %v2883 = vunpack.c.h.b16 %v2803
  %v2884 = vunpack.c.l.b16 %v2804
  %v2885 = vunpack.c.h.b16 %v2804
  %v2886 = vunpack.c.l.b16 %v2805
  %v2887 = vunpack.c.h.b16 %v2805
  %v2888 = vunpack.c.l.b16 %v2806
  %v2889 = vunpack.c.h.b16 %v2806
  %v2890 = vunpack.c.l.b16 %v2807
  %v2891 = vunpack.c.h.b16 %v2807
  %v2892 = vunpack.c.l.b16 %v2808
  %v2893 = vunpack.c.h.b16 %v2808
  %v2894 = vunpack.c.l.b16 %v2809
  %v2895 = vunpack.c.h.b16 %v2809
  %v2896 = vunpack.c.l.b16 %v2810
  %v2897 = vunpack.c.h.b16 %v2810
  %v2898 = vunpack.c.l.b16 %v2811
  %v2899 = vunpack.c.h.b16 %v2811
  %v2900 = vunpack.c.l.b16 %v2812
  %v2901 = vunpack.c.h.b16 %v2812
  %v2902 = vunpack.c.l.b16 %v2813
  %v2903 = vunpack.c.h.b16 %v2813
  %v2904 = vunpack.c.l.b16 %v2814
  %v2905 = vunpack.c.h.b16 %v2814
  %v2906 = vunpack.c.l.b16 %v2815
  %v2907 = vunpack.c.h.b16 %v2815
  %v2908 = vunpack.c.l.b16 %v2816
  %v2909 = vunpack.c.h.b16 %v2816
  %v2910 = vunpack.c.l.b16 %v2817
  %v2911 = vunpack.c.h.b16 %v2817
  %v2912 = vunpack.c.l.b16 %v2818
  %v2913 = vunpack.c.h.b16 %v2818
  %v2914 = vunpack.c.l.b16 %v2819
  %v2915 = vunpack.c.h.b16 %v2819
  %v2916 = vpack.c.b16 %v2856, %v2852
  %v2917 = vpack.c.b16 %v2857, %v2853
  %v2918 = vpack.c.b16 %v2858, %v2854
  %v2919 = vpack.c.b16 %v2859, %v2855
  %v2920 = vpack.c.b16 %v2864, %v2860
  %v2921 = vpack.c.b16 %v2865, %v2861
  %v2922 = vpack.c.b16 %v2866, %v2862
  %v2923 = vpack.c.b16 %v2867, %v2863
  %v2924 = vpack.c.b16 %v2872, %v2868
  %v2925 = vpack.c.b16 %v2873, %v2869
  %v2926 = vpack.c.b16 %v2874, %v2870
  %v2927 = vpack.c.b16 %v2875, %v2871
  %v2928 = vpack.c.b16 %v2880, %v2876
  %v2929 = vpack.c.b16 %v2881, %v2877
  %v2930 = vpack.c.b16 %v2882, %v2878
  %v2931 = vpack.c.b16 %v2883, %v2879
  %v2932 = vpack.c.b16 %v2888, %v2884
  %v2933 = vpack.c.b16 %v2889, %v2885
  %v2934 = vpack.c.b16 %v2890, %v2886
  %v2935 = vpack.c.b16 %v2891, %v2887
  %v2936 = vpack.c.b16 %v2896, %v2892
  %v2937 = vpack.c.b16 %v2897, %v2893
  %v2938 = vpack.c.b16 %v2898, %v2894
  %v2939 = vpack.c.b16 %v2899, %v2895
  %v2940 = vpack.c.b16 %v2904, %v2900
  %v2941 = vpack.c.b16 %v2905, %v2901
  %v2942 = vpack.c.b16 %v2906, %v2902
  %v2943 = vpack.c.b16 %v2907, %v2903
  %v2944 = vpack.c.b16 %v2912, %v2908
  %v2945 = vpack.c.b16 %v2913, %v2909
  %v2946 = vpack.c.b16 %v2914, %v2910
  %v2947 = vpack.c.b16 %v2915, %v2911
  %2980 = vmatprep.subr.bf16.mxu0 %v2917
  %2981 = vmatpush1.bf16.msra.mxu0 %v2916
  %2982 = vmatprep.subr.bf16.mxu0 %v2921
  %2983 = vmatpush1.bf16.msra.mxu0 %v2920
  %2984 = vmatprep.subr.bf16.mxu0 %v2925
  %2985 = vmatpush1.bf16.msra.mxu0 %v2924
  %2986 = vmatprep.subr.bf16.mxu0 %v2929
  %2987 = vmatpush1.bf16.msra.mxu0 %v2928
  %2988 = vmatprep.subr.bf16.mxu0 %v2933
  %2989 = vmatpush1.bf16.msra.mxu0 %v2932
  %2990 = vmatprep.subr.bf16.mxu0 %v2937
  %2991 = vmatpush1.bf16.msra.mxu0 %v2936
  %2992 = vmatprep.subr.bf16.mxu0 %v2941
  %2993 = vmatpush1.bf16.msra.mxu0 %v2940
  %2994 = vmatprep.subr.bf16.mxu0 %v2945
  %2995 = vmatpush1.bf16.msra.mxu0 %v2944
  %2996 = vmatprep.subr.bf16.mxu0 0
  %2997 = vmatpush1.bf16.msra.mxu0 0
  %2998 = vmatprep.subr.bf16.mxu0 0
  %2999 = vmatpush1.bf16.msra.mxu0 0
  %3000 = vmatprep.subr.bf16.mxu0 0
  %3001 = vmatpush1.bf16.msra.mxu0 0
  %3002 = vmatprep.subr.bf16.mxu0 0
  %3003 = vmatpush1.bf16.msra.mxu0 0
  %3004 = vmatprep.subr.bf16.mxu0 0
  %3005 = vmatpush1.bf16.msra.mxu0 0
  %3006 = vmatprep.subr.bf16.mxu0 0
  %3007 = vmatpush1.bf16.msra.mxu0 0
  %3008 = vmatprep.subr.bf16.mxu0 0
  %3009 = vmatpush1.bf16.msra.mxu0 0
  %3010 = vmatprep.subr.bf16.mxu0 0
  %3011 = vmatpush1.bf16.msra.mxu0 0
  %3012 = vmatprep.mubr.bf16.mxu0 0
  %3013 = vmatmul.mubr.bf16.gmra.mrb[0].mxu0 %v2787
  %v3014 = vpop.f32.mrb[0].mxu0
  %v3015 = vadd.f32 0.0, %v3014
  %v3016 = vpop.f32.mrb[0].mxu0
  %v3017 = vadd.f32 0.0, %v3016
  %v3018 = vpop.f32.mrb[0].mxu0
  %v3019 = vadd.f32 0.0, %v3018
  %v3020 = vpop.f32.mrb[0].mxu0
  %v3021 = vadd.f32 0.0, %v3020
  %3022 = vdwg.mxu0
  %3023 = vmatprep.subr.bf16.mxu0 %v2919
  %3024 = vmatpush1.bf16.msra.mxu0 %v2918
  %3025 = vmatprep.subr.bf16.mxu0 %v2923
  %3026 = vmatpush1.bf16.msra.mxu0 %v2922
  %3027 = vmatprep.subr.bf16.mxu0 %v2927
  %3028 = vmatpush1.bf16.msra.mxu0 %v2926
  %3029 = vmatprep.subr.bf16.mxu0 %v2931
  %3030 = vmatpush1.bf16.msra.mxu0 %v2930
  %3031 = vmatprep.subr.bf16.mxu0 %v2935
  %3032 = vmatpush1.bf16.msra.mxu0 %v2934
  %3033 = vmatprep.subr.bf16.mxu0 %v2939
  %3034 = vmatpush1.bf16.msra.mxu0 %v2938
  %3035 = vmatprep.subr.bf16.mxu0 %v2943
  %3036 = vmatpush1.bf16.msra.mxu0 %v2942
  %3037 = vmatprep.subr.bf16.mxu0 %v2947
  %3038 = vmatpush1.bf16.msra.mxu0 %v2946
  %3039 = vmatprep.subr.bf16.mxu0 0
  %3040 = vmatpush1.bf16.msra.mxu0 0
  %3041 = vmatprep.subr.bf16.mxu0 0
  %3042 = vmatpush1.bf16.msra.mxu0 0
  %3043 = vmatprep.subr.bf16.mxu0 0
  %3044 = vmatpush1.bf16.msra.mxu0 0
  %3045 = vmatprep.subr.bf16.mxu0 0
  %3046 = vmatpush1.bf16.msra.mxu0 0
  %3047 = vmatprep.subr.bf16.mxu0 0
  %3048 = vmatpush1.bf16.msra.mxu0 0
  %3049 = vmatprep.subr.bf16.mxu0 0
  %3050 = vmatpush1.bf16.msra.mxu0 0
  %3051 = vmatprep.subr.bf16.mxu0 0
  %3052 = vmatpush1.bf16.msra.mxu0 0
  %3053 = vmatprep.subr.bf16.mxu0 0
  %3054 = vmatpush1.bf16.msra.mxu0 0
  %3055 = vmatprep.mubr.bf16.mxu0 0
  %3056 = vmatmul.mubr.bf16.gmra.mrb[0].mxu0 %v2787
  %v3057 = vpop.f32.mrb[0].mxu0
  %v3058 = vadd.f32 0.0, %v3057
  %v3059 = vpop.f32.mrb[0].mxu0
  %v3060 = vadd.f32 0.0, %v3059
  %v3061 = vpop.f32.mrb[0].mxu0
  %v3062 = vadd.f32 0.0, %v3061
  %v3063 = vpop.f32.mrb[0].mxu0
  %v3064 = vadd.f32 0.0, %v3063
  %3065 = vdwg.mxu0
  %v3066 = vadd.f32 %v2777, %v3015
  %v3067 = vadd.f32 %v2778, %v3017
  %v3068 = vadd.f32 %v2779, %v3058
  %v3069 = vadd.f32 %v2780, %v3060
  %v3070 = vadd.f32 %v2781, %v3019
  %v3071 = vadd.f32 %v2782, %v3021
  %v3072 = vadd.f32 %v2783, %v3062
  %v3073 = vadd.f32 %v2784, %v3064
  %v3074 = vxor.u32 %v3066, 2147483648
  %v3075 = vxor.u32 %v3067, 2147483648
  %v3076 = vxor.u32 %v3068, 2147483648
  %v3077 = vxor.u32 %v3070, 2147483648
  %v3078 = vxor.u32 %v3071, 2147483648
  %v3079 = vxor.u32 %v3072, 2147483648
  %v3080 = vmul.f32 %v3074, 1.442695
  %v3081 = vpow.pop %v3080
  %v3082 = vmul.f32 %v3075, 1.442695
  %v3083 = vpow.pop %v3082
  %v3084 = vmul.f32 %v3076, 1.442695
  %v3085 = vpow.pop %v3084
  %v3086 = vmul.f32 %v3077, 1.442695
  %v3087 = vpow.pop %v3086
  %v3088 = vmul.f32 %v3078, 1.442695
  %v3089 = vpow.pop %v3088
  %v3090 = vmul.f32 %v3079, 1.442695
  %v3091 = vpow.pop %v3090
  %v3092 = vadd.f32 %v3081, 1.0
  %v3093 = vadd.f32 %v3083, 1.0
  %v3094 = vadd.f32 %v3085, 1.0
  %v3095 = vadd.f32 %v3087, 1.0
  %v3096 = vadd.f32 %v3089, 1.0
  %v3097 = vadd.f32 %v3091, 1.0
  %v3098 = vrcp.pop %v3092
  %v3099 = vmul.f32 1.0, %v3098
  %v3100 = vrcp.pop %v3093
  %v3101 = vmul.f32 1.0, %v3100
  %v3102 = vrcp.pop %v3094
  %v3103 = vmul.f32 1.0, %v3102
  %v3104 = vrcp.pop %v3095
  %v3105 = vmul.f32 1.0, %v3104
  %v3106 = vrcp.pop %v3096
  %v3107 = vmul.f32 1.0, %v3106
  %v3108 = vrcp.pop %v3097
  %v3109 = vmul.f32 1.0, %v3108
  %v3110 = vtanh.pop %v3069
  %v3111 = vtanh.pop %v3073
  %v3112 = vld [vmem:[#allocation5] sm:$0xff]
  %v3113 = vld [vmem:[#allocation5 + $0x8] sm:$0xff]
  %v3114 = vmul.f32 %v3101, %v3112
  %v3115 = vmul.f32 %v3107, %v3113
  %v3116 = vmul.f32 %v3099, %v3110
  %v3117 = vmul.f32 %v3105, %v3111
  %v3118 = vadd.f32 %v3114, %v3116
  %v3119 = vadd.f32 %v3115, %v3117
  %v3120 = vtanh.pop %v3118
  %v3121 = vtanh.pop %v3119
  %v3122 = vmul.f32 %v3103, %v3120
  %v3123 = vmul.f32 %v3109, %v3121
  %3124 = vst [vmem:[#allocation5] sm:$0xff] %v3118
  %3125 = vst [vmem:[#allocation5 + $0x8] sm:$0xff] %v3119
  %3126 = vst [vmem:[#allocation4] sm:$0xff] %v3122
  %3127 = vst [vmem:[#allocation4 + $0x8] sm:$0xff] %v3123
  %v3128 = vpack.c.bf16 %v3123, %v3122
  %s3129 = scalar_lea.vmem [#allocation2], 48
  %3130 = vst [vmem:[%s3129] sm:$0xff] %v3128
  %s3131 = smul.u32 7, 4
  %s3132 = smul.addr %s3131, 8
  %s3133 = scalar_lea.vmem [#allocation3], %s3132
  %v3134 = vld [vmem:[%s3133] sm:$0xff]
  %v3135 = vld [vmem:[%s3133 + $0x8] sm:$0xff]
  %v3136 = vld [vmem:[%s3133 + $0x10] sm:$0xff]
  %v3137 = vld [vmem:[%s3133 + $0x18] sm:$0xff]
  %v3138 = vunpack.c.l.bf16 %v3134
  %v3139 = vunpack.c.l.bf16 %v3135
  %v3140 = vunpack.c.l.bf16 %v3136
  %v3141 = vunpack.c.l.bf16 %v3137
  %v3142 = vunpack.c.h.bf16 %v3134
  %v3143 = vunpack.c.h.bf16 %v3135
  %v3144 = vunpack.c.h.bf16 %v3136
  %v3145 = vunpack.c.h.bf16 %v3137
  %v3146 = vld [vmem:[#allocation4] sm:$0xff]
  %v3147 = vld [vmem:[#allocation4 + $0x8] sm:$0xff]
  %v3148 = vpack.c.bf16 %v3147, %v3146
  %v3149 = vld [vmem:[%s2] sm:$0xff]
  %v3150 = vld [vmem:[%s2 + $0x8] sm:$0xff]
  %v3151 = vld [vmem:[%s2 + $0x10] sm:$0xff]
  %v3152 = vld [vmem:[%s2 + $0x18] sm:$0xff]
  %v3153 = vld [vmem:[%s2 + $0x20] sm:$0xff]
  %v3154 = vld [vmem:[%s2 + $0x28] sm:$0xff]
  %v3155 = vld [vmem:[%s2 + $0x30] sm:$0xff]
  %v3156 = vld [vmem:[%s2 + $0x38] sm:$0xff]
  %v3157 = vld [vmem:[%s2 + $0x40] sm:$0xff]
  %v3158 = vld [vmem:[%s2 + $0x48] sm:$0xff]
  %v3159 = vld [vmem:[%s2 + $0x50] sm:$0xff]
  %v3160 = vld [vmem:[%s2 + $0x58] sm:$0xff]
  %v3161 = vld [vmem:[%s2 + $0x60] sm:$0xff]
  %v3162 = vld [vmem:[%s2 + $0x68] sm:$0xff]
  %v3163 = vld [vmem:[%s2 + $0x70] sm:$0xff]
  %v3164 = vld [vmem:[%s2 + $0x78] sm:$0xff]
  %v3165 = vld [vmem:[%s2 + $0x80] sm:$0xff]
  %v3166 = vld [vmem:[%s2 + $0x88] sm:$0xff]
  %v3167 = vld [vmem:[%s2 + $0x90] sm:$0xff]
  %v3168 = vld [vmem:[%s2 + $0x98] sm:$0xff]
  %v3169 = vld [vmem:[%s2 + $0xa0] sm:$0xff]
  %v3170 = vld [vmem:[%s2 + $0xa8] sm:$0xff]
  %v3171 = vld [vmem:[%s2 + $0xb0] sm:$0xff]
  %v3172 = vld [vmem:[%s2 + $0xb8] sm:$0xff]
  %v3173 = vld [vmem:[%s2 + $0xc0] sm:$0xff]
  %v3174 = vld [vmem:[%s2 + $0xc8] sm:$0xff]
  %v3175 = vld [vmem:[%s2 + $0xd0] sm:$0xff]
  %v3176 = vld [vmem:[%s2 + $0xd8] sm:$0xff]
  %v3177 = vld [vmem:[%s2 + $0xe0] sm:$0xff]
  %v3178 = vld [vmem:[%s2 + $0xe8] sm:$0xff]
  %v3179 = vld [vmem:[%s2 + $0xf0] sm:$0xff]
  %v3180 = vld [vmem:[%s2 + $0xf8] sm:$0xff]
  %v3213 = vunpack.c.l.b16 %v3149
  %v3214 = vunpack.c.h.b16 %v3149
  %v3215 = vunpack.c.l.b16 %v3150
  %v3216 = vunpack.c.h.b16 %v3150
  %v3217 = vunpack.c.l.b16 %v3151
  %v3218 = vunpack.c.h.b16 %v3151
  %v3219 = vunpack.c.l.b16 %v3152
  %v3220 = vunpack.c.h.b16 %v3152
  %v3221 = vunpack.c.l.b16 %v3153
  %v3222 = vunpack.c.h.b16 %v3153
  %v3223 = vunpack.c.l.b16 %v3154
  %v3224 = vunpack.c.h.b16 %v3154
  %v3225 = vunpack.c.l.b16 %v3155
  %v3226 = vunpack.c.h.b16 %v3155
  %v3227 = vunpack.c.l.b16 %v3156
  %v3228 = vunpack.c.h.b16 %v3156
  %v3229 = vunpack.c.l.b16 %v3157
  %v3230 = vunpack.c.h.b16 %v3157
  %v3231 = vunpack.c.l.b16 %v3158
  %v3232 = vunpack.c.h.b16 %v3158
  %v3233 = vunpack.c.l.b16 %v3159
  %v3234 = vunpack.c.h.b16 %v3159
  %v3235 = vunpack.c.l.b16 %v3160
  %v3236 = vunpack.c.h.b16 %v3160
  %v3237 = vunpack.c.l.b16 %v3161
  %v3238 = vunpack.c.h.b16 %v3161
  %v3239 = vunpack.c.l.b16 %v3162
  %v3240 = vunpack.c.h.b16 %v3162
  %v3241 = vunpack.c.l.b16 %v3163
  %v3242 = vunpack.c.h.b16 %v3163
  %v3243 = vunpack.c.l.b16 %v3164
  %v3244 = vunpack.c.h.b16 %v3164
  %v3245 = vunpack.c.l.b16 %v3165
  %v3246 = vunpack.c.h.b16 %v3165
  %v3247 = vunpack.c.l.b16 %v3166
  %v3248 = vunpack.c.h.b16 %v3166
  %v3249 = vunpack.c.l.b16 %v3167
  %v3250 = vunpack.c.h.b16 %v3167
  %v3251 = vunpack.c.l.b16 %v3168
  %v3252 = vunpack.c.h.b16 %v3168
  %v3253 = vunpack.c.l.b16 %v3169
  %v3254 = vunpack.c.h.b16 %v3169
  %v3255 = vunpack.c.l.b16 %v3170
  %v3256 = vunpack.c.h.b16 %v3170
  %v3257 = vunpack.c.l.b16 %v3171
  %v3258 = vunpack.c.h.b16 %v3171
  %v3259 = vunpack.c.l.b16 %v3172
  %v3260 = vunpack.c.h.b16 %v3172
  %v3261 = vunpack.c.l.b16 %v3173
  %v3262 = vunpack.c.h.b16 %v3173
  %v3263 = vunpack.c.l.b16 %v3174
  %v3264 = vunpack.c.h.b16 %v3174
  %v3265 = vunpack.c.l.b16 %v3175
  %v3266 = vunpack.c.h.b16 %v3175
  %v3267 = vunpack.c.l.b16 %v3176
  %v3268 = vunpack.c.h.b16 %v3176
  %v3269 = vunpack.c.l.b16 %v3177
  %v3270 = vunpack.c.h.b16 %v3177
  %v3271 = vunpack.c.l.b16 %v3178
  %v3272 = vunpack.c.h.b16 %v3178
  %v3273 = vunpack.c.l.b16 %v3179
  %v3274 = vunpack.c.h.b16 %v3179
  %v3275 = vunpack.c.l.b16 %v3180
  %v3276 = vunpack.c.h.b16 %v3180
  %v3277 = vpack.c.b16 %v3217, %v3213
  %v3278 = vpack.c.b16 %v3218, %v3214
  %v3279 = vpack.c.b16 %v3219, %v3215
  %v3280 = vpack.c.b16 %v3220, %v3216
  %v3281 = vpack.c.b16 %v3225, %v3221
  %v3282 = vpack.c.b16 %v3226, %v3222
  %v3283 = vpack.c.b16 %v3227, %v3223
  %v3284 = vpack.c.b16 %v3228, %v3224
  %v3285 = vpack.c.b16 %v3233, %v3229
  %v3286 = vpack.c.b16 %v3234, %v3230
  %v3287 = vpack.c.b16 %v3235, %v3231
  %v3288 = vpack.c.b16 %v3236, %v3232
  %v3289 = vpack.c.b16 %v3241, %v3237
  %v3290 = vpack.c.b16 %v3242, %v3238
  %v3291 = vpack.c.b16 %v3243, %v3239
  %v3292 = vpack.c.b16 %v3244, %v3240
  %v3293 = vpack.c.b16 %v3249, %v3245
  %v3294 = vpack.c.b16 %v3250, %v3246
  %v3295 = vpack.c.b16 %v3251, %v3247
  %v3296 = vpack.c.b16 %v3252, %v3248
  %v3297 = vpack.c.b16 %v3257, %v3253
  %v3298 = vpack.c.b16 %v3258, %v3254
  %v3299 = vpack.c.b16 %v3259, %v3255
  %v3300 = vpack.c.b16 %v3260, %v3256
  %v3301 = vpack.c.b16 %v3265, %v3261
  %v3302 = vpack.c.b16 %v3266, %v3262
  %v3303 = vpack.c.b16 %v3267, %v3263
  %v3304 = vpack.c.b16 %v3268, %v3264
  %v3305 = vpack.c.b16 %v3273, %v3269
  %v3306 = vpack.c.b16 %v3274, %v3270
  %v3307 = vpack.c.b16 %v3275, %v3271
  %v3308 = vpack.c.b16 %v3276, %v3272
  %3341 = vmatprep.subr.bf16.mxu0 %v3278
  %3342 = vmatpush1.bf16.msra.mxu0 %v3277
  %3343 = vmatprep.subr.bf16.mxu0 %v3282
  %3344 = vmatpush1.bf16.msra.mxu0 %v3281
  %3345 = vmatprep.subr.bf16.mxu0 %v3286
  %3346 = vmatpush1.bf16.msra.mxu0 %v3285
  %3347 = vmatprep.subr.bf16.mxu0 %v3290
  %3348 = vmatpush1.bf16.msra.mxu0 %v3289
  %3349 = vmatprep.subr.bf16.mxu0 %v3294
  %3350 = vmatpush1.bf16.msra.mxu0 %v3293
  %3351 = vmatprep.subr.bf16.mxu0 %v3298
  %3352 = vmatpush1.bf16.msra.mxu0 %v3297
  %3353 = vmatprep.subr.bf16.mxu0 %v3302
  %3354 = vmatpush1.bf16.msra.mxu0 %v3301
  %3355 = vmatprep.subr.bf16.mxu0 %v3306
  %3356 = vmatpush1.bf16.msra.mxu0 %v3305
  %3357 = vmatprep.subr.bf16.mxu0 0
  %3358 = vmatpush1.bf16.msra.mxu0 0
  %3359 = vmatprep.subr.bf16.mxu0 0
  %3360 = vmatpush1.bf16.msra.mxu0 0
  %3361 = vmatprep.subr.bf16.mxu0 0
  %3362 = vmatpush1.bf16.msra.mxu0 0
  %3363 = vmatprep.subr.bf16.mxu0 0
  %3364 = vmatpush1.bf16.msra.mxu0 0
  %3365 = vmatprep.subr.bf16.mxu0 0
  %3366 = vmatpush1.bf16.msra.mxu0 0
  %3367 = vmatprep.subr.bf16.mxu0 0
  %3368 = vmatpush1.bf16.msra.mxu0 0
  %3369 = vmatprep.subr.bf16.mxu0 0
  %3370 = vmatpush1.bf16.msra.mxu0 0
  %3371 = vmatprep.subr.bf16.mxu0 0
  %3372 = vmatpush1.bf16.msra.mxu0 0
  %3373 = vmatprep.mubr.bf16.mxu0 0
  %3374 = vmatmul.mubr.bf16.gmra.mrb[0].mxu0 %v3148
  %v3375 = vpop.f32.mrb[0].mxu0
  %v3376 = vadd.f32 0.0, %v3375
  %v3377 = vpop.f32.mrb[0].mxu0
  %v3378 = vadd.f32 0.0, %v3377
  %v3379 = vpop.f32.mrb[0].mxu0
  %v3380 = vadd.f32 0.0, %v3379
  %v3381 = vpop.f32.mrb[0].mxu0
  %v3382 = vadd.f32 0.0, %v3381
  %3383 = vdwg.mxu0
  %3384 = vmatprep.subr.bf16.mxu0 %v3280
  %3385 = vmatpush1.bf16.msra.mxu0 %v3279
  %3386 = vmatprep.subr.bf16.mxu0 %v3284
  %3387 = vmatpush1.bf16.msra.mxu0 %v3283
  %3388 = vmatprep.subr.bf16.mxu0 %v3288
  %3389 = vmatpush1.bf16.msra.mxu0 %v3287
  %3390 = vmatprep.subr.bf16.mxu0 %v3292
  %3391 = vmatpush1.bf16.msra.mxu0 %v3291
  %3392 = vmatprep.subr.bf16.mxu0 %v3296
  %3393 = vmatpush1.bf16.msra.mxu0 %v3295
  %3394 = vmatprep.subr.bf16.mxu0 %v3300
  %3395 = vmatpush1.bf16.msra.mxu0 %v3299
  %3396 = vmatprep.subr.bf16.mxu0 %v3304
  %3397 = vmatpush1.bf16.msra.mxu0 %v3303
  %3398 = vmatprep.subr.bf16.mxu0 %v3308
  %3399 = vmatpush1.bf16.msra.mxu0 %v3307
  %3400 = vmatprep.subr.bf16.mxu0 0
  %3401 = vmatpush1.bf16.msra.mxu0 0
  %3402 = vmatprep.subr.bf16.mxu0 0
  %3403 = vmatpush1.bf16.msra.mxu0 0
  %3404 = vmatprep.subr.bf16.mxu0 0
  %3405 = vmatpush1.bf16.msra.mxu0 0
  %3406 = vmatprep.subr.bf16.mxu0 0
  %3407 = vmatpush1.bf16.msra.mxu0 0
  %3408 = vmatprep.subr.bf16.mxu0 0
  %3409 = vmatpush1.bf16.msra.mxu0 0
  %3410 = vmatprep.subr.bf16.mxu0 0
  %3411 = vmatpush1.bf16.msra.mxu0 0
  %3412 = vmatprep.subr.bf16.mxu0 0
  %3413 = vmatpush1.bf16.msra.mxu0 0
  %3414 = vmatprep.subr.bf16.mxu0 0
  %3415 = vmatpush1.bf16.msra.mxu0 0
  %3416 = vmatprep.mubr.bf16.mxu0 0
  %3417 = vmatmul.mubr.bf16.gmra.mrb[0].mxu0 %v3148
  %v3418 = vpop.f32.mrb[0].mxu0
  %v3419 = vadd.f32 0.0, %v3418
  %v3420 = vpop.f32.mrb[0].mxu0
  %v3421 = vadd.f32 0.0, %v3420
  %v3422 = vpop.f32.mrb[0].mxu0
  %v3423 = vadd.f32 0.0, %v3422
  %v3424 = vpop.f32.mrb[0].mxu0
  %v3425 = vadd.f32 0.0, %v3424
  %3426 = vdwg.mxu0
  %v3427 = vadd.f32 %v3138, %v3376
  %v3428 = vadd.f32 %v3139, %v3378
  %v3429 = vadd.f32 %v3140, %v3419
  %v3430 = vadd.f32 %v3141, %v3421
  %v3431 = vadd.f32 %v3142, %v3380
  %v3432 = vadd.f32 %v3143, %v3382
  %v3433 = vadd.f32 %v3144, %v3423
  %v3434 = vadd.f32 %v3145, %v3425
  %v3435 = vxor.u32 %v3427, 2147483648
  %v3436 = vxor.u32 %v3428, 2147483648
  %v3437 = vxor.u32 %v3429, 2147483648
  %v3438 = vxor.u32 %v3431, 2147483648
  %v3439 = vxor.u32 %v3432, 2147483648
  %v3440 = vxor.u32 %v3433, 2147483648
  %v3441 = vmul.f32 %v3435, 1.442695
  %v3442 = vpow.pop %v3441
  %v3443 = vmul.f32 %v3436, 1.442695
  %v3444 = vpow.pop %v3443
  %v3445 = vmul.f32 %v3437, 1.442695
  %v3446 = vpow.pop %v3445
  %v3447 = vmul.f32 %v3438, 1.442695
  %v3448 = vpow.pop %v3447
  %v3449 = vmul.f32 %v3439, 1.442695
  %v3450 = vpow.pop %v3449
  %v3451 = vmul.f32 %v3440, 1.442695
  %v3452 = vpow.pop %v3451
  %v3453 = vadd.f32 %v3442, 1.0
  %v3454 = vadd.f32 %v3444, 1.0
  %v3455 = vadd.f32 %v3446, 1.0
  %v3456 = vadd.f32 %v3448, 1.0
  %v3457 = vadd.f32 %v3450, 1.0
  %v3458 = vadd.f32 %v3452, 1.0
  %v3459 = vrcp.pop %v3453
  %v3460 = vmul.f32 1.0, %v3459
  %v3461 = vrcp.pop %v3454
  %v3462 = vmul.f32 1.0, %v3461
  %v3463 = vrcp.pop %v3455
  %v3464 = vmul.f32 1.0, %v3463
  %v3465 = vrcp.pop %v3456
  %v3466 = vmul.f32 1.0, %v3465
  %v3467 = vrcp.pop %v3457
  %v3468 = vmul.f32 1.0, %v3467
  %v3469 = vrcp.pop %v3458
  %v3470 = vmul.f32 1.0, %v3469
  %v3471 = vtanh.pop %v3430
  %v3472 = vtanh.pop %v3434
  %v3473 = vld [vmem:[#allocation5] sm:$0xff]
  %v3474 = vld [vmem:[#allocation5 + $0x8] sm:$0xff]
  %v3475 = vmul.f32 %v3462, %v3473
  %v3476 = vmul.f32 %v3468, %v3474
  %v3477 = vmul.f32 %v3460, %v3471
  %v3478 = vmul.f32 %v3466, %v3472
  %v3479 = vadd.f32 %v3475, %v3477
  %v3480 = vadd.f32 %v3476, %v3478
  %v3481 = vtanh.pop %v3479
  %v3482 = vtanh.pop %v3480
  %v3483 = vmul.f32 %v3464, %v3481
  %v3484 = vmul.f32 %v3470, %v3482
  %3485 = vst [vmem:[#allocation5] sm:$0xff] %v3479
  %3486 = vst [vmem:[#allocation5 + $0x8] sm:$0xff] %v3480
  %3487 = vst [vmem:[#allocation4] sm:$0xff] %v3483
  %3488 = vst [vmem:[#allocation4 + $0x8] sm:$0xff] %v3484
  %v3489 = vpack.c.bf16 %v3484, %v3483
  %s3490 = scalar_lea.vmem [#allocation2], 56
  %3491 = vst [vmem:[%s3490] sm:$0xff] %v3489
  %v3492 = vld [vmem:[#allocation2] sm:$0xff]
  %v3493 = vld [vmem:[#allocation2 + $0x8] sm:$0xff]
  %v3494 = vld [vmem:[#allocation2 + $0x10] sm:$0xff]
  %v3495 = vld [vmem:[#allocation2 + $0x18] sm:$0xff]
  %v3496 = vld [vmem:[#allocation2 + $0x20] sm:$0xff]
  %v3497 = vld [vmem:[#allocation2 + $0x28] sm:$0xff]
  %v3498 = vld [vmem:[#allocation2 + $0x30] sm:$0xff]
  %v3499 = vld [vmem:[#allocation2 + $0x38] sm:$0xff]
  %v3500 = vld [vmem:[%s4] sm:$0xff]
  %v3501 = vld [vmem:[%s4 + $0x8] sm:$0xff]
  %v3502 = vld [vmem:[%s4 + $0x10] sm:$0xff]
  %v3503 = vld [vmem:[%s4 + $0x18] sm:$0xff]
  %v3504 = vld [vmem:[%s4 + $0x20] sm:$0xff]
  %v3505 = vld [vmem:[%s4 + $0x28] sm:$0xff]
  %v3506 = vld [vmem:[%s4 + $0x30] sm:$0xff]
  %v3507 = vld [vmem:[%s4 + $0x38] sm:$0xff]
  %v3508 = vld [vmem:[%s4 + $0x40] sm:$0xff]
  %v3509 = vld [vmem:[%s4 + $0x48] sm:$0xff]
  %v3510 = vld [vmem:[%s4 + $0x50] sm:$0xff]
  %v3511 = vld [vmem:[%s4 + $0x58] sm:$0xff]
  %v3512 = vld [vmem:[%s4 + $0x60] sm:$0xff]
  %v3513 = vld [vmem:[%s4 + $0x68] sm:$0xff]
  %v3514 = vld [vmem:[%s4 + $0x70] sm:$0xff]
  %v3515 = vld [vmem:[%s4 + $0x78] sm:$0xff]
  %v3516 = vld [vmem:[%s4 + $0x80] sm:$0xff]
  %v3517 = vld [vmem:[%s4 + $0x88] sm:$0xff]
  %v3518 = vld [vmem:[%s4 + $0x90] sm:$0xff]
  %v3519 = vld [vmem:[%s4 + $0x98] sm:$0xff]
  %v3520 = vld [vmem:[%s4 + $0xa0] sm:$0xff]
  %v3521 = vld [vmem:[%s4 + $0xa8] sm:$0xff]
  %v3522 = vld [vmem:[%s4 + $0xb0] sm:$0xff]
  %v3523 = vld [vmem:[%s4 + $0xb8] sm:$0xff]
  %v3524 = vld [vmem:[%s4 + $0xc0] sm:$0xff]
  %v3525 = vld [vmem:[%s4 + $0xc8] sm:$0xff]
  %v3526 = vld [vmem:[%s4 + $0xd0] sm:$0xff]
  %v3527 = vld [vmem:[%s4 + $0xd8] sm:$0xff]
  %v3528 = vld [vmem:[%s4 + $0xe0] sm:$0xff]
  %v3529 = vld [vmem:[%s4 + $0xe8] sm:$0xff]
  %v3530 = vld [vmem:[%s4 + $0xf0] sm:$0xff]
  %v3531 = vld [vmem:[%s4 + $0xf8] sm:$0xff]
  %v3532 = vld [vmem:[%s6] sm:$0xf]
  %v3534 = vlaneseq
  %v3535 = vshrl.u32 %v3534, 7
  %v3536 = vsub.s32 0, %v3535
  %v3537 = vrot.slane %v3532, %v3536
  %v3538 = vlaneseq
  %v3539 = vshrl.u32 %v3538, 7
  %v3540 = vsub.s32 1, %v3539
  %v3541 = vrot.slane %v3532, %v3540
  %v3542 = vlaneseq
  %v3543 = vshrl.u32 %v3542, 7
  %v3544 = vsub.s32 2, %v3543
  %v3545 = vrot.slane %v3532, %v3544
  %v3546 = vlaneseq
  %v3547 = vshrl.u32 %v3546, 7
  %v3548 = vsub.s32 3, %v3547
  %v3549 = vrot.slane %v3532, %v3548
  %v3586 = vunpack.c.l.b16 %v3500
  %v3587 = vunpack.c.h.b16 %v3500
  %v3588 = vunpack.c.l.b16 %v3501
  %v3589 = vunpack.c.h.b16 %v3501
  %v3590 = vunpack.c.l.b16 %v3502
  %v3591 = vunpack.c.h.b16 %v3502
  %v3592 = vunpack.c.l.b16 %v3503
  %v3593 = vunpack.c.h.b16 %v3503
  %v3594 = vunpack.c.l.b16 %v3504
  %v3595 = vunpack.c.h.b16 %v3504
  %v3596 = vunpack.c.l.b16 %v3505
  %v3597 = vunpack.c.h.b16 %v3505
  %v3598 = vunpack.c.l.b16 %v3506
  %v3599 = vunpack.c.h.b16 %v3506
  %v3600 = vunpack.c.l.b16 %v3507
  %v3601 = vunpack.c.h.b16 %v3507
  %v3602 = vunpack.c.l.b16 %v3508
  %v3603 = vunpack.c.h.b16 %v3508
  %v3604 = vunpack.c.l.b16 %v3509
  %v3605 = vunpack.c.h.b16 %v3509
  %v3606 = vunpack.c.l.b16 %v3510
  %v3607 = vunpack.c.h.b16 %v3510
  %v3608 = vunpack.c.l.b16 %v3511
  %v3609 = vunpack.c.h.b16 %v3511
  %v3610 = vunpack.c.l.b16 %v3512
  %v3611 = vunpack.c.h.b16 %v3512
  %v3612 = vunpack.c.l.b16 %v3513
  %v3613 = vunpack.c.h.b16 %v3513
  %v3614 = vunpack.c.l.b16 %v3514
  %v3615 = vunpack.c.h.b16 %v3514
  %v3616 = vunpack.c.l.b16 %v3515
  %v3617 = vunpack.c.h.b16 %v3515
  %v3618 = vunpack.c.l.b16 %v3516
  %v3619 = vunpack.c.h.b16 %v3516
  %v3620 = vunpack.c.l.b16 %v3517
  %v3621 = vunpack.c.h.b16 %v3517
  %v3622 = vunpack.c.l.b16 %v3518
  %v3623 = vunpack.c.h.b16 %v3518
  %v3624 = vunpack.c.l.b16 %v3519
  %v3625 = vunpack.c.h.b16 %v3519
  %v3626 = vunpack.c.l.b16 %v3520
  %v3627 = vunpack.c.h.b16 %v3520
  %v3628 = vunpack.c.l.b16 %v3521
  %v3629 = vunpack.c.h.b16 %v3521
  %v3630 = vunpack.c.l.b16 %v3522
  %v3631 = vunpack.c.h.b16 %v3522
  %v3632 = vunpack.c.l.b16 %v3523
  %v3633 = vunpack.c.h.b16 %v3523
  %v3634 = vunpack.c.l.b16 %v3524
  %v3635 = vunpack.c.h.b16 %v3524
  %v3636 = vunpack.c.l.b16 %v3525
  %v3637 = vunpack.c.h.b16 %v3525
  %v3638 = vunpack.c.l.b16 %v3526
  %v3639 = vunpack.c.h.b16 %v3526
  %v3640 = vunpack.c.l.b16 %v3527
  %v3641 = vunpack.c.h.b16 %v3527
  %v3642 = vunpack.c.l.b16 %v3528
  %v3643 = vunpack.c.h.b16 %v3528
  %v3644 = vunpack.c.l.b16 %v3529
  %v3645 = vunpack.c.h.b16 %v3529
  %v3646 = vunpack.c.l.b16 %v3530
  %v3647 = vunpack.c.h.b16 %v3530
  %v3648 = vunpack.c.l.b16 %v3531
  %v3649 = vunpack.c.h.b16 %v3531
  %v3650 = vpack.c.b16 %v3590, %v3586
  %v3651 = vpack.c.b16 %v3591, %v3587
  %v3652 = vpack.c.b16 %v3592, %v3588
  %v3653 = vpack.c.b16 %v3593, %v3589
  %v3654 = vpack.c.b16 %v3598, %v3594
  %v3655 = vpack.c.b16 %v3599, %v3595
  %v3656 = vpack.c.b16 %v3600, %v3596
  %v3657 = vpack.c.b16 %v3601, %v3597
  %v3658 = vpack.c.b16 %v3606, %v3602
  %v3659 = vpack.c.b16 %v3607, %v3603
  %v3660 = vpack.c.b16 %v3608, %v3604
  %v3661 = vpack.c.b16 %v3609, %v3605
  %v3662 = vpack.c.b16 %v3614, %v3610
  %v3663 = vpack.c.b16 %v3615, %v3611
  %v3664 = vpack.c.b16 %v3616, %v3612
  %v3665 = vpack.c.b16 %v3617, %v3613
  %v3666 = vpack.c.b16 %v3622, %v3618
  %v3667 = vpack.c.b16 %v3623, %v3619
  %v3668 = vpack.c.b16 %v3624, %v3620
  %v3669 = vpack.c.b16 %v3625, %v3621
  %v3670 = vpack.c.b16 %v3630, %v3626
  %v3671 = vpack.c.b16 %v3631, %v3627
  %v3672 = vpack.c.b16 %v3632, %v3628
  %v3673 = vpack.c.b16 %v3633, %v3629
  %v3674 = vpack.c.b16 %v3638, %v3634
  %v3675 = vpack.c.b16 %v3639, %v3635
  %v3676 = vpack.c.b16 %v3640, %v3636
  %v3677 = vpack.c.b16 %v3641, %v3637
  %v3678 = vpack.c.b16 %v3646, %v3642
  %v3679 = vpack.c.b16 %v3647, %v3643
  %v3680 = vpack.c.b16 %v3648, %v3644
  %v3681 = vpack.c.b16 %v3649, %v3645
  %3714 = vmatprep.subr.bf16.mxu0 %v3651
  %3715 = vmatpush1.bf16.msra.mxu0 %v3650
  %3716 = vmatprep.subr.bf16.mxu0 %v3655
  %3717 = vmatpush1.bf16.msra.mxu0 %v3654
  %3718 = vmatprep.subr.bf16.mxu0 %v3659
  %3719 = vmatpush1.bf16.msra.mxu0 %v3658
  %3720 = vmatprep.subr.bf16.mxu0 %v3663
  %3721 = vmatpush1.bf16.msra.mxu0 %v3662
  %3722 = vmatprep.subr.bf16.mxu0 %v3667
  %3723 = vmatpush1.bf16.msra.mxu0 %v3666
  %3724 = vmatprep.subr.bf16.mxu0 %v3671
  %3725 = vmatpush1.bf16.msra.mxu0 %v3670
  %3726 = vmatprep.subr.bf16.mxu0 %v3675
  %3727 = vmatpush1.bf16.msra.mxu0 %v3674
  %3728 = vmatprep.subr.bf16.mxu0 %v3679
  %3729 = vmatpush1.bf16.msra.mxu0 %v3678
  %3730 = vmatprep.subr.bf16.mxu0 0
  %3731 = vmatpush1.bf16.msra.mxu0 0
  %3732 = vmatprep.subr.bf16.mxu0 0
  %3733 = vmatpush1.bf16.msra.mxu0 0
  %3734 = vmatprep.subr.bf16.mxu0 0
  %3735 = vmatpush1.bf16.msra.mxu0 0
  %3736 = vmatprep.subr.bf16.mxu0 0
  %3737 = vmatpush1.bf16.msra.mxu0 0
  %3738 = vmatprep.subr.bf16.mxu0 0
  %3739 = vmatpush1.bf16.msra.mxu0 0
  %3740 = vmatprep.subr.bf16.mxu0 0
  %3741 = vmatpush1.bf16.msra.mxu0 0
  %3742 = vmatprep.subr.bf16.mxu0 0
  %3743 = vmatpush1.bf16.msra.mxu0 0
  %3744 = vmatprep.subr.bf16.mxu0 0
  %3745 = vmatpush1.bf16.msra.mxu0 0
  %3746 = vmatprep.mubr.bf16.mxu0 0
  %3747 = vmatmul.mubr.bf16.gmra.mrb[0].mxu0 %v3492
  %v3748 = vpop.f32.mrb[0].mxu0
  %v3749 = vadd.f32 %v3537, %v3748
  %v3750 = vpop.f32.mrb[0].mxu0
  %v3751 = vadd.f32 %v3541, %v3750
  %v3752 = vpop.f32.mrb[0].mxu0
  %v3753 = vadd.f32 %v3537, %v3752
  %v3754 = vpop.f32.mrb[0].mxu0
  %v3755 = vadd.f32 %v3541, %v3754
  %3756 = vmatprep.mubr.bf16.mxu0 0
  %3757 = vmatmul.mubr.bf16.gmra.mrb[0].mxu0 %v3493
  %v3758 = vpop.f32.mrb[0].mxu0
  %v3759 = vadd.f32 %v3537, %v3758
  %v3760 = vpop.f32.mrb[0].mxu0
  %v3761 = vadd.f32 %v3541, %v3760
  %v3762 = vpop.f32.mrb[0].mxu0
  %v3763 = vadd.f32 %v3537, %v3762
  %v3764 = vpop.f32.mrb[0].mxu0
  %v3765 = vadd.f32 %v3541, %v3764
  %3766 = vmatprep.mubr.bf16.mxu0 0
  %3767 = vmatmul.mubr.bf16.gmra.mrb[0].mxu0 %v3494
  %v3768 = vpop.f32.mrb[0].mxu0
  %v3769 = vadd.f32 %v3537, %v3768
  %v3770 = vpop.f32.mrb[0].mxu0
  %v3771 = vadd.f32 %v3541, %v3770
  %v3772 = vpop.f32.mrb[0].mxu0
  %v3773 = vadd.f32 %v3537, %v3772
  %v3774 = vpop.f32.mrb[0].mxu0
  %v3775 = vadd.f32 %v3541, %v3774
  %3776 = vmatprep.mubr.bf16.mxu0 0
  %3777 = vmatmul.mubr.bf16.gmra.mrb[0].mxu0 %v3495
  %v3778 = vpop.f32.mrb[0].mxu0
  %v3779 = vadd.f32 %v3537, %v3778
  %v3780 = vpop.f32.mrb[0].mxu0
  %v3781 = vadd.f32 %v3541, %v3780
  %v3782 = vpop.f32.mrb[0].mxu0
  %v3783 = vadd.f32 %v3537, %v3782
  %v3784 = vpop.f32.mrb[0].mxu0
  %v3785 = vadd.f32 %v3541, %v3784
  %3786 = vmatprep.mubr.bf16.mxu0 0
  %3787 = vmatmul.mubr.bf16.gmra.mrb[0].mxu0 %v3496
  %v3788 = vpop.f32.mrb[0].mxu0
  %v3789 = vadd.f32 %v3537, %v3788
  %v3790 = vpop.f32.mrb[0].mxu0
  %v3791 = vadd.f32 %v3541, %v3790
  %v3792 = vpop.f32.mrb[0].mxu0
  %v3793 = vadd.f32 %v3537, %v3792
  %v3794 = vpop.f32.mrb[0].mxu0
  %v3795 = vadd.f32 %v3541, %v3794
  %3796 = vmatprep.mubr.bf16.mxu0 0
  %3797 = vmatmul.mubr.bf16.gmra.mrb[0].mxu0 %v3497
  %v3798 = vpop.f32.mrb[0].mxu0
  %v3799 = vadd.f32 %v3537, %v3798
  %v3800 = vpop.f32.mrb[0].mxu0
  %v3801 = vadd.f32 %v3541, %v3800
  %v3802 = vpop.f32.mrb[0].mxu0
  %v3803 = vadd.f32 %v3537, %v3802
  %v3804 = vpop.f32.mrb[0].mxu0
  %v3805 = vadd.f32 %v3541, %v3804
  %3806 = vmatprep.mubr.bf16.mxu0 0
  %3807 = vmatmul.mubr.bf16.gmra.mrb[0].mxu0 %v3498
  %v3808 = vpop.f32.mrb[0].mxu0
  %v3809 = vadd.f32 %v3537, %v3808
  %v3810 = vpop.f32.mrb[0].mxu0
  %v3811 = vadd.f32 %v3541, %v3810
  %v3812 = vpop.f32.mrb[0].mxu0
  %v3813 = vadd.f32 %v3537, %v3812
  %v3814 = vpop.f32.mrb[0].mxu0
  %v3815 = vadd.f32 %v3541, %v3814
  %3816 = vmatprep.mubr.bf16.mxu0 0
  %3817 = vmatmul.mubr.bf16.gmra.mrb[0].mxu0 %v3499
  %v3818 = vpop.f32.mrb[0].mxu0
  %v3819 = vadd.f32 %v3537, %v3818
  %v3820 = vpop.f32.mrb[0].mxu0
  %v3821 = vadd.f32 %v3541, %v3820
  %v3822 = vpop.f32.mrb[0].mxu0
  %v3823 = vadd.f32 %v3537, %v3822
  %v3824 = vpop.f32.mrb[0].mxu0
  %v3825 = vadd.f32 %v3541, %v3824
  %3826 = vdwg.mxu0
  %3827 = vmatprep.subr.bf16.mxu0 %v3653
  %3828 = vmatpush1.bf16.msra.mxu0 %v3652
  %3829 = vmatprep.subr.bf16.mxu0 %v3657
  %3830 = vmatpush1.bf16.msra.mxu0 %v3656
  %3831 = vmatprep.subr.bf16.mxu0 %v3661
  %3832 = vmatpush1.bf16.msra.mxu0 %v3660
  %3833 = vmatprep.subr.bf16.mxu0 %v3665
  %3834 = vmatpush1.bf16.msra.mxu0 %v3664
  %3835 = vmatprep.subr.bf16.mxu0 %v3669
  %3836 = vmatpush1.bf16.msra.mxu0 %v3668
  %3837 = vmatprep.subr.bf16.mxu0 %v3673
  %3838 = vmatpush1.bf16.msra.mxu0 %v3672
  %3839 = vmatprep.subr.bf16.mxu0 %v3677
  %3840 = vmatpush1.bf16.msra.mxu0 %v3676
  %3841 = vmatprep.subr.bf16.mxu0 %v3681
  %3842 = vmatpush1.bf16.msra.mxu0 %v3680
  %3843 = vmatprep.subr.bf16.mxu0 0
  %3844 = vmatpush1.bf16.msra.mxu0 0
  %3845 = vmatprep.subr.bf16.mxu0 0
  %3846 = vmatpush1.bf16.msra.mxu0 0
  %3847 = vmatprep.subr.bf16.mxu0 0
  %3848 = vmatpush1.bf16.msra.mxu0 0
  %3849 = vmatprep.subr.bf16.mxu0 0
  %3850 = vmatpush1.bf16.msra.mxu0 0
  %3851 = vmatprep.subr.bf16.mxu0 0
  %3852 = vmatpush1.bf16.msra.mxu0 0
  %3853 = vmatprep.subr.bf16.mxu0 0
  %3854 = vmatpush1.bf16.msra.mxu0 0
  %3855 = vmatprep.subr.bf16.mxu0 0
  %3856 = vmatpush1.bf16.msra.mxu0 0
  %3857 = vmatprep.subr.bf16.mxu0 0
  %3858 = vmatpush1.bf16.msra.mxu0 0
  %3859 = vmatprep.mubr.bf16.mxu0 0
  %3860 = vmatmul.mubr.bf16.gmra.mrb[0].mxu0 %v3492
  %v3861 = vpop.f32.mrb[0].mxu0
  %v3862 = vadd.f32 %v3545, %v3861
  %v3863 = vpop.f32.mrb[0].mxu0
  %v3864 = vadd.f32 %v3549, %v3863
  %v3865 = vpop.f32.mrb[0].mxu0
  %v3866 = vadd.f32 %v3545, %v3865
  %v3867 = vpop.f32.mrb[0].mxu0
  %v3868 = vadd.f32 %v3549, %v3867
  %3869 = vmatprep.mubr.bf16.mxu0 0
  %3870 = vmatmul.mubr.bf16.gmra.mrb[0].mxu0 %v3493
  %v3871 = vpop.f32.mrb[0].mxu0
  %v3872 = vadd.f32 %v3545, %v3871
  %v3873 = vpop.f32.mrb[0].mxu0
  %v3874 = vadd.f32 %v3549, %v3873
  %v3875 = vpop.f32.mrb[0].mxu0
  %v3876 = vadd.f32 %v3545, %v3875
  %v3877 = vpop.f32.mrb[0].mxu0
  %v3878 = vadd.f32 %v3549, %v3877
  %3879 = vmatprep.mubr.bf16.mxu0 0
  %3880 = vmatmul.mubr.bf16.gmra.mrb[0].mxu0 %v3494
  %v3881 = vpop.f32.mrb[0].mxu0
  %v3882 = vadd.f32 %v3545, %v3881
  %v3883 = vpop.f32.mrb[0].mxu0
  %v3884 = vadd.f32 %v3549, %v3883
  %v3885 = vpop.f32.mrb[0].mxu0
  %v3886 = vadd.f32 %v3545, %v3885
  %v3887 = vpop.f32.mrb[0].mxu0
  %v3888 = vadd.f32 %v3549, %v3887
  %3889 = vmatprep.mubr.bf16.mxu0 0
  %3890 = vmatmul.mubr.bf16.gmra.mrb[0].mxu0 %v3495
  %v3891 = vpop.f32.mrb[0].mxu0
  %v3892 = vadd.f32 %v3545, %v3891
  %v3893 = vpop.f32.mrb[0].mxu0
  %v3894 = vadd.f32 %v3549, %v3893
  %v3895 = vpop.f32.mrb[0].mxu0
  %v3896 = vadd.f32 %v3545, %v3895
  %v3897 = vpop.f32.mrb[0].mxu0
  %v3898 = vadd.f32 %v3549, %v3897
  %3899 = vmatprep.mubr.bf16.mxu0 0
  %3900 = vmatmul.mubr.bf16.gmra.mrb[0].mxu0 %v3496
  %v3901 = vpop.f32.mrb[0].mxu0
  %v3902 = vadd.f32 %v3545, %v3901
  %v3903 = vpop.f32.mrb[0].mxu0
  %v3904 = vadd.f32 %v3549, %v3903
  %v3905 = vpop.f32.mrb[0].mxu0
  %v3906 = vadd.f32 %v3545, %v3905
  %v3907 = vpop.f32.mrb[0].mxu0
  %v3908 = vadd.f32 %v3549, %v3907
  %3909 = vmatprep.mubr.bf16.mxu0 0
  %3910 = vmatmul.mubr.bf16.gmra.mrb[0].mxu0 %v3497
  %v3911 = vpop.f32.mrb[0].mxu0
  %v3912 = vadd.f32 %v3545, %v3911
  %v3913 = vpop.f32.mrb[0].mxu0
  %v3914 = vadd.f32 %v3549, %v3913
  %v3915 = vpop.f32.mrb[0].mxu0
  %v3916 = vadd.f32 %v3545, %v3915
  %v3917 = vpop.f32.mrb[0].mxu0
  %v3918 = vadd.f32 %v3549, %v3917
  %3919 = vmatprep.mubr.bf16.mxu0 0
  %3920 = vmatmul.mubr.bf16.gmra.mrb[0].mxu0 %v3498
  %v3921 = vpop.f32.mrb[0].mxu0
  %v3922 = vadd.f32 %v3545, %v3921
  %v3923 = vpop.f32.mrb[0].mxu0
  %v3924 = vadd.f32 %v3549, %v3923
  %v3925 = vpop.f32.mrb[0].mxu0
  %v3926 = vadd.f32 %v3545, %v3925
  %v3927 = vpop.f32.mrb[0].mxu0
  %v3928 = vadd.f32 %v3549, %v3927
  %3929 = vmatprep.mubr.bf16.mxu0 0
  %3930 = vmatmul.mubr.bf16.gmra.mrb[0].mxu0 %v3499
  %v3931 = vpop.f32.mrb[0].mxu0
  %v3932 = vadd.f32 %v3545, %v3931
  %v3933 = vpop.f32.mrb[0].mxu0
  %v3934 = vadd.f32 %v3549, %v3933
  %v3935 = vpop.f32.mrb[0].mxu0
  %v3936 = vadd.f32 %v3545, %v3935
  %v3937 = vpop.f32.mrb[0].mxu0
  %v3938 = vadd.f32 %v3549, %v3937
  %3939 = vdwg.mxu0
  %v3940 = vpack.c.bf16 %v3753, %v3749
  %v3941 = vpack.c.bf16 %v3755, %v3751
  %v3942 = vpack.c.bf16 %v3866, %v3862
  %v3943 = vpack.c.bf16 %v3868, %v3864
  %v3944 = vpack.c.bf16 %v3763, %v3759
  %v3945 = vpack.c.bf16 %v3765, %v3761
  %v3946 = vpack.c.bf16 %v3876, %v3872
  %v3947 = vpack.c.bf16 %v3878, %v3874
  %v3948 = vpack.c.bf16 %v3773, %v3769
  %v3949 = vpack.c.bf16 %v3775, %v3771
  %v3950 = vpack.c.bf16 %v3886, %v3882
  %v3951 = vpack.c.bf16 %v3888, %v3884
  %v3952 = vpack.c.bf16 %v3783, %v3779
  %v3953 = vpack.c.bf16 %v3785, %v3781
  %v3954 = vpack.c.bf16 %v3896, %v3892
  %v3955 = vpack.c.bf16 %v3898, %v3894
  %v3956 = vpack.c.bf16 %v3793, %v3789
  %v3957 = vpack.c.bf16 %v3795, %v3791
  %v3958 = vpack.c.bf16 %v3906, %v3902
  %v3959 = vpack.c.bf16 %v3908, %v3904
  %v3960 = vpack.c.bf16 %v3803, %v3799
  %v3961 = vpack.c.bf16 %v3805, %v3801
  %v3962 = vpack.c.bf16 %v3916, %v3912
  %v3963 = vpack.c.bf16 %v3918, %v3914
  %v3964 = vpack.c.bf16 %v3813, %v3809
  %v3965 = vpack.c.bf16 %v3815, %v3811
  %v3966 = vpack.c.bf16 %v3926, %v3922
  %v3967 = vpack.c.bf16 %v3928, %v3924
  %v3968 = vpack.c.bf16 %v3823, %v3819
  %v3969 = vpack.c.bf16 %v3825, %v3821
  %v3970 = vpack.c.bf16 %v3936, %v3932
  %v3971 = vpack.c.bf16 %v3938, %v3934
  %3972 = vst [vmem:[#allocation3] sm:$0xff] %v3940
  %3973 = vst [vmem:[#allocation3 + $0x8] sm:$0xff] %v3941
  %3974 = vst [vmem:[#allocation3 + $0x10] sm:$0xff] %v3942
  %3975 = vst [vmem:[#allocation3 + $0x18] sm:$0xff] %v3943
  %3976 = vst [vmem:[#allocation3 + $0x20] sm:$0xff] %v3944
  %3977 = vst [vmem:[#allocation3 + $0x28] sm:$0xff] %v3945
  %3978 = vst [vmem:[#allocation3 + $0x30] sm:$0xff] %v3946
  %3979 = vst [vmem:[#allocation3 + $0x38] sm:$0xff] %v3947
  %3980 = vst [vmem:[#allocation3 + $0x40] sm:$0xff] %v3948
  %3981 = vst [vmem:[#allocation3 + $0x48] sm:$0xff] %v3949
  %3982 = vst [vmem:[#allocation3 + $0x50] sm:$0xff] %v3950
  %3983 = vst [vmem:[#allocation3 + $0x58] sm:$0xff] %v3951
  %3984 = vst [vmem:[#allocation3 + $0x60] sm:$0xff] %v3952
  %3985 = vst [vmem:[#allocation3 + $0x68] sm:$0xff] %v3953
  %3986 = vst [vmem:[#allocation3 + $0x70] sm:$0xff] %v3954
  %3987 = vst [vmem:[#allocation3 + $0x78] sm:$0xff] %v3955
  %3988 = vst [vmem:[#allocation3 + $0x80] sm:$0xff] %v3956
  %3989 = vst [vmem:[#allocation3 + $0x88] sm:$0xff] %v3957
  %3990 = vst [vmem:[#allocation3 + $0x90] sm:$0xff] %v3958
  %3991 = vst [vmem:[#allocation3 + $0x98] sm:$0xff] %v3959
  %3992 = vst [vmem:[#allocation3 + $0xa0] sm:$0xff] %v3960
  %3993 = vst [vmem:[#allocation3 + $0xa8] sm:$0xff] %v3961
  %3994 = vst [vmem:[#allocation3 + $0xb0] sm:$0xff] %v3962
  %3995 = vst [vmem:[#allocation3 + $0xb8] sm:$0xff] %v3963
  %3996 = vst [vmem:[#allocation3 + $0xc0] sm:$0xff] %v3964
  %3997 = vst [vmem:[#allocation3 + $0xc8] sm:$0xff] %v3965
  %3998 = vst [vmem:[#allocation3 + $0xd0] sm:$0xff] %v3966
  %3999 = vst [vmem:[#allocation3 + $0xd8] sm:$0xff] %v3967
  %4000 = vst [vmem:[#allocation3 + $0xe0] sm:$0xff] %v3968
  %4001 = vst [vmem:[#allocation3 + $0xe8] sm:$0xff] %v3969
  %4002 = vst [vmem:[#allocation3 + $0xf0] sm:$0xff] %v3970
  %4003 = vst [vmem:[#allocation3 + $0xf8] sm:$0xff] %v3971
  %4004 = vst [vmem:[#allocation4] sm:$0xff] 0.0
  %4005 = vst [vmem:[#allocation4 + $0x8] sm:$0xff] 0.0
  %4006 = vst [vmem:[#allocation5] sm:$0xff] 0.0
  %4007 = vst [vmem:[#allocation5 + $0x8] sm:$0xff] 0.0
  %v4008 = vld [vmem:[%s607] sm:$0xff]
  %v4009 = vld [vmem:[%s607 + $0x8] sm:$0xff]
  %v4010 = vld [vmem:[%s607 + $0x10] sm:$0xff]
  %v4011 = vld [vmem:[%s607 + $0x18] sm:$0xff]
  %v4012 = vunpack.c.l.bf16 %v4008
  %v4013 = vunpack.c.l.bf16 %v4009
  %v4014 = vunpack.c.l.bf16 %v4010
  %v4015 = vunpack.c.l.bf16 %v4011
  %v4016 = vunpack.c.h.bf16 %v4008
  %v4017 = vunpack.c.h.bf16 %v4009
  %v4018 = vunpack.c.h.bf16 %v4010
  %v4019 = vunpack.c.h.bf16 %v4011
  %v4020 = vld [vmem:[#allocation4] sm:$0xff]
  %v4021 = vld [vmem:[#allocation4 + $0x8] sm:$0xff]
  %v4022 = vpack.c.bf16 %v4021, %v4020
  %v4023 = vld [vmem:[%s5] sm:$0xff]
  %v4024 = vld [vmem:[%s5 + $0x8] sm:$0xff]
  %v4025 = vld [vmem:[%s5 + $0x10] sm:$0xff]
  %v4026 = vld [vmem:[%s5 + $0x18] sm:$0xff]
  %v4027 = vld [vmem:[%s5 + $0x20] sm:$0xff]
  %v4028 = vld [vmem:[%s5 + $0x28] sm:$0xff]
  %v4029 = vld [vmem:[%s5 + $0x30] sm:$0xff]
  %v4030 = vld [vmem:[%s5 + $0x38] sm:$0xff]
  %v4031 = vld [vmem:[%s5 + $0x40] sm:$0xff]
  %v4032 = vld [vmem:[%s5 + $0x48] sm:$0xff]
  %v4033 = vld [vmem:[%s5 + $0x50] sm:$0xff]
  %v4034 = vld [vmem:[%s5 + $0x58] sm:$0xff]
  %v4035 = vld [vmem:[%s5 + $0x60] sm:$0xff]
  %v4036 = vld [vmem:[%s5 + $0x68] sm:$0xff]
  %v4037 = vld [vmem:[%s5 + $0x70] sm:$0xff]
  %v4038 = vld [vmem:[%s5 + $0x78] sm:$0xff]
  %v4039 = vld [vmem:[%s5 + $0x80] sm:$0xff]
  %v4040 = vld [vmem:[%s5 + $0x88] sm:$0xff]
  %v4041 = vld [vmem:[%s5 + $0x90] sm:$0xff]
  %v4042 = vld [vmem:[%s5 + $0x98] sm:$0xff]
  %v4043 = vld [vmem:[%s5 + $0xa0] sm:$0xff]
  %v4044 = vld [vmem:[%s5 + $0xa8] sm:$0xff]
  %v4045 = vld [vmem:[%s5 + $0xb0] sm:$0xff]
  %v4046 = vld [vmem:[%s5 + $0xb8] sm:$0xff]
  %v4047 = vld [vmem:[%s5 + $0xc0] sm:$0xff]
  %v4048 = vld [vmem:[%s5 + $0xc8] sm:$0xff]
  %v4049 = vld [vmem:[%s5 + $0xd0] sm:$0xff]
  %v4050 = vld [vmem:[%s5 + $0xd8] sm:$0xff]
  %v4051 = vld [vmem:[%s5 + $0xe0] sm:$0xff]
  %v4052 = vld [vmem:[%s5 + $0xe8] sm:$0xff]
  %v4053 = vld [vmem:[%s5 + $0xf0] sm:$0xff]
  %v4054 = vld [vmem:[%s5 + $0xf8] sm:$0xff]
  %v4087 = vunpack.c.l.b16 %v4023
  %v4088 = vunpack.c.h.b16 %v4023
  %v4089 = vunpack.c.l.b16 %v4024
  %v4090 = vunpack.c.h.b16 %v4024
  %v4091 = vunpack.c.l.b16 %v4025
  %v4092 = vunpack.c.h.b16 %v4025
  %v4093 = vunpack.c.l.b16 %v4026
  %v4094 = vunpack.c.h.b16 %v4026
  %v4095 = vunpack.c.l.b16 %v4027
  %v4096 = vunpack.c.h.b16 %v4027
  %v4097 = vunpack.c.l.b16 %v4028
  %v4098 = vunpack.c.h.b16 %v4028
  %v4099 = vunpack.c.l.b16 %v4029
  %v4100 = vunpack.c.h.b16 %v4029
  %v4101 = vunpack.c.l.b16 %v4030
  %v4102 = vunpack.c.h.b16 %v4030
  %v4103 = vunpack.c.l.b16 %v4031
  %v4104 = vunpack.c.h.b16 %v4031
  %v4105 = vunpack.c.l.b16 %v4032
  %v4106 = vunpack.c.h.b16 %v4032
  %v4107 = vunpack.c.l.b16 %v4033
  %v4108 = vunpack.c.h.b16 %v4033
  %v4109 = vunpack.c.l.b16 %v4034
  %v4110 = vunpack.c.h.b16 %v4034
  %v4111 = vunpack.c.l.b16 %v4035
  %v4112 = vunpack.c.h.b16 %v4035
  %v4113 = vunpack.c.l.b16 %v4036
  %v4114 = vunpack.c.h.b16 %v4036
  %v4115 = vunpack.c.l.b16 %v4037
  %v4116 = vunpack.c.h.b16 %v4037
  %v4117 = vunpack.c.l.b16 %v4038
  %v4118 = vunpack.c.h.b16 %v4038
  %v4119 = vunpack.c.l.b16 %v4039
  %v4120 = vunpack.c.h.b16 %v4039
  %v4121 = vunpack.c.l.b16 %v4040
  %v4122 = vunpack.c.h.b16 %v4040
  %v4123 = vunpack.c.l.b16 %v4041
  %v4124 = vunpack.c.h.b16 %v4041
  %v4125 = vunpack.c.l.b16 %v4042
  %v4126 = vunpack.c.h.b16 %v4042
  %v4127 = vunpack.c.l.b16 %v4043
  %v4128 = vunpack.c.h.b16 %v4043
  %v4129 = vunpack.c.l.b16 %v4044
  %v4130 = vunpack.c.h.b16 %v4044
  %v4131 = vunpack.c.l.b16 %v4045
  %v4132 = vunpack.c.h.b16 %v4045
  %v4133 = vunpack.c.l.b16 %v4046
  %v4134 = vunpack.c.h.b16 %v4046
  %v4135 = vunpack.c.l.b16 %v4047
  %v4136 = vunpack.c.h.b16 %v4047
  %v4137 = vunpack.c.l.b16 %v4048
  %v4138 = vunpack.c.h.b16 %v4048
  %v4139 = vunpack.c.l.b16 %v4049
  %v4140 = vunpack.c.h.b16 %v4049
  %v4141 = vunpack.c.l.b16 %v4050
  %v4142 = vunpack.c.h.b16 %v4050
  %v4143 = vunpack.c.l.b16 %v4051
  %v4144 = vunpack.c.h.b16 %v4051
  %v4145 = vunpack.c.l.b16 %v4052
  %v4146 = vunpack.c.h.b16 %v4052
  %v4147 = vunpack.c.l.b16 %v4053
  %v4148 = vunpack.c.h.b16 %v4053
  %v4149 = vunpack.c.l.b16 %v4054
  %v4150 = vunpack.c.h.b16 %v4054
  %v4151 = vpack.c.b16 %v4091, %v4087
  %v4152 = vpack.c.b16 %v4092, %v4088
  %v4153 = vpack.c.b16 %v4093, %v4089
  %v4154 = vpack.c.b16 %v4094, %v4090
  %v4155 = vpack.c.b16 %v4099, %v4095
  %v4156 = vpack.c.b16 %v4100, %v4096
  %v4157 = vpack.c.b16 %v4101, %v4097
  %v4158 = vpack.c.b16 %v4102, %v4098
  %v4159 = vpack.c.b16 %v4107, %v4103
  %v4160 = vpack.c.b16 %v4108, %v4104
  %v4161 = vpack.c.b16 %v4109, %v4105
  %v4162 = vpack.c.b16 %v4110, %v4106
  %v4163 = vpack.c.b16 %v4115, %v4111
  %v4164 = vpack.c.b16 %v4116, %v4112
  %v4165 = vpack.c.b16 %v4117, %v4113
  %v4166 = vpack.c.b16 %v4118, %v4114
  %v4167 = vpack.c.b16 %v4123, %v4119
  %v4168 = vpack.c.b16 %v4124, %v4120
  %v4169 = vpack.c.b16 %v4125, %v4121
  %v4170 = vpack.c.b16 %v4126, %v4122
  %v4171 = vpack.c.b16 %v4131, %v4127
  %v4172 = vpack.c.b16 %v4132, %v4128
  %v4173 = vpack.c.b16 %v4133, %v4129
  %v4174 = vpack.c.b16 %v4134, %v4130
  %v4175 = vpack.c.b16 %v4139, %v4135
  %v4176 = vpack.c.b16 %v4140, %v4136
  %v4177 = vpack.c.b16 %v4141, %v4137
  %v4178 = vpack.c.b16 %v4142, %v4138
  %v4179 = vpack.c.b16 %v4147, %v4143
  %v4180 = vpack.c.b16 %v4148, %v4144
  %v4181 = vpack.c.b16 %v4149, %v4145
  %v4182 = vpack.c.b16 %v4150, %v4146
  %4215 = vmatprep.subr.bf16.mxu0 %v4152
  %4216 = vmatpush1.bf16.msra.mxu0 %v4151
  %4217 = vmatprep.subr.bf16.mxu0 %v4156
  %4218 = vmatpush1.bf16.msra.mxu0 %v4155
  %4219 = vmatprep.subr.bf16.mxu0 %v4160
  %4220 = vmatpush1.bf16.msra.mxu0 %v4159
  %4221 = vmatprep.subr.bf16.mxu0 %v4164
  %4222 = vmatpush1.bf16.msra.mxu0 %v4163
  %4223 = vmatprep.subr.bf16.mxu0 %v4168
  %4224 = vmatpush1.bf16.msra.mxu0 %v4167
  %4225 = vmatprep.subr.bf16.mxu0 %v4172
  %4226 = vmatpush1.bf16.msra.mxu0 %v4171
  %4227 = vmatprep.subr.bf16.mxu0 %v4176
  %4228 = vmatpush1.bf16.msra.mxu0 %v4175
  %4229 = vmatprep.subr.bf16.mxu0 %v4180
  %4230 = vmatpush1.bf16.msra.mxu0 %v4179
  %4231 = vmatprep.subr.bf16.mxu0 0
  %4232 = vmatpush1.bf16.msra.mxu0 0
  %4233 = vmatprep.subr.bf16.mxu0 0
  %4234 = vmatpush1.bf16.msra.mxu0 0
  %4235 = vmatprep.subr.bf16.mxu0 0
  %4236 = vmatpush1.bf16.msra.mxu0 0
  %4237 = vmatprep.subr.bf16.mxu0 0
  %4238 = vmatpush1.bf16.msra.mxu0 0
  %4239 = vmatprep.subr.bf16.mxu0 0
  %4240 = vmatpush1.bf16.msra.mxu0 0
  %4241 = vmatprep.subr.bf16.mxu0 0
  %4242 = vmatpush1.bf16.msra.mxu0 0
  %4243 = vmatprep.subr.bf16.mxu0 0
  %4244 = vmatpush1.bf16.msra.mxu0 0
  %4245 = vmatprep.subr.bf16.mxu0 0
  %4246 = vmatpush1.bf16.msra.mxu0 0
  %4247 = vmatprep.mubr.bf16.mxu0 0
  %4248 = vmatmul.mubr.bf16.gmra.mrb[0].mxu0 %v4022
  %v4249 = vpop.f32.mrb[0].mxu0
  %v4250 = vadd.f32 0.0, %v4249
  %v4251 = vpop.f32.mrb[0].mxu0
  %v4252 = vadd.f32 0.0, %v4251
  %v4253 = vpop.f32.mrb[0].mxu0
  %v4254 = vadd.f32 0.0, %v4253
  %v4255 = vpop.f32.mrb[0].mxu0
  %v4256 = vadd.f32 0.0, %v4255
  %4257 = vdwg.mxu0
  %4258 = vmatprep.subr.bf16.mxu0 %v4154
  %4259 = vmatpush1.bf16.msra.mxu0 %v4153
  %4260 = vmatprep.subr.bf16.mxu0 %v4158
  %4261 = vmatpush1.bf16.msra.mxu0 %v4157
  %4262 = vmatprep.subr.bf16.mxu0 %v4162
  %4263 = vmatpush1.bf16.msra.mxu0 %v4161
  %4264 = vmatprep.subr.bf16.mxu0 %v4166
  %4265 = vmatpush1.bf16.msra.mxu0 %v4165
  %4266 = vmatprep.subr.bf16.mxu0 %v4170
  %4267 = vmatpush1.bf16.msra.mxu0 %v4169
  %4268 = vmatprep.subr.bf16.mxu0 %v4174
  %4269 = vmatpush1.bf16.msra.mxu0 %v4173
  %4270 = vmatprep.subr.bf16.mxu0 %v4178
  %4271 = vmatpush1.bf16.msra.mxu0 %v4177
  %4272 = vmatprep.subr.bf16.mxu0 %v4182
  %4273 = vmatpush1.bf16.msra.mxu0 %v4181
  %4274 = vmatprep.subr.bf16.mxu0 0
  %4275 = vmatpush1.bf16.msra.mxu0 0
  %4276 = vmatprep.subr.bf16.mxu0 0
  %4277 = vmatpush1.bf16.msra.mxu0 0
  %4278 = vmatprep.subr.bf16.mxu0 0
  %4279 = vmatpush1.bf16.msra.mxu0 0
  %4280 = vmatprep.subr.bf16.mxu0 0
  %4281 = vmatpush1.bf16.msra.mxu0 0
  %4282 = vmatprep.subr.bf16.mxu0 0
  %4283 = vmatpush1.bf16.msra.mxu0 0
  %4284 = vmatprep.subr.bf16.mxu0 0
  %4285 = vmatpush1.bf16.msra.mxu0 0
  %4286 = vmatprep.subr.bf16.mxu0 0
  %4287 = vmatpush1.bf16.msra.mxu0 0
  %4288 = vmatprep.subr.bf16.mxu0 0
  %4289 = vmatpush1.bf16.msra.mxu0 0
  %4290 = vmatprep.mubr.bf16.mxu0 0
  %4291 = vmatmul.mubr.bf16.gmra.mrb[0].mxu0 %v4022
  %v4292 = vpop.f32.mrb[0].mxu0
  %v4293 = vadd.f32 0.0, %v4292
  %v4294 = vpop.f32.mrb[0].mxu0
  %v4295 = vadd.f32 0.0, %v4294
  %v4296 = vpop.f32.mrb[0].mxu0
  %v4297 = vadd.f32 0.0, %v4296
  %v4298 = vpop.f32.mrb[0].mxu0
  %v4299 = vadd.f32 0.0, %v4298
  %4300 = vdwg.mxu0
  %v4301 = vadd.f32 %v4012, %v4250
  %v4302 = vadd.f32 %v4013, %v4252
  %v4303 = vadd.f32 %v4014, %v4293
  %v4304 = vadd.f32 %v4015, %v4295
  %v4305 = vadd.f32 %v4016, %v4254
  %v4306 = vadd.f32 %v4017, %v4256
  %v4307 = vadd.f32 %v4018, %v4297
  %v4308 = vadd.f32 %v4019, %v4299
  %v4309 = vxor.u32 %v4301, 2147483648
  %v4310 = vxor.u32 %v4302, 2147483648
  %v4311 = vxor.u32 %v4303, 2147483648
  %v4312 = vxor.u32 %v4305, 2147483648
  %v4313 = vxor.u32 %v4306, 2147483648
  %v4314 = vxor.u32 %v4307, 2147483648
  %v4315 = vmul.f32 %v4309, 1.442695
  %v4316 = vpow.pop %v4315
  %v4317 = vmul.f32 %v4310, 1.442695
  %v4318 = vpow.pop %v4317
  %v4319 = vmul.f32 %v4311, 1.442695
  %v4320 = vpow.pop %v4319
  %v4321 = vmul.f32 %v4312, 1.442695
  %v4322 = vpow.pop %v4321
  %v4323 = vmul.f32 %v4313, 1.442695
  %v4324 = vpow.pop %v4323
  %v4325 = vmul.f32 %v4314, 1.442695
  %v4326 = vpow.pop %v4325
  %v4327 = vadd.f32 %v4316, 1.0
  %v4328 = vadd.f32 %v4318, 1.0
  %v4329 = vadd.f32 %v4320, 1.0
  %v4330 = vadd.f32 %v4322, 1.0
  %v4331 = vadd.f32 %v4324, 1.0
  %v4332 = vadd.f32 %v4326, 1.0
  %v4333 = vrcp.pop %v4327
  %v4334 = vmul.f32 1.0, %v4333
  %v4335 = vrcp.pop %v4328
  %v4336 = vmul.f32 1.0, %v4335
  %v4337 = vrcp.pop %v4329
  %v4338 = vmul.f32 1.0, %v4337
  %v4339 = vrcp.pop %v4330
  %v4340 = vmul.f32 1.0, %v4339
  %v4341 = vrcp.pop %v4331
  %v4342 = vmul.f32 1.0, %v4341
  %v4343 = vrcp.pop %v4332
  %v4344 = vmul.f32 1.0, %v4343
  %v4345 = vtanh.pop %v4304
  %v4346 = vtanh.pop %v4308
  %v4347 = vld [vmem:[#allocation5] sm:$0xff]
  %v4348 = vld [vmem:[#allocation5 + $0x8] sm:$0xff]
  %v4349 = vmul.f32 %v4336, %v4347
  %v4350 = vmul.f32 %v4342, %v4348
  %v4351 = vmul.f32 %v4334, %v4345
  %v4352 = vmul.f32 %v4340, %v4346
  %v4353 = vadd.f32 %v4349, %v4351
  %v4354 = vadd.f32 %v4350, %v4352
  %v4355 = vtanh.pop %v4353
  %v4356 = vtanh.pop %v4354
  %v4357 = vmul.f32 %v4338, %v4355
  %v4358 = vmul.f32 %v4344, %v4356
  %4359 = vst [vmem:[#allocation5] sm:$0xff] %v4353
  %4360 = vst [vmem:[#allocation5 + $0x8] sm:$0xff] %v4354
  %4361 = vst [vmem:[#allocation4] sm:$0xff] %v4357
  %4362 = vst [vmem:[#allocation4 + $0x8] sm:$0xff] %v4358
  %v4363 = vld [vmem:[%s967] sm:$0xff]
  %v4364 = vld [vmem:[%s967 + $0x8] sm:$0xff]
  %v4365 = vld [vmem:[%s967 + $0x10] sm:$0xff]
  %v4366 = vld [vmem:[%s967 + $0x18] sm:$0xff]
  %v4367 = vunpack.c.l.bf16 %v4363
  %v4368 = vunpack.c.l.bf16 %v4364
  %v4369 = vunpack.c.l.bf16 %v4365
  %v4370 = vunpack.c.l.bf16 %v4366
  %v4371 = vunpack.c.h.bf16 %v4363
  %v4372 = vunpack.c.h.bf16 %v4364
  %v4373 = vunpack.c.h.bf16 %v4365
  %v4374 = vunpack.c.h.bf16 %v4366
  %v4375 = vld [vmem:[#allocation4] sm:$0xff]
  %v4376 = vld [vmem:[#allocation4 + $0x8] sm:$0xff]
  %v4377 = vpack.c.bf16 %v4376, %v4375
  %v4378 = vld [vmem:[%s5] sm:$0xff]
  %v4379 = vld [vmem:[%s5 + $0x8] sm:$0xff]
  %v4380 = vld [vmem:[%s5 + $0x10] sm:$0xff]
  %v4381 = vld [vmem:[%s5 + $0x18] sm:$0xff]
  %v4382 = vld [vmem:[%s5 + $0x20] sm:$0xff]
  %v4383 = vld [vmem:[%s5 + $0x28] sm:$0xff]
  %v4384 = vld [vmem:[%s5 + $0x30] sm:$0xff]
  %v4385 = vld [vmem:[%s5 + $0x38] sm:$0xff]
  %v4386 = vld [vmem:[%s5 + $0x40] sm:$0xff]
  %v4387 = vld [vmem:[%s5 + $0x48] sm:$0xff]
  %v4388 = vld [vmem:[%s5 + $0x50] sm:$0xff]
  %v4389 = vld [vmem:[%s5 + $0x58] sm:$0xff]
  %v4390 = vld [vmem:[%s5 + $0x60] sm:$0xff]
  %v4391 = vld [vmem:[%s5 + $0x68] sm:$0xff]
  %v4392 = vld [vmem:[%s5 + $0x70] sm:$0xff]
  %v4393 = vld [vmem:[%s5 + $0x78] sm:$0xff]
  %v4394 = vld [vmem:[%s5 + $0x80] sm:$0xff]
  %v4395 = vld [vmem:[%s5 + $0x88] sm:$0xff]
  %v4396 = vld [vmem:[%s5 + $0x90] sm:$0xff]
  %v4397 = vld [vmem:[%s5 + $0x98] sm:$0xff]
  %v4398 = vld [vmem:[%s5 + $0xa0] sm:$0xff]
  %v4399 = vld [vmem:[%s5 + $0xa8] sm:$0xff]
  %v4400 = vld [vmem:[%s5 + $0xb0] sm:$0xff]
  %v4401 = vld [vmem:[%s5 + $0xb8] sm:$0xff]
  %v4402 = vld [vmem:[%s5 + $0xc0] sm:$0xff]
  %v4403 = vld [vmem:[%s5 + $0xc8] sm:$0xff]
  %v4404 = vld [vmem:[%s5 + $0xd0] sm:$0xff]
  %v4405 = vld [vmem:[%s5 + $0xd8] sm:$0xff]
  %v4406 = vld [vmem:[%s5 + $0xe0] sm:$0xff]
  %v4407 = vld [vmem:[%s5 + $0xe8] sm:$0xff]
  %v4408 = vld [vmem:[%s5 + $0xf0] sm:$0xff]
  %v4409 = vld [vmem:[%s5 + $0xf8] sm:$0xff]
  %v4442 = vunpack.c.l.b16 %v4378
  %v4443 = vunpack.c.h.b16 %v4378
  %v4444 = vunpack.c.l.b16 %v4379
  %v4445 = vunpack.c.h.b16 %v4379
  %v4446 = vunpack.c.l.b16 %v4380
  %v4447 = vunpack.c.h.b16 %v4380
  %v4448 = vunpack.c.l.b16 %v4381
  %v4449 = vunpack.c.h.b16 %v4381
  %v4450 = vunpack.c.l.b16 %v4382
  %v4451 = vunpack.c.h.b16 %v4382
  %v4452 = vunpack.c.l.b16 %v4383
  %v4453 = vunpack.c.h.b16 %v4383
  %v4454 = vunpack.c.l.b16 %v4384
  %v4455 = vunpack.c.h.b16 %v4384
  %v4456 = vunpack.c.l.b16 %v4385
  %v4457 = vunpack.c.h.b16 %v4385
  %v4458 = vunpack.c.l.b16 %v4386
  %v4459 = vunpack.c.h.b16 %v4386
  %v4460 = vunpack.c.l.b16 %v4387
  %v4461 = vunpack.c.h.b16 %v4387
  %v4462 = vunpack.c.l.b16 %v4388
  %v4463 = vunpack.c.h.b16 %v4388
  %v4464 = vunpack.c.l.b16 %v4389
  %v4465 = vunpack.c.h.b16 %v4389
  %v4466 = vunpack.c.l.b16 %v4390
  %v4467 = vunpack.c.h.b16 %v4390
  %v4468 = vunpack.c.l.b16 %v4391
  %v4469 = vunpack.c.h.b16 %v4391
  %v4470 = vunpack.c.l.b16 %v4392
  %v4471 = vunpack.c.h.b16 %v4392
  %v4472 = vunpack.c.l.b16 %v4393
  %v4473 = vunpack.c.h.b16 %v4393
  %v4474 = vunpack.c.l.b16 %v4394
  %v4475 = vunpack.c.h.b16 %v4394
  %v4476 = vunpack.c.l.b16 %v4395
  %v4477 = vunpack.c.h.b16 %v4395
  %v4478 = vunpack.c.l.b16 %v4396
  %v4479 = vunpack.c.h.b16 %v4396
  %v4480 = vunpack.c.l.b16 %v4397
  %v4481 = vunpack.c.h.b16 %v4397
  %v4482 = vunpack.c.l.b16 %v4398
  %v4483 = vunpack.c.h.b16 %v4398
  %v4484 = vunpack.c.l.b16 %v4399
  %v4485 = vunpack.c.h.b16 %v4399
  %v4486 = vunpack.c.l.b16 %v4400
  %v4487 = vunpack.c.h.b16 %v4400
  %v4488 = vunpack.c.l.b16 %v4401
  %v4489 = vunpack.c.h.b16 %v4401
  %v4490 = vunpack.c.l.b16 %v4402
  %v4491 = vunpack.c.h.b16 %v4402
  %v4492 = vunpack.c.l.b16 %v4403
  %v4493 = vunpack.c.h.b16 %v4403
  %v4494 = vunpack.c.l.b16 %v4404
  %v4495 = vunpack.c.h.b16 %v4404
  %v4496 = vunpack.c.l.b16 %v4405
  %v4497 = vunpack.c.h.b16 %v4405
  %v4498 = vunpack.c.l.b16 %v4406
  %v4499 = vunpack.c.h.b16 %v4406
  %v4500 = vunpack.c.l.b16 %v4407
  %v4501 = vunpack.c.h.b16 %v4407
  %v4502 = vunpack.c.l.b16 %v4408
  %v4503 = vunpack.c.h.b16 %v4408
  %v4504 = vunpack.c.l.b16 %v4409
  %v4505 = vunpack.c.h.b16 %v4409
  %v4506 = vpack.c.b16 %v4446, %v4442
  %v4507 = vpack.c.b16 %v4447, %v4443
  %v4508 = vpack.c.b16 %v4448, %v4444
  %v4509 = vpack.c.b16 %v4449, %v4445
  %v4510 = vpack.c.b16 %v4454, %v4450
  %v4511 = vpack.c.b16 %v4455, %v4451
  %v4512 = vpack.c.b16 %v4456, %v4452
  %v4513 = vpack.c.b16 %v4457, %v4453
  %v4514 = vpack.c.b16 %v4462, %v4458
  %v4515 = vpack.c.b16 %v4463, %v4459
  %v4516 = vpack.c.b16 %v4464, %v4460
  %v4517 = vpack.c.b16 %v4465, %v4461
  %v4518 = vpack.c.b16 %v4470, %v4466
  %v4519 = vpack.c.b16 %v4471, %v4467
  %v4520 = vpack.c.b16 %v4472, %v4468
  %v4521 = vpack.c.b16 %v4473, %v4469
  %v4522 = vpack.c.b16 %v4478, %v4474
  %v4523 = vpack.c.b16 %v4479, %v4475
  %v4524 = vpack.c.b16 %v4480, %v4476
  %v4525 = vpack.c.b16 %v4481, %v4477
  %v4526 = vpack.c.b16 %v4486, %v4482
  %v4527 = vpack.c.b16 %v4487, %v4483
  %v4528 = vpack.c.b16 %v4488, %v4484
  %v4529 = vpack.c.b16 %v4489, %v4485
  %v4530 = vpack.c.b16 %v4494, %v4490
  %v4531 = vpack.c.b16 %v4495, %v4491
  %v4532 = vpack.c.b16 %v4496, %v4492
  %v4533 = vpack.c.b16 %v4497, %v4493
  %v4534 = vpack.c.b16 %v4502, %v4498
  %v4535 = vpack.c.b16 %v4503, %v4499
  %v4536 = vpack.c.b16 %v4504, %v4500
  %v4537 = vpack.c.b16 %v4505, %v4501
  %4570 = vmatprep.subr.bf16.mxu0 %v4507
  %4571 = vmatpush1.bf16.msra.mxu0 %v4506
  %4572 = vmatprep.subr.bf16.mxu0 %v4511
  %4573 = vmatpush1.bf16.msra.mxu0 %v4510
  %4574 = vmatprep.subr.bf16.mxu0 %v4515
  %4575 = vmatpush1.bf16.msra.mxu0 %v4514
  %4576 = vmatprep.subr.bf16.mxu0 %v4519
  %4577 = vmatpush1.bf16.msra.mxu0 %v4518
  %4578 = vmatprep.subr.bf16.mxu0 %v4523
  %4579 = vmatpush1.bf16.msra.mxu0 %v4522
  %4580 = vmatprep.subr.bf16.mxu0 %v4527
  %4581 = vmatpush1.bf16.msra.mxu0 %v4526
  %4582 = vmatprep.subr.bf16.mxu0 %v4531
  %4583 = vmatpush1.bf16.msra.mxu0 %v4530
  %4584 = vmatprep.subr.bf16.mxu0 %v4535
  %4585 = vmatpush1.bf16.msra.mxu0 %v4534
  %4586 = vmatprep.subr.bf16.mxu0 0
  %4587 = vmatpush1.bf16.msra.mxu0 0
  %4588 = vmatprep.subr.bf16.mxu0 0
  %4589 = vmatpush1.bf16.msra.mxu0 0
  %4590 = vmatprep.subr.bf16.mxu0 0
  %4591 = vmatpush1.bf16.msra.mxu0 0
  %4592 = vmatprep.subr.bf16.mxu0 0
  %4593 = vmatpush1.bf16.msra.mxu0 0
  %4594 = vmatprep.subr.bf16.mxu0 0
  %4595 = vmatpush1.bf16.msra.mxu0 0
  %4596 = vmatprep.subr.bf16.mxu0 0
  %4597 = vmatpush1.bf16.msra.mxu0 0
  %4598 = vmatprep.subr.bf16.mxu0 0
  %4599 = vmatpush1.bf16.msra.mxu0 0
  %4600 = vmatprep.subr.bf16.mxu0 0
  %4601 = vmatpush1.bf16.msra.mxu0 0
  %4602 = vmatprep.mubr.bf16.mxu0 0
  %4603 = vmatmul.mubr.bf16.gmra.mrb[0].mxu0 %v4377
  %v4604 = vpop.f32.mrb[0].mxu0
  %v4605 = vadd.f32 0.0, %v4604
  %v4606 = vpop.f32.mrb[0].mxu0
  %v4607 = vadd.f32 0.0, %v4606
  %v4608 = vpop.f32.mrb[0].mxu0
  %v4609 = vadd.f32 0.0, %v4608
  %v4610 = vpop.f32.mrb[0].mxu0
  %v4611 = vadd.f32 0.0, %v4610
  %4612 = vdwg.mxu0
  %4613 = vmatprep.subr.bf16.mxu0 %v4509
  %4614 = vmatpush1.bf16.msra.mxu0 %v4508
  %4615 = vmatprep.subr.bf16.mxu0 %v4513
  %4616 = vmatpush1.bf16.msra.mxu0 %v4512
  %4617 = vmatprep.subr.bf16.mxu0 %v4517
  %4618 = vmatpush1.bf16.msra.mxu0 %v4516
  %4619 = vmatprep.subr.bf16.mxu0 %v4521
  %4620 = vmatpush1.bf16.msra.mxu0 %v4520
  %4621 = vmatprep.subr.bf16.mxu0 %v4525
  %4622 = vmatpush1.bf16.msra.mxu0 %v4524
  %4623 = vmatprep.subr.bf16.mxu0 %v4529
  %4624 = vmatpush1.bf16.msra.mxu0 %v4528
  %4625 = vmatprep.subr.bf16.mxu0 %v4533
  %4626 = vmatpush1.bf16.msra.mxu0 %v4532
  %4627 = vmatprep.subr.bf16.mxu0 %v4537
  %4628 = vmatpush1.bf16.msra.mxu0 %v4536
  %4629 = vmatprep.subr.bf16.mxu0 0
  %4630 = vmatpush1.bf16.msra.mxu0 0
  %4631 = vmatprep.subr.bf16.mxu0 0
  %4632 = vmatpush1.bf16.msra.mxu0 0
  %4633 = vmatprep.subr.bf16.mxu0 0
  %4634 = vmatpush1.bf16.msra.mxu0 0
  %4635 = vmatprep.subr.bf16.mxu0 0
  %4636 = vmatpush1.bf16.msra.mxu0 0
  %4637 = vmatprep.subr.bf16.mxu0 0
  %4638 = vmatpush1.bf16.msra.mxu0 0
  %4639 = vmatprep.subr.bf16.mxu0 0
  %4640 = vmatpush1.bf16.msra.mxu0 0
  %4641 = vmatprep.subr.bf16.mxu0 0
  %4642 = vmatpush1.bf16.msra.mxu0 0
  %4643 = vmatprep.subr.bf16.mxu0 0
  %4644 = vmatpush1.bf16.msra.mxu0 0
  %4645 = vmatprep.mubr.bf16.mxu0 0
  %4646 = vmatmul.mubr.bf16.gmra.mrb[0].mxu0 %v4377
  %v4647 = vpop.f32.mrb[0].mxu0
  %v4648 = vadd.f32 0.0, %v4647
  %v4649 = vpop.f32.mrb[0].mxu0
  %v4650 = vadd.f32 0.0, %v4649
  %v4651 = vpop.f32.mrb[0].mxu0
  %v4652 = vadd.f32 0.0, %v4651
  %v4653 = vpop.f32.mrb[0].mxu0
  %v4654 = vadd.f32 0.0, %v4653
  %4655 = vdwg.mxu0
  %v4656 = vadd.f32 %v4367, %v4605
  %v4657 = vadd.f32 %v4368, %v4607
  %v4658 = vadd.f32 %v4369, %v4648
  %v4659 = vadd.f32 %v4370, %v4650
  %v4660 = vadd.f32 %v4371, %v4609
  %v4661 = vadd.f32 %v4372, %v4611
  %v4662 = vadd.f32 %v4373, %v4652
  %v4663 = vadd.f32 %v4374, %v4654
  %v4664 = vxor.u32 %v4656, 2147483648
  %v4665 = vxor.u32 %v4657, 2147483648
  %v4666 = vxor.u32 %v4658, 2147483648
  %v4667 = vxor.u32 %v4660, 2147483648
  %v4668 = vxor.u32 %v4661, 2147483648
  %v4669 = vxor.u32 %v4662, 2147483648
  %v4670 = vmul.f32 %v4664, 1.442695
  %v4671 = vpow.pop %v4670
  %v4672 = vmul.f32 %v4665, 1.442695
  %v4673 = vpow.pop %v4672
  %v4674 = vmul.f32 %v4666, 1.442695
  %v4675 = vpow.pop %v4674
  %v4676 = vmul.f32 %v4667, 1.442695
  %v4677 = vpow.pop %v4676
  %v4678 = vmul.f32 %v4668, 1.442695
  %v4679 = vpow.pop %v4678
  %v4680 = vmul.f32 %v4669, 1.442695
  %v4681 = vpow.pop %v4680
  %v4682 = vadd.f32 %v4671, 1.0
  %v4683 = vadd.f32 %v4673, 1.0
  %v4684 = vadd.f32 %v4675, 1.0
  %v4685 = vadd.f32 %v4677, 1.0
  %v4686 = vadd.f32 %v4679, 1.0
  %v4687 = vadd.f32 %v4681, 1.0
  %v4688 = vrcp.pop %v4682
  %v4689 = vmul.f32 1.0, %v4688
  %v4690 = vrcp.pop %v4683
  %v4691 = vmul.f32 1.0, %v4690
  %v4692 = vrcp.pop %v4684
  %v4693 = vmul.f32 1.0, %v4692
  %v4694 = vrcp.pop %v4685
  %v4695 = vmul.f32 1.0, %v4694
  %v4696 = vrcp.pop %v4686
  %v4697 = vmul.f32 1.0, %v4696
  %v4698 = vrcp.pop %v4687
  %v4699 = vmul.f32 1.0, %v4698
  %v4700 = vtanh.pop %v4659
  %v4701 = vtanh.pop %v4663
  %v4702 = vld [vmem:[#allocation5] sm:$0xff]
  %v4703 = vld [vmem:[#allocation5 + $0x8] sm:$0xff]
  %v4704 = vmul.f32 %v4691, %v4702
  %v4705 = vmul.f32 %v4697, %v4703
  %v4706 = vmul.f32 %v4689, %v4700
  %v4707 = vmul.f32 %v4695, %v4701
  %v4708 = vadd.f32 %v4704, %v4706
  %v4709 = vadd.f32 %v4705, %v4707
  %v4710 = vtanh.pop %v4708
  %v4711 = vtanh.pop %v4709
  %v4712 = vmul.f32 %v4693, %v4710
  %v4713 = vmul.f32 %v4699, %v4711
  %4714 = vst [vmem:[#allocation5] sm:$0xff] %v4708
  %4715 = vst [vmem:[#allocation5 + $0x8] sm:$0xff] %v4709
  %4716 = vst [vmem:[#allocation4] sm:$0xff] %v4712
  %4717 = vst [vmem:[#allocation4 + $0x8] sm:$0xff] %v4713
  %v4718 = vld [vmem:[%s1328] sm:$0xff]
  %v4719 = vld [vmem:[%s1328 + $0x8] sm:$0xff]
  %v4720 = vld [vmem:[%s1328 + $0x10] sm:$0xff]
  %v4721 = vld [vmem:[%s1328 + $0x18] sm:$0xff]
  %v4722 = vunpack.c.l.bf16 %v4718
  %v4723 = vunpack.c.l.bf16 %v4719
  %v4724 = vunpack.c.l.bf16 %v4720
  %v4725 = vunpack.c.l.bf16 %v4721
  %v4726 = vunpack.c.h.bf16 %v4718
  %v4727 = vunpack.c.h.bf16 %v4719
  %v4728 = vunpack.c.h.bf16 %v4720
  %v4729 = vunpack.c.h.bf16 %v4721
  %v4730 = vld [vmem:[#allocation4] sm:$0xff]
  %v4731 = vld [vmem:[#allocation4 + $0x8] sm:$0xff]
  %v4732 = vpack.c.bf16 %v4731, %v4730
  %v4733 = vld [vmem:[%s5] sm:$0xff]
  %v4734 = vld [vmem:[%s5 + $0x8] sm:$0xff]
  %v4735 = vld [vmem:[%s5 + $0x10] sm:$0xff]
  %v4736 = vld [vmem:[%s5 + $0x18] sm:$0xff]
  %v4737 = vld [vmem:[%s5 + $0x20] sm:$0xff]
  %v4738 = vld [vmem:[%s5 + $0x28] sm:$0xff]
  %v4739 = vld [vmem:[%s5 + $0x30] sm:$0xff]
  %v4740 = vld [vmem:[%s5 + $0x38] sm:$0xff]
  %v4741 = vld [vmem:[%s5 + $0x40] sm:$0xff]
  %v4742 = vld [vmem:[%s5 + $0x48] sm:$0xff]
  %v4743 = vld [vmem:[%s5 + $0x50] sm:$0xff]
  %v4744 = vld [vmem:[%s5 + $0x58] sm:$0xff]
  %v4745 = vld [vmem:[%s5 + $0x60] sm:$0xff]
  %v4746 = vld [vmem:[%s5 + $0x68] sm:$0xff]
  %v4747 = vld [vmem:[%s5 + $0x70] sm:$0xff]
  %v4748 = vld [vmem:[%s5 + $0x78] sm:$0xff]
  %v4749 = vld [vmem:[%s5 + $0x80] sm:$0xff]
  %v4750 = vld [vmem:[%s5 + $0x88] sm:$0xff]
  %v4751 = vld [vmem:[%s5 + $0x90] sm:$0xff]
  %v4752 = vld [vmem:[%s5 + $0x98] sm:$0xff]
  %v4753 = vld [vmem:[%s5 + $0xa0] sm:$0xff]
  %v4754 = vld [vmem:[%s5 + $0xa8] sm:$0xff]
  %v4755 = vld [vmem:[%s5 + $0xb0] sm:$0xff]
  %v4756 = vld [vmem:[%s5 + $0xb8] sm:$0xff]
  %v4757 = vld [vmem:[%s5 + $0xc0] sm:$0xff]
  %v4758 = vld [vmem:[%s5 + $0xc8] sm:$0xff]
  %v4759 = vld [vmem:[%s5 + $0xd0] sm:$0xff]
  %v4760 = vld [vmem:[%s5 + $0xd8] sm:$0xff]
  %v4761 = vld [vmem:[%s5 + $0xe0] sm:$0xff]
  %v4762 = vld [vmem:[%s5 + $0xe8] sm:$0xff]
  %v4763 = vld [vmem:[%s5 + $0xf0] sm:$0xff]
  %v4764 = vld [vmem:[%s5 + $0xf8] sm:$0xff]
  %v4797 = vunpack.c.l.b16 %v4733
  %v4798 = vunpack.c.h.b16 %v4733
  %v4799 = vunpack.c.l.b16 %v4734
  %v4800 = vunpack.c.h.b16 %v4734
  %v4801 = vunpack.c.l.b16 %v4735
  %v4802 = vunpack.c.h.b16 %v4735
  %v4803 = vunpack.c.l.b16 %v4736
  %v4804 = vunpack.c.h.b16 %v4736
  %v4805 = vunpack.c.l.b16 %v4737
  %v4806 = vunpack.c.h.b16 %v4737
  %v4807 = vunpack.c.l.b16 %v4738
  %v4808 = vunpack.c.h.b16 %v4738
  %v4809 = vunpack.c.l.b16 %v4739
  %v4810 = vunpack.c.h.b16 %v4739
  %v4811 = vunpack.c.l.b16 %v4740
  %v4812 = vunpack.c.h.b16 %v4740
  %v4813 = vunpack.c.l.b16 %v4741
  %v4814 = vunpack.c.h.b16 %v4741
  %v4815 = vunpack.c.l.b16 %v4742
  %v4816 = vunpack.c.h.b16 %v4742
  %v4817 = vunpack.c.l.b16 %v4743
  %v4818 = vunpack.c.h.b16 %v4743
  %v4819 = vunpack.c.l.b16 %v4744
  %v4820 = vunpack.c.h.b16 %v4744
  %v4821 = vunpack.c.l.b16 %v4745
  %v4822 = vunpack.c.h.b16 %v4745
  %v4823 = vunpack.c.l.b16 %v4746
  %v4824 = vunpack.c.h.b16 %v4746
  %v4825 = vunpack.c.l.b16 %v4747
  %v4826 = vunpack.c.h.b16 %v4747
  %v4827 = vunpack.c.l.b16 %v4748
  %v4828 = vunpack.c.h.b16 %v4748
  %v4829 = vunpack.c.l.b16 %v4749
  %v4830 = vunpack.c.h.b16 %v4749
  %v4831 = vunpack.c.l.b16 %v4750
  %v4832 = vunpack.c.h.b16 %v4750
  %v4833 = vunpack.c.l.b16 %v4751
  %v4834 = vunpack.c.h.b16 %v4751
  %v4835 = vunpack.c.l.b16 %v4752
  %v4836 = vunpack.c.h.b16 %v4752
  %v4837 = vunpack.c.l.b16 %v4753
  %v4838 = vunpack.c.h.b16 %v4753
  %v4839 = vunpack.c.l.b16 %v4754
  %v4840 = vunpack.c.h.b16 %v4754
  %v4841 = vunpack.c.l.b16 %v4755
  %v4842 = vunpack.c.h.b16 %v4755
  %v4843 = vunpack.c.l.b16 %v4756
  %v4844 = vunpack.c.h.b16 %v4756
  %v4845 = vunpack.c.l.b16 %v4757
  %v4846 = vunpack.c.h.b16 %v4757
  %v4847 = vunpack.c.l.b16 %v4758
  %v4848 = vunpack.c.h.b16 %v4758
  %v4849 = vunpack.c.l.b16 %v4759
  %v4850 = vunpack.c.h.b16 %v4759
  %v4851 = vunpack.c.l.b16 %v4760
  %v4852 = vunpack.c.h.b16 %v4760
  %v4853 = vunpack.c.l.b16 %v4761
  %v4854 = vunpack.c.h.b16 %v4761
  %v4855 = vunpack.c.l.b16 %v4762
  %v4856 = vunpack.c.h.b16 %v4762
  %v4857 = vunpack.c.l.b16 %v4763
  %v4858 = vunpack.c.h.b16 %v4763
  %v4859 = vunpack.c.l.b16 %v4764
  %v4860 = vunpack.c.h.b16 %v4764
  %v4861 = vpack.c.b16 %v4801, %v4797
  %v4862 = vpack.c.b16 %v4802, %v4798
  %v4863 = vpack.c.b16 %v4803, %v4799
  %v4864 = vpack.c.b16 %v4804, %v4800
  %v4865 = vpack.c.b16 %v4809, %v4805
  %v4866 = vpack.c.b16 %v4810, %v4806
  %v4867 = vpack.c.b16 %v4811, %v4807
  %v4868 = vpack.c.b16 %v4812, %v4808
  %v4869 = vpack.c.b16 %v4817, %v4813
  %v4870 = vpack.c.b16 %v4818, %v4814
  %v4871 = vpack.c.b16 %v4819, %v4815
  %v4872 = vpack.c.b16 %v4820, %v4816
  %v4873 = vpack.c.b16 %v4825, %v4821
  %v4874 = vpack.c.b16 %v4826, %v4822
  %v4875 = vpack.c.b16 %v4827, %v4823
  %v4876 = vpack.c.b16 %v4828, %v4824
  %v4877 = vpack.c.b16 %v4833, %v4829
  %v4878 = vpack.c.b16 %v4834, %v4830
  %v4879 = vpack.c.b16 %v4835, %v4831
  %v4880 = vpack.c.b16 %v4836, %v4832
  %v4881 = vpack.c.b16 %v4841, %v4837
  %v4882 = vpack.c.b16 %v4842, %v4838
  %v4883 = vpack.c.b16 %v4843, %v4839
  %v4884 = vpack.c.b16 %v4844, %v4840
  %v4885 = vpack.c.b16 %v4849, %v4845
  %v4886 = vpack.c.b16 %v4850, %v4846
  %v4887 = vpack.c.b16 %v4851, %v4847
  %v4888 = vpack.c.b16 %v4852, %v4848
  %v4889 = vpack.c.b16 %v4857, %v4853
  %v4890 = vpack.c.b16 %v4858, %v4854
  %v4891 = vpack.c.b16 %v4859, %v4855
  %v4892 = vpack.c.b16 %v4860, %v4856
  %4925 = vmatprep.subr.bf16.mxu0 %v4862
  %4926 = vmatpush1.bf16.msra.mxu0 %v4861
  %4927 = vmatprep.subr.bf16.mxu0 %v4866
  %4928 = vmatpush1.bf16.msra.mxu0 %v4865
  %4929 = vmatprep.subr.bf16.mxu0 %v4870
  %4930 = vmatpush1.bf16.msra.mxu0 %v4869
  %4931 = vmatprep.subr.bf16.mxu0 %v4874
  %4932 = vmatpush1.bf16.msra.mxu0 %v4873
  %4933 = vmatprep.subr.bf16.mxu0 %v4878
  %4934 = vmatpush1.bf16.msra.mxu0 %v4877
  %4935 = vmatprep.subr.bf16.mxu0 %v4882
  %4936 = vmatpush1.bf16.msra.mxu0 %v4881
  %4937 = vmatprep.subr.bf16.mxu0 %v4886
  %4938 = vmatpush1.bf16.msra.mxu0 %v4885
  %4939 = vmatprep.subr.bf16.mxu0 %v4890
  %4940 = vmatpush1.bf16.msra.mxu0 %v4889
  %4941 = vmatprep.subr.bf16.mxu0 0
  %4942 = vmatpush1.bf16.msra.mxu0 0
  %4943 = vmatprep.subr.bf16.mxu0 0
  %4944 = vmatpush1.bf16.msra.mxu0 0
  %4945 = vmatprep.subr.bf16.mxu0 0
  %4946 = vmatpush1.bf16.msra.mxu0 0
  %4947 = vmatprep.subr.bf16.mxu0 0
  %4948 = vmatpush1.bf16.msra.mxu0 0
  %4949 = vmatprep.subr.bf16.mxu0 0
  %4950 = vmatpush1.bf16.msra.mxu0 0
  %4951 = vmatprep.subr.bf16.mxu0 0
  %4952 = vmatpush1.bf16.msra.mxu0 0
  %4953 = vmatprep.subr.bf16.mxu0 0
  %4954 = vmatpush1.bf16.msra.mxu0 0
  %4955 = vmatprep.subr.bf16.mxu0 0
  %4956 = vmatpush1.bf16.msra.mxu0 0
  %4957 = vmatprep.mubr.bf16.mxu0 0
  %4958 = vmatmul.mubr.bf16.gmra.mrb[0].mxu0 %v4732
  %v4959 = vpop.f32.mrb[0].mxu0
  %v4960 = vadd.f32 0.0, %v4959
  %v4961 = vpop.f32.mrb[0].mxu0
  %v4962 = vadd.f32 0.0, %v4961
  %v4963 = vpop.f32.mrb[0].mxu0
  %v4964 = vadd.f32 0.0, %v4963
  %v4965 = vpop.f32.mrb[0].mxu0
  %v4966 = vadd.f32 0.0, %v4965
  %4967 = vdwg.mxu0
  %4968 = vmatprep.subr.bf16.mxu0 %v4864
  %4969 = vmatpush1.bf16.msra.mxu0 %v4863
  %4970 = vmatprep.subr.bf16.mxu0 %v4868
  %4971 = vmatpush1.bf16.msra.mxu0 %v4867
  %4972 = vmatprep.subr.bf16.mxu0 %v4872
  %4973 = vmatpush1.bf16.msra.mxu0 %v4871
  %4974 = vmatprep.subr.bf16.mxu0 %v4876
  %4975 = vmatpush1.bf16.msra.mxu0 %v4875
  %4976 = vmatprep.subr.bf16.mxu0 %v4880
  %4977 = vmatpush1.bf16.msra.mxu0 %v4879
  %4978 = vmatprep.subr.bf16.mxu0 %v4884
  %4979 = vmatpush1.bf16.msra.mxu0 %v4883
  %4980 = vmatprep.subr.bf16.mxu0 %v4888
  %4981 = vmatpush1.bf16.msra.mxu0 %v4887
  %4982 = vmatprep.subr.bf16.mxu0 %v4892
  %4983 = vmatpush1.bf16.msra.mxu0 %v4891
  %4984 = vmatprep.subr.bf16.mxu0 0
  %4985 = vmatpush1.bf16.msra.mxu0 0
  %4986 = vmatprep.subr.bf16.mxu0 0
  %4987 = vmatpush1.bf16.msra.mxu0 0
  %4988 = vmatprep.subr.bf16.mxu0 0
  %4989 = vmatpush1.bf16.msra.mxu0 0
  %4990 = vmatprep.subr.bf16.mxu0 0
  %4991 = vmatpush1.bf16.msra.mxu0 0
  %4992 = vmatprep.subr.bf16.mxu0 0
  %4993 = vmatpush1.bf16.msra.mxu0 0
  %4994 = vmatprep.subr.bf16.mxu0 0
  %4995 = vmatpush1.bf16.msra.mxu0 0
  %4996 = vmatprep.subr.bf16.mxu0 0
  %4997 = vmatpush1.bf16.msra.mxu0 0
  %4998 = vmatprep.subr.bf16.mxu0 0
  %4999 = vmatpush1.bf16.msra.mxu0 0
  %5000 = vmatprep.mubr.bf16.mxu0 0
  %5001 = vmatmul.mubr.bf16.gmra.mrb[0].mxu0 %v4732
  %v5002 = vpop.f32.mrb[0].mxu0
  %v5003 = vadd.f32 0.0, %v5002
  %v5004 = vpop.f32.mrb[0].mxu0
  %v5005 = vadd.f32 0.0, %v5004
  %v5006 = vpop.f32.mrb[0].mxu0
  %v5007 = vadd.f32 0.0, %v5006
  %v5008 = vpop.f32.mrb[0].mxu0
  %v5009 = vadd.f32 0.0, %v5008
  %5010 = vdwg.mxu0
  %v5011 = vadd.f32 %v4722, %v4960
  %v5012 = vadd.f32 %v4723, %v4962
  %v5013 = vadd.f32 %v4724, %v5003
  %v5014 = vadd.f32 %v4725, %v5005
  %v5015 = vadd.f32 %v4726, %v4964
  %v5016 = vadd.f32 %v4727, %v4966
  %v5017 = vadd.f32 %v4728, %v5007
  %v5018 = vadd.f32 %v4729, %v5009
  %v5019 = vxor.u32 %v5011, 2147483648
  %v5020 = vxor.u32 %v5012, 2147483648
  %v5021 = vxor.u32 %v5013, 2147483648
  %v5022 = vxor.u32 %v5015, 2147483648
  %v5023 = vxor.u32 %v5016, 2147483648
  %v5024 = vxor.u32 %v5017, 2147483648
  %v5025 = vmul.f32 %v5019, 1.442695
  %v5026 = vpow.pop %v5025
  %v5027 = vmul.f32 %v5020, 1.442695
  %v5028 = vpow.pop %v5027
  %v5029 = vmul.f32 %v5021, 1.442695
  %v5030 = vpow.pop %v5029
  %v5031 = vmul.f32 %v5022, 1.442695
  %v5032 = vpow.pop %v5031
  %v5033 = vmul.f32 %v5023, 1.442695
  %v5034 = vpow.pop %v5033
  %v5035 = vmul.f32 %v5024, 1.442695
  %v5036 = vpow.pop %v5035
  %v5037 = vadd.f32 %v5026, 1.0
  %v5038 = vadd.f32 %v5028, 1.0
  %v5039 = vadd.f32 %v5030, 1.0
  %v5040 = vadd.f32 %v5032, 1.0
  %v5041 = vadd.f32 %v5034, 1.0
  %v5042 = vadd.f32 %v5036, 1.0
  %v5043 = vrcp.pop %v5037
  %v5044 = vmul.f32 1.0, %v5043
  %v5045 = vrcp.pop %v5038
  %v5046 = vmul.f32 1.0, %v5045
  %v5047 = vrcp.pop %v5039
  %v5048 = vmul.f32 1.0, %v5047
  %v5049 = vrcp.pop %v5040
  %v5050 = vmul.f32 1.0, %v5049
  %v5051 = vrcp.pop %v5041
  %v5052 = vmul.f32 1.0, %v5051
  %v5053 = vrcp.pop %v5042
  %v5054 = vmul.f32 1.0, %v5053
  %v5055 = vtanh.pop %v5014
  %v5056 = vtanh.pop %v5018
  %v5057 = vld [vmem:[#allocation5] sm:$0xff]
  %v5058 = vld [vmem:[#allocation5 + $0x8] sm:$0xff]
  %v5059 = vmul.f32 %v5046, %v5057
  %v5060 = vmul.f32 %v5052, %v5058
  %v5061 = vmul.f32 %v5044, %v5055
  %v5062 = vmul.f32 %v5050, %v5056
  %v5063 = vadd.f32 %v5059, %v5061
  %v5064 = vadd.f32 %v5060, %v5062
  %v5065 = vtanh.pop %v5063
  %v5066 = vtanh.pop %v5064
  %v5067 = vmul.f32 %v5048, %v5065
  %v5068 = vmul.f32 %v5054, %v5066
  %5069 = vst [vmem:[#allocation5] sm:$0xff] %v5063
  %5070 = vst [vmem:[#allocation5 + $0x8] sm:$0xff] %v5064
  %5071 = vst [vmem:[#allocation4] sm:$0xff] %v5067
  %5072 = vst [vmem:[#allocation4 + $0x8] sm:$0xff] %v5068
  %v5073 = vld [vmem:[%s1689] sm:$0xff]
  %v5074 = vld [vmem:[%s1689 + $0x8] sm:$0xff]
  %v5075 = vld [vmem:[%s1689 + $0x10] sm:$0xff]
  %v5076 = vld [vmem:[%s1689 + $0x18] sm:$0xff]
  %v5077 = vunpack.c.l.bf16 %v5073
  %v5078 = vunpack.c.l.bf16 %v5074
  %v5079 = vunpack.c.l.bf16 %v5075
  %v5080 = vunpack.c.l.bf16 %v5076
  %v5081 = vunpack.c.h.bf16 %v5073
  %v5082 = vunpack.c.h.bf16 %v5074
  %v5083 = vunpack.c.h.bf16 %v5075
  %v5084 = vunpack.c.h.bf16 %v5076
  %v5085 = vld [vmem:[#allocation4] sm:$0xff]
  %v5086 = vld [vmem:[#allocation4 + $0x8] sm:$0xff]
  %v5087 = vpack.c.bf16 %v5086, %v5085
  %v5088 = vld [vmem:[%s5] sm:$0xff]
  %v5089 = vld [vmem:[%s5 + $0x8] sm:$0xff]
  %v5090 = vld [vmem:[%s5 + $0x10] sm:$0xff]
  %v5091 = vld [vmem:[%s5 + $0x18] sm:$0xff]
  %v5092 = vld [vmem:[%s5 + $0x20] sm:$0xff]
  %v5093 = vld [vmem:[%s5 + $0x28] sm:$0xff]
  %v5094 = vld [vmem:[%s5 + $0x30] sm:$0xff]
  %v5095 = vld [vmem:[%s5 + $0x38] sm:$0xff]
  %v5096 = vld [vmem:[%s5 + $0x40] sm:$0xff]
  %v5097 = vld [vmem:[%s5 + $0x48] sm:$0xff]
  %v5098 = vld [vmem:[%s5 + $0x50] sm:$0xff]
  %v5099 = vld [vmem:[%s5 + $0x58] sm:$0xff]
  %v5100 = vld [vmem:[%s5 + $0x60] sm:$0xff]
  %v5101 = vld [vmem:[%s5 + $0x68] sm:$0xff]
  %v5102 = vld [vmem:[%s5 + $0x70] sm:$0xff]
  %v5103 = vld [vmem:[%s5 + $0x78] sm:$0xff]
  %v5104 = vld [vmem:[%s5 + $0x80] sm:$0xff]
  %v5105 = vld [vmem:[%s5 + $0x88] sm:$0xff]
  %v5106 = vld [vmem:[%s5 + $0x90] sm:$0xff]
  %v5107 = vld [vmem:[%s5 + $0x98] sm:$0xff]
  %v5108 = vld [vmem:[%s5 + $0xa0] sm:$0xff]
  %v5109 = vld [vmem:[%s5 + $0xa8] sm:$0xff]
  %v5110 = vld [vmem:[%s5 + $0xb0] sm:$0xff]
  %v5111 = vld [vmem:[%s5 + $0xb8] sm:$0xff]
  %v5112 = vld [vmem:[%s5 + $0xc0] sm:$0xff]
  %v5113 = vld [vmem:[%s5 + $0xc8] sm:$0xff]
  %v5114 = vld [vmem:[%s5 + $0xd0] sm:$0xff]
  %v5115 = vld [vmem:[%s5 + $0xd8] sm:$0xff]
  %v5116 = vld [vmem:[%s5 + $0xe0] sm:$0xff]
  %v5117 = vld [vmem:[%s5 + $0xe8] sm:$0xff]
  %v5118 = vld [vmem:[%s5 + $0xf0] sm:$0xff]
  %v5119 = vld [vmem:[%s5 + $0xf8] sm:$0xff]
  %v5152 = vunpack.c.l.b16 %v5088
  %v5153 = vunpack.c.h.b16 %v5088
  %v5154 = vunpack.c.l.b16 %v5089
  %v5155 = vunpack.c.h.b16 %v5089
  %v5156 = vunpack.c.l.b16 %v5090
  %v5157 = vunpack.c.h.b16 %v5090
  %v5158 = vunpack.c.l.b16 %v5091
  %v5159 = vunpack.c.h.b16 %v5091
  %v5160 = vunpack.c.l.b16 %v5092
  %v5161 = vunpack.c.h.b16 %v5092
  %v5162 = vunpack.c.l.b16 %v5093
  %v5163 = vunpack.c.h.b16 %v5093
  %v5164 = vunpack.c.l.b16 %v5094
  %v5165 = vunpack.c.h.b16 %v5094
  %v5166 = vunpack.c.l.b16 %v5095
  %v5167 = vunpack.c.h.b16 %v5095
  %v5168 = vunpack.c.l.b16 %v5096
  %v5169 = vunpack.c.h.b16 %v5096
  %v5170 = vunpack.c.l.b16 %v5097
  %v5171 = vunpack.c.h.b16 %v5097
  %v5172 = vunpack.c.l.b16 %v5098
  %v5173 = vunpack.c.h.b16 %v5098
  %v5174 = vunpack.c.l.b16 %v5099
  %v5175 = vunpack.c.h.b16 %v5099
  %v5176 = vunpack.c.l.b16 %v5100
  %v5177 = vunpack.c.h.b16 %v5100
  %v5178 = vunpack.c.l.b16 %v5101
  %v5179 = vunpack.c.h.b16 %v5101
  %v5180 = vunpack.c.l.b16 %v5102
  %v5181 = vunpack.c.h.b16 %v5102
  %v5182 = vunpack.c.l.b16 %v5103
  %v5183 = vunpack.c.h.b16 %v5103
  %v5184 = vunpack.c.l.b16 %v5104
  %v5185 = vunpack.c.h.b16 %v5104
  %v5186 = vunpack.c.l.b16 %v5105
  %v5187 = vunpack.c.h.b16 %v5105
  %v5188 = vunpack.c.l.b16 %v5106
  %v5189 = vunpack.c.h.b16 %v5106
  %v5190 = vunpack.c.l.b16 %v5107
  %v5191 = vunpack.c.h.b16 %v5107
  %v5192 = vunpack.c.l.b16 %v5108
  %v5193 = vunpack.c.h.b16 %v5108
  %v5194 = vunpack.c.l.b16 %v5109
  %v5195 = vunpack.c.h.b16 %v5109
  %v5196 = vunpack.c.l.b16 %v5110
  %v5197 = vunpack.c.h.b16 %v5110
  %v5198 = vunpack.c.l.b16 %v5111
  %v5199 = vunpack.c.h.b16 %v5111
  %v5200 = vunpack.c.l.b16 %v5112
  %v5201 = vunpack.c.h.b16 %v5112
  %v5202 = vunpack.c.l.b16 %v5113
  %v5203 = vunpack.c.h.b16 %v5113
  %v5204 = vunpack.c.l.b16 %v5114
  %v5205 = vunpack.c.h.b16 %v5114
  %v5206 = vunpack.c.l.b16 %v5115
  %v5207 = vunpack.c.h.b16 %v5115
  %v5208 = vunpack.c.l.b16 %v5116
  %v5209 = vunpack.c.h.b16 %v5116
  %v5210 = vunpack.c.l.b16 %v5117
  %v5211 = vunpack.c.h.b16 %v5117
  %v5212 = vunpack.c.l.b16 %v5118
  %v5213 = vunpack.c.h.b16 %v5118
  %v5214 = vunpack.c.l.b16 %v5119
  %v5215 = vunpack.c.h.b16 %v5119
  %v5216 = vpack.c.b16 %v5156, %v5152
  %v5217 = vpack.c.b16 %v5157, %v5153
  %v5218 = vpack.c.b16 %v5158, %v5154
  %v5219 = vpack.c.b16 %v5159, %v5155
  %v5220 = vpack.c.b16 %v5164, %v5160
  %v5221 = vpack.c.b16 %v5165, %v5161
  %v5222 = vpack.c.b16 %v5166, %v5162
  %v5223 = vpack.c.b16 %v5167, %v5163
  %v5224 = vpack.c.b16 %v5172, %v5168
  %v5225 = vpack.c.b16 %v5173, %v5169
  %v5226 = vpack.c.b16 %v5174, %v5170
  %v5227 = vpack.c.b16 %v5175, %v5171
  %v5228 = vpack.c.b16 %v5180, %v5176
  %v5229 = vpack.c.b16 %v5181, %v5177
  %v5230 = vpack.c.b16 %v5182, %v5178
  %v5231 = vpack.c.b16 %v5183, %v5179
  %v5232 = vpack.c.b16 %v5188, %v5184
  %v5233 = vpack.c.b16 %v5189, %v5185
  %v5234 = vpack.c.b16 %v5190, %v5186
  %v5235 = vpack.c.b16 %v5191, %v5187
  %v5236 = vpack.c.b16 %v5196, %v5192
  %v5237 = vpack.c.b16 %v5197, %v5193
  %v5238 = vpack.c.b16 %v5198, %v5194
  %v5239 = vpack.c.b16 %v5199, %v5195
  %v5240 = vpack.c.b16 %v5204, %v5200
  %v5241 = vpack.c.b16 %v5205, %v5201
  %v5242 = vpack.c.b16 %v5206, %v5202
  %v5243 = vpack.c.b16 %v5207, %v5203
  %v5244 = vpack.c.b16 %v5212, %v5208
  %v5245 = vpack.c.b16 %v5213, %v5209
  %v5246 = vpack.c.b16 %v5214, %v5210
  %v5247 = vpack.c.b16 %v5215, %v5211
  %5280 = vmatprep.subr.bf16.mxu0 %v5217
  %5281 = vmatpush1.bf16.msra.mxu0 %v5216
  %5282 = vmatprep.subr.bf16.mxu0 %v5221
  %5283 = vmatpush1.bf16.msra.mxu0 %v5220
  %5284 = vmatprep.subr.bf16.mxu0 %v5225
  %5285 = vmatpush1.bf16.msra.mxu0 %v5224
  %5286 = vmatprep.subr.bf16.mxu0 %v5229
  %5287 = vmatpush1.bf16.msra.mxu0 %v5228
  %5288 = vmatprep.subr.bf16.mxu0 %v5233
  %5289 = vmatpush1.bf16.msra.mxu0 %v5232
  %5290 = vmatprep.subr.bf16.mxu0 %v5237
  %5291 = vmatpush1.bf16.msra.mxu0 %v5236
  %5292 = vmatprep.subr.bf16.mxu0 %v5241
  %5293 = vmatpush1.bf16.msra.mxu0 %v5240
  %5294 = vmatprep.subr.bf16.mxu0 %v5245
  %5295 = vmatpush1.bf16.msra.mxu0 %v5244
  %5296 = vmatprep.subr.bf16.mxu0 0
  %5297 = vmatpush1.bf16.msra.mxu0 0
  %5298 = vmatprep.subr.bf16.mxu0 0
  %5299 = vmatpush1.bf16.msra.mxu0 0
  %5300 = vmatprep.subr.bf16.mxu0 0
  %5301 = vmatpush1.bf16.msra.mxu0 0
  %5302 = vmatprep.subr.bf16.mxu0 0
  %5303 = vmatpush1.bf16.msra.mxu0 0
  %5304 = vmatprep.subr.bf16.mxu0 0
  %5305 = vmatpush1.bf16.msra.mxu0 0
  %5306 = vmatprep.subr.bf16.mxu0 0
  %5307 = vmatpush1.bf16.msra.mxu0 0
  %5308 = vmatprep.subr.bf16.mxu0 0
  %5309 = vmatpush1.bf16.msra.mxu0 0
  %5310 = vmatprep.subr.bf16.mxu0 0
  %5311 = vmatpush1.bf16.msra.mxu0 0
  %5312 = vmatprep.mubr.bf16.mxu0 0
  %5313 = vmatmul.mubr.bf16.gmra.mrb[0].mxu0 %v5087
  %v5314 = vpop.f32.mrb[0].mxu0
  %v5315 = vadd.f32 0.0, %v5314
  %v5316 = vpop.f32.mrb[0].mxu0
  %v5317 = vadd.f32 0.0, %v5316
  %v5318 = vpop.f32.mrb[0].mxu0
  %v5319 = vadd.f32 0.0, %v5318
  %v5320 = vpop.f32.mrb[0].mxu0
  %v5321 = vadd.f32 0.0, %v5320
  %5322 = vdwg.mxu0
  %5323 = vmatprep.subr.bf16.mxu0 %v5219
  %5324 = vmatpush1.bf16.msra.mxu0 %v5218
  %5325 = vmatprep.subr.bf16.mxu0 %v5223
  %5326 = vmatpush1.bf16.msra.mxu0 %v5222
  %5327 = vmatprep.subr.bf16.mxu0 %v5227
  %5328 = vmatpush1.bf16.msra.mxu0 %v5226
  %5329 = vmatprep.subr.bf16.mxu0 %v5231
  %5330 = vmatpush1.bf16.msra.mxu0 %v5230
  %5331 = vmatprep.subr.bf16.mxu0 %v5235
  %5332 = vmatpush1.bf16.msra.mxu0 %v5234
  %5333 = vmatprep.subr.bf16.mxu0 %v5239
  %5334 = vmatpush1.bf16.msra.mxu0 %v5238
  %5335 = vmatprep.subr.bf16.mxu0 %v5243
  %5336 = vmatpush1.bf16.msra.mxu0 %v5242
  %5337 = vmatprep.subr.bf16.mxu0 %v5247
  %5338 = vmatpush1.bf16.msra.mxu0 %v5246
  %5339 = vmatprep.subr.bf16.mxu0 0
  %5340 = vmatpush1.bf16.msra.mxu0 0
  %5341 = vmatprep.subr.bf16.mxu0 0
  %5342 = vmatpush1.bf16.msra.mxu0 0
  %5343 = vmatprep.subr.bf16.mxu0 0
  %5344 = vmatpush1.bf16.msra.mxu0 0
  %5345 = vmatprep.subr.bf16.mxu0 0
  %5346 = vmatpush1.bf16.msra.mxu0 0
  %5347 = vmatprep.subr.bf16.mxu0 0
  %5348 = vmatpush1.bf16.msra.mxu0 0
  %5349 = vmatprep.subr.bf16.mxu0 0
  %5350 = vmatpush1.bf16.msra.mxu0 0
  %5351 = vmatprep.subr.bf16.mxu0 0
  %5352 = vmatpush1.bf16.msra.mxu0 0
  %5353 = vmatprep.subr.bf16.mxu0 0
  %5354 = vmatpush1.bf16.msra.mxu0 0
  %5355 = vmatprep.mubr.bf16.mxu0 0
  %5356 = vmatmul.mubr.bf16.gmra.mrb[0].mxu0 %v5087
  %v5357 = vpop.f32.mrb[0].mxu0
  %v5358 = vadd.f32 0.0, %v5357
  %v5359 = vpop.f32.mrb[0].mxu0
  %v5360 = vadd.f32 0.0, %v5359
  %v5361 = vpop.f32.mrb[0].mxu0
  %v5362 = vadd.f32 0.0, %v5361
  %v5363 = vpop.f32.mrb[0].mxu0
  %v5364 = vadd.f32 0.0, %v5363
  %5365 = vdwg.mxu0
  %v5366 = vadd.f32 %v5077, %v5315
  %v5367 = vadd.f32 %v5078, %v5317
  %v5368 = vadd.f32 %v5079, %v5358
  %v5369 = vadd.f32 %v5080, %v5360
  %v5370 = vadd.f32 %v5081, %v5319
  %v5371 = vadd.f32 %v5082, %v5321
  %v5372 = vadd.f32 %v5083, %v5362
  %v5373 = vadd.f32 %v5084, %v5364
  %v5374 = vxor.u32 %v5366, 2147483648
  %v5375 = vxor.u32 %v5367, 2147483648
  %v5376 = vxor.u32 %v5368, 2147483648
  %v5377 = vxor.u32 %v5370, 2147483648
  %v5378 = vxor.u32 %v5371, 2147483648
  %v5379 = vxor.u32 %v5372, 2147483648
  %v5380 = vmul.f32 %v5374, 1.442695
  %v5381 = vpow.pop %v5380
  %v5382 = vmul.f32 %v5375, 1.442695
  %v5383 = vpow.pop %v5382
  %v5384 = vmul.f32 %v5376, 1.442695
  %v5385 = vpow.pop %v5384
  %v5386 = vmul.f32 %v5377, 1.442695
  %v5387 = vpow.pop %v5386
  %v5388 = vmul.f32 %v5378, 1.442695
  %v5389 = vpow.pop %v5388
  %v5390 = vmul.f32 %v5379, 1.442695
  %v5391 = vpow.pop %v5390
  %v5392 = vadd.f32 %v5381, 1.0
  %v5393 = vadd.f32 %v5383, 1.0
  %v5394 = vadd.f32 %v5385, 1.0
  %v5395 = vadd.f32 %v5387, 1.0
  %v5396 = vadd.f32 %v5389, 1.0
  %v5397 = vadd.f32 %v5391, 1.0
  %v5398 = vrcp.pop %v5392
  %v5399 = vmul.f32 1.0, %v5398
  %v5400 = vrcp.pop %v5393
  %v5401 = vmul.f32 1.0, %v5400
  %v5402 = vrcp.pop %v5394
  %v5403 = vmul.f32 1.0, %v5402
  %v5404 = vrcp.pop %v5395
  %v5405 = vmul.f32 1.0, %v5404
  %v5406 = vrcp.pop %v5396
  %v5407 = vmul.f32 1.0, %v5406
  %v5408 = vrcp.pop %v5397
  %v5409 = vmul.f32 1.0, %v5408
  %v5410 = vtanh.pop %v5369
  %v5411 = vtanh.pop %v5373
  %v5412 = vld [vmem:[#allocation5] sm:$0xff]
  %v5413 = vld [vmem:[#allocation5 + $0x8] sm:$0xff]
  %v5414 = vmul.f32 %v5401, %v5412
  %v5415 = vmul.f32 %v5407, %v5413
  %v5416 = vmul.f32 %v5399, %v5410
  %v5417 = vmul.f32 %v5405, %v5411
  %v5418 = vadd.f32 %v5414, %v5416
  %v5419 = vadd.f32 %v5415, %v5417
  %v5420 = vtanh.pop %v5418
  %v5421 = vtanh.pop %v5419
  %v5422 = vmul.f32 %v5403, %v5420
  %v5423 = vmul.f32 %v5409, %v5421
  %5424 = vst [vmem:[#allocation5] sm:$0xff] %v5418
  %5425 = vst [vmem:[#allocation5 + $0x8] sm:$0xff] %v5419
  %5426 = vst [vmem:[#allocation4] sm:$0xff] %v5422
  %5427 = vst [vmem:[#allocation4 + $0x8] sm:$0xff] %v5423
  %v5428 = vld [vmem:[%s2050] sm:$0xff]
  %v5429 = vld [vmem:[%s2050 + $0x8] sm:$0xff]
  %v5430 = vld [vmem:[%s2050 + $0x10] sm:$0xff]
  %v5431 = vld [vmem:[%s2050 + $0x18] sm:$0xff]
  %v5432 = vunpack.c.l.bf16 %v5428
  %v5433 = vunpack.c.l.bf16 %v5429
  %v5434 = vunpack.c.l.bf16 %v5430
  %v5435 = vunpack.c.l.bf16 %v5431
  %v5436 = vunpack.c.h.bf16 %v5428
  %v5437 = vunpack.c.h.bf16 %v5429
  %v5438 = vunpack.c.h.bf16 %v5430
  %v5439 = vunpack.c.h.bf16 %v5431
  %v5440 = vld [vmem:[#allocation4] sm:$0xff]
  %v5441 = vld [vmem:[#allocation4 + $0x8] sm:$0xff]
  %v5442 = vpack.c.bf16 %v5441, %v5440
  %v5443 = vld [vmem:[%s5] sm:$0xff]
  %v5444 = vld [vmem:[%s5 + $0x8] sm:$0xff]
  %v5445 = vld [vmem:[%s5 + $0x10] sm:$0xff]
  %v5446 = vld [vmem:[%s5 + $0x18] sm:$0xff]
  %v5447 = vld [vmem:[%s5 + $0x20] sm:$0xff]
  %v5448 = vld [vmem:[%s5 + $0x28] sm:$0xff]
  %v5449 = vld [vmem:[%s5 + $0x30] sm:$0xff]
  %v5450 = vld [vmem:[%s5 + $0x38] sm:$0xff]
  %v5451 = vld [vmem:[%s5 + $0x40] sm:$0xff]
  %v5452 = vld [vmem:[%s5 + $0x48] sm:$0xff]
  %v5453 = vld [vmem:[%s5 + $0x50] sm:$0xff]
  %v5454 = vld [vmem:[%s5 + $0x58] sm:$0xff]
  %v5455 = vld [vmem:[%s5 + $0x60] sm:$0xff]
  %v5456 = vld [vmem:[%s5 + $0x68] sm:$0xff]
  %v5457 = vld [vmem:[%s5 + $0x70] sm:$0xff]
  %v5458 = vld [vmem:[%s5 + $0x78] sm:$0xff]
  %v5459 = vld [vmem:[%s5 + $0x80] sm:$0xff]
  %v5460 = vld [vmem:[%s5 + $0x88] sm:$0xff]
  %v5461 = vld [vmem:[%s5 + $0x90] sm:$0xff]
  %v5462 = vld [vmem:[%s5 + $0x98] sm:$0xff]
  %v5463 = vld [vmem:[%s5 + $0xa0] sm:$0xff]
  %v5464 = vld [vmem:[%s5 + $0xa8] sm:$0xff]
  %v5465 = vld [vmem:[%s5 + $0xb0] sm:$0xff]
  %v5466 = vld [vmem:[%s5 + $0xb8] sm:$0xff]
  %v5467 = vld [vmem:[%s5 + $0xc0] sm:$0xff]
  %v5468 = vld [vmem:[%s5 + $0xc8] sm:$0xff]
  %v5469 = vld [vmem:[%s5 + $0xd0] sm:$0xff]
  %v5470 = vld [vmem:[%s5 + $0xd8] sm:$0xff]
  %v5471 = vld [vmem:[%s5 + $0xe0] sm:$0xff]
  %v5472 = vld [vmem:[%s5 + $0xe8] sm:$0xff]
  %v5473 = vld [vmem:[%s5 + $0xf0] sm:$0xff]
  %v5474 = vld [vmem:[%s5 + $0xf8] sm:$0xff]
  %v5507 = vunpack.c.l.b16 %v5443
  %v5508 = vunpack.c.h.b16 %v5443
  %v5509 = vunpack.c.l.b16 %v5444
  %v5510 = vunpack.c.h.b16 %v5444
  %v5511 = vunpack.c.l.b16 %v5445
  %v5512 = vunpack.c.h.b16 %v5445
  %v5513 = vunpack.c.l.b16 %v5446
  %v5514 = vunpack.c.h.b16 %v5446
  %v5515 = vunpack.c.l.b16 %v5447
  %v5516 = vunpack.c.h.b16 %v5447
  %v5517 = vunpack.c.l.b16 %v5448
  %v5518 = vunpack.c.h.b16 %v5448
  %v5519 = vunpack.c.l.b16 %v5449
  %v5520 = vunpack.c.h.b16 %v5449
  %v5521 = vunpack.c.l.b16 %v5450
  %v5522 = vunpack.c.h.b16 %v5450
  %v5523 = vunpack.c.l.b16 %v5451
  %v5524 = vunpack.c.h.b16 %v5451
  %v5525 = vunpack.c.l.b16 %v5452
  %v5526 = vunpack.c.h.b16 %v5452
  %v5527 = vunpack.c.l.b16 %v5453
  %v5528 = vunpack.c.h.b16 %v5453
  %v5529 = vunpack.c.l.b16 %v5454
  %v5530 = vunpack.c.h.b16 %v5454
  %v5531 = vunpack.c.l.b16 %v5455
  %v5532 = vunpack.c.h.b16 %v5455
  %v5533 = vunpack.c.l.b16 %v5456
  %v5534 = vunpack.c.h.b16 %v5456
  %v5535 = vunpack.c.l.b16 %v5457
  %v5536 = vunpack.c.h.b16 %v5457
  %v5537 = vunpack.c.l.b16 %v5458
  %v5538 = vunpack.c.h.b16 %v5458
  %v5539 = vunpack.c.l.b16 %v5459
  %v5540 = vunpack.c.h.b16 %v5459
  %v5541 = vunpack.c.l.b16 %v5460
  %v5542 = vunpack.c.h.b16 %v5460
  %v5543 = vunpack.c.l.b16 %v5461
  %v5544 = vunpack.c.h.b16 %v5461
  %v5545 = vunpack.c.l.b16 %v5462
  %v5546 = vunpack.c.h.b16 %v5462
  %v5547 = vunpack.c.l.b16 %v5463
  %v5548 = vunpack.c.h.b16 %v5463
  %v5549 = vunpack.c.l.b16 %v5464
  %v5550 = vunpack.c.h.b16 %v5464
  %v5551 = vunpack.c.l.b16 %v5465
  %v5552 = vunpack.c.h.b16 %v5465
  %v5553 = vunpack.c.l.b16 %v5466
  %v5554 = vunpack.c.h.b16 %v5466
  %v5555 = vunpack.c.l.b16 %v5467
  %v5556 = vunpack.c.h.b16 %v5467
  %v5557 = vunpack.c.l.b16 %v5468
  %v5558 = vunpack.c.h.b16 %v5468
  %v5559 = vunpack.c.l.b16 %v5469
  %v5560 = vunpack.c.h.b16 %v5469
  %v5561 = vunpack.c.l.b16 %v5470
  %v5562 = vunpack.c.h.b16 %v5470
  %v5563 = vunpack.c.l.b16 %v5471
  %v5564 = vunpack.c.h.b16 %v5471
  %v5565 = vunpack.c.l.b16 %v5472
  %v5566 = vunpack.c.h.b16 %v5472
  %v5567 = vunpack.c.l.b16 %v5473
  %v5568 = vunpack.c.h.b16 %v5473
  %v5569 = vunpack.c.l.b16 %v5474
  %v5570 = vunpack.c.h.b16 %v5474
  %v5571 = vpack.c.b16 %v5511, %v5507
  %v5572 = vpack.c.b16 %v5512, %v5508
  %v5573 = vpack.c.b16 %v5513, %v5509
  %v5574 = vpack.c.b16 %v5514, %v5510
  %v5575 = vpack.c.b16 %v5519, %v5515
  %v5576 = vpack.c.b16 %v5520, %v5516
  %v5577 = vpack.c.b16 %v5521, %v5517
  %v5578 = vpack.c.b16 %v5522, %v5518
  %v5579 = vpack.c.b16 %v5527, %v5523
  %v5580 = vpack.c.b16 %v5528, %v5524
  %v5581 = vpack.c.b16 %v5529, %v5525
  %v5582 = vpack.c.b16 %v5530, %v5526
  %v5583 = vpack.c.b16 %v5535, %v5531
  %v5584 = vpack.c.b16 %v5536, %v5532
  %v5585 = vpack.c.b16 %v5537, %v5533
  %v5586 = vpack.c.b16 %v5538, %v5534
  %v5587 = vpack.c.b16 %v5543, %v5539
  %v5588 = vpack.c.b16 %v5544, %v5540
  %v5589 = vpack.c.b16 %v5545, %v5541
  %v5590 = vpack.c.b16 %v5546, %v5542
  %v5591 = vpack.c.b16 %v5551, %v5547
  %v5592 = vpack.c.b16 %v5552, %v5548
  %v5593 = vpack.c.b16 %v5553, %v5549
  %v5594 = vpack.c.b16 %v5554, %v5550
  %v5595 = vpack.c.b16 %v5559, %v5555
  %v5596 = vpack.c.b16 %v5560, %v5556
  %v5597 = vpack.c.b16 %v5561, %v5557
  %v5598 = vpack.c.b16 %v5562, %v5558
  %v5599 = vpack.c.b16 %v5567, %v5563
  %v5600 = vpack.c.b16 %v5568, %v5564
  %v5601 = vpack.c.b16 %v5569, %v5565
  %v5602 = vpack.c.b16 %v5570, %v5566
  %5635 = vmatprep.subr.bf16.mxu0 %v5572
  %5636 = vmatpush1.bf16.msra.mxu0 %v5571
  %5637 = vmatprep.subr.bf16.mxu0 %v5576
  %5638 = vmatpush1.bf16.msra.mxu0 %v5575
  %5639 = vmatprep.subr.bf16.mxu0 %v5580
  %5640 = vmatpush1.bf16.msra.mxu0 %v5579
  %5641 = vmatprep.subr.bf16.mxu0 %v5584
  %5642 = vmatpush1.bf16.msra.mxu0 %v5583
  %5643 = vmatprep.subr.bf16.mxu0 %v5588
  %5644 = vmatpush1.bf16.msra.mxu0 %v5587
  %5645 = vmatprep.subr.bf16.mxu0 %v5592
  %5646 = vmatpush1.bf16.msra.mxu0 %v5591
  %5647 = vmatprep.subr.bf16.mxu0 %v5596
  %5648 = vmatpush1.bf16.msra.mxu0 %v5595
  %5649 = vmatprep.subr.bf16.mxu0 %v5600
  %5650 = vmatpush1.bf16.msra.mxu0 %v5599
  %5651 = vmatprep.subr.bf16.mxu0 0
  %5652 = vmatpush1.bf16.msra.mxu0 0
  %5653 = vmatprep.subr.bf16.mxu0 0
  %5654 = vmatpush1.bf16.msra.mxu0 0
  %5655 = vmatprep.subr.bf16.mxu0 0
  %5656 = vmatpush1.bf16.msra.mxu0 0
  %5657 = vmatprep.subr.bf16.mxu0 0
  %5658 = vmatpush1.bf16.msra.mxu0 0
  %5659 = vmatprep.subr.bf16.mxu0 0
  %5660 = vmatpush1.bf16.msra.mxu0 0
  %5661 = vmatprep.subr.bf16.mxu0 0
  %5662 = vmatpush1.bf16.msra.mxu0 0
  %5663 = vmatprep.subr.bf16.mxu0 0
  %5664 = vmatpush1.bf16.msra.mxu0 0
  %5665 = vmatprep.subr.bf16.mxu0 0
  %5666 = vmatpush1.bf16.msra.mxu0 0
  %5667 = vmatprep.mubr.bf16.mxu0 0
  %5668 = vmatmul.mubr.bf16.gmra.mrb[0].mxu0 %v5442
  %v5669 = vpop.f32.mrb[0].mxu0
  %v5670 = vadd.f32 0.0, %v5669
  %v5671 = vpop.f32.mrb[0].mxu0
  %v5672 = vadd.f32 0.0, %v5671
  %v5673 = vpop.f32.mrb[0].mxu0
  %v5674 = vadd.f32 0.0, %v5673
  %v5675 = vpop.f32.mrb[0].mxu0
  %v5676 = vadd.f32 0.0, %v5675
  %5677 = vdwg.mxu0
  %5678 = vmatprep.subr.bf16.mxu0 %v5574
  %5679 = vmatpush1.bf16.msra.mxu0 %v5573
  %5680 = vmatprep.subr.bf16.mxu0 %v5578
  %5681 = vmatpush1.bf16.msra.mxu0 %v5577
  %5682 = vmatprep.subr.bf16.mxu0 %v5582
  %5683 = vmatpush1.bf16.msra.mxu0 %v5581
  %5684 = vmatprep.subr.bf16.mxu0 %v5586
  %5685 = vmatpush1.bf16.msra.mxu0 %v5585
  %5686 = vmatprep.subr.bf16.mxu0 %v5590
  %5687 = vmatpush1.bf16.msra.mxu0 %v5589
  %5688 = vmatprep.subr.bf16.mxu0 %v5594
  %5689 = vmatpush1.bf16.msra.mxu0 %v5593
  %5690 = vmatprep.subr.bf16.mxu0 %v5598
  %5691 = vmatpush1.bf16.msra.mxu0 %v5597
  %5692 = vmatprep.subr.bf16.mxu0 %v5602
  %5693 = vmatpush1.bf16.msra.mxu0 %v5601
  %5694 = vmatprep.subr.bf16.mxu0 0
  %5695 = vmatpush1.bf16.msra.mxu0 0
  %5696 = vmatprep.subr.bf16.mxu0 0
  %5697 = vmatpush1.bf16.msra.mxu0 0
  %5698 = vmatprep.subr.bf16.mxu0 0
  %5699 = vmatpush1.bf16.msra.mxu0 0
  %5700 = vmatprep.subr.bf16.mxu0 0
  %5701 = vmatpush1.bf16.msra.mxu0 0
  %5702 = vmatprep.subr.bf16.mxu0 0
  %5703 = vmatpush1.bf16.msra.mxu0 0
  %5704 = vmatprep.subr.bf16.mxu0 0
  %5705 = vmatpush1.bf16.msra.mxu0 0
  %5706 = vmatprep.subr.bf16.mxu0 0
  %5707 = vmatpush1.bf16.msra.mxu0 0
  %5708 = vmatprep.subr.bf16.mxu0 0
  %5709 = vmatpush1.bf16.msra.mxu0 0
  %5710 = vmatprep.mubr.bf16.mxu0 0
  %5711 = vmatmul.mubr.bf16.gmra.mrb[0].mxu0 %v5442
  %v5712 = vpop.f32.mrb[0].mxu0
  %v5713 = vadd.f32 0.0, %v5712
  %v5714 = vpop.f32.mrb[0].mxu0
  %v5715 = vadd.f32 0.0, %v5714
  %v5716 = vpop.f32.mrb[0].mxu0
  %v5717 = vadd.f32 0.0, %v5716
  %v5718 = vpop.f32.mrb[0].mxu0
  %v5719 = vadd.f32 0.0, %v5718
  %5720 = vdwg.mxu0
  %v5721 = vadd.f32 %v5432, %v5670
  %v5722 = vadd.f32 %v5433, %v5672
  %v5723 = vadd.f32 %v5434, %v5713
  %v5724 = vadd.f32 %v5435, %v5715
  %v5725 = vadd.f32 %v5436, %v5674
  %v5726 = vadd.f32 %v5437, %v5676
  %v5727 = vadd.f32 %v5438, %v5717
  %v5728 = vadd.f32 %v5439, %v5719
  %v5729 = vxor.u32 %v5721, 2147483648
  %v5730 = vxor.u32 %v5722, 2147483648
  %v5731 = vxor.u32 %v5723, 2147483648
  %v5732 = vxor.u32 %v5725, 2147483648
  %v5733 = vxor.u32 %v5726, 2147483648
  %v5734 = vxor.u32 %v5727, 2147483648
  %v5735 = vmul.f32 %v5729, 1.442695
  %v5736 = vpow.pop %v5735
  %v5737 = vmul.f32 %v5730, 1.442695
  %v5738 = vpow.pop %v5737
  %v5739 = vmul.f32 %v5731, 1.442695
  %v5740 = vpow.pop %v5739
  %v5741 = vmul.f32 %v5732, 1.442695
  %v5742 = vpow.pop %v5741
  %v5743 = vmul.f32 %v5733, 1.442695
  %v5744 = vpow.pop %v5743
  %v5745 = vmul.f32 %v5734, 1.442695
  %v5746 = vpow.pop %v5745
  %v5747 = vadd.f32 %v5736, 1.0
  %v5748 = vadd.f32 %v5738, 1.0
  %v5749 = vadd.f32 %v5740, 1.0
  %v5750 = vadd.f32 %v5742, 1.0
  %v5751 = vadd.f32 %v5744, 1.0
  %v5752 = vadd.f32 %v5746, 1.0
  %v5753 = vrcp.pop %v5747
  %v5754 = vmul.f32 1.0, %v5753
  %v5755 = vrcp.pop %v5748
  %v5756 = vmul.f32 1.0, %v5755
  %v5757 = vrcp.pop %v5749
  %v5758 = vmul.f32 1.0, %v5757
  %v5759 = vrcp.pop %v5750
  %v5760 = vmul.f32 1.0, %v5759
  %v5761 = vrcp.pop %v5751
  %v5762 = vmul.f32 1.0, %v5761
  %v5763 = vrcp.pop %v5752
  %v5764 = vmul.f32 1.0, %v5763
  %v5765 = vtanh.pop %v5724
  %v5766 = vtanh.pop %v5728
  %v5767 = vld [vmem:[#allocation5] sm:$0xff]
  %v5768 = vld [vmem:[#allocation5 + $0x8] sm:$0xff]
  %v5769 = vmul.f32 %v5756, %v5767
  %v5770 = vmul.f32 %v5762, %v5768
  %v5771 = vmul.f32 %v5754, %v5765
  %v5772 = vmul.f32 %v5760, %v5766
  %v5773 = vadd.f32 %v5769, %v5771
  %v5774 = vadd.f32 %v5770, %v5772
  %v5775 = vtanh.pop %v5773
  %v5776 = vtanh.pop %v5774
  %v5777 = vmul.f32 %v5758, %v5775
  %v5778 = vmul.f32 %v5764, %v5776
  %5779 = vst [vmem:[#allocation5] sm:$0xff] %v5773
  %5780 = vst [vmem:[#allocation5 + $0x8] sm:$0xff] %v5774
  %5781 = vst [vmem:[#allocation4] sm:$0xff] %v5777
  %5782 = vst [vmem:[#allocation4 + $0x8] sm:$0xff] %v5778
  %v5783 = vld [vmem:[%s2411] sm:$0xff]
  %v5784 = vld [vmem:[%s2411 + $0x8] sm:$0xff]
  %v5785 = vld [vmem:[%s2411 + $0x10] sm:$0xff]
  %v5786 = vld [vmem:[%s2411 + $0x18] sm:$0xff]
  %v5787 = vunpack.c.l.bf16 %v5783
  %v5788 = vunpack.c.l.bf16 %v5784
  %v5789 = vunpack.c.l.bf16 %v5785
  %v5790 = vunpack.c.l.bf16 %v5786
  %v5791 = vunpack.c.h.bf16 %v5783
  %v5792 = vunpack.c.h.bf16 %v5784
  %v5793 = vunpack.c.h.bf16 %v5785
  %v5794 = vunpack.c.h.bf16 %v5786
  %v5795 = vld [vmem:[#allocation4] sm:$0xff]
  %v5796 = vld [vmem:[#allocation4 + $0x8] sm:$0xff]
  %v5797 = vpack.c.bf16 %v5796, %v5795
  %v5798 = vld [vmem:[%s5] sm:$0xff]
  %v5799 = vld [vmem:[%s5 + $0x8] sm:$0xff]
  %v5800 = vld [vmem:[%s5 + $0x10] sm:$0xff]
  %v5801 = vld [vmem:[%s5 + $0x18] sm:$0xff]
  %v5802 = vld [vmem:[%s5 + $0x20] sm:$0xff]
  %v5803 = vld [vmem:[%s5 + $0x28] sm:$0xff]
  %v5804 = vld [vmem:[%s5 + $0x30] sm:$0xff]
  %v5805 = vld [vmem:[%s5 + $0x38] sm:$0xff]
  %v5806 = vld [vmem:[%s5 + $0x40] sm:$0xff]
  %v5807 = vld [vmem:[%s5 + $0x48] sm:$0xff]
  %v5808 = vld [vmem:[%s5 + $0x50] sm:$0xff]
  %v5809 = vld [vmem:[%s5 + $0x58] sm:$0xff]
  %v5810 = vld [vmem:[%s5 + $0x60] sm:$0xff]
  %v5811 = vld [vmem:[%s5 + $0x68] sm:$0xff]
  %v5812 = vld [vmem:[%s5 + $0x70] sm:$0xff]
  %v5813 = vld [vmem:[%s5 + $0x78] sm:$0xff]
  %v5814 = vld [vmem:[%s5 + $0x80] sm:$0xff]
  %v5815 = vld [vmem:[%s5 + $0x88] sm:$0xff]
  %v5816 = vld [vmem:[%s5 + $0x90] sm:$0xff]
  %v5817 = vld [vmem:[%s5 + $0x98] sm:$0xff]
  %v5818 = vld [vmem:[%s5 + $0xa0] sm:$0xff]
  %v5819 = vld [vmem:[%s5 + $0xa8] sm:$0xff]
  %v5820 = vld [vmem:[%s5 + $0xb0] sm:$0xff]
  %v5821 = vld [vmem:[%s5 + $0xb8] sm:$0xff]
  %v5822 = vld [vmem:[%s5 + $0xc0] sm:$0xff]
  %v5823 = vld [vmem:[%s5 + $0xc8] sm:$0xff]
  %v5824 = vld [vmem:[%s5 + $0xd0] sm:$0xff]
  %v5825 = vld [vmem:[%s5 + $0xd8] sm:$0xff]
  %v5826 = vld [vmem:[%s5 + $0xe0] sm:$0xff]
  %v5827 = vld [vmem:[%s5 + $0xe8] sm:$0xff]
  %v5828 = vld [vmem:[%s5 + $0xf0] sm:$0xff]
  %v5829 = vld [vmem:[%s5 + $0xf8] sm:$0xff]
  %v5862 = vunpack.c.l.b16 %v5798
  %v5863 = vunpack.c.h.b16 %v5798
  %v5864 = vunpack.c.l.b16 %v5799
  %v5865 = vunpack.c.h.b16 %v5799
  %v5866 = vunpack.c.l.b16 %v5800
  %v5867 = vunpack.c.h.b16 %v5800
  %v5868 = vunpack.c.l.b16 %v5801
  %v5869 = vunpack.c.h.b16 %v5801
  %v5870 = vunpack.c.l.b16 %v5802
  %v5871 = vunpack.c.h.b16 %v5802
  %v5872 = vunpack.c.l.b16 %v5803
  %v5873 = vunpack.c.h.b16 %v5803
  %v5874 = vunpack.c.l.b16 %v5804
  %v5875 = vunpack.c.h.b16 %v5804
  %v5876 = vunpack.c.l.b16 %v5805
  %v5877 = vunpack.c.h.b16 %v5805
  %v5878 = vunpack.c.l.b16 %v5806
  %v5879 = vunpack.c.h.b16 %v5806
  %v5880 = vunpack.c.l.b16 %v5807
  %v5881 = vunpack.c.h.b16 %v5807
  %v5882 = vunpack.c.l.b16 %v5808
  %v5883 = vunpack.c.h.b16 %v5808
  %v5884 = vunpack.c.l.b16 %v5809
  %v5885 = vunpack.c.h.b16 %v5809
  %v5886 = vunpack.c.l.b16 %v5810
  %v5887 = vunpack.c.h.b16 %v5810
  %v5888 = vunpack.c.l.b16 %v5811
  %v5889 = vunpack.c.h.b16 %v5811
  %v5890 = vunpack.c.l.b16 %v5812
  %v5891 = vunpack.c.h.b16 %v5812
  %v5892 = vunpack.c.l.b16 %v5813
  %v5893 = vunpack.c.h.b16 %v5813
  %v5894 = vunpack.c.l.b16 %v5814
  %v5895 = vunpack.c.h.b16 %v5814
  %v5896 = vunpack.c.l.b16 %v5815
  %v5897 = vunpack.c.h.b16 %v5815
  %v5898 = vunpack.c.l.b16 %v5816
  %v5899 = vunpack.c.h.b16 %v5816
  %v5900 = vunpack.c.l.b16 %v5817
  %v5901 = vunpack.c.h.b16 %v5817
  %v5902 = vunpack.c.l.b16 %v5818
  %v5903 = vunpack.c.h.b16 %v5818
  %v5904 = vunpack.c.l.b16 %v5819
  %v5905 = vunpack.c.h.b16 %v5819
  %v5906 = vunpack.c.l.b16 %v5820
  %v5907 = vunpack.c.h.b16 %v5820
  %v5908 = vunpack.c.l.b16 %v5821
  %v5909 = vunpack.c.h.b16 %v5821
  %v5910 = vunpack.c.l.b16 %v5822
  %v5911 = vunpack.c.h.b16 %v5822
  %v5912 = vunpack.c.l.b16 %v5823
  %v5913 = vunpack.c.h.b16 %v5823
  %v5914 = vunpack.c.l.b16 %v5824
  %v5915 = vunpack.c.h.b16 %v5824
  %v5916 = vunpack.c.l.b16 %v5825
  %v5917 = vunpack.c.h.b16 %v5825
  %v5918 = vunpack.c.l.b16 %v5826
  %v5919 = vunpack.c.h.b16 %v5826
  %v5920 = vunpack.c.l.b16 %v5827
  %v5921 = vunpack.c.h.b16 %v5827
  %v5922 = vunpack.c.l.b16 %v5828
  %v5923 = vunpack.c.h.b16 %v5828
  %v5924 = vunpack.c.l.b16 %v5829
  %v5925 = vunpack.c.h.b16 %v5829
  %v5926 = vpack.c.b16 %v5866, %v5862
  %v5927 = vpack.c.b16 %v5867, %v5863
  %v5928 = vpack.c.b16 %v5868, %v5864
  %v5929 = vpack.c.b16 %v5869, %v5865
  %v5930 = vpack.c.b16 %v5874, %v5870
  %v5931 = vpack.c.b16 %v5875, %v5871
  %v5932 = vpack.c.b16 %v5876, %v5872
  %v5933 = vpack.c.b16 %v5877, %v5873
  %v5934 = vpack.c.b16 %v5882, %v5878
  %v5935 = vpack.c.b16 %v5883, %v5879
  %v5936 = vpack.c.b16 %v5884, %v5880
  %v5937 = vpack.c.b16 %v5885, %v5881
  %v5938 = vpack.c.b16 %v5890, %v5886
  %v5939 = vpack.c.b16 %v5891, %v5887
  %v5940 = vpack.c.b16 %v5892, %v5888
  %v5941 = vpack.c.b16 %v5893, %v5889
  %v5942 = vpack.c.b16 %v5898, %v5894
  %v5943 = vpack.c.b16 %v5899, %v5895
  %v5944 = vpack.c.b16 %v5900, %v5896
  %v5945 = vpack.c.b16 %v5901, %v5897
  %v5946 = vpack.c.b16 %v5906, %v5902
  %v5947 = vpack.c.b16 %v5907, %v5903
  %v5948 = vpack.c.b16 %v5908, %v5904
  %v5949 = vpack.c.b16 %v5909, %v5905
  %v5950 = vpack.c.b16 %v5914, %v5910
  %v5951 = vpack.c.b16 %v5915, %v5911
  %v5952 = vpack.c.b16 %v5916, %v5912
  %v5953 = vpack.c.b16 %v5917, %v5913
  %v5954 = vpack.c.b16 %v5922, %v5918
  %v5955 = vpack.c.b16 %v5923, %v5919
  %v5956 = vpack.c.b16 %v5924, %v5920
  %v5957 = vpack.c.b16 %v5925, %v5921
  %5990 = vmatprep.subr.bf16.mxu0 %v5927
  %5991 = vmatpush1.bf16.msra.mxu0 %v5926
  %5992 = vmatprep.subr.bf16.mxu0 %v5931
  %5993 = vmatpush1.bf16.msra.mxu0 %v5930
  %5994 = vmatprep.subr.bf16.mxu0 %v5935
  %5995 = vmatpush1.bf16.msra.mxu0 %v5934
  %5996 = vmatprep.subr.bf16.mxu0 %v5939
  %5997 = vmatpush1.bf16.msra.mxu0 %v5938
  %5998 = vmatprep.subr.bf16.mxu0 %v5943
  %5999 = vmatpush1.bf16.msra.mxu0 %v5942
  %6000 = vmatprep.subr.bf16.mxu0 %v5947
  %6001 = vmatpush1.bf16.msra.mxu0 %v5946
  %6002 = vmatprep.subr.bf16.mxu0 %v5951
  %6003 = vmatpush1.bf16.msra.mxu0 %v5950
  %6004 = vmatprep.subr.bf16.mxu0 %v5955
  %6005 = vmatpush1.bf16.msra.mxu0 %v5954
  %6006 = vmatprep.subr.bf16.mxu0 0
  %6007 = vmatpush1.bf16.msra.mxu0 0
  %6008 = vmatprep.subr.bf16.mxu0 0
  %6009 = vmatpush1.bf16.msra.mxu0 0
  %6010 = vmatprep.subr.bf16.mxu0 0
  %6011 = vmatpush1.bf16.msra.mxu0 0
  %6012 = vmatprep.subr.bf16.mxu0 0
  %6013 = vmatpush1.bf16.msra.mxu0 0
  %6014 = vmatprep.subr.bf16.mxu0 0
  %6015 = vmatpush1.bf16.msra.mxu0 0
  %6016 = vmatprep.subr.bf16.mxu0 0
  %6017 = vmatpush1.bf16.msra.mxu0 0
  %6018 = vmatprep.subr.bf16.mxu0 0
  %6019 = vmatpush1.bf16.msra.mxu0 0
  %6020 = vmatprep.subr.bf16.mxu0 0
  %6021 = vmatpush1.bf16.msra.mxu0 0
  %6022 = vmatprep.mubr.bf16.mxu0 0
  %6023 = vmatmul.mubr.bf16.gmra.mrb[0].mxu0 %v5797
  %v6024 = vpop.f32.mrb[0].mxu0
  %v6025 = vadd.f32 0.0, %v6024
  %v6026 = vpop.f32.mrb[0].mxu0
  %v6027 = vadd.f32 0.0, %v6026
  %v6028 = vpop.f32.mrb[0].mxu0
  %v6029 = vadd.f32 0.0, %v6028
  %v6030 = vpop.f32.mrb[0].mxu0
  %v6031 = vadd.f32 0.0, %v6030
  %6032 = vdwg.mxu0
  %6033 = vmatprep.subr.bf16.mxu0 %v5929
  %6034 = vmatpush1.bf16.msra.mxu0 %v5928
  %6035 = vmatprep.subr.bf16.mxu0 %v5933
  %6036 = vmatpush1.bf16.msra.mxu0 %v5932
  %6037 = vmatprep.subr.bf16.mxu0 %v5937
  %6038 = vmatpush1.bf16.msra.mxu0 %v5936
  %6039 = vmatprep.subr.bf16.mxu0 %v5941
  %6040 = vmatpush1.bf16.msra.mxu0 %v5940
  %6041 = vmatprep.subr.bf16.mxu0 %v5945
  %6042 = vmatpush1.bf16.msra.mxu0 %v5944
  %6043 = vmatprep.subr.bf16.mxu0 %v5949
  %6044 = vmatpush1.bf16.msra.mxu0 %v5948
  %6045 = vmatprep.subr.bf16.mxu0 %v5953
  %6046 = vmatpush1.bf16.msra.mxu0 %v5952
  %6047 = vmatprep.subr.bf16.mxu0 %v5957
  %6048 = vmatpush1.bf16.msra.mxu0 %v5956
  %6049 = vmatprep.subr.bf16.mxu0 0
  %6050 = vmatpush1.bf16.msra.mxu0 0
  %6051 = vmatprep.subr.bf16.mxu0 0
  %6052 = vmatpush1.bf16.msra.mxu0 0
  %6053 = vmatprep.subr.bf16.mxu0 0
  %6054 = vmatpush1.bf16.msra.mxu0 0
  %6055 = vmatprep.subr.bf16.mxu0 0
  %6056 = vmatpush1.bf16.msra.mxu0 0
  %6057 = vmatprep.subr.bf16.mxu0 0
  %6058 = vmatpush1.bf16.msra.mxu0 0
  %6059 = vmatprep.subr.bf16.mxu0 0
  %6060 = vmatpush1.bf16.msra.mxu0 0
  %6061 = vmatprep.subr.bf16.mxu0 0
  %6062 = vmatpush1.bf16.msra.mxu0 0
  %6063 = vmatprep.subr.bf16.mxu0 0
  %6064 = vmatpush1.bf16.msra.mxu0 0
  %6065 = vmatprep.mubr.bf16.mxu0 0
  %6066 = vmatmul.mubr.bf16.gmra.mrb[0].mxu0 %v5797
  %v6067 = vpop.f32.mrb[0].mxu0
  %v6068 = vadd.f32 0.0, %v6067
  %v6069 = vpop.f32.mrb[0].mxu0
  %v6070 = vadd.f32 0.0, %v6069
  %v6071 = vpop.f32.mrb[0].mxu0
  %v6072 = vadd.f32 0.0, %v6071
  %v6073 = vpop.f32.mrb[0].mxu0
  %v6074 = vadd.f32 0.0, %v6073
  %6075 = vdwg.mxu0
  %v6076 = vadd.f32 %v5787, %v6025
  %v6077 = vadd.f32 %v5788, %v6027
  %v6078 = vadd.f32 %v5789, %v6068
  %v6079 = vadd.f32 %v5790, %v6070
  %v6080 = vadd.f32 %v5791, %v6029
  %v6081 = vadd.f32 %v5792, %v6031
  %v6082 = vadd.f32 %v5793, %v6072
  %v6083 = vadd.f32 %v5794, %v6074
  %v6084 = vxor.u32 %v6076, 2147483648
  %v6085 = vxor.u32 %v6077, 2147483648
  %v6086 = vxor.u32 %v6078, 2147483648
  %v6087 = vxor.u32 %v6080, 2147483648
  %v6088 = vxor.u32 %v6081, 2147483648
  %v6089 = vxor.u32 %v6082, 2147483648
  %v6090 = vmul.f32 %v6084, 1.442695
  %v6091 = vpow.pop %v6090
  %v6092 = vmul.f32 %v6085, 1.442695
  %v6093 = vpow.pop %v6092
  %v6094 = vmul.f32 %v6086, 1.442695
  %v6095 = vpow.pop %v6094
  %v6096 = vmul.f32 %v6087, 1.442695
  %v6097 = vpow.pop %v6096
  %v6098 = vmul.f32 %v6088, 1.442695
  %v6099 = vpow.pop %v6098
  %v6100 = vmul.f32 %v6089, 1.442695
  %v6101 = vpow.pop %v6100
  %v6102 = vadd.f32 %v6091, 1.0
  %v6103 = vadd.f32 %v6093, 1.0
  %v6104 = vadd.f32 %v6095, 1.0
  %v6105 = vadd.f32 %v6097, 1.0
  %v6106 = vadd.f32 %v6099, 1.0
  %v6107 = vadd.f32 %v6101, 1.0
  %v6108 = vrcp.pop %v6102
  %v6109 = vmul.f32 1.0, %v6108
  %v6110 = vrcp.pop %v6103
  %v6111 = vmul.f32 1.0, %v6110
  %v6112 = vrcp.pop %v6104
  %v6113 = vmul.f32 1.0, %v6112
  %v6114 = vrcp.pop %v6105
  %v6115 = vmul.f32 1.0, %v6114
  %v6116 = vrcp.pop %v6106
  %v6117 = vmul.f32 1.0, %v6116
  %v6118 = vrcp.pop %v6107
  %v6119 = vmul.f32 1.0, %v6118
  %v6120 = vtanh.pop %v6079
  %v6121 = vtanh.pop %v6083
  %v6122 = vld [vmem:[#allocation5] sm:$0xff]
  %v6123 = vld [vmem:[#allocation5 + $0x8] sm:$0xff]
  %v6124 = vmul.f32 %v6111, %v6122
  %v6125 = vmul.f32 %v6117, %v6123
  %v6126 = vmul.f32 %v6109, %v6120
  %v6127 = vmul.f32 %v6115, %v6121
  %v6128 = vadd.f32 %v6124, %v6126
  %v6129 = vadd.f32 %v6125, %v6127
  %v6130 = vtanh.pop %v6128
  %v6131 = vtanh.pop %v6129
  %v6132 = vmul.f32 %v6113, %v6130
  %v6133 = vmul.f32 %v6119, %v6131
  %6134 = vst [vmem:[#allocation5] sm:$0xff] %v6128
  %6135 = vst [vmem:[#allocation5 + $0x8] sm:$0xff] %v6129
  %6136 = vst [vmem:[#allocation4] sm:$0xff] %v6132
  %6137 = vst [vmem:[#allocation4 + $0x8] sm:$0xff] %v6133
  %v6138 = vld [vmem:[%s2772] sm:$0xff]
  %v6139 = vld [vmem:[%s2772 + $0x8] sm:$0xff]
  %v6140 = vld [vmem:[%s2772 + $0x10] sm:$0xff]
  %v6141 = vld [vmem:[%s2772 + $0x18] sm:$0xff]
  %v6142 = vunpack.c.l.bf16 %v6138
  %v6143 = vunpack.c.l.bf16 %v6139
  %v6144 = vunpack.c.l.bf16 %v6140
  %v6145 = vunpack.c.l.bf16 %v6141
  %v6146 = vunpack.c.h.bf16 %v6138
  %v6147 = vunpack.c.h.bf16 %v6139
  %v6148 = vunpack.c.h.bf16 %v6140
  %v6149 = vunpack.c.h.bf16 %v6141
  %v6150 = vld [vmem:[#allocation4] sm:$0xff]
  %v6151 = vld [vmem:[#allocation4 + $0x8] sm:$0xff]
  %v6152 = vpack.c.bf16 %v6151, %v6150
  %v6153 = vld [vmem:[%s5] sm:$0xff]
  %v6154 = vld [vmem:[%s5 + $0x8] sm:$0xff]
  %v6155 = vld [vmem:[%s5 + $0x10] sm:$0xff]
  %v6156 = vld [vmem:[%s5 + $0x18] sm:$0xff]
  %v6157 = vld [vmem:[%s5 + $0x20] sm:$0xff]
  %v6158 = vld [vmem:[%s5 + $0x28] sm:$0xff]
  %v6159 = vld [vmem:[%s5 + $0x30] sm:$0xff]
  %v6160 = vld [vmem:[%s5 + $0x38] sm:$0xff]
  %v6161 = vld [vmem:[%s5 + $0x40] sm:$0xff]
  %v6162 = vld [vmem:[%s5 + $0x48] sm:$0xff]
  %v6163 = vld [vmem:[%s5 + $0x50] sm:$0xff]
  %v6164 = vld [vmem:[%s5 + $0x58] sm:$0xff]
  %v6165 = vld [vmem:[%s5 + $0x60] sm:$0xff]
  %v6166 = vld [vmem:[%s5 + $0x68] sm:$0xff]
  %v6167 = vld [vmem:[%s5 + $0x70] sm:$0xff]
  %v6168 = vld [vmem:[%s5 + $0x78] sm:$0xff]
  %v6169 = vld [vmem:[%s5 + $0x80] sm:$0xff]
  %v6170 = vld [vmem:[%s5 + $0x88] sm:$0xff]
  %v6171 = vld [vmem:[%s5 + $0x90] sm:$0xff]
  %v6172 = vld [vmem:[%s5 + $0x98] sm:$0xff]
  %v6173 = vld [vmem:[%s5 + $0xa0] sm:$0xff]
  %v6174 = vld [vmem:[%s5 + $0xa8] sm:$0xff]
  %v6175 = vld [vmem:[%s5 + $0xb0] sm:$0xff]
  %v6176 = vld [vmem:[%s5 + $0xb8] sm:$0xff]
  %v6177 = vld [vmem:[%s5 + $0xc0] sm:$0xff]
  %v6178 = vld [vmem:[%s5 + $0xc8] sm:$0xff]
  %v6179 = vld [vmem:[%s5 + $0xd0] sm:$0xff]
  %v6180 = vld [vmem:[%s5 + $0xd8] sm:$0xff]
  %v6181 = vld [vmem:[%s5 + $0xe0] sm:$0xff]
  %v6182 = vld [vmem:[%s5 + $0xe8] sm:$0xff]
  %v6183 = vld [vmem:[%s5 + $0xf0] sm:$0xff]
  %v6184 = vld [vmem:[%s5 + $0xf8] sm:$0xff]
  %v6217 = vunpack.c.l.b16 %v6153
  %v6218 = vunpack.c.h.b16 %v6153
  %v6219 = vunpack.c.l.b16 %v6154
  %v6220 = vunpack.c.h.b16 %v6154
  %v6221 = vunpack.c.l.b16 %v6155
  %v6222 = vunpack.c.h.b16 %v6155
  %v6223 = vunpack.c.l.b16 %v6156
  %v6224 = vunpack.c.h.b16 %v6156
  %v6225 = vunpack.c.l.b16 %v6157
  %v6226 = vunpack.c.h.b16 %v6157
  %v6227 = vunpack.c.l.b16 %v6158
  %v6228 = vunpack.c.h.b16 %v6158
  %v6229 = vunpack.c.l.b16 %v6159
  %v6230 = vunpack.c.h.b16 %v6159
  %v6231 = vunpack.c.l.b16 %v6160
  %v6232 = vunpack.c.h.b16 %v6160
  %v6233 = vunpack.c.l.b16 %v6161
  %v6234 = vunpack.c.h.b16 %v6161
  %v6235 = vunpack.c.l.b16 %v6162
  %v6236 = vunpack.c.h.b16 %v6162
  %v6237 = vunpack.c.l.b16 %v6163
  %v6238 = vunpack.c.h.b16 %v6163
  %v6239 = vunpack.c.l.b16 %v6164
  %v6240 = vunpack.c.h.b16 %v6164
  %v6241 = vunpack.c.l.b16 %v6165
  %v6242 = vunpack.c.h.b16 %v6165
  %v6243 = vunpack.c.l.b16 %v6166
  %v6244 = vunpack.c.h.b16 %v6166
  %v6245 = vunpack.c.l.b16 %v6167
  %v6246 = vunpack.c.h.b16 %v6167
  %v6247 = vunpack.c.l.b16 %v6168
  %v6248 = vunpack.c.h.b16 %v6168
  %v6249 = vunpack.c.l.b16 %v6169
  %v6250 = vunpack.c.h.b16 %v6169
  %v6251 = vunpack.c.l.b16 %v6170
  %v6252 = vunpack.c.h.b16 %v6170
  %v6253 = vunpack.c.l.b16 %v6171
  %v6254 = vunpack.c.h.b16 %v6171
  %v6255 = vunpack.c.l.b16 %v6172
  %v6256 = vunpack.c.h.b16 %v6172
  %v6257 = vunpack.c.l.b16 %v6173
  %v6258 = vunpack.c.h.b16 %v6173
  %v6259 = vunpack.c.l.b16 %v6174
  %v6260 = vunpack.c.h.b16 %v6174
  %v6261 = vunpack.c.l.b16 %v6175
  %v6262 = vunpack.c.h.b16 %v6175
  %v6263 = vunpack.c.l.b16 %v6176
  %v6264 = vunpack.c.h.b16 %v6176
  %v6265 = vunpack.c.l.b16 %v6177
  %v6266 = vunpack.c.h.b16 %v6177
  %v6267 = vunpack.c.l.b16 %v6178
  %v6268 = vunpack.c.h.b16 %v6178
  %v6269 = vunpack.c.l.b16 %v6179
  %v6270 = vunpack.c.h.b16 %v6179
  %v6271 = vunpack.c.l.b16 %v6180
  %v6272 = vunpack.c.h.b16 %v6180
  %v6273 = vunpack.c.l.b16 %v6181
  %v6274 = vunpack.c.h.b16 %v6181
  %v6275 = vunpack.c.l.b16 %v6182
  %v6276 = vunpack.c.h.b16 %v6182
  %v6277 = vunpack.c.l.b16 %v6183
  %v6278 = vunpack.c.h.b16 %v6183
  %v6279 = vunpack.c.l.b16 %v6184
  %v6280 = vunpack.c.h.b16 %v6184
  %v6281 = vpack.c.b16 %v6221, %v6217
  %v6282 = vpack.c.b16 %v6222, %v6218
  %v6283 = vpack.c.b16 %v6223, %v6219
  %v6284 = vpack.c.b16 %v6224, %v6220
  %v6285 = vpack.c.b16 %v6229, %v6225
  %v6286 = vpack.c.b16 %v6230, %v6226
  %v6287 = vpack.c.b16 %v6231, %v6227
  %v6288 = vpack.c.b16 %v6232, %v6228
  %v6289 = vpack.c.b16 %v6237, %v6233
  %v6290 = vpack.c.b16 %v6238, %v6234
  %v6291 = vpack.c.b16 %v6239, %v6235
  %v6292 = vpack.c.b16 %v6240, %v6236
  %v6293 = vpack.c.b16 %v6245, %v6241
  %v6294 = vpack.c.b16 %v6246, %v6242
  %v6295 = vpack.c.b16 %v6247, %v6243
  %v6296 = vpack.c.b16 %v6248, %v6244
  %v6297 = vpack.c.b16 %v6253, %v6249
  %v6298 = vpack.c.b16 %v6254, %v6250
  %v6299 = vpack.c.b16 %v6255, %v6251
  %v6300 = vpack.c.b16 %v6256, %v6252
  %v6301 = vpack.c.b16 %v6261, %v6257
  %v6302 = vpack.c.b16 %v6262, %v6258
  %v6303 = vpack.c.b16 %v6263, %v6259
  %v6304 = vpack.c.b16 %v6264, %v6260
  %v6305 = vpack.c.b16 %v6269, %v6265
  %v6306 = vpack.c.b16 %v6270, %v6266
  %v6307 = vpack.c.b16 %v6271, %v6267
  %v6308 = vpack.c.b16 %v6272, %v6268
  %v6309 = vpack.c.b16 %v6277, %v6273
  %v6310 = vpack.c.b16 %v6278, %v6274
  %v6311 = vpack.c.b16 %v6279, %v6275
  %v6312 = vpack.c.b16 %v6280, %v6276
  %6345 = vmatprep.subr.bf16.mxu0 %v6282
  %6346 = vmatpush1.bf16.msra.mxu0 %v6281
  %6347 = vmatprep.subr.bf16.mxu0 %v6286
  %6348 = vmatpush1.bf16.msra.mxu0 %v6285
  %6349 = vmatprep.subr.bf16.mxu0 %v6290
  %6350 = vmatpush1.bf16.msra.mxu0 %v6289
  %6351 = vmatprep.subr.bf16.mxu0 %v6294
  %6352 = vmatpush1.bf16.msra.mxu0 %v6293
  %6353 = vmatprep.subr.bf16.mxu0 %v6298
  %6354 = vmatpush1.bf16.msra.mxu0 %v6297
  %6355 = vmatprep.subr.bf16.mxu0 %v6302
  %6356 = vmatpush1.bf16.msra.mxu0 %v6301
  %6357 = vmatprep.subr.bf16.mxu0 %v6306
  %6358 = vmatpush1.bf16.msra.mxu0 %v6305
  %6359 = vmatprep.subr.bf16.mxu0 %v6310
  %6360 = vmatpush1.bf16.msra.mxu0 %v6309
  %6361 = vmatprep.subr.bf16.mxu0 0
  %6362 = vmatpush1.bf16.msra.mxu0 0
  %6363 = vmatprep.subr.bf16.mxu0 0
  %6364 = vmatpush1.bf16.msra.mxu0 0
  %6365 = vmatprep.subr.bf16.mxu0 0
  %6366 = vmatpush1.bf16.msra.mxu0 0
  %6367 = vmatprep.subr.bf16.mxu0 0
  %6368 = vmatpush1.bf16.msra.mxu0 0
  %6369 = vmatprep.subr.bf16.mxu0 0
  %6370 = vmatpush1.bf16.msra.mxu0 0
  %6371 = vmatprep.subr.bf16.mxu0 0
  %6372 = vmatpush1.bf16.msra.mxu0 0
  %6373 = vmatprep.subr.bf16.mxu0 0
  %6374 = vmatpush1.bf16.msra.mxu0 0
  %6375 = vmatprep.subr.bf16.mxu0 0
  %6376 = vmatpush1.bf16.msra.mxu0 0
  %6377 = vmatprep.mubr.bf16.mxu0 0
  %6378 = vmatmul.mubr.bf16.gmra.mrb[0].mxu0 %v6152
  %v6379 = vpop.f32.mrb[0].mxu0
  %v6380 = vadd.f32 0.0, %v6379
  %v6381 = vpop.f32.mrb[0].mxu0
  %v6382 = vadd.f32 0.0, %v6381
  %v6383 = vpop.f32.mrb[0].mxu0
  %v6384 = vadd.f32 0.0, %v6383
  %v6385 = vpop.f32.mrb[0].mxu0
  %v6386 = vadd.f32 0.0, %v6385
  %6387 = vdwg.mxu0
  %6388 = vmatprep.subr.bf16.mxu0 %v6284
  %6389 = vmatpush1.bf16.msra.mxu0 %v6283
  %6390 = vmatprep.subr.bf16.mxu0 %v6288
  %6391 = vmatpush1.bf16.msra.mxu0 %v6287
  %6392 = vmatprep.subr.bf16.mxu0 %v6292
  %6393 = vmatpush1.bf16.msra.mxu0 %v6291
  %6394 = vmatprep.subr.bf16.mxu0 %v6296
  %6395 = vmatpush1.bf16.msra.mxu0 %v6295
  %6396 = vmatprep.subr.bf16.mxu0 %v6300
  %6397 = vmatpush1.bf16.msra.mxu0 %v6299
  %6398 = vmatprep.subr.bf16.mxu0 %v6304
  %6399 = vmatpush1.bf16.msra.mxu0 %v6303
  %6400 = vmatprep.subr.bf16.mxu0 %v6308
  %6401 = vmatpush1.bf16.msra.mxu0 %v6307
  %6402 = vmatprep.subr.bf16.mxu0 %v6312
  %6403 = vmatpush1.bf16.msra.mxu0 %v6311
  %6404 = vmatprep.subr.bf16.mxu0 0
  %6405 = vmatpush1.bf16.msra.mxu0 0
  %6406 = vmatprep.subr.bf16.mxu0 0
  %6407 = vmatpush1.bf16.msra.mxu0 0
  %6408 = vmatprep.subr.bf16.mxu0 0
  %6409 = vmatpush1.bf16.msra.mxu0 0
  %6410 = vmatprep.subr.bf16.mxu0 0
  %6411 = vmatpush1.bf16.msra.mxu0 0
  %6412 = vmatprep.subr.bf16.mxu0 0
  %6413 = vmatpush1.bf16.msra.mxu0 0
  %6414 = vmatprep.subr.bf16.mxu0 0
  %6415 = vmatpush1.bf16.msra.mxu0 0
  %6416 = vmatprep.subr.bf16.mxu0 0
  %6417 = vmatpush1.bf16.msra.mxu0 0
  %6418 = vmatprep.subr.bf16.mxu0 0
  %6419 = vmatpush1.bf16.msra.mxu0 0
  %6420 = vmatprep.mubr.bf16.mxu0 0
  %6421 = vmatmul.mubr.bf16.gmra.mrb[0].mxu0 %v6152
  %v6422 = vpop.f32.mrb[0].mxu0
  %v6423 = vadd.f32 0.0, %v6422
  %v6424 = vpop.f32.mrb[0].mxu0
  %v6425 = vadd.f32 0.0, %v6424
  %v6426 = vpop.f32.mrb[0].mxu0
  %v6427 = vadd.f32 0.0, %v6426
  %v6428 = vpop.f32.mrb[0].mxu0
  %v6429 = vadd.f32 0.0, %v6428
  %6430 = vdwg.mxu0
  %v6431 = vadd.f32 %v6142, %v6380
  %v6432 = vadd.f32 %v6143, %v6382
  %v6433 = vadd.f32 %v6144, %v6423
  %v6434 = vadd.f32 %v6145, %v6425
  %v6435 = vadd.f32 %v6146, %v6384
  %v6436 = vadd.f32 %v6147, %v6386
  %v6437 = vadd.f32 %v6148, %v6427
  %v6438 = vadd.f32 %v6149, %v6429
  %v6439 = vxor.u32 %v6431, 2147483648
  %v6440 = vxor.u32 %v6432, 2147483648
  %v6441 = vxor.u32 %v6433, 2147483648
  %v6442 = vxor.u32 %v6435, 2147483648
  %v6443 = vxor.u32 %v6436, 2147483648
  %v6444 = vxor.u32 %v6437, 2147483648
  %v6445 = vmul.f32 %v6439, 1.442695
  %v6446 = vpow.pop %v6445
  %v6447 = vmul.f32 %v6440, 1.442695
  %v6448 = vpow.pop %v6447
  %v6449 = vmul.f32 %v6441, 1.442695
  %v6450 = vpow.pop %v6449
  %v6451 = vmul.f32 %v6442, 1.442695
  %v6452 = vpow.pop %v6451
  %v6453 = vmul.f32 %v6443, 1.442695
  %v6454 = vpow.pop %v6453
  %v6455 = vmul.f32 %v6444, 1.442695
  %v6456 = vpow.pop %v6455
  %v6457 = vadd.f32 %v6446, 1.0
  %v6458 = vadd.f32 %v6448, 1.0
  %v6459 = vadd.f32 %v6450, 1.0
  %v6460 = vadd.f32 %v6452, 1.0
  %v6461 = vadd.f32 %v6454, 1.0
  %v6462 = vadd.f32 %v6456, 1.0
  %v6463 = vrcp.pop %v6457
  %v6464 = vmul.f32 1.0, %v6463
  %v6465 = vrcp.pop %v6458
  %v6466 = vmul.f32 1.0, %v6465
  %v6467 = vrcp.pop %v6459
  %v6468 = vmul.f32 1.0, %v6467
  %v6469 = vrcp.pop %v6460
  %v6470 = vmul.f32 1.0, %v6469
  %v6471 = vrcp.pop %v6461
  %v6472 = vmul.f32 1.0, %v6471
  %v6473 = vrcp.pop %v6462
  %v6474 = vmul.f32 1.0, %v6473
  %v6475 = vtanh.pop %v6434
  %v6476 = vtanh.pop %v6438
  %v6477 = vld [vmem:[#allocation5] sm:$0xff]
  %v6478 = vld [vmem:[#allocation5 + $0x8] sm:$0xff]
  %v6479 = vmul.f32 %v6466, %v6477
  %v6480 = vmul.f32 %v6472, %v6478
  %v6481 = vmul.f32 %v6464, %v6475
  %v6482 = vmul.f32 %v6470, %v6476
  %v6483 = vadd.f32 %v6479, %v6481
  %v6484 = vadd.f32 %v6480, %v6482
  %v6485 = vtanh.pop %v6483
  %v6486 = vtanh.pop %v6484
  %v6487 = vmul.f32 %v6468, %v6485
  %v6488 = vmul.f32 %v6474, %v6486
  %6489 = vst [vmem:[#allocation5] sm:$0xff] %v6483
  %6490 = vst [vmem:[#allocation5 + $0x8] sm:$0xff] %v6484
  %6491 = vst [vmem:[#allocation4] sm:$0xff] %v6487
  %6492 = vst [vmem:[#allocation4 + $0x8] sm:$0xff] %v6488
  %v6493 = vld [vmem:[%s3133] sm:$0xff]
  %v6494 = vld [vmem:[%s3133 + $0x8] sm:$0xff]
  %v6495 = vld [vmem:[%s3133 + $0x10] sm:$0xff]
  %v6496 = vld [vmem:[%s3133 + $0x18] sm:$0xff]
  %v6497 = vunpack.c.l.bf16 %v6493
  %v6498 = vunpack.c.l.bf16 %v6494
  %v6499 = vunpack.c.l.bf16 %v6495
  %v6500 = vunpack.c.l.bf16 %v6496
  %v6501 = vunpack.c.h.bf16 %v6493
  %v6502 = vunpack.c.h.bf16 %v6494
  %v6503 = vunpack.c.h.bf16 %v6495
  %v6504 = vunpack.c.h.bf16 %v6496
  %v6505 = vld [vmem:[#allocation4] sm:$0xff]
  %v6506 = vld [vmem:[#allocation4 + $0x8] sm:$0xff]
  %v6507 = vpack.c.bf16 %v6506, %v6505
  %v6508 = vld [vmem:[%s5] sm:$0xff]
  %v6509 = vld [vmem:[%s5 + $0x8] sm:$0xff]
  %v6510 = vld [vmem:[%s5 + $0x10] sm:$0xff]
  %v6511 = vld [vmem:[%s5 + $0x18] sm:$0xff]
  %v6512 = vld [vmem:[%s5 + $0x20] sm:$0xff]
  %v6513 = vld [vmem:[%s5 + $0x28] sm:$0xff]
  %v6514 = vld [vmem:[%s5 + $0x30] sm:$0xff]
  %v6515 = vld [vmem:[%s5 + $0x38] sm:$0xff]
  %v6516 = vld [vmem:[%s5 + $0x40] sm:$0xff]
  %v6517 = vld [vmem:[%s5 + $0x48] sm:$0xff]
  %v6518 = vld [vmem:[%s5 + $0x50] sm:$0xff]
  %v6519 = vld [vmem:[%s5 + $0x58] sm:$0xff]
  %v6520 = vld [vmem:[%s5 + $0x60] sm:$0xff]
  %v6521 = vld [vmem:[%s5 + $0x68] sm:$0xff]
  %v6522 = vld [vmem:[%s5 + $0x70] sm:$0xff]
  %v6523 = vld [vmem:[%s5 + $0x78] sm:$0xff]
  %v6524 = vld [vmem:[%s5 + $0x80] sm:$0xff]
  %v6525 = vld [vmem:[%s5 + $0x88] sm:$0xff]
  %v6526 = vld [vmem:[%s5 + $0x90] sm:$0xff]
  %v6527 = vld [vmem:[%s5 + $0x98] sm:$0xff]
  %v6528 = vld [vmem:[%s5 + $0xa0] sm:$0xff]
  %v6529 = vld [vmem:[%s5 + $0xa8] sm:$0xff]
  %v6530 = vld [vmem:[%s5 + $0xb0] sm:$0xff]
  %v6531 = vld [vmem:[%s5 + $0xb8] sm:$0xff]
  %v6532 = vld [vmem:[%s5 + $0xc0] sm:$0xff]
  %v6533 = vld [vmem:[%s5 + $0xc8] sm:$0xff]
  %v6534 = vld [vmem:[%s5 + $0xd0] sm:$0xff]
  %v6535 = vld [vmem:[%s5 + $0xd8] sm:$0xff]
  %v6536 = vld [vmem:[%s5 + $0xe0] sm:$0xff]
  %v6537 = vld [vmem:[%s5 + $0xe8] sm:$0xff]
  %v6538 = vld [vmem:[%s5 + $0xf0] sm:$0xff]
  %v6539 = vld [vmem:[%s5 + $0xf8] sm:$0xff]
  %v6572 = vunpack.c.l.b16 %v6508
  %v6573 = vunpack.c.h.b16 %v6508
  %v6574 = vunpack.c.l.b16 %v6509
  %v6575 = vunpack.c.h.b16 %v6509
  %v6576 = vunpack.c.l.b16 %v6510
  %v6577 = vunpack.c.h.b16 %v6510
  %v6578 = vunpack.c.l.b16 %v6511
  %v6579 = vunpack.c.h.b16 %v6511
  %v6580 = vunpack.c.l.b16 %v6512
  %v6581 = vunpack.c.h.b16 %v6512
  %v6582 = vunpack.c.l.b16 %v6513
  %v6583 = vunpack.c.h.b16 %v6513
  %v6584 = vunpack.c.l.b16 %v6514
  %v6585 = vunpack.c.h.b16 %v6514
  %v6586 = vunpack.c.l.b16 %v6515
  %v6587 = vunpack.c.h.b16 %v6515
  %v6588 = vunpack.c.l.b16 %v6516
  %v6589 = vunpack.c.h.b16 %v6516
  %v6590 = vunpack.c.l.b16 %v6517
  %v6591 = vunpack.c.h.b16 %v6517
  %v6592 = vunpack.c.l.b16 %v6518
  %v6593 = vunpack.c.h.b16 %v6518
  %v6594 = vunpack.c.l.b16 %v6519
  %v6595 = vunpack.c.h.b16 %v6519
  %v6596 = vunpack.c.l.b16 %v6520
  %v6597 = vunpack.c.h.b16 %v6520
  %v6598 = vunpack.c.l.b16 %v6521
  %v6599 = vunpack.c.h.b16 %v6521
  %v6600 = vunpack.c.l.b16 %v6522
  %v6601 = vunpack.c.h.b16 %v6522
  %v6602 = vunpack.c.l.b16 %v6523
  %v6603 = vunpack.c.h.b16 %v6523
  %v6604 = vunpack.c.l.b16 %v6524
  %v6605 = vunpack.c.h.b16 %v6524
  %v6606 = vunpack.c.l.b16 %v6525
  %v6607 = vunpack.c.h.b16 %v6525
  %v6608 = vunpack.c.l.b16 %v6526
  %v6609 = vunpack.c.h.b16 %v6526
  %v6610 = vunpack.c.l.b16 %v6527
  %v6611 = vunpack.c.h.b16 %v6527
  %v6612 = vunpack.c.l.b16 %v6528
  %v6613 = vunpack.c.h.b16 %v6528
  %v6614 = vunpack.c.l.b16 %v6529
  %v6615 = vunpack.c.h.b16 %v6529
  %v6616 = vunpack.c.l.b16 %v6530
  %v6617 = vunpack.c.h.b16 %v6530
  %v6618 = vunpack.c.l.b16 %v6531
  %v6619 = vunpack.c.h.b16 %v6531
  %v6620 = vunpack.c.l.b16 %v6532
  %v6621 = vunpack.c.h.b16 %v6532
  %v6622 = vunpack.c.l.b16 %v6533
  %v6623 = vunpack.c.h.b16 %v6533
  %v6624 = vunpack.c.l.b16 %v6534
  %v6625 = vunpack.c.h.b16 %v6534
  %v6626 = vunpack.c.l.b16 %v6535
  %v6627 = vunpack.c.h.b16 %v6535
  %v6628 = vunpack.c.l.b16 %v6536
  %v6629 = vunpack.c.h.b16 %v6536
  %v6630 = vunpack.c.l.b16 %v6537
  %v6631 = vunpack.c.h.b16 %v6537
  %v6632 = vunpack.c.l.b16 %v6538
  %v6633 = vunpack.c.h.b16 %v6538
  %v6634 = vunpack.c.l.b16 %v6539
  %v6635 = vunpack.c.h.b16 %v6539
  %v6636 = vpack.c.b16 %v6576, %v6572
  %v6637 = vpack.c.b16 %v6577, %v6573
  %v6638 = vpack.c.b16 %v6578, %v6574
  %v6639 = vpack.c.b16 %v6579, %v6575
  %v6640 = vpack.c.b16 %v6584, %v6580
  %v6641 = vpack.c.b16 %v6585, %v6581
  %v6642 = vpack.c.b16 %v6586, %v6582
  %v6643 = vpack.c.b16 %v6587, %v6583
  %v6644 = vpack.c.b16 %v6592, %v6588
  %v6645 = vpack.c.b16 %v6593, %v6589
  %v6646 = vpack.c.b16 %v6594, %v6590
  %v6647 = vpack.c.b16 %v6595, %v6591
  %v6648 = vpack.c.b16 %v6600, %v6596
  %v6649 = vpack.c.b16 %v6601, %v6597
  %v6650 = vpack.c.b16 %v6602, %v6598
  %v6651 = vpack.c.b16 %v6603, %v6599
  %v6652 = vpack.c.b16 %v6608, %v6604
  %v6653 = vpack.c.b16 %v6609, %v6605
  %v6654 = vpack.c.b16 %v6610, %v6606
  %v6655 = vpack.c.b16 %v6611, %v6607
  %v6656 = vpack.c.b16 %v6616, %v6612
  %v6657 = vpack.c.b16 %v6617, %v6613
  %v6658 = vpack.c.b16 %v6618, %v6614
  %v6659 = vpack.c.b16 %v6619, %v6615
  %v6660 = vpack.c.b16 %v6624, %v6620
  %v6661 = vpack.c.b16 %v6625, %v6621
  %v6662 = vpack.c.b16 %v6626, %v6622
  %v6663 = vpack.c.b16 %v6627, %v6623
  %v6664 = vpack.c.b16 %v6632, %v6628
  %v6665 = vpack.c.b16 %v6633, %v6629
  %v6666 = vpack.c.b16 %v6634, %v6630
  %v6667 = vpack.c.b16 %v6635, %v6631
  %6700 = vmatprep.subr.bf16.mxu0 %v6637
  %6701 = vmatpush1.bf16.msra.mxu0 %v6636
  %6702 = vmatprep.subr.bf16.mxu0 %v6641
  %6703 = vmatpush1.bf16.msra.mxu0 %v6640
  %6704 = vmatprep.subr.bf16.mxu0 %v6645
  %6705 = vmatpush1.bf16.msra.mxu0 %v6644
  %6706 = vmatprep.subr.bf16.mxu0 %v6649
  %6707 = vmatpush1.bf16.msra.mxu0 %v6648
  %6708 = vmatprep.subr.bf16.mxu0 %v6653
  %6709 = vmatpush1.bf16.msra.mxu0 %v6652
  %6710 = vmatprep.subr.bf16.mxu0 %v6657
  %6711 = vmatpush1.bf16.msra.mxu0 %v6656
  %6712 = vmatprep.subr.bf16.mxu0 %v6661
  %6713 = vmatpush1.bf16.msra.mxu0 %v6660
  %6714 = vmatprep.subr.bf16.mxu0 %v6665
  %6715 = vmatpush1.bf16.msra.mxu0 %v6664
  %6716 = vmatprep.subr.bf16.mxu0 0
  %6717 = vmatpush1.bf16.msra.mxu0 0
  %6718 = vmatprep.subr.bf16.mxu0 0
  %6719 = vmatpush1.bf16.msra.mxu0 0
  %6720 = vmatprep.subr.bf16.mxu0 0
  %6721 = vmatpush1.bf16.msra.mxu0 0
  %6722 = vmatprep.subr.bf16.mxu0 0
  %6723 = vmatpush1.bf16.msra.mxu0 0
  %6724 = vmatprep.subr.bf16.mxu0 0
  %6725 = vmatpush1.bf16.msra.mxu0 0
  %6726 = vmatprep.subr.bf16.mxu0 0
  %6727 = vmatpush1.bf16.msra.mxu0 0
  %6728 = vmatprep.subr.bf16.mxu0 0
  %6729 = vmatpush1.bf16.msra.mxu0 0
  %6730 = vmatprep.subr.bf16.mxu0 0
  %6731 = vmatpush1.bf16.msra.mxu0 0
  %6732 = vmatprep.mubr.bf16.mxu0 0
  %6733 = vmatmul.mubr.bf16.gmra.mrb[0].mxu0 %v6507
  %v6734 = vpop.f32.mrb[0].mxu0
  %v6735 = vadd.f32 0.0, %v6734
  %v6736 = vpop.f32.mrb[0].mxu0
  %v6737 = vadd.f32 0.0, %v6736
  %v6738 = vpop.f32.mrb[0].mxu0
  %v6739 = vadd.f32 0.0, %v6738
  %v6740 = vpop.f32.mrb[0].mxu0
  %v6741 = vadd.f32 0.0, %v6740
  %6742 = vdwg.mxu0
  %6743 = vmatprep.subr.bf16.mxu0 %v6639
  %6744 = vmatpush1.bf16.msra.mxu0 %v6638
  %6745 = vmatprep.subr.bf16.mxu0 %v6643
  %6746 = vmatpush1.bf16.msra.mxu0 %v6642
  %6747 = vmatprep.subr.bf16.mxu0 %v6647
  %6748 = vmatpush1.bf16.msra.mxu0 %v6646
  %6749 = vmatprep.subr.bf16.mxu0 %v6651
  %6750 = vmatpush1.bf16.msra.mxu0 %v6650
  %6751 = vmatprep.subr.bf16.mxu0 %v6655
  %6752 = vmatpush1.bf16.msra.mxu0 %v6654
  %6753 = vmatprep.subr.bf16.mxu0 %v6659
  %6754 = vmatpush1.bf16.msra.mxu0 %v6658
  %6755 = vmatprep.subr.bf16.mxu0 %v6663
  %6756 = vmatpush1.bf16.msra.mxu0 %v6662
  %6757 = vmatprep.subr.bf16.mxu0 %v6667
  %6758 = vmatpush1.bf16.msra.mxu0 %v6666
  %6759 = vmatprep.subr.bf16.mxu0 0
  %6760 = vmatpush1.bf16.msra.mxu0 0
  %6761 = vmatprep.subr.bf16.mxu0 0
  %6762 = vmatpush1.bf16.msra.mxu0 0
  %6763 = vmatprep.subr.bf16.mxu0 0
  %6764 = vmatpush1.bf16.msra.mxu0 0
  %6765 = vmatprep.subr.bf16.mxu0 0
  %6766 = vmatpush1.bf16.msra.mxu0 0
  %6767 = vmatprep.subr.bf16.mxu0 0
  %6768 = vmatpush1.bf16.msra.mxu0 0
  %6769 = vmatprep.subr.bf16.mxu0 0
  %6770 = vmatpush1.bf16.msra.mxu0 0
  %6771 = vmatprep.subr.bf16.mxu0 0
  %6772 = vmatpush1.bf16.msra.mxu0 0
  %6773 = vmatprep.subr.bf16.mxu0 0
  %6774 = vmatpush1.bf16.msra.mxu0 0
  %6775 = vmatprep.mubr.bf16.mxu0 0
  %6776 = vmatmul.mubr.bf16.gmra.mrb[0].mxu0 %v6507
  %v6777 = vpop.f32.mrb[0].mxu0
  %v6778 = vadd.f32 0.0, %v6777
  %v6779 = vpop.f32.mrb[0].mxu0
  %v6780 = vadd.f32 0.0, %v6779
  %v6781 = vpop.f32.mrb[0].mxu0
  %v6782 = vadd.f32 0.0, %v6781
  %v6783 = vpop.f32.mrb[0].mxu0
  %v6784 = vadd.f32 0.0, %v6783
  %6785 = vdwg.mxu0
  %v6786 = vadd.f32 %v6497, %v6735
  %v6787 = vadd.f32 %v6498, %v6737
  %v6788 = vadd.f32 %v6499, %v6778
  %v6789 = vadd.f32 %v6500, %v6780
  %v6790 = vadd.f32 %v6501, %v6739
  %v6791 = vadd.f32 %v6502, %v6741
  %v6792 = vadd.f32 %v6503, %v6782
  %v6793 = vadd.f32 %v6504, %v6784
  %v6794 = vxor.u32 %v6786, 2147483648
  %v6795 = vxor.u32 %v6787, 2147483648
  %v6796 = vxor.u32 %v6788, 2147483648
  %v6797 = vxor.u32 %v6790, 2147483648
  %v6798 = vxor.u32 %v6791, 2147483648
  %v6799 = vxor.u32 %v6792, 2147483648
  %v6800 = vmul.f32 %v6794, 1.442695
  %v6801 = vpow.pop %v6800
  %v6802 = vmul.f32 %v6795, 1.442695
  %v6803 = vpow.pop %v6802
  %v6804 = vmul.f32 %v6796, 1.442695
  %v6805 = vpow.pop %v6804
  %v6806 = vmul.f32 %v6797, 1.442695
  %v6807 = vpow.pop %v6806
  %v6808 = vmul.f32 %v6798, 1.442695
  %v6809 = vpow.pop %v6808
  %v6810 = vmul.f32 %v6799, 1.442695
  %v6811 = vpow.pop %v6810
  %v6812 = vadd.f32 %v6801, 1.0
  %v6813 = vadd.f32 %v6803, 1.0
  %v6814 = vadd.f32 %v6805, 1.0
  %v6815 = vadd.f32 %v6807, 1.0
  %v6816 = vadd.f32 %v6809, 1.0
  %v6817 = vadd.f32 %v6811, 1.0
  %v6818 = vrcp.pop %v6812
  %v6819 = vmul.f32 1.0, %v6818
  %v6820 = vrcp.pop %v6813
  %v6821 = vmul.f32 1.0, %v6820
  %v6822 = vrcp.pop %v6814
  %v6823 = vmul.f32 1.0, %v6822
  %v6824 = vrcp.pop %v6815
  %v6825 = vmul.f32 1.0, %v6824
  %v6826 = vrcp.pop %v6816
  %v6827 = vmul.f32 1.0, %v6826
  %v6828 = vrcp.pop %v6817
  %v6829 = vmul.f32 1.0, %v6828
  %v6830 = vtanh.pop %v6789
  %v6831 = vtanh.pop %v6793
  %v6832 = vld [vmem:[#allocation5] sm:$0xff]
  %v6833 = vld [vmem:[#allocation5 + $0x8] sm:$0xff]
  %v6834 = vmul.f32 %v6821, %v6832
  %v6835 = vmul.f32 %v6827, %v6833
  %v6836 = vmul.f32 %v6819, %v6830
  %v6837 = vmul.f32 %v6825, %v6831
  %v6838 = vadd.f32 %v6834, %v6836
  %v6839 = vadd.f32 %v6835, %v6837
  %v6840 = vtanh.pop %v6838
  %v6841 = vtanh.pop %v6839
  %v6842 = vmul.f32 %v6823, %v6840
  %v6843 = vmul.f32 %v6829, %v6841
  %6844 = vst [vmem:[#allocation5] sm:$0xff] %v6838
  %6845 = vst [vmem:[#allocation5 + $0x8] sm:$0xff] %v6839
  %6846 = vst [vmem:[#allocation4] sm:$0xff] %v6842
  %6847 = vst [vmem:[#allocation4 + $0x8] sm:$0xff] %v6843
  %v6848 = vld [vmem:[#allocation4] sm:$0xff]
  %v6849 = vld [vmem:[#allocation4 + $0x8] sm:$0xff]
  %v6850 = vpack.c.bf16 %v6849, %v6848
  %v6851 = vld [vmem:[%s7] sm:$0xf]
  %v6852 = vld [vmem:[%s7 + $0x4] sm:$0xf]
  %v6853 = vld [vmem:[%s7 + $0x8] sm:$0xf]
  %v6854 = vld [vmem:[%s7 + $0xc] sm:$0xf]
  %v6855 = vld [vmem:[%s7 + $0x10] sm:$0xf]
  %v6856 = vld [vmem:[%s7 + $0x14] sm:$0xf]
  %v6857 = vld [vmem:[%s7 + $0x18] sm:$0xf]
  %v6858 = vld [vmem:[%s7 + $0x1c] sm:$0xf]
  %v6859 = vld [vmem:[%s7 + $0x20] sm:$0xf]
  %v6860 = vld [vmem:[%s7 + $0x24] sm:$0xf]
  %v6861 = vld [vmem:[%s7 + $0x28] sm:$0xf]
  %v6862 = vld [vmem:[%s7 + $0x2c] sm:$0xf]
  %v6863 = vld [vmem:[%s7 + $0x30] sm:$0xf]
  %v6864 = vld [vmem:[%s7 + $0x34] sm:$0xf]
  %v6865 = vld [vmem:[%s7 + $0x38] sm:$0xf]
  %v6866 = vld [vmem:[%s7 + $0x3c] sm:$0xf]
  %v6867 = vld [vmem:[%s8] sm:$0x1]
  %v6869 = vlaneseq
  %v6870 = vshrl.u32 %v6869, 7
  %v6871 = vsub.s32 0, %v6870
  %v6872 = vrot.slane %v6867, %v6871
  %v6890 = vunpack.c.l.b16 %v6851
  %v6891 = vunpack.c.l.b16 %v6852
  %v6892 = vunpack.c.l.b16 %v6853
  %v6893 = vunpack.c.l.b16 %v6854
  %v6894 = vunpack.c.l.b16 %v6855
  %v6895 = vunpack.c.l.b16 %v6856
  %v6896 = vunpack.c.l.b16 %v6857
  %v6897 = vunpack.c.l.b16 %v6858
  %v6898 = vunpack.c.l.b16 %v6859
  %v6899 = vunpack.c.l.b16 %v6860
  %v6900 = vunpack.c.l.b16 %v6861
  %v6901 = vunpack.c.l.b16 %v6862
  %v6902 = vunpack.c.l.b16 %v6863
  %v6903 = vunpack.c.l.b16 %v6864
  %v6904 = vunpack.c.l.b16 %v6865
  %v6905 = vunpack.c.l.b16 %v6866
  %v6906 = vpack.c.b16 %v6891, %v6890
  %v6907 = vpack.c.b16 %v6893, %v6892
  %v6908 = vpack.c.b16 %v6895, %v6894
  %v6909 = vpack.c.b16 %v6897, %v6896
  %v6910 = vpack.c.b16 %v6899, %v6898
  %v6911 = vpack.c.b16 %v6901, %v6900
  %v6912 = vpack.c.b16 %v6903, %v6902
  %v6913 = vpack.c.b16 %v6905, %v6904
  %6922 = vmatprep.subr.bf16.mxu0 0
  %6923 = vmatpush1.bf16.msra.mxu0 %v6906
  %6924 = vmatprep.subr.bf16.mxu0 0
  %6925 = vmatpush1.bf16.msra.mxu0 %v6907
  %6926 = vmatprep.subr.bf16.mxu0 0
  %6927 = vmatpush1.bf16.msra.mxu0 %v6908
  %6928 = vmatprep.subr.bf16.mxu0 0
  %6929 = vmatpush1.bf16.msra.mxu0 %v6909
  %6930 = vmatprep.subr.bf16.mxu0 0
  %6931 = vmatpush1.bf16.msra.mxu0 %v6910
  %6932 = vmatprep.subr.bf16.mxu0 0
  %6933 = vmatpush1.bf16.msra.mxu0 %v6911
  %6934 = vmatprep.subr.bf16.mxu0 0
  %6935 = vmatpush1.bf16.msra.mxu0 %v6912
  %6936 = vmatprep.subr.bf16.mxu0 0
  %6937 = vmatpush1.bf16.msra.mxu0 %v6913
  %6938 = vmatprep.subr.bf16.mxu0 0
  %6939 = vmatpush1.bf16.msra.mxu0 0
  %6940 = vmatprep.subr.bf16.mxu0 0
  %6941 = vmatpush1.bf16.msra.mxu0 0
  %6942 = vmatprep.subr.bf16.mxu0 0
  %6943 = vmatpush1.bf16.msra.mxu0 0
  %6944 = vmatprep.subr.bf16.mxu0 0
  %6945 = vmatpush1.bf16.msra.mxu0 0
  %6946 = vmatprep.subr.bf16.mxu0 0
  %6947 = vmatpush1.bf16.msra.mxu0 0
  %6948 = vmatprep.subr.bf16.mxu0 0
  %6949 = vmatpush1.bf16.msra.mxu0 0
  %6950 = vmatprep.subr.bf16.mxu0 0
  %6951 = vmatpush1.bf16.msra.mxu0 0
  %6952 = vmatprep.subr.bf16.mxu0 0
  %6953 = vmatpush1.bf16.msra.mxu0 0
  %6954 = vmatprep.mubr.bf16.mxu0 0
  %6955 = vmatmul.mubr.bf16.gmra.mrb[0].mxu0 %v6850
  %v6956 = vpop.f32.mrb[0].mxu0
  %v6957 = vadd.f32 %v6872, %v6956
  %v6958 = vpop.f32.mrb[0].mxu0
  %v6959 = vpop.f32.mrb[0].mxu0
  %v6960 = vadd.f32 %v6872, %v6959
  %v6961 = vpop.f32.mrb[0].mxu0
  %6962 = vdwg.mxu0
  %v6963 = vmax.f32 %v6957, 0.0
  %v6964 = vmax.f32 %v6960, 0.0
  %6965 = vst [vmem:[%s9] sm:$0xff] %v6963
  %6966 = vst [vmem:[%s9 + $0x8] sm:$0xff] %v6964
  // Predicated region
  $region38: #{lstm_without_projection_forward.1} parent=0 // pred_check
    _
  $region39: #{lstm_without_projection_forward.1} parent=0 // pred_check_branch
    %6968 = sbr.rel (0) target = $region41
  $region40: #{lstm_without_projection_forward.1} parent=0 // pred_region
    _
  $region41: #{lstm_without_projection_forward.1} parent=0 // pred_fallthru
    _
  // Predicated region
  $region42: #{lstm_without_projection_forward.1} parent=0 // pred_check
    _
  $region43: #{lstm_without_projection_forward.1} parent=0 // pred_check_branch
    %6970 = sbr.rel (0) target = $region45
  $region44: #{lstm_without_projection_forward.1} parent=0 // pred_region
    _
  $region45: #{lstm_without_projection_forward.1} parent=0 // pred_fallthru
    _

</llo_original>
